<compile_context>
chip_gen: v5e
topology: v5e:2x2
jax: 0.10.0
libtpu: 0.0.40
codegen_flags: <defaults>
</compile_context>

<pallas_src>
import jax
import jax.numpy as jnp
from jax import lax
from jax.experimental import pallas as pl
from jax.experimental.pallas import tpu as pltpu

# ----------------------------- small config ---------------------------------
B = 2            # batch
T_PRE = 32       # num_pre_clips
C_IN = 32        # input feature size
HIDDEN = 32      # joint feature size
POOL_STRIDE = 2  # AvgPool1d kernel == stride
N_CLIPS = T_PRE // POOL_STRIDE   # 16 clips, pooling_counts=[N-1] -> upper triangle
D_Q = 16         # query word embedding size
L_Q = 8          # max query length
H_Q = 32         # LSTM hidden size
H_PRED = 32      # predictor hidden size
K_PRED = 3       # predictor conv kernel size
NUM_STACK = 2    # predictor stack layers

# derived conv geometry (all reshaped spatial extents kept 8-sublane friendly)
PAD1 = (K_PRED - 1) * NUM_STACK // 2            # 2  (first conv padding)
S1_I = N_CLIPS + 2 * PAD1 - K_PRED + 1          # 18 (conv1 output rows, == torch)
S1_J = 24                                       # conv1 output cols padded to mult of 8
                                                # (cols >= 18 are masked to 0, never read)
XPAD_I = N_CLIPS + 2 * PAD1                     # 20 (padded conv1 input rows)
XPAD_J = S1_J + K_PRED - 1                      # 26 (padded conv1 input cols)
ROWS1 = B * S1_I * S1_J                         # 864
ROWS2 = B * N_CLIPS * N_CLIPS                   # 512


# ----------------------------------------------------------------------------
# fused TAN forward kernel
# ----------------------------------------------------------------------------
def _tan_kernel(
    feats2_ref, qseq_ref, wl_ref,
    w_pool_ref, b_pool_ref,
    w_ih_ref, w_hh_ref, b_lstm_ref, w_fc_ref, b_fc_ref,
    w_int_ref, b_int_ref,
    w1_ref, b1_ref, mw1_ref,
    w2_ref, b2_ref, mw2_ref,
    w_pred_ref, b_pred_ref, mask2d_ref,
    o_ref,
    xpad_sc,
):
    f32 = jnp.float32
    N, H = N_CLIPS, HIDDEN

    # ---- featpool: ReLU(Conv1d k=1) then AvgPool(2) ------------------------
    # Conv weight is block-diagonal over the 2 timesteps of each pool window,
    # so pooling is a lane-slice add (no pooling matmul).
    y = jnp.dot(feats2_ref[...], w_pool_ref[...], preferred_element_type=f32)
    y = jnp.maximum(y + b_pool_ref[...], 0.0)                      # (B*N, 2H)
    pooled = 0.5 * (y[:, :H] + y[:, H:])                           # (B*N, H)
    pooled = pooled.reshape(B, N, H)

    # ---- feat2d: sparse max pool via running (prefix) max over start row i --
    #   map2d[b, i, j, :] = max_{i<=t<=j} pooled[b, t, :]   (j >= i, else 0)
    # Rows are kept as values and concatenated -> no scratch round trip.
    NEG = f32(-1e30)
    j_iota = lax.broadcasted_iota(jnp.int32, (1, N, 1), 1)
    prev = jnp.full((B, N, H), NEG, dtype=f32)
    rows = [None] * N
    for i in range(N - 1, -1, -1):
        x_i = pooled[:, i:i + 1, :]                                # (B, 1, H)
        row = jnp.maximum(x_i, jnp.where(j_iota >= i + 1, prev, NEG))
        rows[i] = jnp.where(j_iota >= i, row, 0.0)[:, None]        # (B, 1, N, H)
        prev = row
    map_flat = jnp.concatenate(rows, axis=1).reshape(B * N * N, H)  # (512, 32)

    # ---- integrator (a): LSTM over query, take h[wordlen-1], Linear --------
    # Input projection hoisted out of the recurrence; gates packed [i|f|o|g]
    # so i/f/o share a single sigmoid call per step.
    zall = (jnp.dot(qseq_ref[...], w_ih_ref[...], preferred_element_type=f32)
            + b_lstm_ref[...])                                     # (L*B, 4*Hq)
    h = jnp.zeros((B, H_Q), f32)
    c = jnp.zeros((B, H_Q), f32)
    hl = jnp.zeros((B, H_Q), f32)
    last_t = wl_ref[...] - 1                                       # (B, 1), hoisted
    for t in range(L_Q):                                           # static unroll
        z = zall[t * B:(t + 1) * B, :] + jnp.dot(
            h, w_hh_ref[...], preferred_element_type=f32)          # (B, 4*Hq)
        ifo = jax.nn.sigmoid(z[:, :3 * H_Q])                       # one EUP call
        g_g = jnp.tanh(z[:, 3 * H_Q:])
        c = ifo[:, H_Q:2 * H_Q] * c + ifo[:, :H_Q] * g_g
        h = ifo[:, 2 * H_Q:3 * H_Q] * jnp.tanh(c)
        hl = jnp.where(last_t == t, h, hl)                         # last valid step
    q_enc = jnp.dot(hl, w_fc_ref[...], preferred_element_type=f32) + b_fc_ref[...]

    # ---- integrator (b): 1x1 conv, * query, L2-normalize (one fused matmul) -
    v = jnp.dot(map_flat, w_int_ref[...], preferred_element_type=f32) + b_int_ref[...]
    qb = jnp.broadcast_to(q_enc[:, None, :], (B, N * N, H)).reshape(B * N * N, H)
    v = v * qb
    ss = jnp.sum(v * v, axis=-1, keepdims=True)
    v = v * lax.rsqrt(jnp.maximum(ss, 1e-24))                      # F.normalize eps=1e-12

    # ---- write fused map into the zero-haloed conv1 input scratch ----------
    # Only the halo bands are zeroed; the interior is written exactly once.
    xpad_sc[:, :PAD1, :, :] = jnp.zeros((B, PAD1, XPAD_J, H), f32)
    xpad_sc[:, PAD1 + N:, :, :] = jnp.zeros((B, XPAD_I - PAD1 - N, XPAD_J, H), f32)
    xpad_sc[:, PAD1:PAD1 + N, :PAD1, :] = jnp.zeros((B, N, PAD1, H), f32)
    xpad_sc[:, PAD1:PAD1 + N, PAD1 + N:, :] = jnp.zeros(
        (B, N, XPAD_J - PAD1 - N, H), f32)
    xpad_sc[:, PAD1:PAD1 + N, PAD1:PAD1 + N, :] = v.reshape(B, N, N, H)

    # ---- predictor conv 1 (k=3, padding=PAD1): dj taps fused into K=96 -----
    catj1 = jnp.concatenate(
        [xpad_sc[:, :, dj:dj + S1_J, :] for dj in range(K_PRED)], axis=-1)
    acc1 = None
    for di in range(K_PRED):
        lhs = catj1[:, di:di + S1_I].reshape(ROWS1, K_PRED * H)     # (864, 96)
        part = jnp.dot(lhs, w1_ref[di], preferred_element_type=f32)  # (864, Hp)
        acc1 = part if acc1 is None else acc1 + part
    h1 = jnp.maximum(acc1 + b1_ref[...], 0.0)
    h1 = h1.reshape(B, S1_I, S1_J, H_PRED) * mw1_ref[...]            # relu * mask-weight

    # ---- predictor conv 2 (k=3, padding=0): dj taps fused into K=96 ---------
    catj2 = jnp.concatenate(
        [h1[:, :, dj:dj + N, :] for dj in range(K_PRED)], axis=-1)   # (B, 18, 16, 96)
    acc2 = None
    for di in range(K_PRED):
        lhs = catj2[:, di:di + N].reshape(ROWS2, K_PRED * H_PRED)    # (512, 96)
        part = jnp.dot(lhs, w2_ref[di], preferred_element_type=f32)  # (512, Hp)
        acc2 = part if acc2 is None else acc2 + part
    h2 = jnp.maximum(acc2 + b2_ref[...], 0.0)
    h2 = h2.reshape(B, N, N, H_PRED) * mw2_ref[...]

    # ---- 1x1 prediction conv + sigmoid * mask2d, lane-dense (B, N*N) output -
    pred = jnp.sum(h2 * w_pred_ref[...], axis=-1) + b_pred_ref[...]  # (B, N, N)
    sc = jax.nn.sigmoid(pred) * mask2d_ref[...]
    o_flat = jnp.concatenate([sc[:, i:i + 1, :] for i in range(N)], axis=-1)
    o_ref[...] = o_flat.reshape(B, N * N)                            # (2, 256)


# ----------------------------------------------------------------------------
# wrapper
# ----------------------------------------------------------------------------
@jax.jit
def tan_forward(params, feats, queries, wordlens):
    Bn, T, Cin = feats.shape
    # pack the 2 timesteps of each pool window into lanes: row=(b,n), lanes=(t,c)
    feats2 = feats.reshape(Bn * N_CLIPS, POOL_STRIDE * Cin)
    qseq = jnp.transpose(queries, (1, 0, 2)).reshape(L_Q * Bn, D_Q)  # time-major rows
    wl2 = wordlens.reshape(Bn, 1).astype(jnp.int32)

    out = pl.pallas_call(
        _tan_kernel,
        out_shape=jax.ShapeDtypeStruct((Bn, N_CLIPS * N_CLIPS), jnp.float32),
        scratch_shapes=[
            pltpu.VMEM((B, XPAD_I, XPAD_J, HIDDEN), jnp.float32),   # padded fused map
        ],
    )(feats2, qseq, wl2,
      params["w_pool2"], params["b_pool2"],
      params["w_ih"], params["w_hh"], params["b_lstm"],
      params["w_fc"], params["b_fc"],
      params["w_int"], params["b_int"],
      params["w_conv1"], params["b_conv1"], params["maskw1"],
      params["w_conv2"], params["b_conv2"], params["maskw2"],
      params["w_pred"], params["b_pred"], params["mask2d"])
    return out.reshape(Bn, N_CLIPS, N_CLIPS)


# ----------------------------------------------------------------------------
# parameter / constant setup (deterministic, synthetic)
# ----------------------------------------------------------------------------
def _mask_conv_count(m, k, padding):
    mp = jnp.pad(m, ((padding, padding), (padding, padding)))
    s_out = m.shape[0] + 2 * padding - k + 1
    out = jnp.zeros((s_out, s_out), jnp.float32)
    for di in range(k):
        for dj in range(k):
            out = out + mp[di:di + s_out, dj:dj + s_out]
    return out


def _mask2weight(mask, k, padding):
    cnt = _mask_conv_count(mask.astype(jnp.float32), k, padding)
    return jnp.where(cnt > 0, 1.0 / jnp.maximum(cnt, 1e-12), 0.0)


def build_params(key):
    ks = jax.random.split(key, 14)

    def nrm(k, shape, scale=0.1):
        return jax.random.normal(k, shape, dtype=jnp.float32) * scale

    N = N_CLIPS
    # SparseMaxPool mask2d with pooling_counts=[N-1] -> full upper triangle.
    mask2d = jnp.triu(jnp.ones((N, N), jnp.float32))
    # Predictor masked-conv weight maps (constants derived from mask2d).
    maskw1 = _mask2weight(mask2d, K_PRED, PAD1)                          # (18, 18)
    maskw2 = _mask2weight((maskw1 > 0).astype(jnp.float32), K_PRED, 0)   # (16, 16)
    maskw1_ext = jnp.pad(maskw1, ((0, 0), (0, S1_J - maskw1.shape[1])))  # (18, 24)

    # featpool conv weight, packed block-diagonal over the 2 pooled timesteps.
    w_pool = nrm(ks[0], (C_IN, HIDDEN))
    b_pool = nrm(ks[1], (1, HIDDEN), 0.01)
    w_pool2 = jnp.zeros((POOL_STRIDE * C_IN, POOL_STRIDE * HIDDEN), jnp.float32)
    w_pool2 = w_pool2.at[:C_IN, :HIDDEN].set(w_pool).at[C_IN:, HIDDEN:].set(w_pool)
    b_pool2 = jnp.concatenate([b_pool, b_pool], axis=-1)

    # predictor conv weights pre-packed: (di, dj*Cin + c, Cout) so the kernel
    # does one K=96 matmul per di tap.
    w_conv1 = nrm(ks[9], (K_PRED, K_PRED, HIDDEN, H_PRED))
    w_conv2 = nrm(ks[11], (K_PRED, K_PRED, H_PRED, H_PRED))
    w1p = w_conv1.reshape(K_PRED, K_PRED * HIDDEN, H_PRED)
    w2p = w_conv2.reshape(K_PRED, K_PRED * H_PRED, H_PRED)

    return dict(
        mask2d=mask2d[None],                      # (1, N, N)
        maskw1=maskw1_ext[None, :, :, None],      # (1, 18, 24, 1)
        maskw2=maskw2[None, :, :, None],          # (1, 16, 16, 1)
        w_pool2=w_pool2, b_pool2=b_pool2,
        # LSTM gate packing is [i | f | o | g] along the 4*H_Q axis
        # (permuted from torch's [i | f | g | o] so i/f/o share one sigmoid;
        #  for real torch weights, permute the gate blocks accordingly).
        w_ih=nrm(ks[2], (D_Q, 4 * H_Q)),
        w_hh=nrm(ks[3], (H_Q, 4 * H_Q)),
        b_lstm=nrm(ks[4], (1, 4 * H_Q), 0.01),    # b_ih + b_hh combined
        w_fc=nrm(ks[5], (H_Q, HIDDEN)),
        b_fc=nrm(ks[6], (1, HIDDEN), 0.01),
        w_int=nrm(ks[7], (HIDDEN, HIDDEN)),
        b_int=nrm(ks[8], (1, HIDDEN), 0.01),
        w_conv1=w1p, b_conv1=nrm(ks[10], (1, H_PRED), 0.01),
        w_conv2=w2p, b_conv2=nrm(ks[12], (1, H_PRED), 0.01),
        w_pred=nrm(ks[13], (1, 1, 1, H_PRED)),
        b_pred=jnp.zeros((1, 1, 1), jnp.float32),
    )


if __name__ == "__main__":
    key = jax.random.PRNGKey(0)
    kp, kf, kq = jax.random.split(key, 3)
    params = build_params(kp)

    feats = jax.random.normal(kf, (B, T_PRE, C_IN), dtype=jnp.float32)
    queries = jax.random.normal(kq, (B, L_Q, D_Q), dtype=jnp.float32)
    wordlens = jnp.array([5, 8], dtype=jnp.int32)

    scores2d = tan_forward(params, feats, queries, wordlens)
    scores2d = jax.block_until_ready(scores2d)

    assert scores2d.shape == (B, N_CLIPS, N_CLIPS)
    assert bool(jnp.all(jnp.isfinite(scores2d)))
    print("KERNEL_OK")
</pallas_src>

<mosaic_0001>
module attributes {stable_mosaic.version = 11 : i64} {
  func.func @_tan_kernel(%arg0: memref<32x64xf32, #tpu.memory_space<vmem>>, %arg1: memref<16x16xf32, #tpu.memory_space<vmem>>, %arg2: memref<2x1xi32, #tpu.memory_space<vmem>>, %arg3: memref<64x64xf32, #tpu.memory_space<vmem>>, %arg4: memref<1x64xf32, #tpu.memory_space<vmem>>, %arg5: memref<16x128xf32, #tpu.memory_space<vmem>>, %arg6: memref<32x128xf32, #tpu.memory_space<vmem>>, %arg7: memref<1x128xf32, #tpu.memory_space<vmem>>, %arg8: memref<32x32xf32, #tpu.memory_space<vmem>>, %arg9: memref<1x32xf32, #tpu.memory_space<vmem>>, %arg10: memref<32x32xf32, #tpu.memory_space<vmem>>, %arg11: memref<1x32xf32, #tpu.memory_space<vmem>>, %arg12: memref<3x96x32xf32, #tpu.memory_space<vmem>>, %arg13: memref<1x32xf32, #tpu.memory_space<vmem>>, %arg14: memref<1x18x24x1xf32, #tpu.memory_space<vmem>>, %arg15: memref<3x96x32xf32, #tpu.memory_space<vmem>>, %arg16: memref<1x32xf32, #tpu.memory_space<vmem>>, %arg17: memref<1x16x16x1xf32, #tpu.memory_space<vmem>>, %arg18: memref<1x1x1x32xf32, #tpu.memory_space<vmem>>, %arg19: memref<1x1x1xf32, #tpu.memory_space<vmem>>, %arg20: memref<1x16x16xf32, #tpu.memory_space<vmem>>, %arg21: memref<2x256xf32, #tpu.memory_space<vmem>>, %arg22: memref<2x20x26x32xf32, #tpu.memory_space<vmem>>) attributes {dimension_semantics = [], scalar_prefetch = 0 : i64, scratch_operands = 1 : i64, tpu.core_type = #tpu.core_type<tc>} {
    %c0 = arith.constant 0 : index
    %c0_0 = arith.constant 0 : index
    %0 = vector.load %arg0[%c0, %c0_0] : memref<32x64xf32, #tpu.memory_space<vmem>>, vector<32x64xf32>
    %c0_1 = arith.constant 0 : index
    %c0_2 = arith.constant 0 : index
    %1 = vector.load %arg3[%c0_1, %c0_2] : memref<64x64xf32, #tpu.memory_space<vmem>>, vector<64x64xf32>
    %cst = arith.constant dense<0.000000e+00> : vector<32x64xf32>
    %2 = tpu.matmul %0, %1, %cst {dimension_numbers = #tpu.dot_dimension_numbers<[1], [0], [0], [1], [0, 0, 1, 1], [], []>} : vector<32x64xf32>, vector<64x64xf32>, vector<32x64xf32> -> vector<32x64xf32>
    %c0_3 = arith.constant 0 : index
    %c0_4 = arith.constant 0 : index
    %3 = vector.load %arg4[%c0_3, %c0_4] : memref<1x64xf32, #tpu.memory_space<vmem>>, vector<1x64xf32>
    %4 = vector.broadcast %3 : vector<1x64xf32> to vector<32x64xf32>
    %5 = arith.addf %2, %4 : vector<32x64xf32>
    %cst_5 = arith.constant 0.000000e+00 : f32
    %6 = vector.broadcast %cst_5 : f32 to vector<32x64xf32>
    %7 = arith.maximumf %5, %6 : vector<32x64xf32>
    %8 = vector.extract_strided_slice %7 {offsets = [0, 0], sizes = [32, 32], strides = [1, 1]} : vector<32x64xf32> to vector<32x32xf32>
    %9 = vector.extract_strided_slice %7 {offsets = [0, 32], sizes = [32, 32], strides = [1, 1]} : vector<32x64xf32> to vector<32x32xf32>
    %10 = arith.addf %8, %9 : vector<32x32xf32>
    %cst_6 = arith.constant 5.000000e-01 : f32
    %11 = vector.broadcast %cst_6 : f32 to vector<32x32xf32>
    %12 = arith.mulf %11, %10 : vector<32x32xf32>
    %13 = vector.shape_cast %12 : vector<32x32xf32> to vector<2x16x32xf32>
    %14 = tpu.iota {dimensions = array<i32: 1>} : vector<1x16x1xi32>
    %cst_7 = arith.constant -1.000000e+30 : f32
    %15 = vector.broadcast %cst_7 : f32 to vector<2x16x32xf32>
    %16 = vector.extract_strided_slice %13 {offsets = [0, 15, 0], sizes = [2, 1, 32], strides = [1, 1, 1]} : vector<2x16x32xf32> to vector<2x1x32xf32>
    %c16_i32 = arith.constant 16 : i32
    %17 = vector.broadcast %c16_i32 : i32 to vector<1x16x1xi32>
    %18 = arith.cmpi sge, %14, %17 : vector<1x16x1xi32>
    %cst_8 = arith.constant -1.000000e+30 : f32
    %19 = vector.shape_cast %18 : vector<1x16x1xi1> to vector<1x16x1xi1>
    %20 = vector.broadcast %19 : vector<1x16x1xi1> to vector<2x16x32xi1>
    %21 = vector.broadcast %cst_8 : f32 to vector<2x16x32xf32>
    %22 = arith.select %20, %15, %21 : vector<2x16x32xi1>, vector<2x16x32xf32>
    %23 = vector.broadcast %16 : vector<2x1x32xf32> to vector<2x16x32xf32>
    %24 = arith.maximumf %23, %22 : vector<2x16x32xf32>
    %c15_i32 = arith.constant 15 : i32
    %25 = vector.broadcast %c15_i32 : i32 to vector<1x16x1xi32>
    %26 = arith.cmpi sge, %14, %25 : vector<1x16x1xi32>
    %cst_9 = arith.constant 0.000000e+00 : f32
    %27 = vector.shape_cast %26 : vector<1x16x1xi1> to vector<1x16x1xi1>
    %28 = vector.broadcast %27 : vector<1x16x1xi1> to vector<2x16x32xi1>
    %29 = vector.broadcast %cst_9 : f32 to vector<2x16x32xf32>
    %30 = arith.select %28, %24, %29 : vector<2x16x32xi1>, vector<2x16x32xf32>
    %31 = vector.shape_cast %30 : vector<2x16x32xf32> to vector<2x1x16x32xf32>
    %32 = vector.extract_strided_slice %13 {offsets = [0, 14, 0], sizes = [2, 1, 32], strides = [1, 1, 1]} : vector<2x16x32xf32> to vector<2x1x32xf32>
    %c15_i32_10 = arith.constant 15 : i32
    %33 = vector.broadcast %c15_i32_10 : i32 to vector<1x16x1xi32>
    %34 = arith.cmpi sge, %14, %33 : vector<1x16x1xi32>
    %cst_11 = arith.constant -1.000000e+30 : f32
    %35 = vector.shape_cast %34 : vector<1x16x1xi1> to vector<1x16x1xi1>
    %36 = vector.broadcast %35 : vector<1x16x1xi1> to vector<2x16x32xi1>
    %37 = vector.broadcast %cst_11 : f32 to vector<2x16x32xf32>
    %38 = arith.select %36, %24, %37 : vector<2x16x32xi1>, vector<2x16x32xf32>
    %39 = vector.broadcast %32 : vector<2x1x32xf32> to vector<2x16x32xf32>
    %40 = arith.maximumf %39, %38 : vector<2x16x32xf32>
    %c14_i32 = arith.constant 14 : i32
    %41 = vector.broadcast %c14_i32 : i32 to vector<1x16x1xi32>
    %42 = arith.cmpi sge, %14, %41 : vector<1x16x1xi32>
    %cst_12 = arith.constant 0.000000e+00 : f32
    %43 = vector.shape_cast %42 : vector<1x16x1xi1> to vector<1x16x1xi1>
    %44 = vector.broadcast %43 : vector<1x16x1xi1> to vector<2x16x32xi1>
    %45 = vector.broadcast %cst_12 : f32 to vector<2x16x32xf32>
    %46 = arith.select %44, %40, %45 : vector<2x16x32xi1>, vector<2x16x32xf32>
    %47 = vector.shape_cast %46 : vector<2x16x32xf32> to vector<2x1x16x32xf32>
    %48 = vector.extract_strided_slice %13 {offsets = [0, 13, 0], sizes = [2, 1, 32], strides = [1, 1, 1]} : vector<2x16x32xf32> to vector<2x1x32xf32>
    %c14_i32_13 = arith.constant 14 : i32
    %49 = vector.broadcast %c14_i32_13 : i32 to vector<1x16x1xi32>
    %50 = arith.cmpi sge, %14, %49 : vector<1x16x1xi32>
    %cst_14 = arith.constant -1.000000e+30 : f32
    %51 = vector.shape_cast %50 : vector<1x16x1xi1> to vector<1x16x1xi1>
    %52 = vector.broadcast %51 : vector<1x16x1xi1> to vector<2x16x32xi1>
    %53 = vector.broadcast %cst_14 : f32 to vector<2x16x32xf32>
    %54 = arith.select %52, %40, %53 : vector<2x16x32xi1>, vector<2x16x32xf32>
    %55 = vector.broadcast %48 : vector<2x1x32xf32> to vector<2x16x32xf32>
    %56 = arith.maximumf %55, %54 : vector<2x16x32xf32>
    %c13_i32 = arith.constant 13 : i32
    %57 = vector.broadcast %c13_i32 : i32 to vector<1x16x1xi32>
    %58 = arith.cmpi sge, %14, %57 : vector<1x16x1xi32>
    %cst_15 = arith.constant 0.000000e+00 : f32
    %59 = vector.shape_cast %58 : vector<1x16x1xi1> to vector<1x16x1xi1>
    %60 = vector.broadcast %59 : vector<1x16x1xi1> to vector<2x16x32xi1>
    %61 = vector.broadcast %cst_15 : f32 to vector<2x16x32xf32>
    %62 = arith.select %60, %56, %61 : vector<2x16x32xi1>, vector<2x16x32xf32>
    %63 = vector.shape_cast %62 : vector<2x16x32xf32> to vector<2x1x16x32xf32>
    %64 = vector.extract_strided_slice %13 {offsets = [0, 12, 0], sizes = [2, 1, 32], strides = [1, 1, 1]} : vector<2x16x32xf32> to vector<2x1x32xf32>
    %c13_i32_16 = arith.constant 13 : i32
    %65 = vector.broadcast %c13_i32_16 : i32 to vector<1x16x1xi32>
    %66 = arith.cmpi sge, %14, %65 : vector<1x16x1xi32>
    %cst_17 = arith.constant -1.000000e+30 : f32
    %67 = vector.shape_cast %66 : vector<1x16x1xi1> to vector<1x16x1xi1>
    %68 = vector.broadcast %67 : vector<1x16x1xi1> to vector<2x16x32xi1>
    %69 = vector.broadcast %cst_17 : f32 to vector<2x16x32xf32>
    %70 = arith.select %68, %56, %69 : vector<2x16x32xi1>, vector<2x16x32xf32>
    %71 = vector.broadcast %64 : vector<2x1x32xf32> to vector<2x16x32xf32>
    %72 = arith.maximumf %71, %70 : vector<2x16x32xf32>
    %c12_i32 = arith.constant 12 : i32
    %73 = vector.broadcast %c12_i32 : i32 to vector<1x16x1xi32>
    %74 = arith.cmpi sge, %14, %73 : vector<1x16x1xi32>
    %cst_18 = arith.constant 0.000000e+00 : f32
    %75 = vector.shape_cast %74 : vector<1x16x1xi1> to vector<1x16x1xi1>
    %76 = vector.broadcast %75 : vector<1x16x1xi1> to vector<2x16x32xi1>
    %77 = vector.broadcast %cst_18 : f32 to vector<2x16x32xf32>
    %78 = arith.select %76, %72, %77 : vector<2x16x32xi1>, vector<2x16x32xf32>
    %79 = vector.shape_cast %78 : vector<2x16x32xf32> to vector<2x1x16x32xf32>
    %80 = vector.extract_strided_slice %13 {offsets = [0, 11, 0], sizes = [2, 1, 32], strides = [1, 1, 1]} : vector<2x16x32xf32> to vector<2x1x32xf32>
    %c12_i32_19 = arith.constant 12 : i32
    %81 = vector.broadcast %c12_i32_19 : i32 to vector<1x16x1xi32>
    %82 = arith.cmpi sge, %14, %81 : vector<1x16x1xi32>
    %cst_20 = arith.constant -1.000000e+30 : f32
    %83 = vector.shape_cast %82 : vector<1x16x1xi1> to vector<1x16x1xi1>
    %84 = vector.broadcast %83 : vector<1x16x1xi1> to vector<2x16x32xi1>
    %85 = vector.broadcast %cst_20 : f32 to vector<2x16x32xf32>
    %86 = arith.select %84, %72, %85 : vector<2x16x32xi1>, vector<2x16x32xf32>
    %87 = vector.broadcast %80 : vector<2x1x32xf32> to vector<2x16x32xf32>
    %88 = arith.maximumf %87, %86 : vector<2x16x32xf32>
    %c11_i32 = arith.constant 11 : i32
    %89 = vector.broadcast %c11_i32 : i32 to vector<1x16x1xi32>
    %90 = arith.cmpi sge, %14, %89 : vector<1x16x1xi32>
    %cst_21 = arith.constant 0.000000e+00 : f32
    %91 = vector.shape_cast %90 : vector<1x16x1xi1> to vector<1x16x1xi1>
    %92 = vector.broadcast %91 : vector<1x16x1xi1> to vector<2x16x32xi1>
    %93 = vector.broadcast %cst_21 : f32 to vector<2x16x32xf32>
    %94 = arith.select %92, %88, %93 : vector<2x16x32xi1>, vector<2x16x32xf32>
    %95 = vector.shape_cast %94 : vector<2x16x32xf32> to vector<2x1x16x32xf32>
    %96 = vector.extract_strided_slice %13 {offsets = [0, 10, 0], sizes = [2, 1, 32], strides = [1, 1, 1]} : vector<2x16x32xf32> to vector<2x1x32xf32>
    %c11_i32_22 = arith.constant 11 : i32
    %97 = vector.broadcast %c11_i32_22 : i32 to vector<1x16x1xi32>
    %98 = arith.cmpi sge, %14, %97 : vector<1x16x1xi32>
    %cst_23 = arith.constant -1.000000e+30 : f32
    %99 = vector.shape_cast %98 : vector<1x16x1xi1> to vector<1x16x1xi1>
    %100 = vector.broadcast %99 : vector<1x16x1xi1> to vector<2x16x32xi1>
    %101 = vector.broadcast %cst_23 : f32 to vector<2x16x32xf32>
    %102 = arith.select %100, %88, %101 : vector<2x16x32xi1>, vector<2x16x32xf32>
    %103 = vector.broadcast %96 : vector<2x1x32xf32> to vector<2x16x32xf32>
    %104 = arith.maximumf %103, %102 : vector<2x16x32xf32>
    %c10_i32 = arith.constant 10 : i32
    %105 = vector.broadcast %c10_i32 : i32 to vector<1x16x1xi32>
    %106 = arith.cmpi sge, %14, %105 : vector<1x16x1xi32>
    %cst_24 = arith.constant 0.000000e+00 : f32
    %107 = vector.shape_cast %106 : vector<1x16x1xi1> to vector<1x16x1xi1>
    %108 = vector.broadcast %107 : vector<1x16x1xi1> to vector<2x16x32xi1>
    %109 = vector.broadcast %cst_24 : f32 to vector<2x16x32xf32>
    %110 = arith.select %108, %104, %109 : vector<2x16x32xi1>, vector<2x16x32xf32>
    %111 = vector.shape_cast %110 : vector<2x16x32xf32> to vector<2x1x16x32xf32>
    %112 = vector.extract_strided_slice %13 {offsets = [0, 9, 0], sizes = [2, 1, 32], strides = [1, 1, 1]} : vector<2x16x32xf32> to vector<2x1x32xf32>
    %c10_i32_25 = arith.constant 10 : i32
    %113 = vector.broadcast %c10_i32_25 : i32 to vector<1x16x1xi32>
    %114 = arith.cmpi sge, %14, %113 : vector<1x16x1xi32>
    %cst_26 = arith.constant -1.000000e+30 : f32
    %115 = vector.shape_cast %114 : vector<1x16x1xi1> to vector<1x16x1xi1>
    %116 = vector.broadcast %115 : vector<1x16x1xi1> to vector<2x16x32xi1>
    %117 = vector.broadcast %cst_26 : f32 to vector<2x16x32xf32>
    %118 = arith.select %116, %104, %117 : vector<2x16x32xi1>, vector<2x16x32xf32>
    %119 = vector.broadcast %112 : vector<2x1x32xf32> to vector<2x16x32xf32>
    %120 = arith.maximumf %119, %118 : vector<2x16x32xf32>
    %c9_i32 = arith.constant 9 : i32
    %121 = vector.broadcast %c9_i32 : i32 to vector<1x16x1xi32>
    %122 = arith.cmpi sge, %14, %121 : vector<1x16x1xi32>
    %cst_27 = arith.constant 0.000000e+00 : f32
    %123 = vector.shape_cast %122 : vector<1x16x1xi1> to vector<1x16x1xi1>
    %124 = vector.broadcast %123 : vector<1x16x1xi1> to vector<2x16x32xi1>
    %125 = vector.broadcast %cst_27 : f32 to vector<2x16x32xf32>
    %126 = arith.select %124, %120, %125 : vector<2x16x32xi1>, vector<2x16x32xf32>
    %127 = vector.shape_cast %126 : vector<2x16x32xf32> to vector<2x1x16x32xf32>
    %128 = vector.extract_strided_slice %13 {offsets = [0, 8, 0], sizes = [2, 1, 32], strides = [1, 1, 1]} : vector<2x16x32xf32> to vector<2x1x32xf32>
    %c9_i32_28 = arith.constant 9 : i32
    %129 = vector.broadcast %c9_i32_28 : i32 to vector<1x16x1xi32>
    %130 = arith.cmpi sge, %14, %129 : vector<1x16x1xi32>
    %cst_29 = arith.constant -1.000000e+30 : f32
    %131 = vector.shape_cast %130 : vector<1x16x1xi1> to vector<1x16x1xi1>
    %132 = vector.broadcast %131 : vector<1x16x1xi1> to vector<2x16x32xi1>
    %133 = vector.broadcast %cst_29 : f32 to vector<2x16x32xf32>
    %134 = arith.select %132, %120, %133 : vector<2x16x32xi1>, vector<2x16x32xf32>
    %135 = vector.broadcast %128 : vector<2x1x32xf32> to vector<2x16x32xf32>
    %136 = arith.maximumf %135, %134 : vector<2x16x32xf32>
    %c8_i32 = arith.constant 8 : i32
    %137 = vector.broadcast %c8_i32 : i32 to vector<1x16x1xi32>
    %138 = arith.cmpi sge, %14, %137 : vector<1x16x1xi32>
    %cst_30 = arith.constant 0.000000e+00 : f32
    %139 = vector.shape_cast %138 : vector<1x16x1xi1> to vector<1x16x1xi1>
    %140 = vector.broadcast %139 : vector<1x16x1xi1> to vector<2x16x32xi1>
    %141 = vector.broadcast %cst_30 : f32 to vector<2x16x32xf32>
    %142 = arith.select %140, %136, %141 : vector<2x16x32xi1>, vector<2x16x32xf32>
    %143 = vector.shape_cast %142 : vector<2x16x32xf32> to vector<2x1x16x32xf32>
    %144 = vector.extract_strided_slice %13 {offsets = [0, 7, 0], sizes = [2, 1, 32], strides = [1, 1, 1]} : vector<2x16x32xf32> to vector<2x1x32xf32>
    %c8_i32_31 = arith.constant 8 : i32
    %145 = vector.broadcast %c8_i32_31 : i32 to vector<1x16x1xi32>
    %146 = arith.cmpi sge, %14, %145 : vector<1x16x1xi32>
    %cst_32 = arith.constant -1.000000e+30 : f32
    %147 = vector.shape_cast %146 : vector<1x16x1xi1> to vector<1x16x1xi1>
    %148 = vector.broadcast %147 : vector<1x16x1xi1> to vector<2x16x32xi1>
    %149 = vector.broadcast %cst_32 : f32 to vector<2x16x32xf32>
    %150 = arith.select %148, %136, %149 : vector<2x16x32xi1>, vector<2x16x32xf32>
    %151 = vector.broadcast %144 : vector<2x1x32xf32> to vector<2x16x32xf32>
    %152 = arith.maximumf %151, %150 : vector<2x16x32xf32>
    %c7_i32 = arith.constant 7 : i32
    %153 = vector.broadcast %c7_i32 : i32 to vector<1x16x1xi32>
    %154 = arith.cmpi sge, %14, %153 : vector<1x16x1xi32>
    %cst_33 = arith.constant 0.000000e+00 : f32
    %155 = vector.shape_cast %154 : vector<1x16x1xi1> to vector<1x16x1xi1>
    %156 = vector.broadcast %155 : vector<1x16x1xi1> to vector<2x16x32xi1>
    %157 = vector.broadcast %cst_33 : f32 to vector<2x16x32xf32>
    %158 = arith.select %156, %152, %157 : vector<2x16x32xi1>, vector<2x16x32xf32>
    %159 = vector.shape_cast %158 : vector<2x16x32xf32> to vector<2x1x16x32xf32>
    %160 = vector.extract_strided_slice %13 {offsets = [0, 6, 0], sizes = [2, 1, 32], strides = [1, 1, 1]} : vector<2x16x32xf32> to vector<2x1x32xf32>
    %c7_i32_34 = arith.constant 7 : i32
    %161 = vector.broadcast %c7_i32_34 : i32 to vector<1x16x1xi32>
    %162 = arith.cmpi sge, %14, %161 : vector<1x16x1xi32>
    %cst_35 = arith.constant -1.000000e+30 : f32
    %163 = vector.shape_cast %162 : vector<1x16x1xi1> to vector<1x16x1xi1>
    %164 = vector.broadcast %163 : vector<1x16x1xi1> to vector<2x16x32xi1>
    %165 = vector.broadcast %cst_35 : f32 to vector<2x16x32xf32>
    %166 = arith.select %164, %152, %165 : vector<2x16x32xi1>, vector<2x16x32xf32>
    %167 = vector.broadcast %160 : vector<2x1x32xf32> to vector<2x16x32xf32>
    %168 = arith.maximumf %167, %166 : vector<2x16x32xf32>
    %c6_i32 = arith.constant 6 : i32
    %169 = vector.broadcast %c6_i32 : i32 to vector<1x16x1xi32>
    %170 = arith.cmpi sge, %14, %169 : vector<1x16x1xi32>
    %cst_36 = arith.constant 0.000000e+00 : f32
    %171 = vector.shape_cast %170 : vector<1x16x1xi1> to vector<1x16x1xi1>
    %172 = vector.broadcast %171 : vector<1x16x1xi1> to vector<2x16x32xi1>
    %173 = vector.broadcast %cst_36 : f32 to vector<2x16x32xf32>
    %174 = arith.select %172, %168, %173 : vector<2x16x32xi1>, vector<2x16x32xf32>
    %175 = vector.shape_cast %174 : vector<2x16x32xf32> to vector<2x1x16x32xf32>
    %176 = vector.extract_strided_slice %13 {offsets = [0, 5, 0], sizes = [2, 1, 32], strides = [1, 1, 1]} : vector<2x16x32xf32> to vector<2x1x32xf32>
    %c6_i32_37 = arith.constant 6 : i32
    %177 = vector.broadcast %c6_i32_37 : i32 to vector<1x16x1xi32>
    %178 = arith.cmpi sge, %14, %177 : vector<1x16x1xi32>
    %cst_38 = arith.constant -1.000000e+30 : f32
    %179 = vector.shape_cast %178 : vector<1x16x1xi1> to vector<1x16x1xi1>
    %180 = vector.broadcast %179 : vector<1x16x1xi1> to vector<2x16x32xi1>
    %181 = vector.broadcast %cst_38 : f32 to vector<2x16x32xf32>
    %182 = arith.select %180, %168, %181 : vector<2x16x32xi1>, vector<2x16x32xf32>
    %183 = vector.broadcast %176 : vector<2x1x32xf32> to vector<2x16x32xf32>
    %184 = arith.maximumf %183, %182 : vector<2x16x32xf32>
    %c5_i32 = arith.constant 5 : i32
    %185 = vector.broadcast %c5_i32 : i32 to vector<1x16x1xi32>
    %186 = arith.cmpi sge, %14, %185 : vector<1x16x1xi32>
    %cst_39 = arith.constant 0.000000e+00 : f32
    %187 = vector.shape_cast %186 : vector<1x16x1xi1> to vector<1x16x1xi1>
    %188 = vector.broadcast %187 : vector<1x16x1xi1> to vector<2x16x32xi1>
    %189 = vector.broadcast %cst_39 : f32 to vector<2x16x32xf32>
    %190 = arith.select %188, %184, %189 : vector<2x16x32xi1>, vector<2x16x32xf32>
    %191 = vector.shape_cast %190 : vector<2x16x32xf32> to vector<2x1x16x32xf32>
    %192 = vector.extract_strided_slice %13 {offsets = [0, 4, 0], sizes = [2, 1, 32], strides = [1, 1, 1]} : vector<2x16x32xf32> to vector<2x1x32xf32>
    %c5_i32_40 = arith.constant 5 : i32
    %193 = vector.broadcast %c5_i32_40 : i32 to vector<1x16x1xi32>
    %194 = arith.cmpi sge, %14, %193 : vector<1x16x1xi32>
    %cst_41 = arith.constant -1.000000e+30 : f32
    %195 = vector.shape_cast %194 : vector<1x16x1xi1> to vector<1x16x1xi1>
    %196 = vector.broadcast %195 : vector<1x16x1xi1> to vector<2x16x32xi1>
    %197 = vector.broadcast %cst_41 : f32 to vector<2x16x32xf32>
    %198 = arith.select %196, %184, %197 : vector<2x16x32xi1>, vector<2x16x32xf32>
    %199 = vector.broadcast %192 : vector<2x1x32xf32> to vector<2x16x32xf32>
    %200 = arith.maximumf %199, %198 : vector<2x16x32xf32>
    %c4_i32 = arith.constant 4 : i32
    %201 = vector.broadcast %c4_i32 : i32 to vector<1x16x1xi32>
    %202 = arith.cmpi sge, %14, %201 : vector<1x16x1xi32>
    %cst_42 = arith.constant 0.000000e+00 : f32
    %203 = vector.shape_cast %202 : vector<1x16x1xi1> to vector<1x16x1xi1>
    %204 = vector.broadcast %203 : vector<1x16x1xi1> to vector<2x16x32xi1>
    %205 = vector.broadcast %cst_42 : f32 to vector<2x16x32xf32>
    %206 = arith.select %204, %200, %205 : vector<2x16x32xi1>, vector<2x16x32xf32>
    %207 = vector.shape_cast %206 : vector<2x16x32xf32> to vector<2x1x16x32xf32>
    %208 = vector.extract_strided_slice %13 {offsets = [0, 3, 0], sizes = [2, 1, 32], strides = [1, 1, 1]} : vector<2x16x32xf32> to vector<2x1x32xf32>
    %c4_i32_43 = arith.constant 4 : i32
    %209 = vector.broadcast %c4_i32_43 : i32 to vector<1x16x1xi32>
    %210 = arith.cmpi sge, %14, %209 : vector<1x16x1xi32>
    %cst_44 = arith.constant -1.000000e+30 : f32
    %211 = vector.shape_cast %210 : vector<1x16x1xi1> to vector<1x16x1xi1>
    %212 = vector.broadcast %211 : vector<1x16x1xi1> to vector<2x16x32xi1>
    %213 = vector.broadcast %cst_44 : f32 to vector<2x16x32xf32>
    %214 = arith.select %212, %200, %213 : vector<2x16x32xi1>, vector<2x16x32xf32>
    %215 = vector.broadcast %208 : vector<2x1x32xf32> to vector<2x16x32xf32>
    %216 = arith.maximumf %215, %214 : vector<2x16x32xf32>
    %c3_i32 = arith.constant 3 : i32
    %217 = vector.broadcast %c3_i32 : i32 to vector<1x16x1xi32>
    %218 = arith.cmpi sge, %14, %217 : vector<1x16x1xi32>
    %cst_45 = arith.constant 0.000000e+00 : f32
    %219 = vector.shape_cast %218 : vector<1x16x1xi1> to vector<1x16x1xi1>
    %220 = vector.broadcast %219 : vector<1x16x1xi1> to vector<2x16x32xi1>
    %221 = vector.broadcast %cst_45 : f32 to vector<2x16x32xf32>
    %222 = arith.select %220, %216, %221 : vector<2x16x32xi1>, vector<2x16x32xf32>
    %223 = vector.shape_cast %222 : vector<2x16x32xf32> to vector<2x1x16x32xf32>
    %224 = vector.extract_strided_slice %13 {offsets = [0, 2, 0], sizes = [2, 1, 32], strides = [1, 1, 1]} : vector<2x16x32xf32> to vector<2x1x32xf32>
    %c3_i32_46 = arith.constant 3 : i32
    %225 = vector.broadcast %c3_i32_46 : i32 to vector<1x16x1xi32>
    %226 = arith.cmpi sge, %14, %225 : vector<1x16x1xi32>
    %cst_47 = arith.constant -1.000000e+30 : f32
    %227 = vector.shape_cast %226 : vector<1x16x1xi1> to vector<1x16x1xi1>
    %228 = vector.broadcast %227 : vector<1x16x1xi1> to vector<2x16x32xi1>
    %229 = vector.broadcast %cst_47 : f32 to vector<2x16x32xf32>
    %230 = arith.select %228, %216, %229 : vector<2x16x32xi1>, vector<2x16x32xf32>
    %231 = vector.broadcast %224 : vector<2x1x32xf32> to vector<2x16x32xf32>
    %232 = arith.maximumf %231, %230 : vector<2x16x32xf32>
    %c2_i32 = arith.constant 2 : i32
    %233 = vector.broadcast %c2_i32 : i32 to vector<1x16x1xi32>
    %234 = arith.cmpi sge, %14, %233 : vector<1x16x1xi32>
    %cst_48 = arith.constant 0.000000e+00 : f32
    %235 = vector.shape_cast %234 : vector<1x16x1xi1> to vector<1x16x1xi1>
    %236 = vector.broadcast %235 : vector<1x16x1xi1> to vector<2x16x32xi1>
    %237 = vector.broadcast %cst_48 : f32 to vector<2x16x32xf32>
    %238 = arith.select %236, %232, %237 : vector<2x16x32xi1>, vector<2x16x32xf32>
    %239 = vector.shape_cast %238 : vector<2x16x32xf32> to vector<2x1x16x32xf32>
    %240 = vector.extract_strided_slice %13 {offsets = [0, 1, 0], sizes = [2, 1, 32], strides = [1, 1, 1]} : vector<2x16x32xf32> to vector<2x1x32xf32>
    %c2_i32_49 = arith.constant 2 : i32
    %241 = vector.broadcast %c2_i32_49 : i32 to vector<1x16x1xi32>
    %242 = arith.cmpi sge, %14, %241 : vector<1x16x1xi32>
    %cst_50 = arith.constant -1.000000e+30 : f32
    %243 = vector.shape_cast %242 : vector<1x16x1xi1> to vector<1x16x1xi1>
    %244 = vector.broadcast %243 : vector<1x16x1xi1> to vector<2x16x32xi1>
    %245 = vector.broadcast %cst_50 : f32 to vector<2x16x32xf32>
    %246 = arith.select %244, %232, %245 : vector<2x16x32xi1>, vector<2x16x32xf32>
    %247 = vector.broadcast %240 : vector<2x1x32xf32> to vector<2x16x32xf32>
    %248 = arith.maximumf %247, %246 : vector<2x16x32xf32>
    %c1_i32 = arith.constant 1 : i32
    %249 = vector.broadcast %c1_i32 : i32 to vector<1x16x1xi32>
    %250 = arith.cmpi sge, %14, %249 : vector<1x16x1xi32>
    %cst_51 = arith.constant 0.000000e+00 : f32
    %251 = vector.shape_cast %250 : vector<1x16x1xi1> to vector<1x16x1xi1>
    %252 = vector.broadcast %251 : vector<1x16x1xi1> to vector<2x16x32xi1>
    %253 = vector.broadcast %cst_51 : f32 to vector<2x16x32xf32>
    %254 = arith.select %252, %248, %253 : vector<2x16x32xi1>, vector<2x16x32xf32>
    %255 = vector.shape_cast %254 : vector<2x16x32xf32> to vector<2x1x16x32xf32>
    %256 = vector.extract_strided_slice %13 {offsets = [0, 0, 0], sizes = [2, 1, 32], strides = [1, 1, 1]} : vector<2x16x32xf32> to vector<2x1x32xf32>
    %c1_i32_52 = arith.constant 1 : i32
    %257 = vector.broadcast %c1_i32_52 : i32 to vector<1x16x1xi32>
    %258 = arith.cmpi sge, %14, %257 : vector<1x16x1xi32>
    %cst_53 = arith.constant -1.000000e+30 : f32
    %259 = vector.shape_cast %258 : vector<1x16x1xi1> to vector<1x16x1xi1>
    %260 = vector.broadcast %259 : vector<1x16x1xi1> to vector<2x16x32xi1>
    %261 = vector.broadcast %cst_53 : f32 to vector<2x16x32xf32>
    %262 = arith.select %260, %248, %261 : vector<2x16x32xi1>, vector<2x16x32xf32>
    %263 = vector.broadcast %256 : vector<2x1x32xf32> to vector<2x16x32xf32>
    %264 = arith.maximumf %263, %262 : vector<2x16x32xf32>
    %c0_i32 = arith.constant 0 : i32
    %265 = vector.broadcast %c0_i32 : i32 to vector<1x16x1xi32>
    %266 = arith.cmpi sge, %14, %265 : vector<1x16x1xi32>
    %cst_54 = arith.constant 0.000000e+00 : f32
    %267 = vector.shape_cast %266 : vector<1x16x1xi1> to vector<1x16x1xi1>
    %268 = vector.broadcast %267 : vector<1x16x1xi1> to vector<2x16x32xi1>
    %269 = vector.broadcast %cst_54 : f32 to vector<2x16x32xf32>
    %270 = arith.select %268, %264, %269 : vector<2x16x32xi1>, vector<2x16x32xf32>
    %271 = vector.shape_cast %270 : vector<2x16x32xf32> to vector<2x1x16x32xf32>
    %272 = tpu.concatenate %271, %255, %239, %223, %207, %191, %175, %159, %143, %127, %111, %95, %79, %63, %47, %31 in 1 : vector<2x1x16x32xf32>, vector<2x1x16x32xf32>, vector<2x1x16x32xf32>, vector<2x1x16x32xf32>, vector<2x1x16x32xf32>, vector<2x1x16x32xf32>, vector<2x1x16x32xf32>, vector<2x1x16x32xf32>, vector<2x1x16x32xf32>, vector<2x1x16x32xf32>, vector<2x1x16x32xf32>, vector<2x1x16x32xf32>, vector<2x1x16x32xf32>, vector<2x1x16x32xf32>, vector<2x1x16x32xf32>, vector<2x1x16x32xf32> -> vector<2x16x16x32xf32>
    %273 = vector.shape_cast %272 : vector<2x16x16x32xf32> to vector<512x32xf32>
    %c0_55 = arith.constant 0 : index
    %c0_56 = arith.constant 0 : index
    %274 = vector.load %arg1[%c0_55, %c0_56] : memref<16x16xf32, #tpu.memory_space<vmem>>, vector<16x16xf32>
    %c0_57 = arith.constant 0 : index
    %c0_58 = arith.constant 0 : index
    %275 = vector.load %arg5[%c0_57, %c0_58] : memref<16x128xf32, #tpu.memory_space<vmem>>, vector<16x128xf32>
    %cst_59 = arith.constant dense<0.000000e+00> : vector<16x128xf32>
    %276 = tpu.matmul %274, %275, %cst_59 {dimension_numbers = #tpu.dot_dimension_numbers<[1], [0], [0], [1], [0, 0, 1, 1], [], []>} : vector<16x16xf32>, vector<16x128xf32>, vector<16x128xf32> -> vector<16x128xf32>
    %c0_60 = arith.constant 0 : index
    %c0_61 = arith.constant 0 : index
    %277 = vector.load %arg7[%c0_60, %c0_61] : memref<1x128xf32, #tpu.memory_space<vmem>>, vector<1x128xf32>
    %278 = vector.broadcast %277 : vector<1x128xf32> to vector<16x128xf32>
    %279 = arith.addf %276, %278 : vector<16x128xf32>
    %cst_62 = arith.constant 0.000000e+00 : f32
    %280 = vector.broadcast %cst_62 : f32 to vector<2x32xf32>
    %cst_63 = arith.constant 0.000000e+00 : f32
    %281 = vector.broadcast %cst_63 : f32 to vector<2x32xf32>
    %cst_64 = arith.constant 0.000000e+00 : f32
    %282 = vector.broadcast %cst_64 : f32 to vector<2x32xf32>
    %c0_65 = arith.constant 0 : index
    %c0_66 = arith.constant 0 : index
    %283 = vector.load %arg2[%c0_65, %c0_66] : memref<2x1xi32, #tpu.memory_space<vmem>>, vector<2x1xi32>
    %c1_i32_67 = arith.constant 1 : i32
    %284 = vector.broadcast %c1_i32_67 : i32 to vector<2x1xi32>
    %285 = arith.subi %283, %284 : vector<2x1xi32>
    %286 = vector.extract_strided_slice %279 {offsets = [0, 0], sizes = [2, 128], strides = [1, 1]} : vector<16x128xf32> to vector<2x128xf32>
    %c0_68 = arith.constant 0 : index
    %c0_69 = arith.constant 0 : index
    %287 = vector.load %arg6[%c0_68, %c0_69] : memref<32x128xf32, #tpu.memory_space<vmem>>, vector<32x128xf32>
    %cst_70 = arith.constant dense<0.000000e+00> : vector<2x128xf32>
    %288 = tpu.matmul %280, %287, %cst_70 {dimension_numbers = #tpu.dot_dimension_numbers<[1], [0], [0], [1], [0, 0, 1, 1], [], []>} : vector<2x32xf32>, vector<32x128xf32>, vector<2x128xf32> -> vector<2x128xf32>
    %289 = arith.addf %286, %288 : vector<2x128xf32>
    %290 = vector.extract_strided_slice %289 {offsets = [0, 0], sizes = [2, 96], strides = [1, 1]} : vector<2x128xf32> to vector<2x96xf32>
    %291 = arith.negf %290 : vector<2x96xf32>
    %292 = math.exp %291 : vector<2x96xf32>
    %cst_71 = arith.constant 1.000000e+00 : f32
    %293 = vector.broadcast %cst_71 : f32 to vector<2x96xf32>
    %294 = arith.addf %293, %292 : vector<2x96xf32>
    %295 = arith.divf %293, %294 : vector<2x96xf32>
    %296 = vector.extract_strided_slice %289 {offsets = [0, 96], sizes = [2, 32], strides = [1, 1]} : vector<2x128xf32> to vector<2x32xf32>
    %297 = math.tanh %296 : vector<2x32xf32>
    %298 = vector.extract_strided_slice %295 {offsets = [0, 32], sizes = [2, 32], strides = [1, 1]} : vector<2x96xf32> to vector<2x32xf32>
    %299 = arith.mulf %298, %281 : vector<2x32xf32>
    %300 = vector.extract_strided_slice %295 {offsets = [0, 0], sizes = [2, 32], strides = [1, 1]} : vector<2x96xf32> to vector<2x32xf32>
    %301 = arith.mulf %300, %297 : vector<2x32xf32>
    %302 = arith.addf %299, %301 : vector<2x32xf32>
    %303 = vector.extract_strided_slice %295 {offsets = [0, 64], sizes = [2, 32], strides = [1, 1]} : vector<2x96xf32> to vector<2x32xf32>
    %304 = math.tanh %302 : vector<2x32xf32>
    %305 = arith.mulf %303, %304 : vector<2x32xf32>
    %c0_i32_72 = arith.constant 0 : i32
    %306 = vector.broadcast %c0_i32_72 : i32 to vector<2x1xi32>
    %307 = arith.cmpi eq, %285, %306 : vector<2x1xi32>
    %308 = vector.shape_cast %307 : vector<2x1xi1> to vector<2x1xi1>
    %309 = vector.broadcast %308 : vector<2x1xi1> to vector<2x32xi1>
    %310 = arith.select %309, %305, %282 : vector<2x32xi1>, vector<2x32xf32>
    %311 = vector.extract_strided_slice %279 {offsets = [2, 0], sizes = [2, 128], strides = [1, 1]} : vector<16x128xf32> to vector<2x128xf32>
    %c0_73 = arith.constant 0 : index
    %c0_74 = arith.constant 0 : index
    %312 = vector.load %arg6[%c0_73, %c0_74] : memref<32x128xf32, #tpu.memory_space<vmem>>, vector<32x128xf32>
    %cst_75 = arith.constant dense<0.000000e+00> : vector<2x128xf32>
    %313 = tpu.matmul %305, %312, %cst_75 {dimension_numbers = #tpu.dot_dimension_numbers<[1], [0], [0], [1], [0, 0, 1, 1], [], []>} : vector<2x32xf32>, vector<32x128xf32>, vector<2x128xf32> -> vector<2x128xf32>
    %314 = arith.addf %311, %313 : vector<2x128xf32>
    %315 = vector.extract_strided_slice %314 {offsets = [0, 0], sizes = [2, 96], strides = [1, 1]} : vector<2x128xf32> to vector<2x96xf32>
    %316 = arith.negf %315 : vector<2x96xf32>
    %317 = math.exp %316 : vector<2x96xf32>
    %cst_76 = arith.constant 1.000000e+00 : f32
    %318 = vector.broadcast %cst_76 : f32 to vector<2x96xf32>
    %319 = arith.addf %318, %317 : vector<2x96xf32>
    %320 = arith.divf %318, %319 : vector<2x96xf32>
    %321 = vector.extract_strided_slice %314 {offsets = [0, 96], sizes = [2, 32], strides = [1, 1]} : vector<2x128xf32> to vector<2x32xf32>
    %322 = math.tanh %321 : vector<2x32xf32>
    %323 = vector.extract_strided_slice %320 {offsets = [0, 32], sizes = [2, 32], strides = [1, 1]} : vector<2x96xf32> to vector<2x32xf32>
    %324 = arith.mulf %323, %302 : vector<2x32xf32>
    %325 = vector.extract_strided_slice %320 {offsets = [0, 0], sizes = [2, 32], strides = [1, 1]} : vector<2x96xf32> to vector<2x32xf32>
    %326 = arith.mulf %325, %322 : vector<2x32xf32>
    %327 = arith.addf %324, %326 : vector<2x32xf32>
    %328 = vector.extract_strided_slice %320 {offsets = [0, 64], sizes = [2, 32], strides = [1, 1]} : vector<2x96xf32> to vector<2x32xf32>
    %329 = math.tanh %327 : vector<2x32xf32>
    %330 = arith.mulf %328, %329 : vector<2x32xf32>
    %c1_i32_77 = arith.constant 1 : i32
    %331 = vector.broadcast %c1_i32_77 : i32 to vector<2x1xi32>
    %332 = arith.cmpi eq, %285, %331 : vector<2x1xi32>
    %333 = vector.shape_cast %332 : vector<2x1xi1> to vector<2x1xi1>
    %334 = vector.broadcast %333 : vector<2x1xi1> to vector<2x32xi1>
    %335 = arith.select %334, %330, %310 : vector<2x32xi1>, vector<2x32xf32>
    %336 = vector.extract_strided_slice %279 {offsets = [4, 0], sizes = [2, 128], strides = [1, 1]} : vector<16x128xf32> to vector<2x128xf32>
    %c0_78 = arith.constant 0 : index
    %c0_79 = arith.constant 0 : index
    %337 = vector.load %arg6[%c0_78, %c0_79] : memref<32x128xf32, #tpu.memory_space<vmem>>, vector<32x128xf32>
    %cst_80 = arith.constant dense<0.000000e+00> : vector<2x128xf32>
    %338 = tpu.matmul %330, %337, %cst_80 {dimension_numbers = #tpu.dot_dimension_numbers<[1], [0], [0], [1], [0, 0, 1, 1], [], []>} : vector<2x32xf32>, vector<32x128xf32>, vector<2x128xf32> -> vector<2x128xf32>
    %339 = arith.addf %336, %338 : vector<2x128xf32>
    %340 = vector.extract_strided_slice %339 {offsets = [0, 0], sizes = [2, 96], strides = [1, 1]} : vector<2x128xf32> to vector<2x96xf32>
    %341 = arith.negf %340 : vector<2x96xf32>
    %342 = math.exp %341 : vector<2x96xf32>
    %cst_81 = arith.constant 1.000000e+00 : f32
    %343 = vector.broadcast %cst_81 : f32 to vector<2x96xf32>
    %344 = arith.addf %343, %342 : vector<2x96xf32>
    %345 = arith.divf %343, %344 : vector<2x96xf32>
    %346 = vector.extract_strided_slice %339 {offsets = [0, 96], sizes = [2, 32], strides = [1, 1]} : vector<2x128xf32> to vector<2x32xf32>
    %347 = math.tanh %346 : vector<2x32xf32>
    %348 = vector.extract_strided_slice %345 {offsets = [0, 32], sizes = [2, 32], strides = [1, 1]} : vector<2x96xf32> to vector<2x32xf32>
    %349 = arith.mulf %348, %327 : vector<2x32xf32>
    %350 = vector.extract_strided_slice %345 {offsets = [0, 0], sizes = [2, 32], strides = [1, 1]} : vector<2x96xf32> to vector<2x32xf32>
    %351 = arith.mulf %350, %347 : vector<2x32xf32>
    %352 = arith.addf %349, %351 : vector<2x32xf32>
    %353 = vector.extract_strided_slice %345 {offsets = [0, 64], sizes = [2, 32], strides = [1, 1]} : vector<2x96xf32> to vector<2x32xf32>
    %354 = math.tanh %352 : vector<2x32xf32>
    %355 = arith.mulf %353, %354 : vector<2x32xf32>
    %c2_i32_82 = arith.constant 2 : i32
    %356 = vector.broadcast %c2_i32_82 : i32 to vector<2x1xi32>
    %357 = arith.cmpi eq, %285, %356 : vector<2x1xi32>
    %358 = vector.shape_cast %357 : vector<2x1xi1> to vector<2x1xi1>
    %359 = vector.broadcast %358 : vector<2x1xi1> to vector<2x32xi1>
    %360 = arith.select %359, %355, %335 : vector<2x32xi1>, vector<2x32xf32>
    %361 = vector.extract_strided_slice %279 {offsets = [6, 0], sizes = [2, 128], strides = [1, 1]} : vector<16x128xf32> to vector<2x128xf32>
    %c0_83 = arith.constant 0 : index
    %c0_84 = arith.constant 0 : index
    %362 = vector.load %arg6[%c0_83, %c0_84] : memref<32x128xf32, #tpu.memory_space<vmem>>, vector<32x128xf32>
    %cst_85 = arith.constant dense<0.000000e+00> : vector<2x128xf32>
    %363 = tpu.matmul %355, %362, %cst_85 {dimension_numbers = #tpu.dot_dimension_numbers<[1], [0], [0], [1], [0, 0, 1, 1], [], []>} : vector<2x32xf32>, vector<32x128xf32>, vector<2x128xf32> -> vector<2x128xf32>
    %364 = arith.addf %361, %363 : vector<2x128xf32>
    %365 = vector.extract_strided_slice %364 {offsets = [0, 0], sizes = [2, 96], strides = [1, 1]} : vector<2x128xf32> to vector<2x96xf32>
    %366 = arith.negf %365 : vector<2x96xf32>
    %367 = math.exp %366 : vector<2x96xf32>
    %cst_86 = arith.constant 1.000000e+00 : f32
    %368 = vector.broadcast %cst_86 : f32 to vector<2x96xf32>
    %369 = arith.addf %368, %367 : vector<2x96xf32>
    %370 = arith.divf %368, %369 : vector<2x96xf32>
    %371 = vector.extract_strided_slice %364 {offsets = [0, 96], sizes = [2, 32], strides = [1, 1]} : vector<2x128xf32> to vector<2x32xf32>
    %372 = math.tanh %371 : vector<2x32xf32>
    %373 = vector.extract_strided_slice %370 {offsets = [0, 32], sizes = [2, 32], strides = [1, 1]} : vector<2x96xf32> to vector<2x32xf32>
    %374 = arith.mulf %373, %352 : vector<2x32xf32>
    %375 = vector.extract_strided_slice %370 {offsets = [0, 0], sizes = [2, 32], strides = [1, 1]} : vector<2x96xf32> to vector<2x32xf32>
    %376 = arith.mulf %375, %372 : vector<2x32xf32>
    %377 = arith.addf %374, %376 : vector<2x32xf32>
    %378 = vector.extract_strided_slice %370 {offsets = [0, 64], sizes = [2, 32], strides = [1, 1]} : vector<2x96xf32> to vector<2x32xf32>
    %379 = math.tanh %377 : vector<2x32xf32>
    %380 = arith.mulf %378, %379 : vector<2x32xf32>
    %c3_i32_87 = arith.constant 3 : i32
    %381 = vector.broadcast %c3_i32_87 : i32 to vector<2x1xi32>
    %382 = arith.cmpi eq, %285, %381 : vector<2x1xi32>
    %383 = vector.shape_cast %382 : vector<2x1xi1> to vector<2x1xi1>
    %384 = vector.broadcast %383 : vector<2x1xi1> to vector<2x32xi1>
    %385 = arith.select %384, %380, %360 : vector<2x32xi1>, vector<2x32xf32>
    %386 = vector.extract_strided_slice %279 {offsets = [8, 0], sizes = [2, 128], strides = [1, 1]} : vector<16x128xf32> to vector<2x128xf32>
    %c0_88 = arith.constant 0 : index
    %c0_89 = arith.constant 0 : index
    %387 = vector.load %arg6[%c0_88, %c0_89] : memref<32x128xf32, #tpu.memory_space<vmem>>, vector<32x128xf32>
    %cst_90 = arith.constant dense<0.000000e+00> : vector<2x128xf32>
    %388 = tpu.matmul %380, %387, %cst_90 {dimension_numbers = #tpu.dot_dimension_numbers<[1], [0], [0], [1], [0, 0, 1, 1], [], []>} : vector<2x32xf32>, vector<32x128xf32>, vector<2x128xf32> -> vector<2x128xf32>
    %389 = arith.addf %386, %388 : vector<2x128xf32>
    %390 = vector.extract_strided_slice %389 {offsets = [0, 0], sizes = [2, 96], strides = [1, 1]} : vector<2x128xf32> to vector<2x96xf32>
    %391 = arith.negf %390 : vector<2x96xf32>
    %392 = math.exp %391 : vector<2x96xf32>
    %cst_91 = arith.constant 1.000000e+00 : f32
    %393 = vector.broadcast %cst_91 : f32 to vector<2x96xf32>
    %394 = arith.addf %393, %392 : vector<2x96xf32>
    %395 = arith.divf %393, %394 : vector<2x96xf32>
    %396 = vector.extract_strided_slice %389 {offsets = [0, 96], sizes = [2, 32], strides = [1, 1]} : vector<2x128xf32> to vector<2x32xf32>
    %397 = math.tanh %396 : vector<2x32xf32>
    %398 = vector.extract_strided_slice %395 {offsets = [0, 32], sizes = [2, 32], strides = [1, 1]} : vector<2x96xf32> to vector<2x32xf32>
    %399 = arith.mulf %398, %377 : vector<2x32xf32>
    %400 = vector.extract_strided_slice %395 {offsets = [0, 0], sizes = [2, 32], strides = [1, 1]} : vector<2x96xf32> to vector<2x32xf32>
    %401 = arith.mulf %400, %397 : vector<2x32xf32>
    %402 = arith.addf %399, %401 : vector<2x32xf32>
    %403 = vector.extract_strided_slice %395 {offsets = [0, 64], sizes = [2, 32], strides = [1, 1]} : vector<2x96xf32> to vector<2x32xf32>
    %404 = math.tanh %402 : vector<2x32xf32>
    %405 = arith.mulf %403, %404 : vector<2x32xf32>
    %c4_i32_92 = arith.constant 4 : i32
    %406 = vector.broadcast %c4_i32_92 : i32 to vector<2x1xi32>
    %407 = arith.cmpi eq, %285, %406 : vector<2x1xi32>
    %408 = vector.shape_cast %407 : vector<2x1xi1> to vector<2x1xi1>
    %409 = vector.broadcast %408 : vector<2x1xi1> to vector<2x32xi1>
    %410 = arith.select %409, %405, %385 : vector<2x32xi1>, vector<2x32xf32>
    %411 = vector.extract_strided_slice %279 {offsets = [10, 0], sizes = [2, 128], strides = [1, 1]} : vector<16x128xf32> to vector<2x128xf32>
    %c0_93 = arith.constant 0 : index
    %c0_94 = arith.constant 0 : index
    %412 = vector.load %arg6[%c0_93, %c0_94] : memref<32x128xf32, #tpu.memory_space<vmem>>, vector<32x128xf32>
    %cst_95 = arith.constant dense<0.000000e+00> : vector<2x128xf32>
    %413 = tpu.matmul %405, %412, %cst_95 {dimension_numbers = #tpu.dot_dimension_numbers<[1], [0], [0], [1], [0, 0, 1, 1], [], []>} : vector<2x32xf32>, vector<32x128xf32>, vector<2x128xf32> -> vector<2x128xf32>
    %414 = arith.addf %411, %413 : vector<2x128xf32>
    %415 = vector.extract_strided_slice %414 {offsets = [0, 0], sizes = [2, 96], strides = [1, 1]} : vector<2x128xf32> to vector<2x96xf32>
    %416 = arith.negf %415 : vector<2x96xf32>
    %417 = math.exp %416 : vector<2x96xf32>
    %cst_96 = arith.constant 1.000000e+00 : f32
    %418 = vector.broadcast %cst_96 : f32 to vector<2x96xf32>
    %419 = arith.addf %418, %417 : vector<2x96xf32>
    %420 = arith.divf %418, %419 : vector<2x96xf32>
    %421 = vector.extract_strided_slice %414 {offsets = [0, 96], sizes = [2, 32], strides = [1, 1]} : vector<2x128xf32> to vector<2x32xf32>
    %422 = math.tanh %421 : vector<2x32xf32>
    %423 = vector.extract_strided_slice %420 {offsets = [0, 32], sizes = [2, 32], strides = [1, 1]} : vector<2x96xf32> to vector<2x32xf32>
    %424 = arith.mulf %423, %402 : vector<2x32xf32>
    %425 = vector.extract_strided_slice %420 {offsets = [0, 0], sizes = [2, 32], strides = [1, 1]} : vector<2x96xf32> to vector<2x32xf32>
    %426 = arith.mulf %425, %422 : vector<2x32xf32>
    %427 = arith.addf %424, %426 : vector<2x32xf32>
    %428 = vector.extract_strided_slice %420 {offsets = [0, 64], sizes = [2, 32], strides = [1, 1]} : vector<2x96xf32> to vector<2x32xf32>
    %429 = math.tanh %427 : vector<2x32xf32>
    %430 = arith.mulf %428, %429 : vector<2x32xf32>
    %c5_i32_97 = arith.constant 5 : i32
    %431 = vector.broadcast %c5_i32_97 : i32 to vector<2x1xi32>
    %432 = arith.cmpi eq, %285, %431 : vector<2x1xi32>
    %433 = vector.shape_cast %432 : vector<2x1xi1> to vector<2x1xi1>
    %434 = vector.broadcast %433 : vector<2x1xi1> to vector<2x32xi1>
    %435 = arith.select %434, %430, %410 : vector<2x32xi1>, vector<2x32xf32>
    %436 = vector.extract_strided_slice %279 {offsets = [12, 0], sizes = [2, 128], strides = [1, 1]} : vector<16x128xf32> to vector<2x128xf32>
    %c0_98 = arith.constant 0 : index
    %c0_99 = arith.constant 0 : index
    %437 = vector.load %arg6[%c0_98, %c0_99] : memref<32x128xf32, #tpu.memory_space<vmem>>, vector<32x128xf32>
    %cst_100 = arith.constant dense<0.000000e+00> : vector<2x128xf32>
    %438 = tpu.matmul %430, %437, %cst_100 {dimension_numbers = #tpu.dot_dimension_numbers<[1], [0], [0], [1], [0, 0, 1, 1], [], []>} : vector<2x32xf32>, vector<32x128xf32>, vector<2x128xf32> -> vector<2x128xf32>
    %439 = arith.addf %436, %438 : vector<2x128xf32>
    %440 = vector.extract_strided_slice %439 {offsets = [0, 0], sizes = [2, 96], strides = [1, 1]} : vector<2x128xf32> to vector<2x96xf32>
    %441 = arith.negf %440 : vector<2x96xf32>
    %442 = math.exp %441 : vector<2x96xf32>
    %cst_101 = arith.constant 1.000000e+00 : f32
    %443 = vector.broadcast %cst_101 : f32 to vector<2x96xf32>
    %444 = arith.addf %443, %442 : vector<2x96xf32>
    %445 = arith.divf %443, %444 : vector<2x96xf32>
    %446 = vector.extract_strided_slice %439 {offsets = [0, 96], sizes = [2, 32], strides = [1, 1]} : vector<2x128xf32> to vector<2x32xf32>
    %447 = math.tanh %446 : vector<2x32xf32>
    %448 = vector.extract_strided_slice %445 {offsets = [0, 32], sizes = [2, 32], strides = [1, 1]} : vector<2x96xf32> to vector<2x32xf32>
    %449 = arith.mulf %448, %427 : vector<2x32xf32>
    %450 = vector.extract_strided_slice %445 {offsets = [0, 0], sizes = [2, 32], strides = [1, 1]} : vector<2x96xf32> to vector<2x32xf32>
    %451 = arith.mulf %450, %447 : vector<2x32xf32>
    %452 = arith.addf %449, %451 : vector<2x32xf32>
    %453 = vector.extract_strided_slice %445 {offsets = [0, 64], sizes = [2, 32], strides = [1, 1]} : vector<2x96xf32> to vector<2x32xf32>
    %454 = math.tanh %452 : vector<2x32xf32>
    %455 = arith.mulf %453, %454 : vector<2x32xf32>
    %c6_i32_102 = arith.constant 6 : i32
    %456 = vector.broadcast %c6_i32_102 : i32 to vector<2x1xi32>
    %457 = arith.cmpi eq, %285, %456 : vector<2x1xi32>
    %458 = vector.shape_cast %457 : vector<2x1xi1> to vector<2x1xi1>
    %459 = vector.broadcast %458 : vector<2x1xi1> to vector<2x32xi1>
    %460 = arith.select %459, %455, %435 : vector<2x32xi1>, vector<2x32xf32>
    %461 = vector.extract_strided_slice %279 {offsets = [14, 0], sizes = [2, 128], strides = [1, 1]} : vector<16x128xf32> to vector<2x128xf32>
    %c0_103 = arith.constant 0 : index
    %c0_104 = arith.constant 0 : index
    %462 = vector.load %arg6[%c0_103, %c0_104] : memref<32x128xf32, #tpu.memory_space<vmem>>, vector<32x128xf32>
    %cst_105 = arith.constant dense<0.000000e+00> : vector<2x128xf32>
    %463 = tpu.matmul %455, %462, %cst_105 {dimension_numbers = #tpu.dot_dimension_numbers<[1], [0], [0], [1], [0, 0, 1, 1], [], []>} : vector<2x32xf32>, vector<32x128xf32>, vector<2x128xf32> -> vector<2x128xf32>
    %464 = arith.addf %461, %463 : vector<2x128xf32>
    %465 = vector.extract_strided_slice %464 {offsets = [0, 0], sizes = [2, 96], strides = [1, 1]} : vector<2x128xf32> to vector<2x96xf32>
    %466 = arith.negf %465 : vector<2x96xf32>
    %467 = math.exp %466 : vector<2x96xf32>
    %cst_106 = arith.constant 1.000000e+00 : f32
    %468 = vector.broadcast %cst_106 : f32 to vector<2x96xf32>
    %469 = arith.addf %468, %467 : vector<2x96xf32>
    %470 = arith.divf %468, %469 : vector<2x96xf32>
    %471 = vector.extract_strided_slice %464 {offsets = [0, 96], sizes = [2, 32], strides = [1, 1]} : vector<2x128xf32> to vector<2x32xf32>
    %472 = math.tanh %471 : vector<2x32xf32>
    %473 = vector.extract_strided_slice %470 {offsets = [0, 32], sizes = [2, 32], strides = [1, 1]} : vector<2x96xf32> to vector<2x32xf32>
    %474 = arith.mulf %473, %452 : vector<2x32xf32>
    %475 = vector.extract_strided_slice %470 {offsets = [0, 0], sizes = [2, 32], strides = [1, 1]} : vector<2x96xf32> to vector<2x32xf32>
    %476 = arith.mulf %475, %472 : vector<2x32xf32>
    %477 = arith.addf %474, %476 : vector<2x32xf32>
    %478 = vector.extract_strided_slice %470 {offsets = [0, 64], sizes = [2, 32], strides = [1, 1]} : vector<2x96xf32> to vector<2x32xf32>
    %479 = math.tanh %477 : vector<2x32xf32>
    %480 = arith.mulf %478, %479 : vector<2x32xf32>
    %c7_i32_107 = arith.constant 7 : i32
    %481 = vector.broadcast %c7_i32_107 : i32 to vector<2x1xi32>
    %482 = arith.cmpi eq, %285, %481 : vector<2x1xi32>
    %483 = vector.shape_cast %482 : vector<2x1xi1> to vector<2x1xi1>
    %484 = vector.broadcast %483 : vector<2x1xi1> to vector<2x32xi1>
    %485 = arith.select %484, %480, %460 : vector<2x32xi1>, vector<2x32xf32>
    %c0_108 = arith.constant 0 : index
    %c0_109 = arith.constant 0 : index
    %486 = vector.load %arg8[%c0_108, %c0_109] : memref<32x32xf32, #tpu.memory_space<vmem>>, vector<32x32xf32>
    %cst_110 = arith.constant dense<0.000000e+00> : vector<2x32xf32>
    %487 = tpu.matmul %485, %486, %cst_110 {dimension_numbers = #tpu.dot_dimension_numbers<[1], [0], [0], [1], [0, 0, 1, 1], [], []>} : vector<2x32xf32>, vector<32x32xf32>, vector<2x32xf32> -> vector<2x32xf32>
    %c0_111 = arith.constant 0 : index
    %c0_112 = arith.constant 0 : index
    %488 = vector.load %arg9[%c0_111, %c0_112] : memref<1x32xf32, #tpu.memory_space<vmem>>, vector<1x32xf32>
    %489 = vector.broadcast %488 : vector<1x32xf32> to vector<2x32xf32>
    %490 = arith.addf %487, %489 : vector<2x32xf32>
    %c0_113 = arith.constant 0 : index
    %c0_114 = arith.constant 0 : index
    %491 = vector.load %arg10[%c0_113, %c0_114] : memref<32x32xf32, #tpu.memory_space<vmem>>, vector<32x32xf32>
    %cst_115 = arith.constant dense<0.000000e+00> : vector<512x32xf32>
    %492 = tpu.matmul %273, %491, %cst_115 {dimension_numbers = #tpu.dot_dimension_numbers<[1], [0], [0], [1], [0, 0, 1, 1], [], []>} : vector<512x32xf32>, vector<32x32xf32>, vector<512x32xf32> -> vector<512x32xf32>
    %c0_116 = arith.constant 0 : index
    %c0_117 = arith.constant 0 : index
    %493 = vector.load %arg11[%c0_116, %c0_117] : memref<1x32xf32, #tpu.memory_space<vmem>>, vector<1x32xf32>
    %494 = vector.broadcast %493 : vector<1x32xf32> to vector<512x32xf32>
    %495 = arith.addf %492, %494 : vector<512x32xf32>
    %496 = vector.shape_cast %490 : vector<2x32xf32> to vector<2x1x32xf32>
    %497 = vector.shape_cast %496 : vector<2x1x32xf32> to vector<2x1x32xf32>
    %498 = vector.broadcast %497 : vector<2x1x32xf32> to vector<2x256x32xf32>
    %499 = vector.shape_cast %498 : vector<2x256x32xf32> to vector<512x32xf32>
    %500 = arith.mulf %495, %499 : vector<512x32xf32>
    %501 = arith.mulf %500, %500 : vector<512x32xf32>
    %cst_118 = arith.constant dense<0.000000e+00> : vector<512xf32>
    %502 = vector.multi_reduction <add>, %501, %cst_118 [1] : vector<512x32xf32> to vector<512xf32>
    %503 = vector.shape_cast %502 : vector<512xf32> to vector<512x1xf32>
    %cst_119 = arith.constant 1.000000e-24 : f32
    %504 = vector.broadcast %cst_119 : f32 to vector<512x1xf32>
    %505 = arith.maximumf %503, %504 : vector<512x1xf32>
    %506 = math.rsqrt %505 : vector<512x1xf32>
    %507 = vector.broadcast %506 : vector<512x1xf32> to vector<512x32xf32>
    %508 = arith.mulf %500, %507 : vector<512x32xf32>
    %cst_120 = arith.constant 0.000000e+00 : f32
    %509 = vector.broadcast %cst_120 : f32 to vector<2x2x26x32xf32>
    %c0_121 = arith.constant 0 : index
    %c0_122 = arith.constant 0 : index
    %c0_123 = arith.constant 0 : index
    %c0_124 = arith.constant 0 : index
    %510 = vector.load %arg22[%c0_121, %c0_122, %c0_123, %c0_124] : memref<2x20x26x32xf32, #tpu.memory_space<vmem>>, vector<2x2x26x32xf32>
    tpu.vector_store %arg22[%c0_121, %c0_122, %c0_123, %c0_124], %509 {strides = array<i32>} : memref<2x20x26x32xf32, #tpu.memory_space<vmem>>, vector<2x2x26x32xf32>,
    %cst_125 = arith.constant 0.000000e+00 : f32
    %511 = vector.broadcast %cst_125 : f32 to vector<2x2x26x32xf32>
    %c0_126 = arith.constant 0 : index
    %c18 = arith.constant 18 : index
    %c0_127 = arith.constant 0 : index
    %c0_128 = arith.constant 0 : index
    %512 = vector.load %arg22[%c0_126, %c18, %c0_127, %c0_128] : memref<2x20x26x32xf32, #tpu.memory_space<vmem>>, vector<2x2x26x32xf32>
    tpu.vector_store %arg22[%c0_126, %c18, %c0_127, %c0_128], %511 {strides = array<i32>} : memref<2x20x26x32xf32, #tpu.memory_space<vmem>>, vector<2x2x26x32xf32>,
    %cst_129 = arith.constant 0.000000e+00 : f32
    %513 = vector.broadcast %cst_129 : f32 to vector<2x16x2x32xf32>
    %c0_130 = arith.constant 0 : index
    %c2 = arith.constant 2 : index
    %c0_131 = arith.constant 0 : index
    %c0_132 = arith.constant 0 : index
    %514 = vector.load %arg22[%c0_130, %c2, %c0_131, %c0_132] : memref<2x20x26x32xf32, #tpu.memory_space<vmem>>, vector<2x16x2x32xf32>
    tpu.vector_store %arg22[%c0_130, %c2, %c0_131, %c0_132], %513 {strides = array<i32>} : memref<2x20x26x32xf32, #tpu.memory_space<vmem>>, vector<2x16x2x32xf32>,
    %cst_133 = arith.constant 0.000000e+00 : f32
    %515 = vector.broadcast %cst_133 : f32 to vector<2x16x8x32xf32>
    %c0_134 = arith.constant 0 : index
    %c2_135 = arith.constant 2 : index
    %c18_136 = arith.constant 18 : index
    %c0_137 = arith.constant 0 : index
    %516 = vector.load %arg22[%c0_134, %c2_135, %c18_136, %c0_137] : memref<2x20x26x32xf32, #tpu.memory_space<vmem>>, vector<2x16x8x32xf32>
    tpu.vector_store %arg22[%c0_134, %c2_135, %c18_136, %c0_137], %515 {strides = array<i32>} : memref<2x20x26x32xf32, #tpu.memory_space<vmem>>, vector<2x16x8x32xf32>,
    %517 = vector.shape_cast %508 : vector<512x32xf32> to vector<2x16x16x32xf32>
    %c0_138 = arith.constant 0 : index
    %c2_139 = arith.constant 2 : index
    %c2_140 = arith.constant 2 : index
    %c0_141 = arith.constant 0 : index
    %518 = vector.load %arg22[%c0_138, %c2_139, %c2_140, %c0_141] : memref<2x20x26x32xf32, #tpu.memory_space<vmem>>, vector<2x16x16x32xf32>
    tpu.vector_store %arg22[%c0_138, %c2_139, %c2_140, %c0_141], %517 {strides = array<i32>} : memref<2x20x26x32xf32, #tpu.memory_space<vmem>>, vector<2x16x16x32xf32>,
    %c0_142 = arith.constant 0 : index
    %c0_143 = arith.constant 0 : index
    %c0_144 = arith.constant 0 : index
    %c0_145 = arith.constant 0 : index
    %519 = vector.load %arg22[%c0_142, %c0_143, %c0_144, %c0_145] : memref<2x20x26x32xf32, #tpu.memory_space<vmem>>, vector<2x20x24x32xf32>
    %c0_146 = arith.constant 0 : index
    %c0_147 = arith.constant 0 : index
    %c1 = arith.constant 1 : index
    %c0_148 = arith.constant 0 : index
    %520 = vector.load %arg22[%c0_146, %c0_147, %c1, %c0_148] : memref<2x20x26x32xf32, #tpu.memory_space<vmem>>, vector<2x20x24x32xf32>
    %c0_149 = arith.constant 0 : index
    %c0_150 = arith.constant 0 : index
    %c2_151 = arith.constant 2 : index
    %c0_152 = arith.constant 0 : index
    %521 = vector.load %arg22[%c0_149, %c0_150, %c2_151, %c0_152] : memref<2x20x26x32xf32, #tpu.memory_space<vmem>>, vector<2x20x24x32xf32>
    %522 = tpu.concatenate %519, %520, %521 in 3 : vector<2x20x24x32xf32>, vector<2x20x24x32xf32>, vector<2x20x24x32xf32> -> vector<2x20x24x96xf32>
    %523 = vector.extract_strided_slice %522 {offsets = [0, 0, 0, 0], sizes = [2, 18, 24, 96], strides = [1, 1, 1, 1]} : vector<2x20x24x96xf32> to vector<2x18x24x96xf32>
    %524 = vector.shape_cast %523 : vector<2x18x24x96xf32> to vector<864x96xf32>
    %c0_153 = arith.constant 0 : index
    %c0_154 = arith.constant 0 : index
    %c0_155 = arith.constant 0 : index
    %525 = vector.load %arg12[%c0_153, %c0_154, %c0_155] : memref<3x96x32xf32, #tpu.memory_space<vmem>>, vector<1x96x32xf32>
    %526 = vector.shape_cast %525 : vector<1x96x32xf32> to vector<96x32xf32>
    %cst_156 = arith.constant dense<0.000000e+00> : vector<864x32xf32>
    %527 = tpu.matmul %524, %526, %cst_156 {dimension_numbers = #tpu.dot_dimension_numbers<[1], [0], [0], [1], [0, 0, 1, 1], [], []>} : vector<864x96xf32>, vector<96x32xf32>, vector<864x32xf32> -> vector<864x32xf32>
    %528 = vector.extract_strided_slice %522 {offsets = [0, 1, 0, 0], sizes = [2, 18, 24, 96], strides = [1, 1, 1, 1]} : vector<2x20x24x96xf32> to vector<2x18x24x96xf32>
    %529 = vector.shape_cast %528 : vector<2x18x24x96xf32> to vector<864x96xf32>
    %c1_157 = arith.constant 1 : index
    %c0_158 = arith.constant 0 : index
    %c0_159 = arith.constant 0 : index
    %530 = vector.load %arg12[%c1_157, %c0_158, %c0_159] : memref<3x96x32xf32, #tpu.memory_space<vmem>>, vector<1x96x32xf32>
    %531 = vector.shape_cast %530 : vector<1x96x32xf32> to vector<96x32xf32>
    %cst_160 = arith.constant dense<0.000000e+00> : vector<864x32xf32>
    %532 = tpu.matmul %529, %531, %cst_160 {dimension_numbers = #tpu.dot_dimension_numbers<[1], [0], [0], [1], [0, 0, 1, 1], [], []>} : vector<864x96xf32>, vector<96x32xf32>, vector<864x32xf32> -> vector<864x32xf32>
    %533 = arith.addf %527, %532 : vector<864x32xf32>
    %534 = vector.extract_strided_slice %522 {offsets = [0, 2, 0, 0], sizes = [2, 18, 24, 96], strides = [1, 1, 1, 1]} : vector<2x20x24x96xf32> to vector<2x18x24x96xf32>
    %535 = vector.shape_cast %534 : vector<2x18x24x96xf32> to vector<864x96xf32>
    %c2_161 = arith.constant 2 : index
    %c0_162 = arith.constant 0 : index
    %c0_163 = arith.constant 0 : index
    %536 = vector.load %arg12[%c2_161, %c0_162, %c0_163] : memref<3x96x32xf32, #tpu.memory_space<vmem>>, vector<1x96x32xf32>
    %537 = vector.shape_cast %536 : vector<1x96x32xf32> to vector<96x32xf32>
    %cst_164 = arith.constant dense<0.000000e+00> : vector<864x32xf32>
    %538 = tpu.matmul %535, %537, %cst_164 {dimension_numbers = #tpu.dot_dimension_numbers<[1], [0], [0], [1], [0, 0, 1, 1], [], []>} : vector<864x96xf32>, vector<96x32xf32>, vector<864x32xf32> -> vector<864x32xf32>
    %539 = arith.addf %533, %538 : vector<864x32xf32>
    %c0_165 = arith.constant 0 : index
    %c0_166 = arith.constant 0 : index
    %540 = vector.load %arg13[%c0_165, %c0_166] : memref<1x32xf32, #tpu.memory_space<vmem>>, vector<1x32xf32>
    %541 = vector.broadcast %540 : vector<1x32xf32> to vector<864x32xf32>
    %542 = arith.addf %539, %541 : vector<864x32xf32>
    %cst_167 = arith.constant 0.000000e+00 : f32
    %543 = vector.broadcast %cst_167 : f32 to vector<864x32xf32>
    %544 = arith.maximumf %542, %543 : vector<864x32xf32>
    %545 = vector.shape_cast %544 : vector<864x32xf32> to vector<2x18x24x32xf32>
    %c0_168 = arith.constant 0 : index
    %c0_169 = arith.constant 0 : index
    %c0_170 = arith.constant 0 : index
    %c0_171 = arith.constant 0 : index
    %546 = vector.load %arg14[%c0_168, %c0_169, %c0_170, %c0_171] : memref<1x18x24x1xf32, #tpu.memory_space<vmem>>, vector<1x18x24x1xf32>
    %547 = vector.broadcast %546 : vector<1x18x24x1xf32> to vector<2x18x24x32xf32>
    %548 = arith.mulf %545, %547 : vector<2x18x24x32xf32>
    %549 = vector.extract_strided_slice %548 {offsets = [0, 0, 0, 0], sizes = [2, 18, 16, 32], strides = [1, 1, 1, 1]} : vector<2x18x24x32xf32> to vector<2x18x16x32xf32>
    %550 = vector.extract_strided_slice %548 {offsets = [0, 0, 1, 0], sizes = [2, 18, 16, 32], strides = [1, 1, 1, 1]} : vector<2x18x24x32xf32> to vector<2x18x16x32xf32>
    %551 = vector.extract_strided_slice %548 {offsets = [0, 0, 2, 0], sizes = [2, 18, 16, 32], strides = [1, 1, 1, 1]} : vector<2x18x24x32xf32> to vector<2x18x16x32xf32>
    %552 = tpu.concatenate %549, %550, %551 in 3 : vector<2x18x16x32xf32>, vector<2x18x16x32xf32>, vector<2x18x16x32xf32> -> vector<2x18x16x96xf32>
    %553 = vector.extract_strided_slice %552 {offsets = [0, 0, 0, 0], sizes = [2, 16, 16, 96], strides = [1, 1, 1, 1]} : vector<2x18x16x96xf32> to vector<2x16x16x96xf32>
    %554 = vector.shape_cast %553 : vector<2x16x16x96xf32> to vector<512x96xf32>
    %c0_172 = arith.constant 0 : index
    %c0_173 = arith.constant 0 : index
    %c0_174 = arith.constant 0 : index
    %555 = vector.load %arg15[%c0_172, %c0_173, %c0_174] : memref<3x96x32xf32, #tpu.memory_space<vmem>>, vector<1x96x32xf32>
    %556 = vector.shape_cast %555 : vector<1x96x32xf32> to vector<96x32xf32>
    %cst_175 = arith.constant dense<0.000000e+00> : vector<512x32xf32>
    %557 = tpu.matmul %554, %556, %cst_175 {dimension_numbers = #tpu.dot_dimension_numbers<[1], [0], [0], [1], [0, 0, 1, 1], [], []>} : vector<512x96xf32>, vector<96x32xf32>, vector<512x32xf32> -> vector<512x32xf32>
    %558 = vector.extract_strided_slice %552 {offsets = [0, 1, 0, 0], sizes = [2, 16, 16, 96], strides = [1, 1, 1, 1]} : vector<2x18x16x96xf32> to vector<2x16x16x96xf32>
    %559 = vector.shape_cast %558 : vector<2x16x16x96xf32> to vector<512x96xf32>
    %c1_176 = arith.constant 1 : index
    %c0_177 = arith.constant 0 : index
    %c0_178 = arith.constant 0 : index
    %560 = vector.load %arg15[%c1_176, %c0_177, %c0_178] : memref<3x96x32xf32, #tpu.memory_space<vmem>>, vector<1x96x32xf32>
    %561 = vector.shape_cast %560 : vector<1x96x32xf32> to vector<96x32xf32>
    %cst_179 = arith.constant dense<0.000000e+00> : vector<512x32xf32>
    %562 = tpu.matmul %559, %561, %cst_179 {dimension_numbers = #tpu.dot_dimension_numbers<[1], [0], [0], [1], [0, 0, 1, 1], [], []>} : vector<512x96xf32>, vector<96x32xf32>, vector<512x32xf32> -> vector<512x32xf32>
    %563 = arith.addf %557, %562 : vector<512x32xf32>
    %564 = vector.extract_strided_slice %552 {offsets = [0, 2, 0, 0], sizes = [2, 16, 16, 96], strides = [1, 1, 1, 1]} : vector<2x18x16x96xf32> to vector<2x16x16x96xf32>
    %565 = vector.shape_cast %564 : vector<2x16x16x96xf32> to vector<512x96xf32>
    %c2_180 = arith.constant 2 : index
    %c0_181 = arith.constant 0 : index
    %c0_182 = arith.constant 0 : index
    %566 = vector.load %arg15[%c2_180, %c0_181, %c0_182] : memref<3x96x32xf32, #tpu.memory_space<vmem>>, vector<1x96x32xf32>
    %567 = vector.shape_cast %566 : vector<1x96x32xf32> to vector<96x32xf32>
    %cst_183 = arith.constant dense<0.000000e+00> : vector<512x32xf32>
    %568 = tpu.matmul %565, %567, %cst_183 {dimension_numbers = #tpu.dot_dimension_numbers<[1], [0], [0], [1], [0, 0, 1, 1], [], []>} : vector<512x96xf32>, vector<96x32xf32>, vector<512x32xf32> -> vector<512x32xf32>
    %569 = arith.addf %563, %568 : vector<512x32xf32>
    %c0_184 = arith.constant 0 : index
    %c0_185 = arith.constant 0 : index
    %570 = vector.load %arg16[%c0_184, %c0_185] : memref<1x32xf32, #tpu.memory_space<vmem>>, vector<1x32xf32>
    %571 = vector.broadcast %570 : vector<1x32xf32> to vector<512x32xf32>
    %572 = arith.addf %569, %571 : vector<512x32xf32>
    %cst_186 = arith.constant 0.000000e+00 : f32
    %573 = vector.broadcast %cst_186 : f32 to vector<512x32xf32>
    %574 = arith.maximumf %572, %573 : vector<512x32xf32>
    %575 = vector.shape_cast %574 : vector<512x32xf32> to vector<2x16x16x32xf32>
    %c0_187 = arith.constant 0 : index
    %c0_188 = arith.constant 0 : index
    %c0_189 = arith.constant 0 : index
    %c0_190 = arith.constant 0 : index
    %576 = vector.load %arg17[%c0_187, %c0_188, %c0_189, %c0_190] : memref<1x16x16x1xf32, #tpu.memory_space<vmem>>, vector<1x16x16x1xf32>
    %577 = vector.broadcast %576 : vector<1x16x16x1xf32> to vector<2x16x16x32xf32>
    %578 = arith.mulf %575, %577 : vector<2x16x16x32xf32>
    %c0_191 = arith.constant 0 : index
    %c0_192 = arith.constant 0 : index
    %c0_193 = arith.constant 0 : index
    %c0_194 = arith.constant 0 : index
    %579 = vector.load %arg18[%c0_191, %c0_192, %c0_193, %c0_194] : memref<1x1x1x32xf32, #tpu.memory_space<vmem>>, vector<1x1x1x32xf32>
    %580 = vector.broadcast %579 : vector<1x1x1x32xf32> to vector<2x16x16x32xf32>
    %581 = arith.mulf %578, %580 : vector<2x16x16x32xf32>
    %cst_195 = arith.constant dense<0.000000e+00> : vector<2x16x16xf32>
    %582 = vector.multi_reduction <add>, %581, %cst_195 [3] : vector<2x16x16x32xf32> to vector<2x16x16xf32>
    %c0_196 = arith.constant 0 : index
    %c0_197 = arith.constant 0 : index
    %c0_198 = arith.constant 0 : index
    %583 = vector.load %arg19[%c0_196, %c0_197, %c0_198] : memref<1x1x1xf32, #tpu.memory_space<vmem>>, vector<1x1x1xf32>
    %584 = vector.broadcast %583 : vector<1x1x1xf32> to vector<2x16x16xf32>
    %585 = arith.addf %582, %584 : vector<2x16x16xf32>
    %586 = arith.negf %585 : vector<2x16x16xf32>
    %587 = math.exp %586 : vector<2x16x16xf32>
    %cst_199 = arith.constant 1.000000e+00 : f32
    %588 = vector.broadcast %cst_199 : f32 to vector<2x16x16xf32>
    %589 = arith.addf %588, %587 : vector<2x16x16xf32>
    %590 = arith.divf %588, %589 : vector<2x16x16xf32>
    %c0_200 = arith.constant 0 : index
    %c0_201 = arith.constant 0 : index
    %c0_202 = arith.constant 0 : index
    %591 = vector.load %arg20[%c0_200, %c0_201, %c0_202] : memref<1x16x16xf32, #tpu.memory_space<vmem>>, vector<1x16x16xf32>
    %592 = vector.broadcast %591 : vector<1x16x16xf32> to vector<2x16x16xf32>
    %593 = arith.mulf %590, %592 : vector<2x16x16xf32>
    %594 = vector.extract_strided_slice %593 {offsets = [0, 0, 0], sizes = [2, 1, 16], strides = [1, 1, 1]} : vector<2x16x16xf32> to vector<2x1x16xf32>
    %595 = vector.extract_strided_slice %593 {offsets = [0, 1, 0], sizes = [2, 1, 16], strides = [1, 1, 1]} : vector<2x16x16xf32> to vector<2x1x16xf32>
    %596 = vector.extract_strided_slice %593 {offsets = [0, 2, 0], sizes = [2, 1, 16], strides = [1, 1, 1]} : vector<2x16x16xf32> to vector<2x1x16xf32>
    %597 = vector.extract_strided_slice %593 {offsets = [0, 3, 0], sizes = [2, 1, 16], strides = [1, 1, 1]} : vector<2x16x16xf32> to vector<2x1x16xf32>
    %598 = vector.extract_strided_slice %593 {offsets = [0, 4, 0], sizes = [2, 1, 16], strides = [1, 1, 1]} : vector<2x16x16xf32> to vector<2x1x16xf32>
    %599 = vector.extract_strided_slice %593 {offsets = [0, 5, 0], sizes = [2, 1, 16], strides = [1, 1, 1]} : vector<2x16x16xf32> to vector<2x1x16xf32>
    %600 = vector.extract_strided_slice %593 {offsets = [0, 6, 0], sizes = [2, 1, 16], strides = [1, 1, 1]} : vector<2x16x16xf32> to vector<2x1x16xf32>
    %601 = vector.extract_strided_slice %593 {offsets = [0, 7, 0], sizes = [2, 1, 16], strides = [1, 1, 1]} : vector<2x16x16xf32> to vector<2x1x16xf32>
    %602 = vector.extract_strided_slice %593 {offsets = [0, 8, 0], sizes = [2, 1, 16], strides = [1, 1, 1]} : vector<2x16x16xf32> to vector<2x1x16xf32>
    %603 = vector.extract_strided_slice %593 {offsets = [0, 9, 0], sizes = [2, 1, 16], strides = [1, 1, 1]} : vector<2x16x16xf32> to vector<2x1x16xf32>
    %604 = vector.extract_strided_slice %593 {offsets = [0, 10, 0], sizes = [2, 1, 16], strides = [1, 1, 1]} : vector<2x16x16xf32> to vector<2x1x16xf32>
    %605 = vector.extract_strided_slice %593 {offsets = [0, 11, 0], sizes = [2, 1, 16], strides = [1, 1, 1]} : vector<2x16x16xf32> to vector<2x1x16xf32>
    %606 = vector.extract_strided_slice %593 {offsets = [0, 12, 0], sizes = [2, 1, 16], strides = [1, 1, 1]} : vector<2x16x16xf32> to vector<2x1x16xf32>
    %607 = vector.extract_strided_slice %593 {offsets = [0, 13, 0], sizes = [2, 1, 16], strides = [1, 1, 1]} : vector<2x16x16xf32> to vector<2x1x16xf32>
    %608 = vector.extract_strided_slice %593 {offsets = [0, 14, 0], sizes = [2, 1, 16], strides = [1, 1, 1]} : vector<2x16x16xf32> to vector<2x1x16xf32>
    %609 = vector.extract_strided_slice %593 {offsets = [0, 15, 0], sizes = [2, 1, 16], strides = [1, 1, 1]} : vector<2x16x16xf32> to vector<2x1x16xf32>
    %610 = tpu.concatenate %594, %595, %596, %597, %598, %599, %600, %601, %602, %603, %604, %605, %606, %607, %608, %609 in 2 : vector<2x1x16xf32>, vector<2x1x16xf32>, vector<2x1x16xf32>, vector<2x1x16xf32>, vector<2x1x16xf32>, vector<2x1x16xf32>, vector<2x1x16xf32>, vector<2x1x16xf32>, vector<2x1x16xf32>, vector<2x1x16xf32>, vector<2x1x16xf32>, vector<2x1x16xf32>, vector<2x1x16xf32>, vector<2x1x16xf32>, vector<2x1x16xf32>, vector<2x1x16xf32> -> vector<2x1x256xf32>
    %611 = vector.shape_cast %610 : vector<2x1x256xf32> to vector<2x256xf32>
    %c0_203 = arith.constant 0 : index
    %c0_204 = arith.constant 0 : index
    %612 = vector.load %arg21[%c0_203, %c0_204] : memref<2x256xf32, #tpu.memory_space<vmem>>, vector<2x256xf32>
    tpu.vector_store %arg21[%c0_203, %c0_204], %611 {strides = array<i32>} : memref<2x256xf32, #tpu.memory_space<vmem>>, vector<2x256xf32>,
    return
  }
}

</mosaic_0001>

<llo_original>
// kernel: tan_forward.1
$region0: #{tan_forward.1}
  #allocation0 [shape = 'u32[]', space=smem, size = 0x4, offset = 0x4, fixed_abs, tag = 'smem constant byte address 0x4 - core index']
  #allocation1 [shape = 'u32[72,128]{1,0:T(1,128)}', space=vmem, size = 0x9000, scoped, tag = 'internal scratch']
  #allocation2 [shape = 'f32[2,20,26,32]{3,2,1,0:T(8,128)}', space=vmem, size = 0xa0000, scoped, tag = 'scratch operand']
  #allocation3 [shape = 'f32[1,1,1]{2,1,0:T(1,128)S(1)}', space=vmem, size = 0x200, scoped, tag = 'scoped memory for tan_forward.1']
  %s0 = inlined_call_operand.vmem [shape: f32[32,64], index: 0, kind: input, shape index: {}]
  %s1 = inlined_call_operand.vmem [shape: f32[16,16], index: 1, kind: input, shape index: {}]
  %s2 = inlined_call_operand.vmem [shape: s32[2,1], index: 2, kind: input, shape index: {}]
  %s3 = inlined_call_operand.vmem [shape: f32[64,64], index: 3, kind: input, shape index: {}]
  %s4 = inlined_call_operand.vmem [shape: f32[1,64], index: 4, kind: input, shape index: {}]
  %s5 = inlined_call_operand.vmem [shape: f32[16,128], index: 5, kind: input, shape index: {}]
  %s6 = inlined_call_operand.vmem [shape: f32[32,128], index: 6, kind: input, shape index: {}]
  %s7 = inlined_call_operand.vmem [shape: f32[1,128], index: 7, kind: input, shape index: {}]
  %s8 = inlined_call_operand.vmem [shape: f32[32,32], index: 8, kind: input, shape index: {}]
  %s9 = inlined_call_operand.vmem [shape: f32[1,32], index: 9, kind: input, shape index: {}]
  %s10 = inlined_call_operand.vmem [shape: f32[32,32], index: 10, kind: input, shape index: {}]
  %s11 = inlined_call_operand.vmem [shape: f32[1,32], index: 11, kind: input, shape index: {}]
  %s12 = inlined_call_operand.vmem [shape: f32[3,96,32], index: 12, kind: input, shape index: {}]
  %s13 = inlined_call_operand.vmem [shape: f32[1,32], index: 13, kind: input, shape index: {}]
  %s14 = inlined_call_operand.vmem [shape: f32[1,18,24,1], index: 14, kind: input, shape index: {}]
  %s15 = inlined_call_operand.vmem [shape: f32[3,96,32], index: 15, kind: input, shape index: {}]
  %s16 = inlined_call_operand.vmem [shape: f32[1,32], index: 16, kind: input, shape index: {}]
  %s17 = inlined_call_operand.vmem [shape: f32[1,16,16,1], index: 17, kind: input, shape index: {}]
  %s18 = inlined_call_operand.vmem [shape: f32[1,1,1,32], index: 18, kind: input, shape index: {}]
  %s19 = inlined_call_operand.<no memory space> [shape: f32[1,1,1], index: 19, kind: input, shape index: {}]
  %s20 = inlined_call_operand.vmem [shape: f32[1,16,16], index: 20, kind: input, shape index: {}]
  %s21 = inlined_call_operand.vmem [shape: f32[2,256], index: 21, kind: output, shape index: {}]
  %s22 = sld [smem:[#allocation0]]
  $region94: #{tan_forward.1} parent=0
    _
  %s24 = ssub.s32 1, %s22
  %s25 = scalar_select 0, %s24, %s22
  %v26 = vstv %s19
  %27 = vst [vmem:[#allocation3] sm:$0x1] %v26
  // Predicated region
  $region2: #{tan_forward.1} parent=0 // pred_check
    _
  $region3: #{tan_forward.1} parent=0 // pred_check_branch
    %29 = sbr.rel (0) target = $region5
  $region4: #{tan_forward.1} parent=0 // pred_region
    _
  $region5: #{tan_forward.1} parent=0 // pred_fallthru
    _
  // Predicated region
  $region6: #{tan_forward.1} parent=0 // pred_check
    _
  $region7: #{tan_forward.1} parent=0 // pred_check_branch
    %31 = sbr.rel (0) target = $region9
  $region8: #{tan_forward.1} parent=0 // pred_region
    _
  $region9: #{tan_forward.1} parent=0 // pred_fallthru
    _
  // Predicated region
  $region10: #{tan_forward.1} parent=0 // pred_check
    _
  $region11: #{tan_forward.1} parent=0 // pred_check_branch
    %33 = sbr.rel (0) target = $region13
  $region12: #{tan_forward.1} parent=0 // pred_region
    _
  $region13: #{tan_forward.1} parent=0 // pred_fallthru
    _
  // Predicated region
  $region14: #{tan_forward.1} parent=0 // pred_check
    _
  $region15: #{tan_forward.1} parent=0 // pred_check_branch
    %35 = sbr.rel (0) target = $region17
  $region16: #{tan_forward.1} parent=0 // pred_region
    _
  $region17: #{tan_forward.1} parent=0 // pred_fallthru
    _
  // Predicated region
  $region18: #{tan_forward.1} parent=0 // pred_check
    _
  $region19: #{tan_forward.1} parent=0 // pred_check_branch
    %37 = sbr.rel (0) target = $region21
  $region20: #{tan_forward.1} parent=0 // pred_region
    _
  $region21: #{tan_forward.1} parent=0 // pred_fallthru
    _
  // Predicated region
  $region22: #{tan_forward.1} parent=0 // pred_check
    _
  $region23: #{tan_forward.1} parent=0 // pred_check_branch
    %39 = sbr.rel (0) target = $region25
  $region24: #{tan_forward.1} parent=0 // pred_region
    _
  $region25: #{tan_forward.1} parent=0 // pred_fallthru
    _
  // Predicated region
  $region26: #{tan_forward.1} parent=0 // pred_check
    _
  $region27: #{tan_forward.1} parent=0 // pred_check_branch
    %41 = sbr.rel (0) target = $region29
  $region28: #{tan_forward.1} parent=0 // pred_region
    _
  $region29: #{tan_forward.1} parent=0 // pred_fallthru
    _
  // Predicated region
  $region30: #{tan_forward.1} parent=0 // pred_check
    _
  $region31: #{tan_forward.1} parent=0 // pred_check_branch
    %43 = sbr.rel (0) target = $region33
  $region32: #{tan_forward.1} parent=0 // pred_region
    _
  $region33: #{tan_forward.1} parent=0 // pred_fallthru
    _
  // Predicated region
  $region34: #{tan_forward.1} parent=0 // pred_check
    _
  $region35: #{tan_forward.1} parent=0 // pred_check_branch
    %45 = sbr.rel (0) target = $region37
  $region36: #{tan_forward.1} parent=0 // pred_region
    _
  $region37: #{tan_forward.1} parent=0 // pred_fallthru
    _
  // Predicated region
  $region38: #{tan_forward.1} parent=0 // pred_check
    _
  $region39: #{tan_forward.1} parent=0 // pred_check_branch
    %47 = sbr.rel (0) target = $region41
  $region40: #{tan_forward.1} parent=0 // pred_region
    _
  $region41: #{tan_forward.1} parent=0 // pred_fallthru
    _
  // Predicated region
  $region42: #{tan_forward.1} parent=0 // pred_check
    _
  $region43: #{tan_forward.1} parent=0 // pred_check_branch
    %49 = sbr.rel (0) target = $region45
  $region44: #{tan_forward.1} parent=0 // pred_region
    _
  $region45: #{tan_forward.1} parent=0 // pred_fallthru
    _
  // Predicated region
  $region46: #{tan_forward.1} parent=0 // pred_check
    _
  $region47: #{tan_forward.1} parent=0 // pred_check_branch
    %51 = sbr.rel (0) target = $region49
  $region48: #{tan_forward.1} parent=0 // pred_region
    _
  $region49: #{tan_forward.1} parent=0 // pred_fallthru
    _
  // Predicated region
  $region50: #{tan_forward.1} parent=0 // pred_check
    _
  $region51: #{tan_forward.1} parent=0 // pred_check_branch
    %53 = sbr.rel (0) target = $region53
  $region52: #{tan_forward.1} parent=0 // pred_region
    _
  $region53: #{tan_forward.1} parent=0 // pred_fallthru
    _
  // Predicated region
  $region54: #{tan_forward.1} parent=0 // pred_check
    _
  $region55: #{tan_forward.1} parent=0 // pred_check_branch
    %55 = sbr.rel (0) target = $region57
  $region56: #{tan_forward.1} parent=0 // pred_region
    _
  $region57: #{tan_forward.1} parent=0 // pred_fallthru
    _
  // Predicated region
  $region58: #{tan_forward.1} parent=0 // pred_check
    _
  $region59: #{tan_forward.1} parent=0 // pred_check_branch
    %57 = sbr.rel (0) target = $region61
  $region60: #{tan_forward.1} parent=0 // pred_region
    _
  $region61: #{tan_forward.1} parent=0 // pred_fallthru
    _
  // Predicated region
  $region62: #{tan_forward.1} parent=0 // pred_check
    _
  $region63: #{tan_forward.1} parent=0 // pred_check_branch
    %59 = sbr.rel (0) target = $region65
  $region64: #{tan_forward.1} parent=0 // pred_region
    _
  $region65: #{tan_forward.1} parent=0 // pred_fallthru
    _
  // Predicated region
  $region66: #{tan_forward.1} parent=0 // pred_check
    _
  $region67: #{tan_forward.1} parent=0 // pred_check_branch
    %61 = sbr.rel (0) target = $region69
  $region68: #{tan_forward.1} parent=0 // pred_region
    _
  $region69: #{tan_forward.1} parent=0 // pred_fallthru
    _
  // Predicated region
  $region70: #{tan_forward.1} parent=0 // pred_check
    _
  $region71: #{tan_forward.1} parent=0 // pred_check_branch
    %63 = sbr.rel (0) target = $region73
  $region72: #{tan_forward.1} parent=0 // pred_region
    _
  $region73: #{tan_forward.1} parent=0 // pred_fallthru
    _
  // Predicated region
  $region74: #{tan_forward.1} parent=0 // pred_check
    _
  $region75: #{tan_forward.1} parent=0 // pred_check_branch
    %65 = sbr.rel (0) target = $region77
  $region76: #{tan_forward.1} parent=0 // pred_region
    _
  $region77: #{tan_forward.1} parent=0 // pred_fallthru
    _
  // Predicated region
  $region78: #{tan_forward.1} parent=0 // pred_check
    _
  $region79: #{tan_forward.1} parent=0 // pred_check_branch
    %67 = sbr.rel (0) target = $region81
  $region80: #{tan_forward.1} parent=0 // pred_region
    _
  $region81: #{tan_forward.1} parent=0 // pred_fallthru
    _
  // Predicated region
  $region82: #{tan_forward.1} parent=0 // pred_check
    _
  $region83: #{tan_forward.1} parent=0 // pred_check_branch
    %69 = sbr.rel (0) target = $region85
  $region84: #{tan_forward.1} parent=0 // pred_region
    _
  $region85: #{tan_forward.1} parent=0 // pred_fallthru
    _
  %v70 = vld [vmem:[%s0] sm:$0xff]
  %v71 = vld [vmem:[%s0 + $0x8] sm:$0xff]
  %v72 = vld [vmem:[%s0 + $0x10] sm:$0xff]
  %v73 = vld [vmem:[%s0 + $0x18] sm:$0xff]
  %v74 = vld [vmem:[%s3] sm:$0xff]
  %v75 = vld [vmem:[%s3 + $0x8] sm:$0xff]
  %v76 = vld [vmem:[%s3 + $0x10] sm:$0xff]
  %v77 = vld [vmem:[%s3 + $0x18] sm:$0xff]
  %v78 = vld [vmem:[%s3 + $0x20] sm:$0xff]
  %v79 = vld [vmem:[%s3 + $0x28] sm:$0xff]
  %v80 = vld [vmem:[%s3 + $0x30] sm:$0xff]
  %v81 = vld [vmem:[%s3 + $0x38] sm:$0xff]
  %v82 = vld [vmem:[%s4] sm:$0x1]
  %v84 = vperm.slane %v82, 0
  %vm86 = vcmask 523264
  %v88 = vsel %vm86, %v70, 0
  %v91 = vsel %vm86, %v71, 0
  %v94 = vsel %vm86, %v72, 0
  %v97 = vsel %vm86, %v73, 0
  %99 = vmatpush.msra.mxu0 0.0
  %100 = vmatpush.msra.mxu0 0.0
  %101 = vmatpush.msra.mxu0 0.0
  %102 = vmatpush.msra.mxu0 0.0
  %103 = vmatpush.msra.mxu0 0.0
  %104 = vmatpush.msra.mxu0 0.0
  %105 = vmatpush.msra.mxu0 0.0
  %106 = vmatpush.msra.mxu0 0.0
  %107 = vmatpush.msra.mxu0 %v81
  %108 = vmatpush.msra.mxu0 %v80
  %109 = vmatpush.msra.mxu0 %v79
  %110 = vmatpush.msra.mxu0 %v78
  %111 = vmatpush.msra.mxu0 %v77
  %112 = vmatpush.msra.mxu0 %v76
  %113 = vmatpush.msra.mxu0 %v75
  %114 = vmatpush.msra.mxu0 %v74
  %115 = vmatmul.f32.gmra.mxu0 %v88
  %v116 = vpop.f32.mrf.mxu0
  %v117 = vadd.f32 %v84, %v116
  %118 = vmatmul.f32.gmra.mxu0 %v91
  %v119 = vpop.f32.mrf.mxu0
  %v120 = vadd.f32 %v84, %v119
  %121 = vmatmul.f32.gmra.mxu0 %v94
  %v122 = vpop.f32.mrf.mxu0
  %v123 = vadd.f32 %v84, %v122
  %124 = vmatmul.f32.gmra.mxu0 %v97
  %v125 = vpop.f32.mrf.mxu0
  %v126 = vadd.f32 %v84, %v125
  %127 = vdwg.mxu0
  %v128 = vmax.f32 %v117, 0.0
  %v129 = vmax.f32 %v120, 0.0
  %v130 = vmax.f32 %v123, 0.0
  %v131 = vmax.f32 %v126, 0.0
  %136 = vrot.lane.b32.xlu0 %v128, 96
  %v137 = vpop.permute.xlu0 %136
  %138 = vrot.lane.b32.xlu0 %v129, 96
  %v139 = vpop.permute.xlu0 %138
  %140 = vrot.lane.b32.xlu0 %v130, 96
  %v141 = vpop.permute.xlu0 %140
  %142 = vrot.lane.b32.xlu0 %v131, 96
  %v143 = vpop.permute.xlu0 %142
  %v148 = vadd.f32 %v128, %v137
  %v149 = vadd.f32 %v129, %v139
  %v150 = vadd.f32 %v130, %v141
  %v151 = vadd.f32 %v131, %v143
  %v152 = vmul.f32 %v148, 0.5
  %v153 = vmul.f32 %v149, 0.5
  %v154 = vmul.f32 %v150, 0.5
  %v155 = vmul.f32 %v151, 0.5
  %v156 = vlaneseq
  %v157 = vshrl.u32 %v156, 7
  %v158 = vadd.s32 %v157, 8
  %v159 = vperm.slane %v153, 7
  %v160 = vperm.slane %v155, 7
  %v161 = vmax.f32 %v159, -1e+30
  %v162 = vmax.f32 %v160, -1e+30
  %vm163 = vcmp.ge.s32.totalorder %v157, 15
  %vm164 = vcmp.ge.s32.totalorder %v158, 15
  %v165 = vsel %vm163, 1, 0
  %v166 = vsel %vm164, 1, 0
  %vm167 = vcmp.eq.s32.totalorder %v165, 1
  %vm168 = vcmp.eq.s32.totalorder %v166, 1
  %v169 = vsel %vm167, %v161, 0.0
  %v170 = vsel %vm168, %v161, 0.0
  %v171 = vsel %vm167, %v162, 0.0
  %v172 = vsel %vm168, %v162, 0.0
  %v173 = vsel %vm167, %v161, -1e+30
  %v174 = vsel %vm168, %v161, -1e+30
  %v175 = vsel %vm167, %v162, -1e+30
  %v176 = vsel %vm168, %v162, -1e+30
  %v177 = vperm.slane %v153, 6
  %v178 = vperm.slane %v155, 6
  %v179 = vmax.f32 %v177, %v173
  %v180 = vmax.f32 %v177, %v174
  %v181 = vmax.f32 %v178, %v175
  %v182 = vmax.f32 %v178, %v176
  %vm183 = vcmp.ge.s32.totalorder %v157, 14
  %vm184 = vcmp.ge.s32.totalorder %v158, 14
  %v185 = vsel %vm183, 1, 0
  %v186 = vsel %vm184, 1, 0
  %vm187 = vcmp.eq.s32.totalorder %v185, 1
  %vm188 = vcmp.eq.s32.totalorder %v186, 1
  %v189 = vsel %vm187, %v179, 0.0
  %v190 = vsel %vm188, %v180, 0.0
  %v191 = vsel %vm187, %v181, 0.0
  %v192 = vsel %vm188, %v182, 0.0
  %v193 = vsel %vm187, %v179, -1e+30
  %v194 = vsel %vm188, %v180, -1e+30
  %v195 = vsel %vm187, %v181, -1e+30
  %v196 = vsel %vm188, %v182, -1e+30
  %v197 = vperm.slane %v153, 5
  %v198 = vperm.slane %v155, 5
  %v199 = vmax.f32 %v197, %v193
  %v200 = vmax.f32 %v197, %v194
  %v201 = vmax.f32 %v198, %v195
  %v202 = vmax.f32 %v198, %v196
  %vm203 = vcmp.ge.s32.totalorder %v157, 13
  %vm204 = vcmp.ge.s32.totalorder %v158, 13
  %v205 = vsel %vm203, 1, 0
  %v206 = vsel %vm204, 1, 0
  %vm207 = vcmp.eq.s32.totalorder %v205, 1
  %vm208 = vcmp.eq.s32.totalorder %v206, 1
  %v209 = vsel %vm207, %v199, 0.0
  %v210 = vsel %vm208, %v200, 0.0
  %v211 = vsel %vm207, %v201, 0.0
  %v212 = vsel %vm208, %v202, 0.0
  %v213 = vsel %vm207, %v199, -1e+30
  %v214 = vsel %vm208, %v200, -1e+30
  %v215 = vsel %vm207, %v201, -1e+30
  %v216 = vsel %vm208, %v202, -1e+30
  %v217 = vperm.slane %v153, 4
  %v218 = vperm.slane %v155, 4
  %v219 = vmax.f32 %v217, %v213
  %v220 = vmax.f32 %v217, %v214
  %v221 = vmax.f32 %v218, %v215
  %v222 = vmax.f32 %v218, %v216
  %vm223 = vcmp.ge.s32.totalorder %v157, 12
  %vm224 = vcmp.ge.s32.totalorder %v158, 12
  %v225 = vsel %vm223, 1, 0
  %v226 = vsel %vm224, 1, 0
  %vm227 = vcmp.eq.s32.totalorder %v225, 1
  %vm228 = vcmp.eq.s32.totalorder %v226, 1
  %v229 = vsel %vm227, %v219, 0.0
  %v230 = vsel %vm228, %v220, 0.0
  %v231 = vsel %vm227, %v221, 0.0
  %v232 = vsel %vm228, %v222, 0.0
  %v233 = vsel %vm227, %v219, -1e+30
  %v234 = vsel %vm228, %v220, -1e+30
  %v235 = vsel %vm227, %v221, -1e+30
  %v236 = vsel %vm228, %v222, -1e+30
  %v237 = vperm.slane %v153, 3
  %v238 = vperm.slane %v155, 3
  %v239 = vmax.f32 %v237, %v233
  %v240 = vmax.f32 %v237, %v234
  %v241 = vmax.f32 %v238, %v235
  %v242 = vmax.f32 %v238, %v236
  %vm243 = vcmp.ge.s32.totalorder %v157, 11
  %vm244 = vcmp.ge.s32.totalorder %v158, 11
  %v245 = vsel %vm243, 1, 0
  %v246 = vsel %vm244, 1, 0
  %vm247 = vcmp.eq.s32.totalorder %v245, 1
  %vm248 = vcmp.eq.s32.totalorder %v246, 1
  %v249 = vsel %vm247, %v239, 0.0
  %v250 = vsel %vm248, %v240, 0.0
  %v251 = vsel %vm247, %v241, 0.0
  %v252 = vsel %vm248, %v242, 0.0
  %v253 = vsel %vm247, %v239, -1e+30
  %v254 = vsel %vm248, %v240, -1e+30
  %v255 = vsel %vm247, %v241, -1e+30
  %v256 = vsel %vm248, %v242, -1e+30
  %v257 = vperm.slane %v153, 2
  %v258 = vperm.slane %v155, 2
  %v259 = vmax.f32 %v257, %v253
  %v260 = vmax.f32 %v257, %v254
  %v261 = vmax.f32 %v258, %v255
  %v262 = vmax.f32 %v258, %v256
  %vm263 = vcmp.ge.s32.totalorder %v157, 10
  %vm264 = vcmp.ge.s32.totalorder %v158, 10
  %v265 = vsel %vm263, 1, 0
  %v266 = vsel %vm264, 1, 0
  %vm267 = vcmp.eq.s32.totalorder %v265, 1
  %vm268 = vcmp.eq.s32.totalorder %v266, 1
  %v269 = vsel %vm267, %v259, 0.0
  %v270 = vsel %vm268, %v260, 0.0
  %v271 = vsel %vm267, %v261, 0.0
  %v272 = vsel %vm268, %v262, 0.0
  %v273 = vsel %vm267, %v259, -1e+30
  %v274 = vsel %vm268, %v260, -1e+30
  %v275 = vsel %vm267, %v261, -1e+30
  %v276 = vsel %vm268, %v262, -1e+30
  %v277 = vperm.slane %v153, 1
  %v278 = vperm.slane %v155, 1
  %v279 = vmax.f32 %v277, %v273
  %v280 = vmax.f32 %v277, %v274
  %v281 = vmax.f32 %v278, %v275
  %v282 = vmax.f32 %v278, %v276
  %vm283 = vcmp.ge.s32.totalorder %v157, 9
  %vm284 = vcmp.ge.s32.totalorder %v158, 9
  %v285 = vsel %vm283, 1, 0
  %v286 = vsel %vm284, 1, 0
  %vm287 = vcmp.eq.s32.totalorder %v285, 1
  %vm288 = vcmp.eq.s32.totalorder %v286, 1
  %v289 = vsel %vm287, %v279, 0.0
  %v290 = vsel %vm288, %v280, 0.0
  %v291 = vsel %vm287, %v281, 0.0
  %v292 = vsel %vm288, %v282, 0.0
  %v293 = vsel %vm287, %v279, -1e+30
  %v294 = vsel %vm288, %v280, -1e+30
  %v295 = vsel %vm287, %v281, -1e+30
  %v296 = vsel %vm288, %v282, -1e+30
  %v297 = vperm.slane %v153, 0
  %v298 = vperm.slane %v155, 0
  %v299 = vmax.f32 %v297, %v293
  %v300 = vmax.f32 %v297, %v294
  %v301 = vmax.f32 %v298, %v295
  %v302 = vmax.f32 %v298, %v296
  %vm303 = vcmp.ge.s32.totalorder %v157, 8
  %vm304 = vcmp.ge.s32.totalorder %v158, 8
  %v305 = vsel %vm303, 1, 0
  %v306 = vsel %vm304, 1, 0
  %vm307 = vcmp.eq.s32.totalorder %v305, 1
  %vm308 = vcmp.eq.s32.totalorder %v306, 1
  %v309 = vsel %vm307, %v299, 0.0
  %v310 = vsel %vm308, %v300, 0.0
  %v311 = vsel %vm307, %v301, 0.0
  %v312 = vsel %vm308, %v302, 0.0
  %v313 = vsel %vm307, %v299, -1e+30
  %v314 = vsel %vm308, %v300, -1e+30
  %v315 = vsel %vm307, %v301, -1e+30
  %v316 = vsel %vm308, %v302, -1e+30
  %v317 = vperm.slane %v152, 7
  %v318 = vperm.slane %v154, 7
  %v319 = vmax.f32 %v317, %v313
  %v320 = vmax.f32 %v317, %v314
  %v321 = vmax.f32 %v318, %v315
  %v322 = vmax.f32 %v318, %v316
  %vm323 = vcmp.ge.s32.totalorder %v157, 7
  %vm324 = vcmp.ge.s32.totalorder %v158, 7
  %v325 = vsel %vm323, 1, 0
  %v326 = vsel %vm324, 1, 0
  %vm327 = vcmp.eq.s32.totalorder %v325, 1
  %vm328 = vcmp.eq.s32.totalorder %v326, 1
  %v329 = vsel %vm327, %v319, 0.0
  %v330 = vsel %vm328, %v320, 0.0
  %v331 = vsel %vm327, %v321, 0.0
  %v332 = vsel %vm328, %v322, 0.0
  %v333 = vsel %vm327, %v319, -1e+30
  %v334 = vsel %vm328, %v320, -1e+30
  %v335 = vsel %vm327, %v321, -1e+30
  %v336 = vsel %vm328, %v322, -1e+30
  %v337 = vperm.slane %v152, 6
  %v338 = vperm.slane %v154, 6
  %v339 = vmax.f32 %v337, %v333
  %v340 = vmax.f32 %v337, %v334
  %v341 = vmax.f32 %v338, %v335
  %v342 = vmax.f32 %v338, %v336
  %vm343 = vcmp.ge.s32.totalorder %v157, 6
  %vm344 = vcmp.ge.s32.totalorder %v158, 6
  %v345 = vsel %vm343, 1, 0
  %v346 = vsel %vm344, 1, 0
  %vm347 = vcmp.eq.s32.totalorder %v345, 1
  %vm348 = vcmp.eq.s32.totalorder %v346, 1
  %v349 = vsel %vm347, %v339, 0.0
  %v350 = vsel %vm348, %v340, 0.0
  %v351 = vsel %vm347, %v341, 0.0
  %v352 = vsel %vm348, %v342, 0.0
  %v353 = vsel %vm347, %v339, -1e+30
  %v354 = vsel %vm348, %v340, -1e+30
  %v355 = vsel %vm347, %v341, -1e+30
  %v356 = vsel %vm348, %v342, -1e+30
  %v357 = vperm.slane %v152, 5
  %v358 = vperm.slane %v154, 5
  %v359 = vmax.f32 %v357, %v353
  %v360 = vmax.f32 %v357, %v354
  %v361 = vmax.f32 %v358, %v355
  %v362 = vmax.f32 %v358, %v356
  %vm363 = vcmp.ge.s32.totalorder %v157, 5
  %vm364 = vcmp.ge.s32.totalorder %v158, 5
  %v365 = vsel %vm363, 1, 0
  %v366 = vsel %vm364, 1, 0
  %vm367 = vcmp.eq.s32.totalorder %v365, 1
  %vm368 = vcmp.eq.s32.totalorder %v366, 1
  %v369 = vsel %vm367, %v359, 0.0
  %v370 = vsel %vm368, %v360, 0.0
  %v371 = vsel %vm367, %v361, 0.0
  %v372 = vsel %vm368, %v362, 0.0
  %v373 = vsel %vm367, %v359, -1e+30
  %v374 = vsel %vm368, %v360, -1e+30
  %v375 = vsel %vm367, %v361, -1e+30
  %v376 = vsel %vm368, %v362, -1e+30
  %v377 = vperm.slane %v152, 4
  %v378 = vperm.slane %v154, 4
  %v379 = vmax.f32 %v377, %v373
  %v380 = vmax.f32 %v377, %v374
  %v381 = vmax.f32 %v378, %v375
  %v382 = vmax.f32 %v378, %v376
  %vm383 = vcmp.ge.s32.totalorder %v157, 4
  %vm384 = vcmp.ge.s32.totalorder %v158, 4
  %v385 = vsel %vm383, 1, 0
  %v386 = vsel %vm384, 1, 0
  %vm387 = vcmp.eq.s32.totalorder %v385, 1
  %vm388 = vcmp.eq.s32.totalorder %v386, 1
  %v389 = vsel %vm387, %v379, 0.0
  %v390 = vsel %vm388, %v380, 0.0
  %v391 = vsel %vm387, %v381, 0.0
  %v392 = vsel %vm388, %v382, 0.0
  %v393 = vsel %vm387, %v379, -1e+30
  %v394 = vsel %vm388, %v380, -1e+30
  %v395 = vsel %vm387, %v381, -1e+30
  %v396 = vsel %vm388, %v382, -1e+30
  %v397 = vperm.slane %v152, 3
  %v398 = vperm.slane %v154, 3
  %v399 = vmax.f32 %v397, %v393
  %v400 = vmax.f32 %v397, %v394
  %v401 = vmax.f32 %v398, %v395
  %v402 = vmax.f32 %v398, %v396
  %vm403 = vcmp.ge.s32.totalorder %v157, 3
  %vm404 = vcmp.ge.s32.totalorder %v158, 3
  %v405 = vsel %vm403, 1, 0
  %v406 = vsel %vm404, 1, 0
  %vm407 = vcmp.eq.s32.totalorder %v405, 1
  %vm408 = vcmp.eq.s32.totalorder %v406, 1
  %v409 = vsel %vm407, %v399, 0.0
  %v410 = vsel %vm408, %v400, 0.0
  %v411 = vsel %vm407, %v401, 0.0
  %v412 = vsel %vm408, %v402, 0.0
  %v413 = vsel %vm407, %v399, -1e+30
  %v414 = vsel %vm408, %v400, -1e+30
  %v415 = vsel %vm407, %v401, -1e+30
  %v416 = vsel %vm408, %v402, -1e+30
  %v417 = vperm.slane %v152, 2
  %v418 = vperm.slane %v154, 2
  %v419 = vmax.f32 %v417, %v413
  %v420 = vmax.f32 %v417, %v414
  %v421 = vmax.f32 %v418, %v415
  %v422 = vmax.f32 %v418, %v416
  %vm423 = vcmp.ge.s32.totalorder %v157, 2
  %vm424 = vcmp.ge.s32.totalorder %v158, 2
  %v425 = vsel %vm423, 1, 0
  %v426 = vsel %vm424, 1, 0
  %vm427 = vcmp.eq.s32.totalorder %v425, 1
  %vm428 = vcmp.eq.s32.totalorder %v426, 1
  %v429 = vsel %vm427, %v419, 0.0
  %v430 = vsel %vm428, %v420, 0.0
  %v431 = vsel %vm427, %v421, 0.0
  %v432 = vsel %vm428, %v422, 0.0
  %v433 = vsel %vm427, %v419, -1e+30
  %v434 = vsel %vm428, %v420, -1e+30
  %v435 = vsel %vm427, %v421, -1e+30
  %v436 = vsel %vm428, %v422, -1e+30
  %v437 = vperm.slane %v152, 1
  %v438 = vperm.slane %v154, 1
  %v439 = vmax.f32 %v437, %v433
  %v440 = vmax.f32 %v437, %v434
  %v441 = vmax.f32 %v438, %v435
  %v442 = vmax.f32 %v438, %v436
  %vm443 = vcmp.ge.s32.totalorder %v157, 1
  %vm444 = vcmp.ge.s32.totalorder %v158, 1
  %v445 = vsel %vm443, 1, 0
  %v446 = vsel %vm444, 1, 0
  %vm447 = vcmp.eq.s32.totalorder %v445, 1
  %vm448 = vcmp.eq.s32.totalorder %v446, 1
  %v449 = vsel %vm447, %v439, 0.0
  %v450 = vsel %vm448, %v440, 0.0
  %v451 = vsel %vm447, %v441, 0.0
  %v452 = vsel %vm448, %v442, 0.0
  %v453 = vsel %vm447, %v439, -1e+30
  %v454 = vsel %vm448, %v440, -1e+30
  %v455 = vsel %vm447, %v441, -1e+30
  %v456 = vsel %vm448, %v442, -1e+30
  %v457 = vperm.slane %v152, 0
  %v458 = vperm.slane %v154, 0
  %v459 = vmax.f32 %v457, %v453
  %v460 = vmax.f32 %v457, %v454
  %v461 = vmax.f32 %v458, %v455
  %v462 = vmax.f32 %v458, %v456
  %vm463 = vcmp.ge.s32.totalorder %v157, 0
  %vm464 = vcmp.ge.s32.totalorder %v158, 0
  %v465 = vsel %vm463, 1, 0
  %v466 = vsel %vm464, 1, 0
  %vm467 = vcmp.eq.s32.totalorder %v465, 1
  %vm468 = vcmp.eq.s32.totalorder %v466, 1
  %v469 = vsel %vm467, %v459, 0.0
  %v470 = vsel %vm468, %v460, 0.0
  %v471 = vsel %vm467, %v461, 0.0
  %v472 = vsel %vm468, %v462, 0.0
  %v473 = vld [vmem:[%s1] sm:$0xff]
  %v474 = vld [vmem:[%s1 + $0x8] sm:$0xff]
  %v475 = vld [vmem:[%s5] sm:$0xff]
  %v476 = vld [vmem:[%s5 + $0x8] sm:$0xff]
  %v477 = vld [vmem:[%s7] sm:$0x1]
  %v479 = vperm.slane %v477, 0
  %vm481 = vcmask 130048
  %v483 = vsel %vm481, %v473, 0
  %v486 = vsel %vm481, %v474, 0
  %488 = vmatpush.msra.mxu0 0.0
  %489 = vmatpush.msra.mxu0 0.0
  %490 = vmatpush.msra.mxu0 0.0
  %491 = vmatpush.msra.mxu0 0.0
  %492 = vmatpush.msra.mxu0 0.0
  %493 = vmatpush.msra.mxu0 0.0
  %494 = vmatpush.msra.mxu0 0.0
  %495 = vmatpush.msra.mxu0 0.0
  %496 = vmatpush.msra.mxu0 0.0
  %497 = vmatpush.msra.mxu0 0.0
  %498 = vmatpush.msra.mxu0 0.0
  %499 = vmatpush.msra.mxu0 0.0
  %500 = vmatpush.msra.mxu0 0.0
  %501 = vmatpush.msra.mxu0 0.0
  %502 = vmatpush.msra.mxu0 %v476
  %503 = vmatpush.msra.mxu0 %v475
  %504 = vmatmul.f32.gmra.mxu0 %v483
  %v505 = vpop.f32.mrf.mxu0
  %v506 = vadd.f32 %v479, %v505
  %507 = vmatmul.f32.gmra.mxu0 %v486
  %v508 = vpop.f32.mrf.mxu0
  %v509 = vadd.f32 %v479, %v508
  %510 = vdwg.mxu0
  %v511 = vld [vmem:[%s2] sm:$0x3]
  %v512 = vsub.s32 %v511, 1
  %v513 = vld [vmem:[%s6] sm:$0xff]
  %v514 = vld [vmem:[%s6 + $0x8] sm:$0xff]
  %v515 = vld [vmem:[%s6 + $0x10] sm:$0xff]
  %v516 = vld [vmem:[%s6 + $0x18] sm:$0xff]
  %vm517 = vcmask 261120
  %v519 = vsel %vm517, 0.0, 0
  %521 = vmatpush.msra.mxu0 0.0
  %522 = vmatpush.msra.mxu0 0.0
  %523 = vmatpush.msra.mxu0 0.0
  %524 = vmatpush.msra.mxu0 0.0
  %525 = vmatpush.msra.mxu0 0.0
  %526 = vmatpush.msra.mxu0 0.0
  %527 = vmatpush.msra.mxu0 0.0
  %528 = vmatpush.msra.mxu0 0.0
  %529 = vmatpush.msra.mxu0 0.0
  %530 = vmatpush.msra.mxu0 0.0
  %531 = vmatpush.msra.mxu0 0.0
  %532 = vmatpush.msra.mxu0 0.0
  %533 = vmatpush.msra.mxu0 %v516
  %534 = vmatpush.msra.mxu0 %v515
  %535 = vmatpush.msra.mxu0 %v514
  %536 = vmatpush.msra.mxu0 %v513
  %537 = vmatmul.f32.gmra.mxu0 %v519
  %v538 = vpop.f32.mrf.mxu0
  %v539 = vadd.f32 0.0, %v538
  %540 = vdwg.mxu0
  %v541 = vadd.f32 %v506, %v539
  %v542 = vxor.u32 %v541, 2147483648
  %v543 = vmul.f32 %v542, 1.442695
  %v544 = vpow.pop %v543
  %v545 = vadd.f32 %v544, 1.0
  %v546 = vrcp.pop %v545
  %v547 = vmul.f32 %v545, %v546
  %v548 = vsub.f32 1.0, %v547
  %v549 = vmul.f32 %v546, %v548
  %v550 = vadd.f32 %v546, %v549
  %vm551 = vweird.f32 %v545
  %vm552 = vweird.f32 %v546
  %vm553 = vmor %vm551, %vm552
  %v554 = vsel %vm553, %v546, %v550
  %v555 = vand.u32 2147483647, %v545
  %vm556 = vcmp.eq.f32.partialorder %v555, 8.507059e+37
  %v557 = vand.u32 %v545, 2147483648
  %v558 = vor.u32 1.1754944e-38, %v557
  %v559 = vsel %vm556, %v558, %v554
  %v560 = vmul.f32 1.0, %v559
  %v561 = vtanh.pop %v541
  %v562 = vmul.f32 %v560, 0.0
  %564 = vrot.lane.b32.xlu0 %v561, 32
  %v565 = vpop.permute.xlu0 %564
  %v567 = vmul.f32 %v560, %v565
  %569 = vrot.lane.b32.xlu0 %v567, 32
  %v570 = vpop.permute.xlu0 %569
  %v572 = vadd.f32 %v562, %v570
  %v573 = vtanh.pop %v572
  %575 = vrot.lane.b32.xlu0 %v573, 32
  %v576 = vpop.permute.xlu0 %575
  %v578 = vmul.f32 %v560, %v576
  %vm579 = vcmp.eq.s32.totalorder %v512, 0
  %v580 = vsel %vm579, 1, 0
  %581 = vset.pattern.permute.xlu0 0
  %582 = vperm.xlu0 %581, %v580
  %v583 = vpop.permute.xlu0 %582
  %vm584 = vcmp.eq.s32.totalorder %v583, 1
  %v585 = vsel %vm584, %v578, 0.0
  %587 = vrot.lane.b32.xlu0 %v578, 64
  %v588 = vpop.permute.xlu0 %587
  %v589 = vsel %vm517, %v588, 0
  %591 = vmatpush.msra.mxu0 0.0
  %592 = vmatpush.msra.mxu0 0.0
  %593 = vmatpush.msra.mxu0 0.0
  %594 = vmatpush.msra.mxu0 0.0
  %595 = vmatpush.msra.mxu0 0.0
  %596 = vmatpush.msra.mxu0 0.0
  %597 = vmatpush.msra.mxu0 0.0
  %598 = vmatpush.msra.mxu0 0.0
  %599 = vmatpush.msra.mxu0 0.0
  %600 = vmatpush.msra.mxu0 0.0
  %601 = vmatpush.msra.mxu0 0.0
  %602 = vmatpush.msra.mxu0 0.0
  %603 = vmatpush.msra.mxu0 %v516
  %604 = vmatpush.msra.mxu0 %v515
  %605 = vmatpush.msra.mxu0 %v514
  %606 = vmatpush.msra.mxu0 %v513
  %607 = vmatmul.f32.gmra.mxu0 %v589
  %v608 = vpop.f32.mrf.mxu0
  %v609 = vadd.f32 0.0, %v608
  %610 = vdwg.mxu0
  %v612 = vrot.slane %v609, 6
  %v614 = vadd.f32 %v506, %v612
  %v615 = vxor.u32 %v614, 2147483648
  %v616 = vmul.f32 %v615, 1.442695
  %v617 = vpow.pop %v616
  %v618 = vadd.f32 %v617, 1.0
  %v619 = vrcp.pop %v618
  %v620 = vmul.f32 %v618, %v619
  %v621 = vsub.f32 1.0, %v620
  %v622 = vmul.f32 %v619, %v621
  %v623 = vadd.f32 %v619, %v622
  %vm624 = vweird.f32 %v618
  %vm625 = vweird.f32 %v619
  %vm626 = vmor %vm624, %vm625
  %v627 = vsel %vm626, %v619, %v623
  %v628 = vand.u32 2147483647, %v618
  %vm629 = vcmp.eq.f32.partialorder %v628, 8.507059e+37
  %v630 = vand.u32 %v618, 2147483648
  %v631 = vor.u32 1.1754944e-38, %v630
  %v632 = vsel %vm629, %v631, %v627
  %v633 = vmul.f32 1.0, %v632
  %v634 = vtanh.pop %v614
  %v636 = vrot.slane %v572, 6
  %v638 = vmul.f32 %v633, %v636
  %640 = vrot.lane.b32.xlu0 %v634, 32
  %v641 = vpop.permute.xlu0 %640
  %v643 = vmul.f32 %v633, %v641
  %645 = vrot.lane.b32.xlu0 %v643, 32
  %v646 = vpop.permute.xlu0 %645
  %v648 = vadd.f32 %v638, %v646
  %v649 = vtanh.pop %v648
  %651 = vrot.lane.b32.xlu0 %v649, 32
  %v652 = vpop.permute.xlu0 %651
  %v654 = vmul.f32 %v633, %v652
  %vm655 = vcmp.eq.s32.totalorder %v512, 1
  %v656 = vsel %vm655, 1, 0
  %657 = vset.pattern.permute.xlu0 0
  %658 = vperm.xlu0 %657, %v656
  %v659 = vpop.permute.xlu0 %658
  %vm660 = vcmp.eq.s32.totalorder %v659, 1
  %v662 = vrot.slane %v654, 2
  %663 = vrot.lane.b32.xlu0 %v662, 64
  %v664 = vpop.permute.xlu0 %663
  %667 = vrot.lane.b32.xlu0 %v585, 64
  %v668 = vpop.permute.xlu0 %667
  %v670 = vsel %vm660, %v664, %v668
  %v671 = vsel %vm517, %v664, 0
  %673 = vmatpush.msra.mxu0 0.0
  %674 = vmatpush.msra.mxu0 0.0
  %675 = vmatpush.msra.mxu0 0.0
  %676 = vmatpush.msra.mxu0 0.0
  %677 = vmatpush.msra.mxu0 0.0
  %678 = vmatpush.msra.mxu0 0.0
  %679 = vmatpush.msra.mxu0 0.0
  %680 = vmatpush.msra.mxu0 0.0
  %681 = vmatpush.msra.mxu0 0.0
  %682 = vmatpush.msra.mxu0 0.0
  %683 = vmatpush.msra.mxu0 0.0
  %684 = vmatpush.msra.mxu0 0.0
  %685 = vmatpush.msra.mxu0 %v516
  %686 = vmatpush.msra.mxu0 %v515
  %687 = vmatpush.msra.mxu0 %v514
  %688 = vmatpush.msra.mxu0 %v513
  %689 = vmatmul.f32.gmra.mxu0 %v671
  %v690 = vpop.f32.mrf.mxu0
  %v691 = vadd.f32 0.0, %v690
  %692 = vdwg.mxu0
  %v694 = vrot.slane %v691, 4
  %v696 = vadd.f32 %v506, %v694
  %v697 = vxor.u32 %v696, 2147483648
  %v698 = vmul.f32 %v697, 1.442695
  %v699 = vpow.pop %v698
  %v700 = vadd.f32 %v699, 1.0
  %v701 = vrcp.pop %v700
  %v702 = vmul.f32 %v700, %v701
  %v703 = vsub.f32 1.0, %v702
  %v704 = vmul.f32 %v701, %v703
  %v705 = vadd.f32 %v701, %v704
  %vm706 = vweird.f32 %v700
  %vm707 = vweird.f32 %v701
  %vm708 = vmor %vm706, %vm707
  %v709 = vsel %vm708, %v701, %v705
  %v710 = vand.u32 2147483647, %v700
  %vm711 = vcmp.eq.f32.partialorder %v710, 8.507059e+37
  %v712 = vand.u32 %v700, 2147483648
  %v713 = vor.u32 1.1754944e-38, %v712
  %v714 = vsel %vm711, %v713, %v709
  %v715 = vmul.f32 1.0, %v714
  %v716 = vtanh.pop %v696
  %v718 = vrot.slane %v648, 6
  %v720 = vmul.f32 %v715, %v718
  %722 = vrot.lane.b32.xlu0 %v716, 32
  %v723 = vpop.permute.xlu0 %722
  %v725 = vmul.f32 %v715, %v723
  %727 = vrot.lane.b32.xlu0 %v725, 32
  %v728 = vpop.permute.xlu0 %727
  %v730 = vadd.f32 %v720, %v728
  %v731 = vtanh.pop %v730
  %733 = vrot.lane.b32.xlu0 %v731, 32
  %v734 = vpop.permute.xlu0 %733
  %v736 = vmul.f32 %v715, %v734
  %vm737 = vcmp.eq.s32.totalorder %v512, 2
  %v738 = vsel %vm737, 1, 0
  %739 = vset.pattern.permute.xlu0 0
  %740 = vperm.xlu0 %739, %v738
  %v741 = vpop.permute.xlu0 %740
  %vm742 = vcmp.eq.s32.totalorder %v741, 1
  %v744 = vrot.slane %v736, 4
  %745 = vrot.lane.b32.xlu0 %v744, 64
  %v746 = vpop.permute.xlu0 %745
  %v748 = vsel %vm742, %v746, %v670
  %v749 = vsel %vm517, %v746, 0
  %751 = vmatpush.msra.mxu0 0.0
  %752 = vmatpush.msra.mxu0 0.0
  %753 = vmatpush.msra.mxu0 0.0
  %754 = vmatpush.msra.mxu0 0.0
  %755 = vmatpush.msra.mxu0 0.0
  %756 = vmatpush.msra.mxu0 0.0
  %757 = vmatpush.msra.mxu0 0.0
  %758 = vmatpush.msra.mxu0 0.0
  %759 = vmatpush.msra.mxu0 0.0
  %760 = vmatpush.msra.mxu0 0.0
  %761 = vmatpush.msra.mxu0 0.0
  %762 = vmatpush.msra.mxu0 0.0
  %763 = vmatpush.msra.mxu0 %v516
  %764 = vmatpush.msra.mxu0 %v515
  %765 = vmatpush.msra.mxu0 %v514
  %766 = vmatpush.msra.mxu0 %v513
  %767 = vmatmul.f32.gmra.mxu0 %v749
  %v768 = vpop.f32.mrf.mxu0
  %v769 = vadd.f32 0.0, %v768
  %770 = vdwg.mxu0
  %v772 = vrot.slane %v769, 2
  %v774 = vadd.f32 %v506, %v772
  %v775 = vxor.u32 %v774, 2147483648
  %v776 = vmul.f32 %v775, 1.442695
  %v777 = vpow.pop %v776
  %v778 = vadd.f32 %v777, 1.0
  %v779 = vrcp.pop %v778
  %v780 = vmul.f32 %v778, %v779
  %v781 = vsub.f32 1.0, %v780
  %v782 = vmul.f32 %v779, %v781
  %v783 = vadd.f32 %v779, %v782
  %vm784 = vweird.f32 %v778
  %vm785 = vweird.f32 %v779
  %vm786 = vmor %vm784, %vm785
  %v787 = vsel %vm786, %v779, %v783
  %v788 = vand.u32 2147483647, %v778
  %vm789 = vcmp.eq.f32.partialorder %v788, 8.507059e+37
  %v790 = vand.u32 %v778, 2147483648
  %v791 = vor.u32 1.1754944e-38, %v790
  %v792 = vsel %vm789, %v791, %v787
  %v793 = vmul.f32 1.0, %v792
  %v794 = vtanh.pop %v774
  %v796 = vrot.slane %v730, 6
  %v798 = vmul.f32 %v793, %v796
  %800 = vrot.lane.b32.xlu0 %v794, 32
  %v801 = vpop.permute.xlu0 %800
  %v803 = vmul.f32 %v793, %v801
  %805 = vrot.lane.b32.xlu0 %v803, 32
  %v806 = vpop.permute.xlu0 %805
  %v808 = vadd.f32 %v798, %v806
  %v809 = vtanh.pop %v808
  %811 = vrot.lane.b32.xlu0 %v809, 32
  %v812 = vpop.permute.xlu0 %811
  %v814 = vmul.f32 %v793, %v812
  %vm815 = vcmp.eq.s32.totalorder %v512, 3
  %v816 = vsel %vm815, 1, 0
  %817 = vset.pattern.permute.xlu0 0
  %818 = vperm.xlu0 %817, %v816
  %v819 = vpop.permute.xlu0 %818
  %vm820 = vcmp.eq.s32.totalorder %v819, 1
  %v822 = vrot.slane %v814, 6
  %823 = vrot.lane.b32.xlu0 %v822, 64
  %v824 = vpop.permute.xlu0 %823
  %v826 = vsel %vm820, %v824, %v748
  %v827 = vsel %vm517, %v824, 0
  %829 = vmatpush.msra.mxu0 0.0
  %830 = vmatpush.msra.mxu0 0.0
  %831 = vmatpush.msra.mxu0 0.0
  %832 = vmatpush.msra.mxu0 0.0
  %833 = vmatpush.msra.mxu0 0.0
  %834 = vmatpush.msra.mxu0 0.0
  %835 = vmatpush.msra.mxu0 0.0
  %836 = vmatpush.msra.mxu0 0.0
  %837 = vmatpush.msra.mxu0 0.0
  %838 = vmatpush.msra.mxu0 0.0
  %839 = vmatpush.msra.mxu0 0.0
  %840 = vmatpush.msra.mxu0 0.0
  %841 = vmatpush.msra.mxu0 %v516
  %842 = vmatpush.msra.mxu0 %v515
  %843 = vmatpush.msra.mxu0 %v514
  %844 = vmatpush.msra.mxu0 %v513
  %845 = vmatmul.f32.gmra.mxu0 %v827
  %v846 = vpop.f32.mrf.mxu0
  %v847 = vadd.f32 0.0, %v846
  %848 = vdwg.mxu0
  %v849 = vadd.f32 %v509, %v847
  %v850 = vxor.u32 %v849, 2147483648
  %v851 = vmul.f32 %v850, 1.442695
  %v852 = vpow.pop %v851
  %v853 = vadd.f32 %v852, 1.0
  %v854 = vrcp.pop %v853
  %v855 = vmul.f32 %v853, %v854
  %v856 = vsub.f32 1.0, %v855
  %v857 = vmul.f32 %v854, %v856
  %v858 = vadd.f32 %v854, %v857
  %vm859 = vweird.f32 %v853
  %vm860 = vweird.f32 %v854
  %vm861 = vmor %vm859, %vm860
  %v862 = vsel %vm861, %v854, %v858
  %v863 = vand.u32 2147483647, %v853
  %vm864 = vcmp.eq.f32.partialorder %v863, 8.507059e+37
  %v865 = vand.u32 %v853, 2147483648
  %v866 = vor.u32 1.1754944e-38, %v865
  %v867 = vsel %vm864, %v866, %v862
  %v868 = vmul.f32 1.0, %v867
  %v869 = vtanh.pop %v849
  %v871 = vrot.slane %v808, 6
  %v873 = vmul.f32 %v868, %v871
  %875 = vrot.lane.b32.xlu0 %v869, 32
  %v876 = vpop.permute.xlu0 %875
  %v878 = vmul.f32 %v868, %v876
  %880 = vrot.lane.b32.xlu0 %v878, 32
  %v881 = vpop.permute.xlu0 %880
  %v883 = vadd.f32 %v873, %v881
  %v884 = vtanh.pop %v883
  %886 = vrot.lane.b32.xlu0 %v884, 32
  %v887 = vpop.permute.xlu0 %886
  %v889 = vmul.f32 %v868, %v887
  %vm890 = vcmp.eq.s32.totalorder %v512, 4
  %v891 = vsel %vm890, 1, 0
  %892 = vset.pattern.permute.xlu0 0
  %893 = vperm.xlu0 %892, %v891
  %v894 = vpop.permute.xlu0 %893
  %vm895 = vcmp.eq.s32.totalorder %v894, 1
  %897 = vrot.lane.b32.xlu0 %v826, 64
  %v898 = vpop.permute.xlu0 %897
  %v900 = vsel %vm895, %v889, %v898
  %902 = vrot.lane.b32.xlu0 %v889, 64
  %v903 = vpop.permute.xlu0 %902
  %v904 = vsel %vm517, %v903, 0
  %906 = vmatpush.msra.mxu0 0.0
  %907 = vmatpush.msra.mxu0 0.0
  %908 = vmatpush.msra.mxu0 0.0
  %909 = vmatpush.msra.mxu0 0.0
  %910 = vmatpush.msra.mxu0 0.0
  %911 = vmatpush.msra.mxu0 0.0
  %912 = vmatpush.msra.mxu0 0.0
  %913 = vmatpush.msra.mxu0 0.0
  %914 = vmatpush.msra.mxu0 0.0
  %915 = vmatpush.msra.mxu0 0.0
  %916 = vmatpush.msra.mxu0 0.0
  %917 = vmatpush.msra.mxu0 0.0
  %918 = vmatpush.msra.mxu0 %v516
  %919 = vmatpush.msra.mxu0 %v515
  %920 = vmatpush.msra.mxu0 %v514
  %921 = vmatpush.msra.mxu0 %v513
  %922 = vmatmul.f32.gmra.mxu0 %v904
  %v923 = vpop.f32.mrf.mxu0
  %v924 = vadd.f32 0.0, %v923
  %925 = vdwg.mxu0
  %v927 = vrot.slane %v924, 6
  %v929 = vadd.f32 %v509, %v927
  %v930 = vxor.u32 %v929, 2147483648
  %v931 = vmul.f32 %v930, 1.442695
  %v932 = vpow.pop %v931
  %v933 = vadd.f32 %v932, 1.0
  %v934 = vrcp.pop %v933
  %v935 = vmul.f32 %v933, %v934
  %v936 = vsub.f32 1.0, %v935
  %v937 = vmul.f32 %v934, %v936
  %v938 = vadd.f32 %v934, %v937
  %vm939 = vweird.f32 %v933
  %vm940 = vweird.f32 %v934
  %vm941 = vmor %vm939, %vm940
  %v942 = vsel %vm941, %v934, %v938
  %v943 = vand.u32 2147483647, %v933
  %vm944 = vcmp.eq.f32.partialorder %v943, 8.507059e+37
  %v945 = vand.u32 %v933, 2147483648
  %v946 = vor.u32 1.1754944e-38, %v945
  %v947 = vsel %vm944, %v946, %v942
  %v948 = vmul.f32 1.0, %v947
  %v949 = vtanh.pop %v929
  %v951 = vrot.slane %v883, 6
  %v953 = vmul.f32 %v948, %v951
  %955 = vrot.lane.b32.xlu0 %v949, 32
  %v956 = vpop.permute.xlu0 %955
  %v958 = vmul.f32 %v948, %v956
  %960 = vrot.lane.b32.xlu0 %v958, 32
  %v961 = vpop.permute.xlu0 %960
  %v963 = vadd.f32 %v953, %v961
  %v964 = vtanh.pop %v963
  %966 = vrot.lane.b32.xlu0 %v964, 32
  %v967 = vpop.permute.xlu0 %966
  %v969 = vmul.f32 %v948, %v967
  %vm970 = vcmp.eq.s32.totalorder %v512, 5
  %v971 = vsel %vm970, 1, 0
  %972 = vset.pattern.permute.xlu0 0
  %973 = vperm.xlu0 %972, %v971
  %v974 = vpop.permute.xlu0 %973
  %vm975 = vcmp.eq.s32.totalorder %v974, 1
  %v977 = vrot.slane %v969, 2
  %978 = vrot.lane.b32.xlu0 %v977, 64
  %v979 = vpop.permute.xlu0 %978
  %982 = vrot.lane.b32.xlu0 %v900, 64
  %v983 = vpop.permute.xlu0 %982
  %v985 = vsel %vm975, %v979, %v983
  %v986 = vsel %vm517, %v979, 0
  %988 = vmatpush.msra.mxu0 0.0
  %989 = vmatpush.msra.mxu0 0.0
  %990 = vmatpush.msra.mxu0 0.0
  %991 = vmatpush.msra.mxu0 0.0
  %992 = vmatpush.msra.mxu0 0.0
  %993 = vmatpush.msra.mxu0 0.0
  %994 = vmatpush.msra.mxu0 0.0
  %995 = vmatpush.msra.mxu0 0.0
  %996 = vmatpush.msra.mxu0 0.0
  %997 = vmatpush.msra.mxu0 0.0
  %998 = vmatpush.msra.mxu0 0.0
  %999 = vmatpush.msra.mxu0 0.0
  %1000 = vmatpush.msra.mxu0 %v516
  %1001 = vmatpush.msra.mxu0 %v515
  %1002 = vmatpush.msra.mxu0 %v514
  %1003 = vmatpush.msra.mxu0 %v513
  %1004 = vmatmul.f32.gmra.mxu0 %v986
  %v1005 = vpop.f32.mrf.mxu0
  %v1006 = vadd.f32 0.0, %v1005
  %1007 = vdwg.mxu0
  %v1009 = vrot.slane %v1006, 4
  %v1011 = vadd.f32 %v509, %v1009
  %v1012 = vxor.u32 %v1011, 2147483648
  %v1013 = vmul.f32 %v1012, 1.442695
  %v1014 = vpow.pop %v1013
  %v1015 = vadd.f32 %v1014, 1.0
  %v1016 = vrcp.pop %v1015
  %v1017 = vmul.f32 %v1015, %v1016
  %v1018 = vsub.f32 1.0, %v1017
  %v1019 = vmul.f32 %v1016, %v1018
  %v1020 = vadd.f32 %v1016, %v1019
  %vm1021 = vweird.f32 %v1015
  %vm1022 = vweird.f32 %v1016
  %vm1023 = vmor %vm1021, %vm1022
  %v1024 = vsel %vm1023, %v1016, %v1020
  %v1025 = vand.u32 2147483647, %v1015
  %vm1026 = vcmp.eq.f32.partialorder %v1025, 8.507059e+37
  %v1027 = vand.u32 %v1015, 2147483648
  %v1028 = vor.u32 1.1754944e-38, %v1027
  %v1029 = vsel %vm1026, %v1028, %v1024
  %v1030 = vmul.f32 1.0, %v1029
  %v1031 = vtanh.pop %v1011
  %v1033 = vrot.slane %v963, 6
  %v1035 = vmul.f32 %v1030, %v1033
  %1037 = vrot.lane.b32.xlu0 %v1031, 32
  %v1038 = vpop.permute.xlu0 %1037
  %v1040 = vmul.f32 %v1030, %v1038
  %1042 = vrot.lane.b32.xlu0 %v1040, 32
  %v1043 = vpop.permute.xlu0 %1042
  %v1045 = vadd.f32 %v1035, %v1043
  %v1046 = vtanh.pop %v1045
  %1048 = vrot.lane.b32.xlu0 %v1046, 32
  %v1049 = vpop.permute.xlu0 %1048
  %v1051 = vmul.f32 %v1030, %v1049
  %vm1052 = vcmp.eq.s32.totalorder %v512, 6
  %v1053 = vsel %vm1052, 1, 0
  %1054 = vset.pattern.permute.xlu0 0
  %1055 = vperm.xlu0 %1054, %v1053
  %v1056 = vpop.permute.xlu0 %1055
  %vm1057 = vcmp.eq.s32.totalorder %v1056, 1
  %v1059 = vrot.slane %v1051, 4
  %1060 = vrot.lane.b32.xlu0 %v1059, 64
  %v1061 = vpop.permute.xlu0 %1060
  %v1063 = vsel %vm1057, %v1061, %v985
  %v1064 = vsel %vm517, %v1061, 0
  %1066 = vmatpush.msra.mxu0 0.0
  %1067 = vmatpush.msra.mxu0 0.0
  %1068 = vmatpush.msra.mxu0 0.0
  %1069 = vmatpush.msra.mxu0 0.0
  %1070 = vmatpush.msra.mxu0 0.0
  %1071 = vmatpush.msra.mxu0 0.0
  %1072 = vmatpush.msra.mxu0 0.0
  %1073 = vmatpush.msra.mxu0 0.0
  %1074 = vmatpush.msra.mxu0 0.0
  %1075 = vmatpush.msra.mxu0 0.0
  %1076 = vmatpush.msra.mxu0 0.0
  %1077 = vmatpush.msra.mxu0 0.0
  %1078 = vmatpush.msra.mxu0 %v516
  %1079 = vmatpush.msra.mxu0 %v515
  %1080 = vmatpush.msra.mxu0 %v514
  %1081 = vmatpush.msra.mxu0 %v513
  %1082 = vmatmul.f32.gmra.mxu0 %v1064
  %v1083 = vpop.f32.mrf.mxu0
  %v1084 = vadd.f32 0.0, %v1083
  %1085 = vdwg.mxu0
  %v1087 = vrot.slane %v1084, 2
  %v1089 = vadd.f32 %v509, %v1087
  %v1090 = vxor.u32 %v1089, 2147483648
  %v1091 = vmul.f32 %v1090, 1.442695
  %v1092 = vpow.pop %v1091
  %v1093 = vadd.f32 %v1092, 1.0
  %v1094 = vrcp.pop %v1093
  %v1095 = vmul.f32 %v1093, %v1094
  %v1096 = vsub.f32 1.0, %v1095
  %v1097 = vmul.f32 %v1094, %v1096
  %v1098 = vadd.f32 %v1094, %v1097
  %vm1099 = vweird.f32 %v1093
  %vm1100 = vweird.f32 %v1094
  %vm1101 = vmor %vm1099, %vm1100
  %v1102 = vsel %vm1101, %v1094, %v1098
  %v1103 = vand.u32 2147483647, %v1093
  %vm1104 = vcmp.eq.f32.partialorder %v1103, 8.507059e+37
  %v1105 = vand.u32 %v1093, 2147483648
  %v1106 = vor.u32 1.1754944e-38, %v1105
  %v1107 = vsel %vm1104, %v1106, %v1102
  %v1108 = vmul.f32 1.0, %v1107
  %v1109 = vtanh.pop %v1089
  %v1111 = vrot.slane %v1045, 6
  %v1113 = vmul.f32 %v1108, %v1111
  %1115 = vrot.lane.b32.xlu0 %v1109, 32
  %v1116 = vpop.permute.xlu0 %1115
  %v1118 = vmul.f32 %v1108, %v1116
  %1120 = vrot.lane.b32.xlu0 %v1118, 32
  %v1121 = vpop.permute.xlu0 %1120
  %v1123 = vadd.f32 %v1113, %v1121
  %v1124 = vtanh.pop %v1123
  %1126 = vrot.lane.b32.xlu0 %v1124, 32
  %v1127 = vpop.permute.xlu0 %1126
  %v1129 = vmul.f32 %v1108, %v1127
  %vm1130 = vcmp.eq.s32.totalorder %v512, 7
  %v1131 = vsel %vm1130, 1, 0
  %1132 = vset.pattern.permute.xlu0 0
  %1133 = vperm.xlu0 %1132, %v1131
  %v1134 = vpop.permute.xlu0 %1133
  %vm1135 = vcmp.eq.s32.totalorder %v1134, 1
  %v1137 = vrot.slane %v1129, 6
  %1138 = vrot.lane.b32.xlu0 %v1137, 64
  %v1139 = vpop.permute.xlu0 %1138
  %v1141 = vsel %vm1135, %v1139, %v1063
  %v1142 = vld [vmem:[%s8] sm:$0xff]
  %v1143 = vld [vmem:[%s8 + $0x8] sm:$0xff]
  %v1144 = vld [vmem:[%s8 + $0x10] sm:$0xff]
  %v1145 = vld [vmem:[%s8 + $0x18] sm:$0xff]
  %v1146 = vld [vmem:[%s9] sm:$0x1]
  %v1148 = vperm.slane %v1146, 0
  %v1151 = vsel %vm517, %v1141, 0
  %1153 = vmatpush.msra.mxu0 0.0
  %1154 = vmatpush.msra.mxu0 0.0
  %1155 = vmatpush.msra.mxu0 0.0
  %1156 = vmatpush.msra.mxu0 0.0
  %1157 = vmatpush.msra.mxu0 0.0
  %1158 = vmatpush.msra.mxu0 0.0
  %1159 = vmatpush.msra.mxu0 0.0
  %1160 = vmatpush.msra.mxu0 0.0
  %1161 = vmatpush.msra.mxu0 0.0
  %1162 = vmatpush.msra.mxu0 0.0
  %1163 = vmatpush.msra.mxu0 0.0
  %1164 = vmatpush.msra.mxu0 0.0
  %1165 = vmatpush.msra.mxu0 %v1145
  %1166 = vmatpush.msra.mxu0 %v1144
  %1167 = vmatpush.msra.mxu0 %v1143
  %1168 = vmatpush.msra.mxu0 %v1142
  %1169 = vmatmul.f32.gmra.mxu0 %v1151
  %v1170 = vpop.f32.mrf.mxu0
  %v1171 = vadd.f32 %v1148, %v1170
  %1172 = vdwg.mxu0
  %v1173 = vld [vmem:[%s10] sm:$0xff]
  %v1174 = vld [vmem:[%s10 + $0x8] sm:$0xff]
  %v1175 = vld [vmem:[%s10 + $0x10] sm:$0xff]
  %v1176 = vld [vmem:[%s10 + $0x18] sm:$0xff]
  %v1177 = vld [vmem:[%s11] sm:$0x1]
  %v1179 = vperm.slane %v1177, 0
  %v1182 = vsel %vm517, %v469, 0
  %v1185 = vsel %vm517, %v470, 0
  %v1188 = vsel %vm517, %v449, 0
  %v1191 = vsel %vm517, %v450, 0
  %v1194 = vsel %vm517, %v429, 0
  %v1197 = vsel %vm517, %v430, 0
  %v1200 = vsel %vm517, %v409, 0
  %v1203 = vsel %vm517, %v410, 0
  %v1206 = vsel %vm517, %v389, 0
  %v1209 = vsel %vm517, %v390, 0
  %v1212 = vsel %vm517, %v369, 0
  %v1215 = vsel %vm517, %v370, 0
  %v1218 = vsel %vm517, %v349, 0
  %v1221 = vsel %vm517, %v350, 0
  %v1224 = vsel %vm517, %v329, 0
  %v1227 = vsel %vm517, %v330, 0
  %v1230 = vsel %vm517, %v309, 0
  %v1233 = vsel %vm517, %v310, 0
  %v1236 = vsel %vm517, %v289, 0
  %v1239 = vsel %vm517, %v290, 0
  %v1242 = vsel %vm517, %v269, 0
  %v1245 = vsel %vm517, %v270, 0
  %v1248 = vsel %vm517, %v249, 0
  %v1251 = vsel %vm517, %v250, 0
  %v1254 = vsel %vm517, %v229, 0
  %v1257 = vsel %vm517, %v230, 0
  %v1260 = vsel %vm517, %v209, 0
  %v1263 = vsel %vm517, %v210, 0
  %v1266 = vsel %vm517, %v189, 0
  %v1269 = vsel %vm517, %v190, 0
  %v1272 = vsel %vm517, %v169, 0
  %v1275 = vsel %vm517, %v170, 0
  %v1278 = vsel %vm517, %v471, 0
  %v1281 = vsel %vm517, %v472, 0
  %v1284 = vsel %vm517, %v451, 0
  %v1287 = vsel %vm517, %v452, 0
  %v1290 = vsel %vm517, %v431, 0
  %v1293 = vsel %vm517, %v432, 0
  %v1296 = vsel %vm517, %v411, 0
  %v1299 = vsel %vm517, %v412, 0
  %v1302 = vsel %vm517, %v391, 0
  %v1305 = vsel %vm517, %v392, 0
  %v1308 = vsel %vm517, %v371, 0
  %v1311 = vsel %vm517, %v372, 0
  %v1314 = vsel %vm517, %v351, 0
  %v1317 = vsel %vm517, %v352, 0
  %v1320 = vsel %vm517, %v331, 0
  %v1323 = vsel %vm517, %v332, 0
  %v1326 = vsel %vm517, %v311, 0
  %v1329 = vsel %vm517, %v312, 0
  %v1332 = vsel %vm517, %v291, 0
  %v1335 = vsel %vm517, %v292, 0
  %v1338 = vsel %vm517, %v271, 0
  %v1341 = vsel %vm517, %v272, 0
  %v1344 = vsel %vm517, %v251, 0
  %v1347 = vsel %vm517, %v252, 0
  %v1350 = vsel %vm517, %v231, 0
  %v1353 = vsel %vm517, %v232, 0
  %v1356 = vsel %vm517, %v211, 0
  %v1359 = vsel %vm517, %v212, 0
  %v1362 = vsel %vm517, %v191, 0
  %v1365 = vsel %vm517, %v192, 0
  %v1368 = vsel %vm517, %v171, 0
  %v1371 = vsel %vm517, %v172, 0
  %1373 = vmatpush.msra.mxu0 0.0
  %1374 = vmatpush.msra.mxu0 0.0
  %1375 = vmatpush.msra.mxu0 0.0
  %1376 = vmatpush.msra.mxu0 0.0
  %1377 = vmatpush.msra.mxu0 0.0
  %1378 = vmatpush.msra.mxu0 0.0
  %1379 = vmatpush.msra.mxu0 0.0
  %1380 = vmatpush.msra.mxu0 0.0
  %1381 = vmatpush.msra.mxu0 0.0
  %1382 = vmatpush.msra.mxu0 0.0
  %1383 = vmatpush.msra.mxu0 0.0
  %1384 = vmatpush.msra.mxu0 0.0
  %1385 = vmatpush.msra.mxu0 %v1176
  %1386 = vmatpush.msra.mxu0 %v1175
  %1387 = vmatpush.msra.mxu0 %v1174
  %1388 = vmatpush.msra.mxu0 %v1173
  %1389 = vmatmul.f32.gmra.mxu0 %v1182
  %v1390 = vpop.f32.mrf.mxu0
  %v1391 = vadd.f32 %v1179, %v1390
  %1392 = vmatmul.f32.gmra.mxu0 %v1185
  %v1393 = vpop.f32.mrf.mxu0
  %v1394 = vadd.f32 %v1179, %v1393
  %1395 = vmatmul.f32.gmra.mxu0 %v1188
  %v1396 = vpop.f32.mrf.mxu0
  %v1397 = vadd.f32 %v1179, %v1396
  %1398 = vmatmul.f32.gmra.mxu0 %v1191
  %v1399 = vpop.f32.mrf.mxu0
  %v1400 = vadd.f32 %v1179, %v1399
  %1401 = vmatmul.f32.gmra.mxu0 %v1194
  %v1402 = vpop.f32.mrf.mxu0
  %v1403 = vadd.f32 %v1179, %v1402
  %1404 = vmatmul.f32.gmra.mxu0 %v1197
  %v1405 = vpop.f32.mrf.mxu0
  %v1406 = vadd.f32 %v1179, %v1405
  %1407 = vmatmul.f32.gmra.mxu0 %v1200
  %v1408 = vpop.f32.mrf.mxu0
  %v1409 = vadd.f32 %v1179, %v1408
  %1410 = vmatmul.f32.gmra.mxu0 %v1203
  %v1411 = vpop.f32.mrf.mxu0
  %v1412 = vadd.f32 %v1179, %v1411
  %1413 = vmatmul.f32.gmra.mxu0 %v1206
  %v1414 = vpop.f32.mrf.mxu0
  %v1415 = vadd.f32 %v1179, %v1414
  %1416 = vmatmul.f32.gmra.mxu0 %v1209
  %v1417 = vpop.f32.mrf.mxu0
  %v1418 = vadd.f32 %v1179, %v1417
  %1419 = vmatmul.f32.gmra.mxu0 %v1212
  %v1420 = vpop.f32.mrf.mxu0
  %v1421 = vadd.f32 %v1179, %v1420
  %1422 = vmatmul.f32.gmra.mxu0 %v1215
  %v1423 = vpop.f32.mrf.mxu0
  %v1424 = vadd.f32 %v1179, %v1423
  %1425 = vmatmul.f32.gmra.mxu0 %v1218
  %v1426 = vpop.f32.mrf.mxu0
  %v1427 = vadd.f32 %v1179, %v1426
  %1428 = vmatmul.f32.gmra.mxu0 %v1221
  %v1429 = vpop.f32.mrf.mxu0
  %v1430 = vadd.f32 %v1179, %v1429
  %1431 = vmatmul.f32.gmra.mxu0 %v1224
  %v1432 = vpop.f32.mrf.mxu0
  %v1433 = vadd.f32 %v1179, %v1432
  %1434 = vmatmul.f32.gmra.mxu0 %v1227
  %v1435 = vpop.f32.mrf.mxu0
  %v1436 = vadd.f32 %v1179, %v1435
  %1437 = vmatmul.f32.gmra.mxu0 %v1230
  %v1438 = vpop.f32.mrf.mxu0
  %v1439 = vadd.f32 %v1179, %v1438
  %1440 = vmatmul.f32.gmra.mxu0 %v1233
  %v1441 = vpop.f32.mrf.mxu0
  %v1442 = vadd.f32 %v1179, %v1441
  %1443 = vmatmul.f32.gmra.mxu0 %v1236
  %v1444 = vpop.f32.mrf.mxu0
  %v1445 = vadd.f32 %v1179, %v1444
  %1446 = vmatmul.f32.gmra.mxu0 %v1239
  %v1447 = vpop.f32.mrf.mxu0
  %v1448 = vadd.f32 %v1179, %v1447
  %1449 = vmatmul.f32.gmra.mxu0 %v1242
  %v1450 = vpop.f32.mrf.mxu0
  %v1451 = vadd.f32 %v1179, %v1450
  %1452 = vmatmul.f32.gmra.mxu0 %v1245
  %v1453 = vpop.f32.mrf.mxu0
  %v1454 = vadd.f32 %v1179, %v1453
  %1455 = vmatmul.f32.gmra.mxu0 %v1248
  %v1456 = vpop.f32.mrf.mxu0
  %v1457 = vadd.f32 %v1179, %v1456
  %1458 = vmatmul.f32.gmra.mxu0 %v1251
  %v1459 = vpop.f32.mrf.mxu0
  %v1460 = vadd.f32 %v1179, %v1459
  %1461 = vmatmul.f32.gmra.mxu0 %v1254
  %v1462 = vpop.f32.mrf.mxu0
  %v1463 = vadd.f32 %v1179, %v1462
  %1464 = vmatmul.f32.gmra.mxu0 %v1257
  %v1465 = vpop.f32.mrf.mxu0
  %v1466 = vadd.f32 %v1179, %v1465
  %1467 = vmatmul.f32.gmra.mxu0 %v1260
  %v1468 = vpop.f32.mrf.mxu0
  %v1469 = vadd.f32 %v1179, %v1468
  %1470 = vmatmul.f32.gmra.mxu0 %v1263
  %v1471 = vpop.f32.mrf.mxu0
  %v1472 = vadd.f32 %v1179, %v1471
  %1473 = vmatmul.f32.gmra.mxu0 %v1266
  %v1474 = vpop.f32.mrf.mxu0
  %v1475 = vadd.f32 %v1179, %v1474
  %1476 = vmatmul.f32.gmra.mxu0 %v1269
  %v1477 = vpop.f32.mrf.mxu0
  %v1478 = vadd.f32 %v1179, %v1477
  %1479 = vmatmul.f32.gmra.mxu0 %v1272
  %v1480 = vpop.f32.mrf.mxu0
  %v1481 = vadd.f32 %v1179, %v1480
  %1482 = vmatmul.f32.gmra.mxu0 %v1275
  %v1483 = vpop.f32.mrf.mxu0
  %v1484 = vadd.f32 %v1179, %v1483
  %1485 = vmatmul.f32.gmra.mxu0 %v1278
  %v1486 = vpop.f32.mrf.mxu0
  %v1487 = vadd.f32 %v1179, %v1486
  %1488 = vmatmul.f32.gmra.mxu0 %v1281
  %v1489 = vpop.f32.mrf.mxu0
  %v1490 = vadd.f32 %v1179, %v1489
  %1491 = vmatmul.f32.gmra.mxu0 %v1284
  %v1492 = vpop.f32.mrf.mxu0
  %v1493 = vadd.f32 %v1179, %v1492
  %1494 = vmatmul.f32.gmra.mxu0 %v1287
  %v1495 = vpop.f32.mrf.mxu0
  %v1496 = vadd.f32 %v1179, %v1495
  %1497 = vmatmul.f32.gmra.mxu0 %v1290
  %v1498 = vpop.f32.mrf.mxu0
  %v1499 = vadd.f32 %v1179, %v1498
  %1500 = vmatmul.f32.gmra.mxu0 %v1293
  %v1501 = vpop.f32.mrf.mxu0
  %v1502 = vadd.f32 %v1179, %v1501
  %1503 = vmatmul.f32.gmra.mxu0 %v1296
  %v1504 = vpop.f32.mrf.mxu0
  %v1505 = vadd.f32 %v1179, %v1504
  %1506 = vmatmul.f32.gmra.mxu0 %v1299
  %v1507 = vpop.f32.mrf.mxu0
  %v1508 = vadd.f32 %v1179, %v1507
  %1509 = vmatmul.f32.gmra.mxu0 %v1302
  %v1510 = vpop.f32.mrf.mxu0
  %v1511 = vadd.f32 %v1179, %v1510
  %1512 = vmatmul.f32.gmra.mxu0 %v1305
  %v1513 = vpop.f32.mrf.mxu0
  %v1514 = vadd.f32 %v1179, %v1513
  %1515 = vmatmul.f32.gmra.mxu0 %v1308
  %v1516 = vpop.f32.mrf.mxu0
  %v1517 = vadd.f32 %v1179, %v1516
  %1518 = vmatmul.f32.gmra.mxu0 %v1311
  %v1519 = vpop.f32.mrf.mxu0
  %v1520 = vadd.f32 %v1179, %v1519
  %1521 = vmatmul.f32.gmra.mxu0 %v1314
  %v1522 = vpop.f32.mrf.mxu0
  %v1523 = vadd.f32 %v1179, %v1522
  %1524 = vmatmul.f32.gmra.mxu0 %v1317
  %v1525 = vpop.f32.mrf.mxu0
  %v1526 = vadd.f32 %v1179, %v1525
  %1527 = vmatmul.f32.gmra.mxu0 %v1320
  %v1528 = vpop.f32.mrf.mxu0
  %v1529 = vadd.f32 %v1179, %v1528
  %1530 = vmatmul.f32.gmra.mxu0 %v1323
  %v1531 = vpop.f32.mrf.mxu0
  %v1532 = vadd.f32 %v1179, %v1531
  %1533 = vmatmul.f32.gmra.mxu0 %v1326
  %v1534 = vpop.f32.mrf.mxu0
  %v1535 = vadd.f32 %v1179, %v1534
  %1536 = vmatmul.f32.gmra.mxu0 %v1329
  %v1537 = vpop.f32.mrf.mxu0
  %v1538 = vadd.f32 %v1179, %v1537
  %1539 = vmatmul.f32.gmra.mxu0 %v1332
  %v1540 = vpop.f32.mrf.mxu0
  %v1541 = vadd.f32 %v1179, %v1540
  %1542 = vmatmul.f32.gmra.mxu0 %v1335
  %v1543 = vpop.f32.mrf.mxu0
  %v1544 = vadd.f32 %v1179, %v1543
  %1545 = vmatmul.f32.gmra.mxu0 %v1338
  %v1546 = vpop.f32.mrf.mxu0
  %v1547 = vadd.f32 %v1179, %v1546
  %1548 = vmatmul.f32.gmra.mxu0 %v1341
  %v1549 = vpop.f32.mrf.mxu0
  %v1550 = vadd.f32 %v1179, %v1549
  %1551 = vmatmul.f32.gmra.mxu0 %v1344
  %v1552 = vpop.f32.mrf.mxu0
  %v1553 = vadd.f32 %v1179, %v1552
  %1554 = vmatmul.f32.gmra.mxu0 %v1347
  %v1555 = vpop.f32.mrf.mxu0
  %v1556 = vadd.f32 %v1179, %v1555
  %1557 = vmatmul.f32.gmra.mxu0 %v1350
  %v1558 = vpop.f32.mrf.mxu0
  %v1559 = vadd.f32 %v1179, %v1558
  %1560 = vmatmul.f32.gmra.mxu0 %v1353
  %v1561 = vpop.f32.mrf.mxu0
  %v1562 = vadd.f32 %v1179, %v1561
  %1563 = vmatmul.f32.gmra.mxu0 %v1356
  %v1564 = vpop.f32.mrf.mxu0
  %v1565 = vadd.f32 %v1179, %v1564
  %1566 = vmatmul.f32.gmra.mxu0 %v1359
  %v1567 = vpop.f32.mrf.mxu0
  %v1568 = vadd.f32 %v1179, %v1567
  %1569 = vmatmul.f32.gmra.mxu0 %v1362
  %v1570 = vpop.f32.mrf.mxu0
  %v1571 = vadd.f32 %v1179, %v1570
  %1572 = vmatmul.f32.gmra.mxu0 %v1365
  %v1573 = vpop.f32.mrf.mxu0
  %v1574 = vadd.f32 %v1179, %v1573
  %1575 = vmatmul.f32.gmra.mxu0 %v1368
  %v1576 = vpop.f32.mrf.mxu0
  %v1577 = vadd.f32 %v1179, %v1576
  %1578 = vmatmul.f32.gmra.mxu0 %v1371
  %v1579 = vpop.f32.mrf.mxu0
  %v1580 = vadd.f32 %v1179, %v1579
  %1581 = vdwg.mxu0
  %v1583 = vrot.slane %v1171, 1
  %v1584 = vperm.slane %v1171, 0
  %v1585 = vperm.slane %v1583, 0
  %v1588 = vmul.f32 %v1391, %v1584
  %v1589 = vmul.f32 %v1394, %v1584
  %v1590 = vmul.f32 %v1397, %v1584
  %v1591 = vmul.f32 %v1400, %v1584
  %v1592 = vmul.f32 %v1403, %v1584
  %v1593 = vmul.f32 %v1406, %v1584
  %v1594 = vmul.f32 %v1409, %v1584
  %v1595 = vmul.f32 %v1412, %v1584
  %v1596 = vmul.f32 %v1415, %v1584
  %v1597 = vmul.f32 %v1418, %v1584
  %v1598 = vmul.f32 %v1421, %v1584
  %v1599 = vmul.f32 %v1424, %v1584
  %v1600 = vmul.f32 %v1427, %v1584
  %v1601 = vmul.f32 %v1430, %v1584
  %v1602 = vmul.f32 %v1433, %v1584
  %v1603 = vmul.f32 %v1436, %v1584
  %v1604 = vmul.f32 %v1439, %v1584
  %v1605 = vmul.f32 %v1442, %v1584
  %v1606 = vmul.f32 %v1445, %v1584
  %v1607 = vmul.f32 %v1448, %v1584
  %v1608 = vmul.f32 %v1451, %v1584
  %v1609 = vmul.f32 %v1454, %v1584
  %v1610 = vmul.f32 %v1457, %v1584
  %v1611 = vmul.f32 %v1460, %v1584
  %v1612 = vmul.f32 %v1463, %v1584
  %v1613 = vmul.f32 %v1466, %v1584
  %v1614 = vmul.f32 %v1469, %v1584
  %v1615 = vmul.f32 %v1472, %v1584
  %v1616 = vmul.f32 %v1475, %v1584
  %v1617 = vmul.f32 %v1478, %v1584
  %v1618 = vmul.f32 %v1481, %v1584
  %v1619 = vmul.f32 %v1484, %v1584
  %v1620 = vmul.f32 %v1487, %v1585
  %v1621 = vmul.f32 %v1490, %v1585
  %v1622 = vmul.f32 %v1493, %v1585
  %v1623 = vmul.f32 %v1496, %v1585
  %v1624 = vmul.f32 %v1499, %v1585
  %v1625 = vmul.f32 %v1502, %v1585
  %v1626 = vmul.f32 %v1505, %v1585
  %v1627 = vmul.f32 %v1508, %v1585
  %v1628 = vmul.f32 %v1511, %v1585
  %v1629 = vmul.f32 %v1514, %v1585
  %v1630 = vmul.f32 %v1517, %v1585
  %v1631 = vmul.f32 %v1520, %v1585
  %v1632 = vmul.f32 %v1523, %v1585
  %v1633 = vmul.f32 %v1526, %v1585
  %v1634 = vmul.f32 %v1529, %v1585
  %v1635 = vmul.f32 %v1532, %v1585
  %v1636 = vmul.f32 %v1535, %v1585
  %v1637 = vmul.f32 %v1538, %v1585
  %v1638 = vmul.f32 %v1541, %v1585
  %v1639 = vmul.f32 %v1544, %v1585
  %v1640 = vmul.f32 %v1547, %v1585
  %v1641 = vmul.f32 %v1550, %v1585
  %v1642 = vmul.f32 %v1553, %v1585
  %v1643 = vmul.f32 %v1556, %v1585
  %v1644 = vmul.f32 %v1559, %v1585
  %v1645 = vmul.f32 %v1562, %v1585
  %v1646 = vmul.f32 %v1565, %v1585
  %v1647 = vmul.f32 %v1568, %v1585
  %v1648 = vmul.f32 %v1571, %v1585
  %v1649 = vmul.f32 %v1574, %v1585
  %v1650 = vmul.f32 %v1577, %v1585
  %v1651 = vmul.f32 %v1580, %v1585
  %v1652 = vmul.f32 %v1588, %v1588
  %v1653 = vmul.f32 %v1589, %v1589
  %v1654 = vmul.f32 %v1590, %v1590
  %v1655 = vmul.f32 %v1591, %v1591
  %v1656 = vmul.f32 %v1592, %v1592
  %v1657 = vmul.f32 %v1593, %v1593
  %v1658 = vmul.f32 %v1594, %v1594
  %v1659 = vmul.f32 %v1595, %v1595
  %v1660 = vmul.f32 %v1596, %v1596
  %v1661 = vmul.f32 %v1597, %v1597
  %v1662 = vmul.f32 %v1598, %v1598
  %v1663 = vmul.f32 %v1599, %v1599
  %v1664 = vmul.f32 %v1600, %v1600
  %v1665 = vmul.f32 %v1601, %v1601
  %v1666 = vmul.f32 %v1602, %v1602
  %v1667 = vmul.f32 %v1603, %v1603
  %v1668 = vmul.f32 %v1604, %v1604
  %v1669 = vmul.f32 %v1605, %v1605
  %v1670 = vmul.f32 %v1606, %v1606
  %v1671 = vmul.f32 %v1607, %v1607
  %v1672 = vmul.f32 %v1608, %v1608
  %v1673 = vmul.f32 %v1609, %v1609
  %v1674 = vmul.f32 %v1610, %v1610
  %v1675 = vmul.f32 %v1611, %v1611
  %v1676 = vmul.f32 %v1612, %v1612
  %v1677 = vmul.f32 %v1613, %v1613
  %v1678 = vmul.f32 %v1614, %v1614
  %v1679 = vmul.f32 %v1615, %v1615
  %v1680 = vmul.f32 %v1616, %v1616
  %v1681 = vmul.f32 %v1617, %v1617
  %v1682 = vmul.f32 %v1618, %v1618
  %v1683 = vmul.f32 %v1619, %v1619
  %v1684 = vmul.f32 %v1620, %v1620
  %v1685 = vmul.f32 %v1621, %v1621
  %v1686 = vmul.f32 %v1622, %v1622
  %v1687 = vmul.f32 %v1623, %v1623
  %v1688 = vmul.f32 %v1624, %v1624
  %v1689 = vmul.f32 %v1625, %v1625
  %v1690 = vmul.f32 %v1626, %v1626
  %v1691 = vmul.f32 %v1627, %v1627
  %v1692 = vmul.f32 %v1628, %v1628
  %v1693 = vmul.f32 %v1629, %v1629
  %v1694 = vmul.f32 %v1630, %v1630
  %v1695 = vmul.f32 %v1631, %v1631
  %v1696 = vmul.f32 %v1632, %v1632
  %v1697 = vmul.f32 %v1633, %v1633
  %v1698 = vmul.f32 %v1634, %v1634
  %v1699 = vmul.f32 %v1635, %v1635
  %v1700 = vmul.f32 %v1636, %v1636
  %v1701 = vmul.f32 %v1637, %v1637
  %v1702 = vmul.f32 %v1638, %v1638
  %v1703 = vmul.f32 %v1639, %v1639
  %v1704 = vmul.f32 %v1640, %v1640
  %v1705 = vmul.f32 %v1641, %v1641
  %v1706 = vmul.f32 %v1642, %v1642
  %v1707 = vmul.f32 %v1643, %v1643
  %v1708 = vmul.f32 %v1644, %v1644
  %v1709 = vmul.f32 %v1645, %v1645
  %v1710 = vmul.f32 %v1646, %v1646
  %v1711 = vmul.f32 %v1647, %v1647
  %v1712 = vmul.f32 %v1648, %v1648
  %v1713 = vmul.f32 %v1649, %v1649
  %v1714 = vmul.f32 %v1650, %v1650
  %v1715 = vmul.f32 %v1651, %v1651
  %v1716 = vsel %vm517, %v1652, 0.0
  %1717 = vadd.xlane.f32.xlu0 %v1716
  %v1718 = vpop.xlane.xlu0 %1717
  %v1719 = vsel %vm517, %v1653, 0.0
  %1720 = vadd.xlane.f32.xlu0 %v1719
  %v1721 = vpop.xlane.xlu0 %1720
  %v1722 = vsel %vm517, %v1654, 0.0
  %1723 = vadd.xlane.f32.xlu0 %v1722
  %v1724 = vpop.xlane.xlu0 %1723
  %v1725 = vsel %vm517, %v1655, 0.0
  %1726 = vadd.xlane.f32.xlu0 %v1725
  %v1727 = vpop.xlane.xlu0 %1726
  %v1728 = vsel %vm517, %v1656, 0.0
  %1729 = vadd.xlane.f32.xlu0 %v1728
  %v1730 = vpop.xlane.xlu0 %1729
  %v1731 = vsel %vm517, %v1657, 0.0
  %1732 = vadd.xlane.f32.xlu0 %v1731
  %v1733 = vpop.xlane.xlu0 %1732
  %v1734 = vsel %vm517, %v1658, 0.0
  %1735 = vadd.xlane.f32.xlu0 %v1734
  %v1736 = vpop.xlane.xlu0 %1735
  %v1737 = vsel %vm517, %v1659, 0.0
  %1738 = vadd.xlane.f32.xlu0 %v1737
  %v1739 = vpop.xlane.xlu0 %1738
  %v1740 = vsel %vm517, %v1660, 0.0
  %1741 = vadd.xlane.f32.xlu0 %v1740
  %v1742 = vpop.xlane.xlu0 %1741
  %v1743 = vsel %vm517, %v1661, 0.0
  %1744 = vadd.xlane.f32.xlu0 %v1743
  %v1745 = vpop.xlane.xlu0 %1744
  %v1746 = vsel %vm517, %v1662, 0.0
  %1747 = vadd.xlane.f32.xlu0 %v1746
  %v1748 = vpop.xlane.xlu0 %1747
  %v1749 = vsel %vm517, %v1663, 0.0
  %1750 = vadd.xlane.f32.xlu0 %v1749
  %v1751 = vpop.xlane.xlu0 %1750
  %v1752 = vsel %vm517, %v1664, 0.0
  %1753 = vadd.xlane.f32.xlu0 %v1752
  %v1754 = vpop.xlane.xlu0 %1753
  %v1755 = vsel %vm517, %v1665, 0.0
  %1756 = vadd.xlane.f32.xlu0 %v1755
  %v1757 = vpop.xlane.xlu0 %1756
  %v1758 = vsel %vm517, %v1666, 0.0
  %1759 = vadd.xlane.f32.xlu0 %v1758
  %v1760 = vpop.xlane.xlu0 %1759
  %v1761 = vsel %vm517, %v1667, 0.0
  %1762 = vadd.xlane.f32.xlu0 %v1761
  %v1763 = vpop.xlane.xlu0 %1762
  %v1764 = vsel %vm517, %v1668, 0.0
  %1765 = vadd.xlane.f32.xlu0 %v1764
  %v1766 = vpop.xlane.xlu0 %1765
  %v1767 = vsel %vm517, %v1669, 0.0
  %1768 = vadd.xlane.f32.xlu0 %v1767
  %v1769 = vpop.xlane.xlu0 %1768
  %v1770 = vsel %vm517, %v1670, 0.0
  %1771 = vadd.xlane.f32.xlu0 %v1770
  %v1772 = vpop.xlane.xlu0 %1771
  %v1773 = vsel %vm517, %v1671, 0.0
  %1774 = vadd.xlane.f32.xlu0 %v1773
  %v1775 = vpop.xlane.xlu0 %1774
  %v1776 = vsel %vm517, %v1672, 0.0
  %1777 = vadd.xlane.f32.xlu0 %v1776
  %v1778 = vpop.xlane.xlu0 %1777
  %v1779 = vsel %vm517, %v1673, 0.0
  %1780 = vadd.xlane.f32.xlu0 %v1779
  %v1781 = vpop.xlane.xlu0 %1780
  %v1782 = vsel %vm517, %v1674, 0.0
  %1783 = vadd.xlane.f32.xlu0 %v1782
  %v1784 = vpop.xlane.xlu0 %1783
  %v1785 = vsel %vm517, %v1675, 0.0
  %1786 = vadd.xlane.f32.xlu0 %v1785
  %v1787 = vpop.xlane.xlu0 %1786
  %v1788 = vsel %vm517, %v1676, 0.0
  %1789 = vadd.xlane.f32.xlu0 %v1788
  %v1790 = vpop.xlane.xlu0 %1789
  %v1791 = vsel %vm517, %v1677, 0.0
  %1792 = vadd.xlane.f32.xlu0 %v1791
  %v1793 = vpop.xlane.xlu0 %1792
  %v1794 = vsel %vm517, %v1678, 0.0
  %1795 = vadd.xlane.f32.xlu0 %v1794
  %v1796 = vpop.xlane.xlu0 %1795
  %v1797 = vsel %vm517, %v1679, 0.0
  %1798 = vadd.xlane.f32.xlu0 %v1797
  %v1799 = vpop.xlane.xlu0 %1798
  %v1800 = vsel %vm517, %v1680, 0.0
  %1801 = vadd.xlane.f32.xlu0 %v1800
  %v1802 = vpop.xlane.xlu0 %1801
  %v1803 = vsel %vm517, %v1681, 0.0
  %1804 = vadd.xlane.f32.xlu0 %v1803
  %v1805 = vpop.xlane.xlu0 %1804
  %v1806 = vsel %vm517, %v1682, 0.0
  %1807 = vadd.xlane.f32.xlu0 %v1806
  %v1808 = vpop.xlane.xlu0 %1807
  %v1809 = vsel %vm517, %v1683, 0.0
  %1810 = vadd.xlane.f32.xlu0 %v1809
  %v1811 = vpop.xlane.xlu0 %1810
  %v1812 = vsel %vm517, %v1684, 0.0
  %1813 = vadd.xlane.f32.xlu0 %v1812
  %v1814 = vpop.xlane.xlu0 %1813
  %v1815 = vsel %vm517, %v1685, 0.0
  %1816 = vadd.xlane.f32.xlu0 %v1815
  %v1817 = vpop.xlane.xlu0 %1816
  %v1818 = vsel %vm517, %v1686, 0.0
  %1819 = vadd.xlane.f32.xlu0 %v1818
  %v1820 = vpop.xlane.xlu0 %1819
  %v1821 = vsel %vm517, %v1687, 0.0
  %1822 = vadd.xlane.f32.xlu0 %v1821
  %v1823 = vpop.xlane.xlu0 %1822
  %v1824 = vsel %vm517, %v1688, 0.0
  %1825 = vadd.xlane.f32.xlu0 %v1824
  %v1826 = vpop.xlane.xlu0 %1825
  %v1827 = vsel %vm517, %v1689, 0.0
  %1828 = vadd.xlane.f32.xlu0 %v1827
  %v1829 = vpop.xlane.xlu0 %1828
  %v1830 = vsel %vm517, %v1690, 0.0
  %1831 = vadd.xlane.f32.xlu0 %v1830
  %v1832 = vpop.xlane.xlu0 %1831
  %v1833 = vsel %vm517, %v1691, 0.0
  %1834 = vadd.xlane.f32.xlu0 %v1833
  %v1835 = vpop.xlane.xlu0 %1834
  %v1836 = vsel %vm517, %v1692, 0.0
  %1837 = vadd.xlane.f32.xlu0 %v1836
  %v1838 = vpop.xlane.xlu0 %1837
  %v1839 = vsel %vm517, %v1693, 0.0
  %1840 = vadd.xlane.f32.xlu0 %v1839
  %v1841 = vpop.xlane.xlu0 %1840
  %v1842 = vsel %vm517, %v1694, 0.0
  %1843 = vadd.xlane.f32.xlu0 %v1842
  %v1844 = vpop.xlane.xlu0 %1843
  %v1845 = vsel %vm517, %v1695, 0.0
  %1846 = vadd.xlane.f32.xlu0 %v1845
  %v1847 = vpop.xlane.xlu0 %1846
  %v1848 = vsel %vm517, %v1696, 0.0
  %1849 = vadd.xlane.f32.xlu0 %v1848
  %v1850 = vpop.xlane.xlu0 %1849
  %v1851 = vsel %vm517, %v1697, 0.0
  %1852 = vadd.xlane.f32.xlu0 %v1851
  %v1853 = vpop.xlane.xlu0 %1852
  %v1854 = vsel %vm517, %v1698, 0.0
  %1855 = vadd.xlane.f32.xlu0 %v1854
  %v1856 = vpop.xlane.xlu0 %1855
  %v1857 = vsel %vm517, %v1699, 0.0
  %1858 = vadd.xlane.f32.xlu0 %v1857
  %v1859 = vpop.xlane.xlu0 %1858
  %v1860 = vsel %vm517, %v1700, 0.0
  %1861 = vadd.xlane.f32.xlu0 %v1860
  %v1862 = vpop.xlane.xlu0 %1861
  %v1863 = vsel %vm517, %v1701, 0.0
  %1864 = vadd.xlane.f32.xlu0 %v1863
  %v1865 = vpop.xlane.xlu0 %1864
  %v1866 = vsel %vm517, %v1702, 0.0
  %1867 = vadd.xlane.f32.xlu0 %v1866
  %v1868 = vpop.xlane.xlu0 %1867
  %v1869 = vsel %vm517, %v1703, 0.0
  %1870 = vadd.xlane.f32.xlu0 %v1869
  %v1871 = vpop.xlane.xlu0 %1870
  %v1872 = vsel %vm517, %v1704, 0.0
  %1873 = vadd.xlane.f32.xlu0 %v1872
  %v1874 = vpop.xlane.xlu0 %1873
  %v1875 = vsel %vm517, %v1705, 0.0
  %1876 = vadd.xlane.f32.xlu0 %v1875
  %v1877 = vpop.xlane.xlu0 %1876
  %v1878 = vsel %vm517, %v1706, 0.0
  %1879 = vadd.xlane.f32.xlu0 %v1878
  %v1880 = vpop.xlane.xlu0 %1879
  %v1881 = vsel %vm517, %v1707, 0.0
  %1882 = vadd.xlane.f32.xlu0 %v1881
  %v1883 = vpop.xlane.xlu0 %1882
  %v1884 = vsel %vm517, %v1708, 0.0
  %1885 = vadd.xlane.f32.xlu0 %v1884
  %v1886 = vpop.xlane.xlu0 %1885
  %v1887 = vsel %vm517, %v1709, 0.0
  %1888 = vadd.xlane.f32.xlu0 %v1887
  %v1889 = vpop.xlane.xlu0 %1888
  %v1890 = vsel %vm517, %v1710, 0.0
  %1891 = vadd.xlane.f32.xlu0 %v1890
  %v1892 = vpop.xlane.xlu0 %1891
  %v1893 = vsel %vm517, %v1711, 0.0
  %1894 = vadd.xlane.f32.xlu0 %v1893
  %v1895 = vpop.xlane.xlu0 %1894
  %v1896 = vsel %vm517, %v1712, 0.0
  %1897 = vadd.xlane.f32.xlu0 %v1896
  %v1898 = vpop.xlane.xlu0 %1897
  %v1899 = vsel %vm517, %v1713, 0.0
  %1900 = vadd.xlane.f32.xlu0 %v1899
  %v1901 = vpop.xlane.xlu0 %1900
  %v1902 = vsel %vm517, %v1714, 0.0
  %1903 = vadd.xlane.f32.xlu0 %v1902
  %v1904 = vpop.xlane.xlu0 %1903
  %v1905 = vsel %vm517, %v1715, 0.0
  %1906 = vadd.xlane.f32.xlu0 %v1905
  %v1907 = vpop.xlane.xlu0 %1906
  %v1908 = vmax.f32 %v1718, 1e-24
  %v1909 = vmax.f32 %v1721, 1e-24
  %v1910 = vmax.f32 %v1724, 1e-24
  %v1911 = vmax.f32 %v1727, 1e-24
  %v1912 = vmax.f32 %v1730, 1e-24
  %v1913 = vmax.f32 %v1733, 1e-24
  %v1914 = vmax.f32 %v1736, 1e-24
  %v1915 = vmax.f32 %v1739, 1e-24
  %v1916 = vmax.f32 %v1742, 1e-24
  %v1917 = vmax.f32 %v1745, 1e-24
  %v1918 = vmax.f32 %v1748, 1e-24
  %v1919 = vmax.f32 %v1751, 1e-24
  %v1920 = vmax.f32 %v1754, 1e-24
  %v1921 = vmax.f32 %v1757, 1e-24
  %v1922 = vmax.f32 %v1760, 1e-24
  %v1923 = vmax.f32 %v1763, 1e-24
  %v1924 = vmax.f32 %v1766, 1e-24
  %v1925 = vmax.f32 %v1769, 1e-24
  %v1926 = vmax.f32 %v1772, 1e-24
  %v1927 = vmax.f32 %v1775, 1e-24
  %v1928 = vmax.f32 %v1778, 1e-24
  %v1929 = vmax.f32 %v1781, 1e-24
  %v1930 = vmax.f32 %v1784, 1e-24
  %v1931 = vmax.f32 %v1787, 1e-24
  %v1932 = vmax.f32 %v1790, 1e-24
  %v1933 = vmax.f32 %v1793, 1e-24
  %v1934 = vmax.f32 %v1796, 1e-24
  %v1935 = vmax.f32 %v1799, 1e-24
  %v1936 = vmax.f32 %v1802, 1e-24
  %v1937 = vmax.f32 %v1805, 1e-24
  %v1938 = vmax.f32 %v1808, 1e-24
  %v1939 = vmax.f32 %v1811, 1e-24
  %v1940 = vmax.f32 %v1814, 1e-24
  %v1941 = vmax.f32 %v1817, 1e-24
  %v1942 = vmax.f32 %v1820, 1e-24
  %v1943 = vmax.f32 %v1823, 1e-24
  %v1944 = vmax.f32 %v1826, 1e-24
  %v1945 = vmax.f32 %v1829, 1e-24
  %v1946 = vmax.f32 %v1832, 1e-24
  %v1947 = vmax.f32 %v1835, 1e-24
  %v1948 = vmax.f32 %v1838, 1e-24
  %v1949 = vmax.f32 %v1841, 1e-24
  %v1950 = vmax.f32 %v1844, 1e-24
  %v1951 = vmax.f32 %v1847, 1e-24
  %v1952 = vmax.f32 %v1850, 1e-24
  %v1953 = vmax.f32 %v1853, 1e-24
  %v1954 = vmax.f32 %v1856, 1e-24
  %v1955 = vmax.f32 %v1859, 1e-24
  %v1956 = vmax.f32 %v1862, 1e-24
  %v1957 = vmax.f32 %v1865, 1e-24
  %v1958 = vmax.f32 %v1868, 1e-24
  %v1959 = vmax.f32 %v1871, 1e-24
  %v1960 = vmax.f32 %v1874, 1e-24
  %v1961 = vmax.f32 %v1877, 1e-24
  %v1962 = vmax.f32 %v1880, 1e-24
  %v1963 = vmax.f32 %v1883, 1e-24
  %v1964 = vmax.f32 %v1886, 1e-24
  %v1965 = vmax.f32 %v1889, 1e-24
  %v1966 = vmax.f32 %v1892, 1e-24
  %v1967 = vmax.f32 %v1895, 1e-24
  %v1968 = vmax.f32 %v1898, 1e-24
  %v1969 = vmax.f32 %v1901, 1e-24
  %v1970 = vmax.f32 %v1904, 1e-24
  %v1971 = vmax.f32 %v1907, 1e-24
  %v1972 = vrsqrt.pop %v1908
  %v1973 = vmul.f32 %v1972, %v1908
  %v1974 = vmul.f32 %v1973, %v1972
  %v1975 = vmul.f32 0.5, %v1974
  %v1976 = vsub.f32 1.5, %v1975
  %v1977 = vmul.f32 %v1972, %v1976
  %vm1978 = vweird.f32 %v1908
  %vm1979 = vweird.f32 %v1972
  %vm1980 = vmor %vm1978, %vm1979
  %v1981 = vsel %vm1980, %v1972, %v1977
  %v1982 = vrsqrt.pop %v1909
  %v1983 = vmul.f32 %v1982, %v1909
  %v1984 = vmul.f32 %v1983, %v1982
  %v1985 = vmul.f32 0.5, %v1984
  %v1986 = vsub.f32 1.5, %v1985
  %v1987 = vmul.f32 %v1982, %v1986
  %vm1988 = vweird.f32 %v1909
  %vm1989 = vweird.f32 %v1982
  %vm1990 = vmor %vm1988, %vm1989
  %v1991 = vsel %vm1990, %v1982, %v1987
  %v1992 = vrsqrt.pop %v1910
  %v1993 = vmul.f32 %v1992, %v1910
  %v1994 = vmul.f32 %v1993, %v1992
  %v1995 = vmul.f32 0.5, %v1994
  %v1996 = vsub.f32 1.5, %v1995
  %v1997 = vmul.f32 %v1992, %v1996
  %vm1998 = vweird.f32 %v1910
  %vm1999 = vweird.f32 %v1992
  %vm2000 = vmor %vm1998, %vm1999
  %v2001 = vsel %vm2000, %v1992, %v1997
  %v2002 = vrsqrt.pop %v1911
  %v2003 = vmul.f32 %v2002, %v1911
  %v2004 = vmul.f32 %v2003, %v2002
  %v2005 = vmul.f32 0.5, %v2004
  %v2006 = vsub.f32 1.5, %v2005
  %v2007 = vmul.f32 %v2002, %v2006
  %vm2008 = vweird.f32 %v1911
  %vm2009 = vweird.f32 %v2002
  %vm2010 = vmor %vm2008, %vm2009
  %v2011 = vsel %vm2010, %v2002, %v2007
  %v2012 = vrsqrt.pop %v1912
  %v2013 = vmul.f32 %v2012, %v1912
  %v2014 = vmul.f32 %v2013, %v2012
  %v2015 = vmul.f32 0.5, %v2014
  %v2016 = vsub.f32 1.5, %v2015
  %v2017 = vmul.f32 %v2012, %v2016
  %vm2018 = vweird.f32 %v1912
  %vm2019 = vweird.f32 %v2012
  %vm2020 = vmor %vm2018, %vm2019
  %v2021 = vsel %vm2020, %v2012, %v2017
  %v2022 = vrsqrt.pop %v1913
  %v2023 = vmul.f32 %v2022, %v1913
  %v2024 = vmul.f32 %v2023, %v2022
  %v2025 = vmul.f32 0.5, %v2024
  %v2026 = vsub.f32 1.5, %v2025
  %v2027 = vmul.f32 %v2022, %v2026
  %vm2028 = vweird.f32 %v1913
  %vm2029 = vweird.f32 %v2022
  %vm2030 = vmor %vm2028, %vm2029
  %v2031 = vsel %vm2030, %v2022, %v2027
  %v2032 = vrsqrt.pop %v1914
  %v2033 = vmul.f32 %v2032, %v1914
  %v2034 = vmul.f32 %v2033, %v2032
  %v2035 = vmul.f32 0.5, %v2034
  %v2036 = vsub.f32 1.5, %v2035
  %v2037 = vmul.f32 %v2032, %v2036
  %vm2038 = vweird.f32 %v1914
  %vm2039 = vweird.f32 %v2032
  %vm2040 = vmor %vm2038, %vm2039
  %v2041 = vsel %vm2040, %v2032, %v2037
  %v2042 = vrsqrt.pop %v1915
  %v2043 = vmul.f32 %v2042, %v1915
  %v2044 = vmul.f32 %v2043, %v2042
  %v2045 = vmul.f32 0.5, %v2044
  %v2046 = vsub.f32 1.5, %v2045
  %v2047 = vmul.f32 %v2042, %v2046
  %vm2048 = vweird.f32 %v1915
  %vm2049 = vweird.f32 %v2042
  %vm2050 = vmor %vm2048, %vm2049
  %v2051 = vsel %vm2050, %v2042, %v2047
  %v2052 = vrsqrt.pop %v1916
  %v2053 = vmul.f32 %v2052, %v1916
  %v2054 = vmul.f32 %v2053, %v2052
  %v2055 = vmul.f32 0.5, %v2054
  %v2056 = vsub.f32 1.5, %v2055
  %v2057 = vmul.f32 %v2052, %v2056
  %vm2058 = vweird.f32 %v1916
  %vm2059 = vweird.f32 %v2052
  %vm2060 = vmor %vm2058, %vm2059
  %v2061 = vsel %vm2060, %v2052, %v2057
  %v2062 = vrsqrt.pop %v1917
  %v2063 = vmul.f32 %v2062, %v1917
  %v2064 = vmul.f32 %v2063, %v2062
  %v2065 = vmul.f32 0.5, %v2064
  %v2066 = vsub.f32 1.5, %v2065
  %v2067 = vmul.f32 %v2062, %v2066
  %vm2068 = vweird.f32 %v1917
  %vm2069 = vweird.f32 %v2062
  %vm2070 = vmor %vm2068, %vm2069
  %v2071 = vsel %vm2070, %v2062, %v2067
  %v2072 = vrsqrt.pop %v1918
  %v2073 = vmul.f32 %v2072, %v1918
  %v2074 = vmul.f32 %v2073, %v2072
  %v2075 = vmul.f32 0.5, %v2074
  %v2076 = vsub.f32 1.5, %v2075
  %v2077 = vmul.f32 %v2072, %v2076
  %vm2078 = vweird.f32 %v1918
  %vm2079 = vweird.f32 %v2072
  %vm2080 = vmor %vm2078, %vm2079
  %v2081 = vsel %vm2080, %v2072, %v2077
  %v2082 = vrsqrt.pop %v1919
  %v2083 = vmul.f32 %v2082, %v1919
  %v2084 = vmul.f32 %v2083, %v2082
  %v2085 = vmul.f32 0.5, %v2084
  %v2086 = vsub.f32 1.5, %v2085
  %v2087 = vmul.f32 %v2082, %v2086
  %vm2088 = vweird.f32 %v1919
  %vm2089 = vweird.f32 %v2082
  %vm2090 = vmor %vm2088, %vm2089
  %v2091 = vsel %vm2090, %v2082, %v2087
  %v2092 = vrsqrt.pop %v1920
  %v2093 = vmul.f32 %v2092, %v1920
  %v2094 = vmul.f32 %v2093, %v2092
  %v2095 = vmul.f32 0.5, %v2094
  %v2096 = vsub.f32 1.5, %v2095
  %v2097 = vmul.f32 %v2092, %v2096
  %vm2098 = vweird.f32 %v1920
  %vm2099 = vweird.f32 %v2092
  %vm2100 = vmor %vm2098, %vm2099
  %v2101 = vsel %vm2100, %v2092, %v2097
  %v2102 = vrsqrt.pop %v1921
  %v2103 = vmul.f32 %v2102, %v1921
  %v2104 = vmul.f32 %v2103, %v2102
  %v2105 = vmul.f32 0.5, %v2104
  %v2106 = vsub.f32 1.5, %v2105
  %v2107 = vmul.f32 %v2102, %v2106
  %vm2108 = vweird.f32 %v1921
  %vm2109 = vweird.f32 %v2102
  %vm2110 = vmor %vm2108, %vm2109
  %v2111 = vsel %vm2110, %v2102, %v2107
  %v2112 = vrsqrt.pop %v1922
  %v2113 = vmul.f32 %v2112, %v1922
  %v2114 = vmul.f32 %v2113, %v2112
  %v2115 = vmul.f32 0.5, %v2114
  %v2116 = vsub.f32 1.5, %v2115
  %v2117 = vmul.f32 %v2112, %v2116
  %vm2118 = vweird.f32 %v1922
  %vm2119 = vweird.f32 %v2112
  %vm2120 = vmor %vm2118, %vm2119
  %v2121 = vsel %vm2120, %v2112, %v2117
  %v2122 = vrsqrt.pop %v1923
  %v2123 = vmul.f32 %v2122, %v1923
  %v2124 = vmul.f32 %v2123, %v2122
  %v2125 = vmul.f32 0.5, %v2124
  %v2126 = vsub.f32 1.5, %v2125
  %v2127 = vmul.f32 %v2122, %v2126
  %vm2128 = vweird.f32 %v1923
  %vm2129 = vweird.f32 %v2122
  %vm2130 = vmor %vm2128, %vm2129
  %v2131 = vsel %vm2130, %v2122, %v2127
  %v2132 = vrsqrt.pop %v1924
  %v2133 = vmul.f32 %v2132, %v1924
  %v2134 = vmul.f32 %v2133, %v2132
  %v2135 = vmul.f32 0.5, %v2134
  %v2136 = vsub.f32 1.5, %v2135
  %v2137 = vmul.f32 %v2132, %v2136
  %vm2138 = vweird.f32 %v1924
  %vm2139 = vweird.f32 %v2132
  %vm2140 = vmor %vm2138, %vm2139
  %v2141 = vsel %vm2140, %v2132, %v2137
  %v2142 = vrsqrt.pop %v1925
  %v2143 = vmul.f32 %v2142, %v1925
  %v2144 = vmul.f32 %v2143, %v2142
  %v2145 = vmul.f32 0.5, %v2144
  %v2146 = vsub.f32 1.5, %v2145
  %v2147 = vmul.f32 %v2142, %v2146
  %vm2148 = vweird.f32 %v1925
  %vm2149 = vweird.f32 %v2142
  %vm2150 = vmor %vm2148, %vm2149
  %v2151 = vsel %vm2150, %v2142, %v2147
  %v2152 = vrsqrt.pop %v1926
  %v2153 = vmul.f32 %v2152, %v1926
  %v2154 = vmul.f32 %v2153, %v2152
  %v2155 = vmul.f32 0.5, %v2154
  %v2156 = vsub.f32 1.5, %v2155
  %v2157 = vmul.f32 %v2152, %v2156
  %vm2158 = vweird.f32 %v1926
  %vm2159 = vweird.f32 %v2152
  %vm2160 = vmor %vm2158, %vm2159
  %v2161 = vsel %vm2160, %v2152, %v2157
  %v2162 = vrsqrt.pop %v1927
  %v2163 = vmul.f32 %v2162, %v1927
  %v2164 = vmul.f32 %v2163, %v2162
  %v2165 = vmul.f32 0.5, %v2164
  %v2166 = vsub.f32 1.5, %v2165
  %v2167 = vmul.f32 %v2162, %v2166
  %vm2168 = vweird.f32 %v1927
  %vm2169 = vweird.f32 %v2162
  %vm2170 = vmor %vm2168, %vm2169
  %v2171 = vsel %vm2170, %v2162, %v2167
  %v2172 = vrsqrt.pop %v1928
  %v2173 = vmul.f32 %v2172, %v1928
  %v2174 = vmul.f32 %v2173, %v2172
  %v2175 = vmul.f32 0.5, %v2174
  %v2176 = vsub.f32 1.5, %v2175
  %v2177 = vmul.f32 %v2172, %v2176
  %vm2178 = vweird.f32 %v1928
  %vm2179 = vweird.f32 %v2172
  %vm2180 = vmor %vm2178, %vm2179
  %v2181 = vsel %vm2180, %v2172, %v2177
  %v2182 = vrsqrt.pop %v1929
  %v2183 = vmul.f32 %v2182, %v1929
  %v2184 = vmul.f32 %v2183, %v2182
  %v2185 = vmul.f32 0.5, %v2184
  %v2186 = vsub.f32 1.5, %v2185
  %v2187 = vmul.f32 %v2182, %v2186
  %vm2188 = vweird.f32 %v1929
  %vm2189 = vweird.f32 %v2182
  %vm2190 = vmor %vm2188, %vm2189
  %v2191 = vsel %vm2190, %v2182, %v2187
  %v2192 = vrsqrt.pop %v1930
  %v2193 = vmul.f32 %v2192, %v1930
  %v2194 = vmul.f32 %v2193, %v2192
  %v2195 = vmul.f32 0.5, %v2194
  %v2196 = vsub.f32 1.5, %v2195
  %v2197 = vmul.f32 %v2192, %v2196
  %vm2198 = vweird.f32 %v1930
  %vm2199 = vweird.f32 %v2192
  %vm2200 = vmor %vm2198, %vm2199
  %v2201 = vsel %vm2200, %v2192, %v2197
  %v2202 = vrsqrt.pop %v1931
  %v2203 = vmul.f32 %v2202, %v1931
  %v2204 = vmul.f32 %v2203, %v2202
  %v2205 = vmul.f32 0.5, %v2204
  %v2206 = vsub.f32 1.5, %v2205
  %v2207 = vmul.f32 %v2202, %v2206
  %vm2208 = vweird.f32 %v1931
  %vm2209 = vweird.f32 %v2202
  %vm2210 = vmor %vm2208, %vm2209
  %v2211 = vsel %vm2210, %v2202, %v2207
  %v2212 = vrsqrt.pop %v1932
  %v2213 = vmul.f32 %v2212, %v1932
  %v2214 = vmul.f32 %v2213, %v2212
  %v2215 = vmul.f32 0.5, %v2214
  %v2216 = vsub.f32 1.5, %v2215
  %v2217 = vmul.f32 %v2212, %v2216
  %vm2218 = vweird.f32 %v1932
  %vm2219 = vweird.f32 %v2212
  %vm2220 = vmor %vm2218, %vm2219
  %v2221 = vsel %vm2220, %v2212, %v2217
  %v2222 = vrsqrt.pop %v1933
  %v2223 = vmul.f32 %v2222, %v1933
  %v2224 = vmul.f32 %v2223, %v2222
  %v2225 = vmul.f32 0.5, %v2224
  %v2226 = vsub.f32 1.5, %v2225
  %v2227 = vmul.f32 %v2222, %v2226
  %vm2228 = vweird.f32 %v1933
  %vm2229 = vweird.f32 %v2222
  %vm2230 = vmor %vm2228, %vm2229
  %v2231 = vsel %vm2230, %v2222, %v2227
  %v2232 = vrsqrt.pop %v1934
  %v2233 = vmul.f32 %v2232, %v1934
  %v2234 = vmul.f32 %v2233, %v2232
  %v2235 = vmul.f32 0.5, %v2234
  %v2236 = vsub.f32 1.5, %v2235
  %v2237 = vmul.f32 %v2232, %v2236
  %vm2238 = vweird.f32 %v1934
  %vm2239 = vweird.f32 %v2232
  %vm2240 = vmor %vm2238, %vm2239
  %v2241 = vsel %vm2240, %v2232, %v2237
  %v2242 = vrsqrt.pop %v1935
  %v2243 = vmul.f32 %v2242, %v1935
  %v2244 = vmul.f32 %v2243, %v2242
  %v2245 = vmul.f32 0.5, %v2244
  %v2246 = vsub.f32 1.5, %v2245
  %v2247 = vmul.f32 %v2242, %v2246
  %vm2248 = vweird.f32 %v1935
  %vm2249 = vweird.f32 %v2242
  %vm2250 = vmor %vm2248, %vm2249
  %v2251 = vsel %vm2250, %v2242, %v2247
  %v2252 = vrsqrt.pop %v1936
  %v2253 = vmul.f32 %v2252, %v1936
  %v2254 = vmul.f32 %v2253, %v2252
  %v2255 = vmul.f32 0.5, %v2254
  %v2256 = vsub.f32 1.5, %v2255
  %v2257 = vmul.f32 %v2252, %v2256
  %vm2258 = vweird.f32 %v1936
  %vm2259 = vweird.f32 %v2252
  %vm2260 = vmor %vm2258, %vm2259
  %v2261 = vsel %vm2260, %v2252, %v2257
  %v2262 = vrsqrt.pop %v1937
  %v2263 = vmul.f32 %v2262, %v1937
  %v2264 = vmul.f32 %v2263, %v2262
  %v2265 = vmul.f32 0.5, %v2264
  %v2266 = vsub.f32 1.5, %v2265
  %v2267 = vmul.f32 %v2262, %v2266
  %vm2268 = vweird.f32 %v1937
  %vm2269 = vweird.f32 %v2262
  %vm2270 = vmor %vm2268, %vm2269
  %v2271 = vsel %vm2270, %v2262, %v2267
  %v2272 = vrsqrt.pop %v1938
  %v2273 = vmul.f32 %v2272, %v1938
  %v2274 = vmul.f32 %v2273, %v2272
  %v2275 = vmul.f32 0.5, %v2274
  %v2276 = vsub.f32 1.5, %v2275
  %v2277 = vmul.f32 %v2272, %v2276
  %vm2278 = vweird.f32 %v1938
  %vm2279 = vweird.f32 %v2272
  %vm2280 = vmor %vm2278, %vm2279
  %v2281 = vsel %vm2280, %v2272, %v2277
  %v2282 = vrsqrt.pop %v1939
  %v2283 = vmul.f32 %v2282, %v1939
  %v2284 = vmul.f32 %v2283, %v2282
  %v2285 = vmul.f32 0.5, %v2284
  %v2286 = vsub.f32 1.5, %v2285
  %v2287 = vmul.f32 %v2282, %v2286
  %vm2288 = vweird.f32 %v1939
  %vm2289 = vweird.f32 %v2282
  %vm2290 = vmor %vm2288, %vm2289
  %v2291 = vsel %vm2290, %v2282, %v2287
  %v2292 = vrsqrt.pop %v1940
  %v2293 = vmul.f32 %v2292, %v1940
  %v2294 = vmul.f32 %v2293, %v2292
  %v2295 = vmul.f32 0.5, %v2294
  %v2296 = vsub.f32 1.5, %v2295
  %v2297 = vmul.f32 %v2292, %v2296
  %vm2298 = vweird.f32 %v1940
  %vm2299 = vweird.f32 %v2292
  %vm2300 = vmor %vm2298, %vm2299
  %v2301 = vsel %vm2300, %v2292, %v2297
  %v2302 = vrsqrt.pop %v1941
  %v2303 = vmul.f32 %v2302, %v1941
  %v2304 = vmul.f32 %v2303, %v2302
  %v2305 = vmul.f32 0.5, %v2304
  %v2306 = vsub.f32 1.5, %v2305
  %v2307 = vmul.f32 %v2302, %v2306
  %vm2308 = vweird.f32 %v1941
  %vm2309 = vweird.f32 %v2302
  %vm2310 = vmor %vm2308, %vm2309
  %v2311 = vsel %vm2310, %v2302, %v2307
  %v2312 = vrsqrt.pop %v1942
  %v2313 = vmul.f32 %v2312, %v1942
  %v2314 = vmul.f32 %v2313, %v2312
  %v2315 = vmul.f32 0.5, %v2314
  %v2316 = vsub.f32 1.5, %v2315
  %v2317 = vmul.f32 %v2312, %v2316
  %vm2318 = vweird.f32 %v1942
  %vm2319 = vweird.f32 %v2312
  %vm2320 = vmor %vm2318, %vm2319
  %v2321 = vsel %vm2320, %v2312, %v2317
  %v2322 = vrsqrt.pop %v1943
  %v2323 = vmul.f32 %v2322, %v1943
  %v2324 = vmul.f32 %v2323, %v2322
  %v2325 = vmul.f32 0.5, %v2324
  %v2326 = vsub.f32 1.5, %v2325
  %v2327 = vmul.f32 %v2322, %v2326
  %vm2328 = vweird.f32 %v1943
  %vm2329 = vweird.f32 %v2322
  %vm2330 = vmor %vm2328, %vm2329
  %v2331 = vsel %vm2330, %v2322, %v2327
  %v2332 = vrsqrt.pop %v1944
  %v2333 = vmul.f32 %v2332, %v1944
  %v2334 = vmul.f32 %v2333, %v2332
  %v2335 = vmul.f32 0.5, %v2334
  %v2336 = vsub.f32 1.5, %v2335
  %v2337 = vmul.f32 %v2332, %v2336
  %vm2338 = vweird.f32 %v1944
  %vm2339 = vweird.f32 %v2332
  %vm2340 = vmor %vm2338, %vm2339
  %v2341 = vsel %vm2340, %v2332, %v2337
  %v2342 = vrsqrt.pop %v1945
  %v2343 = vmul.f32 %v2342, %v1945
  %v2344 = vmul.f32 %v2343, %v2342
  %v2345 = vmul.f32 0.5, %v2344
  %v2346 = vsub.f32 1.5, %v2345
  %v2347 = vmul.f32 %v2342, %v2346
  %vm2348 = vweird.f32 %v1945
  %vm2349 = vweird.f32 %v2342
  %vm2350 = vmor %vm2348, %vm2349
  %v2351 = vsel %vm2350, %v2342, %v2347
  %v2352 = vrsqrt.pop %v1946
  %v2353 = vmul.f32 %v2352, %v1946
  %v2354 = vmul.f32 %v2353, %v2352
  %v2355 = vmul.f32 0.5, %v2354
  %v2356 = vsub.f32 1.5, %v2355
  %v2357 = vmul.f32 %v2352, %v2356
  %vm2358 = vweird.f32 %v1946
  %vm2359 = vweird.f32 %v2352
  %vm2360 = vmor %vm2358, %vm2359
  %v2361 = vsel %vm2360, %v2352, %v2357
  %v2362 = vrsqrt.pop %v1947
  %v2363 = vmul.f32 %v2362, %v1947
  %v2364 = vmul.f32 %v2363, %v2362
  %v2365 = vmul.f32 0.5, %v2364
  %v2366 = vsub.f32 1.5, %v2365
  %v2367 = vmul.f32 %v2362, %v2366
  %vm2368 = vweird.f32 %v1947
  %vm2369 = vweird.f32 %v2362
  %vm2370 = vmor %vm2368, %vm2369
  %v2371 = vsel %vm2370, %v2362, %v2367
  %v2372 = vrsqrt.pop %v1948
  %v2373 = vmul.f32 %v2372, %v1948
  %v2374 = vmul.f32 %v2373, %v2372
  %v2375 = vmul.f32 0.5, %v2374
  %v2376 = vsub.f32 1.5, %v2375
  %v2377 = vmul.f32 %v2372, %v2376
  %vm2378 = vweird.f32 %v1948
  %vm2379 = vweird.f32 %v2372
  %vm2380 = vmor %vm2378, %vm2379
  %v2381 = vsel %vm2380, %v2372, %v2377
  %v2382 = vrsqrt.pop %v1949
  %v2383 = vmul.f32 %v2382, %v1949
  %v2384 = vmul.f32 %v2383, %v2382
  %v2385 = vmul.f32 0.5, %v2384
  %v2386 = vsub.f32 1.5, %v2385
  %v2387 = vmul.f32 %v2382, %v2386
  %vm2388 = vweird.f32 %v1949
  %vm2389 = vweird.f32 %v2382
  %vm2390 = vmor %vm2388, %vm2389
  %v2391 = vsel %vm2390, %v2382, %v2387
  %v2392 = vrsqrt.pop %v1950
  %v2393 = vmul.f32 %v2392, %v1950
  %v2394 = vmul.f32 %v2393, %v2392
  %v2395 = vmul.f32 0.5, %v2394
  %v2396 = vsub.f32 1.5, %v2395
  %v2397 = vmul.f32 %v2392, %v2396
  %vm2398 = vweird.f32 %v1950
  %vm2399 = vweird.f32 %v2392
  %vm2400 = vmor %vm2398, %vm2399
  %v2401 = vsel %vm2400, %v2392, %v2397
  %v2402 = vrsqrt.pop %v1951
  %v2403 = vmul.f32 %v2402, %v1951
  %v2404 = vmul.f32 %v2403, %v2402
  %v2405 = vmul.f32 0.5, %v2404
  %v2406 = vsub.f32 1.5, %v2405
  %v2407 = vmul.f32 %v2402, %v2406
  %vm2408 = vweird.f32 %v1951
  %vm2409 = vweird.f32 %v2402
  %vm2410 = vmor %vm2408, %vm2409
  %v2411 = vsel %vm2410, %v2402, %v2407
  %v2412 = vrsqrt.pop %v1952
  %v2413 = vmul.f32 %v2412, %v1952
  %v2414 = vmul.f32 %v2413, %v2412
  %v2415 = vmul.f32 0.5, %v2414
  %v2416 = vsub.f32 1.5, %v2415
  %v2417 = vmul.f32 %v2412, %v2416
  %vm2418 = vweird.f32 %v1952
  %vm2419 = vweird.f32 %v2412
  %vm2420 = vmor %vm2418, %vm2419
  %v2421 = vsel %vm2420, %v2412, %v2417
  %v2422 = vrsqrt.pop %v1953
  %v2423 = vmul.f32 %v2422, %v1953
  %v2424 = vmul.f32 %v2423, %v2422
  %v2425 = vmul.f32 0.5, %v2424
  %v2426 = vsub.f32 1.5, %v2425
  %v2427 = vmul.f32 %v2422, %v2426
  %vm2428 = vweird.f32 %v1953
  %vm2429 = vweird.f32 %v2422
  %vm2430 = vmor %vm2428, %vm2429
  %v2431 = vsel %vm2430, %v2422, %v2427
  %v2432 = vrsqrt.pop %v1954
  %v2433 = vmul.f32 %v2432, %v1954
  %v2434 = vmul.f32 %v2433, %v2432
  %v2435 = vmul.f32 0.5, %v2434
  %v2436 = vsub.f32 1.5, %v2435
  %v2437 = vmul.f32 %v2432, %v2436
  %vm2438 = vweird.f32 %v1954
  %vm2439 = vweird.f32 %v2432
  %vm2440 = vmor %vm2438, %vm2439
  %v2441 = vsel %vm2440, %v2432, %v2437
  %v2442 = vrsqrt.pop %v1955
  %v2443 = vmul.f32 %v2442, %v1955
  %v2444 = vmul.f32 %v2443, %v2442
  %v2445 = vmul.f32 0.5, %v2444
  %v2446 = vsub.f32 1.5, %v2445
  %v2447 = vmul.f32 %v2442, %v2446
  %vm2448 = vweird.f32 %v1955
  %vm2449 = vweird.f32 %v2442
  %vm2450 = vmor %vm2448, %vm2449
  %v2451 = vsel %vm2450, %v2442, %v2447
  %v2452 = vrsqrt.pop %v1956
  %v2453 = vmul.f32 %v2452, %v1956
  %v2454 = vmul.f32 %v2453, %v2452
  %v2455 = vmul.f32 0.5, %v2454
  %v2456 = vsub.f32 1.5, %v2455
  %v2457 = vmul.f32 %v2452, %v2456
  %vm2458 = vweird.f32 %v1956
  %vm2459 = vweird.f32 %v2452
  %vm2460 = vmor %vm2458, %vm2459
  %v2461 = vsel %vm2460, %v2452, %v2457
  %v2462 = vrsqrt.pop %v1957
  %v2463 = vmul.f32 %v2462, %v1957
  %v2464 = vmul.f32 %v2463, %v2462
  %v2465 = vmul.f32 0.5, %v2464
  %v2466 = vsub.f32 1.5, %v2465
  %v2467 = vmul.f32 %v2462, %v2466
  %vm2468 = vweird.f32 %v1957
  %vm2469 = vweird.f32 %v2462
  %vm2470 = vmor %vm2468, %vm2469
  %v2471 = vsel %vm2470, %v2462, %v2467
  %v2472 = vrsqrt.pop %v1958
  %v2473 = vmul.f32 %v2472, %v1958
  %v2474 = vmul.f32 %v2473, %v2472
  %v2475 = vmul.f32 0.5, %v2474
  %v2476 = vsub.f32 1.5, %v2475
  %v2477 = vmul.f32 %v2472, %v2476
  %vm2478 = vweird.f32 %v1958
  %vm2479 = vweird.f32 %v2472
  %vm2480 = vmor %vm2478, %vm2479
  %v2481 = vsel %vm2480, %v2472, %v2477
  %v2482 = vrsqrt.pop %v1959
  %v2483 = vmul.f32 %v2482, %v1959
  %v2484 = vmul.f32 %v2483, %v2482
  %v2485 = vmul.f32 0.5, %v2484
  %v2486 = vsub.f32 1.5, %v2485
  %v2487 = vmul.f32 %v2482, %v2486
  %vm2488 = vweird.f32 %v1959
  %vm2489 = vweird.f32 %v2482
  %vm2490 = vmor %vm2488, %vm2489
  %v2491 = vsel %vm2490, %v2482, %v2487
  %v2492 = vrsqrt.pop %v1960
  %v2493 = vmul.f32 %v2492, %v1960
  %v2494 = vmul.f32 %v2493, %v2492
  %v2495 = vmul.f32 0.5, %v2494
  %v2496 = vsub.f32 1.5, %v2495
  %v2497 = vmul.f32 %v2492, %v2496
  %vm2498 = vweird.f32 %v1960
  %vm2499 = vweird.f32 %v2492
  %vm2500 = vmor %vm2498, %vm2499
  %v2501 = vsel %vm2500, %v2492, %v2497
  %v2502 = vrsqrt.pop %v1961
  %v2503 = vmul.f32 %v2502, %v1961
  %v2504 = vmul.f32 %v2503, %v2502
  %v2505 = vmul.f32 0.5, %v2504
  %v2506 = vsub.f32 1.5, %v2505
  %v2507 = vmul.f32 %v2502, %v2506
  %vm2508 = vweird.f32 %v1961
  %vm2509 = vweird.f32 %v2502
  %vm2510 = vmor %vm2508, %vm2509
  %v2511 = vsel %vm2510, %v2502, %v2507
  %v2512 = vrsqrt.pop %v1962
  %v2513 = vmul.f32 %v2512, %v1962
  %v2514 = vmul.f32 %v2513, %v2512
  %v2515 = vmul.f32 0.5, %v2514
  %v2516 = vsub.f32 1.5, %v2515
  %v2517 = vmul.f32 %v2512, %v2516
  %vm2518 = vweird.f32 %v1962
  %vm2519 = vweird.f32 %v2512
  %vm2520 = vmor %vm2518, %vm2519
  %v2521 = vsel %vm2520, %v2512, %v2517
  %v2522 = vrsqrt.pop %v1963
  %v2523 = vmul.f32 %v2522, %v1963
  %v2524 = vmul.f32 %v2523, %v2522
  %v2525 = vmul.f32 0.5, %v2524
  %v2526 = vsub.f32 1.5, %v2525
  %v2527 = vmul.f32 %v2522, %v2526
  %vm2528 = vweird.f32 %v1963
  %vm2529 = vweird.f32 %v2522
  %vm2530 = vmor %vm2528, %vm2529
  %v2531 = vsel %vm2530, %v2522, %v2527
  %v2532 = vrsqrt.pop %v1964
  %v2533 = vmul.f32 %v2532, %v1964
  %v2534 = vmul.f32 %v2533, %v2532
  %v2535 = vmul.f32 0.5, %v2534
  %v2536 = vsub.f32 1.5, %v2535
  %v2537 = vmul.f32 %v2532, %v2536
  %vm2538 = vweird.f32 %v1964
  %vm2539 = vweird.f32 %v2532
  %vm2540 = vmor %vm2538, %vm2539
  %v2541 = vsel %vm2540, %v2532, %v2537
  %v2542 = vrsqrt.pop %v1965
  %v2543 = vmul.f32 %v2542, %v1965
  %v2544 = vmul.f32 %v2543, %v2542
  %v2545 = vmul.f32 0.5, %v2544
  %v2546 = vsub.f32 1.5, %v2545
  %v2547 = vmul.f32 %v2542, %v2546
  %vm2548 = vweird.f32 %v1965
  %vm2549 = vweird.f32 %v2542
  %vm2550 = vmor %vm2548, %vm2549
  %v2551 = vsel %vm2550, %v2542, %v2547
  %v2552 = vrsqrt.pop %v1966
  %v2553 = vmul.f32 %v2552, %v1966
  %v2554 = vmul.f32 %v2553, %v2552
  %v2555 = vmul.f32 0.5, %v2554
  %v2556 = vsub.f32 1.5, %v2555
  %v2557 = vmul.f32 %v2552, %v2556
  %vm2558 = vweird.f32 %v1966
  %vm2559 = vweird.f32 %v2552
  %vm2560 = vmor %vm2558, %vm2559
  %v2561 = vsel %vm2560, %v2552, %v2557
  %v2562 = vrsqrt.pop %v1967
  %v2563 = vmul.f32 %v2562, %v1967
  %v2564 = vmul.f32 %v2563, %v2562
  %v2565 = vmul.f32 0.5, %v2564
  %v2566 = vsub.f32 1.5, %v2565
  %v2567 = vmul.f32 %v2562, %v2566
  %vm2568 = vweird.f32 %v1967
  %vm2569 = vweird.f32 %v2562
  %vm2570 = vmor %vm2568, %vm2569
  %v2571 = vsel %vm2570, %v2562, %v2567
  %v2572 = vrsqrt.pop %v1968
  %v2573 = vmul.f32 %v2572, %v1968
  %v2574 = vmul.f32 %v2573, %v2572
  %v2575 = vmul.f32 0.5, %v2574
  %v2576 = vsub.f32 1.5, %v2575
  %v2577 = vmul.f32 %v2572, %v2576
  %vm2578 = vweird.f32 %v1968
  %vm2579 = vweird.f32 %v2572
  %vm2580 = vmor %vm2578, %vm2579
  %v2581 = vsel %vm2580, %v2572, %v2577
  %v2582 = vrsqrt.pop %v1969
  %v2583 = vmul.f32 %v2582, %v1969
  %v2584 = vmul.f32 %v2583, %v2582
  %v2585 = vmul.f32 0.5, %v2584
  %v2586 = vsub.f32 1.5, %v2585
  %v2587 = vmul.f32 %v2582, %v2586
  %vm2588 = vweird.f32 %v1969
  %vm2589 = vweird.f32 %v2582
  %vm2590 = vmor %vm2588, %vm2589
  %v2591 = vsel %vm2590, %v2582, %v2587
  %v2592 = vrsqrt.pop %v1970
  %v2593 = vmul.f32 %v2592, %v1970
  %v2594 = vmul.f32 %v2593, %v2592
  %v2595 = vmul.f32 0.5, %v2594
  %v2596 = vsub.f32 1.5, %v2595
  %v2597 = vmul.f32 %v2592, %v2596
  %vm2598 = vweird.f32 %v1970
  %vm2599 = vweird.f32 %v2592
  %vm2600 = vmor %vm2598, %vm2599
  %v2601 = vsel %vm2600, %v2592, %v2597
  %v2602 = vrsqrt.pop %v1971
  %v2603 = vmul.f32 %v2602, %v1971
  %v2604 = vmul.f32 %v2603, %v2602
  %v2605 = vmul.f32 0.5, %v2604
  %v2606 = vsub.f32 1.5, %v2605
  %v2607 = vmul.f32 %v2602, %v2606
  %vm2608 = vweird.f32 %v1971
  %vm2609 = vweird.f32 %v2602
  %vm2610 = vmor %vm2608, %vm2609
  %v2611 = vsel %vm2610, %v2602, %v2607
  %v2612 = vmul.f32 %v1588, %v1981
  %v2613 = vmul.f32 %v1589, %v1991
  %v2614 = vmul.f32 %v1590, %v2001
  %v2615 = vmul.f32 %v1591, %v2011
  %v2616 = vmul.f32 %v1592, %v2021
  %v2617 = vmul.f32 %v1593, %v2031
  %v2618 = vmul.f32 %v1594, %v2041
  %v2619 = vmul.f32 %v1595, %v2051
  %v2620 = vmul.f32 %v1596, %v2061
  %v2621 = vmul.f32 %v1597, %v2071
  %v2622 = vmul.f32 %v1598, %v2081
  %v2623 = vmul.f32 %v1599, %v2091
  %v2624 = vmul.f32 %v1600, %v2101
  %v2625 = vmul.f32 %v1601, %v2111
  %v2626 = vmul.f32 %v1602, %v2121
  %v2627 = vmul.f32 %v1603, %v2131
  %v2628 = vmul.f32 %v1604, %v2141
  %v2629 = vmul.f32 %v1605, %v2151
  %v2630 = vmul.f32 %v1606, %v2161
  %v2631 = vmul.f32 %v1607, %v2171
  %v2632 = vmul.f32 %v1608, %v2181
  %v2633 = vmul.f32 %v1609, %v2191
  %v2634 = vmul.f32 %v1610, %v2201
  %v2635 = vmul.f32 %v1611, %v2211
  %v2636 = vmul.f32 %v1612, %v2221
  %v2637 = vmul.f32 %v1613, %v2231
  %v2638 = vmul.f32 %v1614, %v2241
  %v2639 = vmul.f32 %v1615, %v2251
  %v2640 = vmul.f32 %v1616, %v2261
  %v2641 = vmul.f32 %v1617, %v2271
  %v2642 = vmul.f32 %v1618, %v2281
  %v2643 = vmul.f32 %v1619, %v2291
  %v2644 = vmul.f32 %v1620, %v2301
  %v2645 = vmul.f32 %v1621, %v2311
  %v2646 = vmul.f32 %v1622, %v2321
  %v2647 = vmul.f32 %v1623, %v2331
  %v2648 = vmul.f32 %v1624, %v2341
  %v2649 = vmul.f32 %v1625, %v2351
  %v2650 = vmul.f32 %v1626, %v2361
  %v2651 = vmul.f32 %v1627, %v2371
  %v2652 = vmul.f32 %v1628, %v2381
  %v2653 = vmul.f32 %v1629, %v2391
  %v2654 = vmul.f32 %v1630, %v2401
  %v2655 = vmul.f32 %v1631, %v2411
  %v2656 = vmul.f32 %v1632, %v2421
  %v2657 = vmul.f32 %v1633, %v2431
  %v2658 = vmul.f32 %v1634, %v2441
  %v2659 = vmul.f32 %v1635, %v2451
  %v2660 = vmul.f32 %v1636, %v2461
  %v2661 = vmul.f32 %v1637, %v2471
  %v2662 = vmul.f32 %v1638, %v2481
  %v2663 = vmul.f32 %v1639, %v2491
  %v2664 = vmul.f32 %v1640, %v2501
  %v2665 = vmul.f32 %v1641, %v2511
  %v2666 = vmul.f32 %v1642, %v2521
  %v2667 = vmul.f32 %v1643, %v2531
  %v2668 = vmul.f32 %v1644, %v2541
  %v2669 = vmul.f32 %v1645, %v2551
  %v2670 = vmul.f32 %v1646, %v2561
  %v2671 = vmul.f32 %v1647, %v2571
  %v2672 = vmul.f32 %v1648, %v2581
  %v2673 = vmul.f32 %v1649, %v2591
  %v2674 = vmul.f32 %v1650, %v2601
  %v2675 = vmul.f32 %v1651, %v2611
  %2676 = vst.msk [vmem:[#allocation2] sm:$0xff] %vm517, 0.0
  %2677 = vst.msk [vmem:[#allocation2 + $0x8] sm:$0xff] %vm517, 0.0
  %2678 = vst.msk [vmem:[#allocation2 + $0x10] sm:$0xff] %vm517, 0.0
  %vm2679 = vcmask 254976
  %2680 = vst.msk [vmem:[#allocation2 + $0x18] sm:$0x3] %vm2679, 0.0
  %2681 = vst.msk [vmem:[#allocation2 + $0x20] sm:$0xff] %vm517, 0.0
  %2682 = vst.msk [vmem:[#allocation2 + $0x28] sm:$0xff] %vm517, 0.0
  %2683 = vst.msk [vmem:[#allocation2 + $0x30] sm:$0xff] %vm517, 0.0
  %2684 = vst.msk [vmem:[#allocation2 + $0x38] sm:$0x3] %vm2679, 0.0
  %2685 = vst.msk [vmem:[#allocation2 + $0x280] sm:$0xff] %vm517, 0.0
  %2686 = vst.msk [vmem:[#allocation2 + $0x288] sm:$0xff] %vm517, 0.0
  %2687 = vst.msk [vmem:[#allocation2 + $0x290] sm:$0xff] %vm517, 0.0
  %2688 = vst.msk [vmem:[#allocation2 + $0x298] sm:$0x3] %vm2679, 0.0
  %2689 = vst.msk [vmem:[#allocation2 + $0x2a0] sm:$0xff] %vm517, 0.0
  %2690 = vst.msk [vmem:[#allocation2 + $0x2a8] sm:$0xff] %vm517, 0.0
  %2691 = vst.msk [vmem:[#allocation2 + $0x2b0] sm:$0xff] %vm517, 0.0
  %2692 = vst.msk [vmem:[#allocation2 + $0x2b8] sm:$0x3] %vm2679, 0.0
  %s2693 = scalar_lea.vmem [#allocation2], 576
  %2694 = vst.msk [vmem:[%s2693] sm:$0xff] %vm517, 0.0
  %2695 = vst.msk [vmem:[%s2693 + $0x8] sm:$0xff] %vm517, 0.0
  %2696 = vst.msk [vmem:[%s2693 + $0x10] sm:$0xff] %vm517, 0.0
  %2697 = vst.msk [vmem:[%s2693 + $0x18] sm:$0x3] %vm2679, 0.0
  %2698 = vst.msk [vmem:[%s2693 + $0x20] sm:$0xff] %vm517, 0.0
  %2699 = vst.msk [vmem:[%s2693 + $0x28] sm:$0xff] %vm517, 0.0
  %2700 = vst.msk [vmem:[%s2693 + $0x30] sm:$0xff] %vm517, 0.0
  %2701 = vst.msk [vmem:[%s2693 + $0x38] sm:$0x3] %vm2679, 0.0
  %2702 = vst.msk [vmem:[%s2693 + $0x280] sm:$0xff] %vm517, 0.0
  %2703 = vst.msk [vmem:[%s2693 + $0x288] sm:$0xff] %vm517, 0.0
  %2704 = vst.msk [vmem:[%s2693 + $0x290] sm:$0xff] %vm517, 0.0
  %2705 = vst.msk [vmem:[%s2693 + $0x298] sm:$0x3] %vm2679, 0.0
  %2706 = vst.msk [vmem:[%s2693 + $0x2a0] sm:$0xff] %vm517, 0.0
  %2707 = vst.msk [vmem:[%s2693 + $0x2a8] sm:$0xff] %vm517, 0.0
  %2708 = vst.msk [vmem:[%s2693 + $0x2b0] sm:$0xff] %vm517, 0.0
  %2709 = vst.msk [vmem:[%s2693 + $0x2b8] sm:$0x3] %vm2679, 0.0
  %s2710 = scalar_lea.vmem [#allocation2], 64
  %2711 = vst.msk [vmem:[%s2710] sm:$0x3] %vm2679, 0.0
  %2712 = vst.msk [vmem:[%s2710 + $0x20] sm:$0x3] %vm2679, 0.0
  %2713 = vst.msk [vmem:[%s2710 + $0x40] sm:$0x3] %vm2679, 0.0
  %2714 = vst.msk [vmem:[%s2710 + $0x60] sm:$0x3] %vm2679, 0.0
  %2715 = vst.msk [vmem:[%s2710 + $0x80] sm:$0x3] %vm2679, 0.0
  %2716 = vst.msk [vmem:[%s2710 + $0xa0] sm:$0x3] %vm2679, 0.0
  %2717 = vst.msk [vmem:[%s2710 + $0xc0] sm:$0x3] %vm2679, 0.0
  %2718 = vst.msk [vmem:[%s2710 + $0xe0] sm:$0x3] %vm2679, 0.0
  %2719 = vst.msk [vmem:[%s2710 + $0x100] sm:$0x3] %vm2679, 0.0
  %2720 = vst.msk [vmem:[%s2710 + $0x120] sm:$0x3] %vm2679, 0.0
  %2721 = vst.msk [vmem:[%s2710 + $0x140] sm:$0x3] %vm2679, 0.0
  %2722 = vst.msk [vmem:[%s2710 + $0x160] sm:$0x3] %vm2679, 0.0
  %2723 = vst.msk [vmem:[%s2710 + $0x180] sm:$0x3] %vm2679, 0.0
  %2724 = vst.msk [vmem:[%s2710 + $0x1a0] sm:$0x3] %vm2679, 0.0
  %2725 = vst.msk [vmem:[%s2710 + $0x1c0] sm:$0x3] %vm2679, 0.0
  %2726 = vst.msk [vmem:[%s2710 + $0x1e0] sm:$0x3] %vm2679, 0.0
  %2727 = vst.msk [vmem:[%s2710 + $0x280] sm:$0x3] %vm2679, 0.0
  %2728 = vst.msk [vmem:[%s2710 + $0x2a0] sm:$0x3] %vm2679, 0.0
  %2729 = vst.msk [vmem:[%s2710 + $0x2c0] sm:$0x3] %vm2679, 0.0
  %2730 = vst.msk [vmem:[%s2710 + $0x2e0] sm:$0x3] %vm2679, 0.0
  %2731 = vst.msk [vmem:[%s2710 + $0x300] sm:$0x3] %vm2679, 0.0
  %2732 = vst.msk [vmem:[%s2710 + $0x320] sm:$0x3] %vm2679, 0.0
  %2733 = vst.msk [vmem:[%s2710 + $0x340] sm:$0x3] %vm2679, 0.0
  %2734 = vst.msk [vmem:[%s2710 + $0x360] sm:$0x3] %vm2679, 0.0
  %2735 = vst.msk [vmem:[%s2710 + $0x380] sm:$0x3] %vm2679, 0.0
  %2736 = vst.msk [vmem:[%s2710 + $0x3a0] sm:$0x3] %vm2679, 0.0
  %2737 = vst.msk [vmem:[%s2710 + $0x3c0] sm:$0x3] %vm2679, 0.0
  %2738 = vst.msk [vmem:[%s2710 + $0x3e0] sm:$0x3] %vm2679, 0.0
  %2739 = vst.msk [vmem:[%s2710 + $0x400] sm:$0x3] %vm2679, 0.0
  %2740 = vst.msk [vmem:[%s2710 + $0x420] sm:$0x3] %vm2679, 0.0
  %2741 = vst.msk [vmem:[%s2710 + $0x440] sm:$0x3] %vm2679, 0.0
  %2742 = vst.msk [vmem:[%s2710 + $0x460] sm:$0x3] %vm2679, 0.0
  %2743 = vst.msk [vmem:[%s2710 + $0x12] sm:$0xff] %vm517, 0.0
  %2744 = vst.msk [vmem:[%s2710 + $0x32] sm:$0xff] %vm517, 0.0
  %2745 = vst.msk [vmem:[%s2710 + $0x52] sm:$0xff] %vm517, 0.0
  %2746 = vst.msk [vmem:[%s2710 + $0x72] sm:$0xff] %vm517, 0.0
  %2747 = vst.msk [vmem:[%s2710 + $0x92] sm:$0xff] %vm517, 0.0
  %2748 = vst.msk [vmem:[%s2710 + $0xb2] sm:$0xff] %vm517, 0.0
  %2749 = vst.msk [vmem:[%s2710 + $0xd2] sm:$0xff] %vm517, 0.0
  %2750 = vst.msk [vmem:[%s2710 + $0xf2] sm:$0xff] %vm517, 0.0
  %2751 = vst.msk [vmem:[%s2710 + $0x112] sm:$0xff] %vm517, 0.0
  %2752 = vst.msk [vmem:[%s2710 + $0x132] sm:$0xff] %vm517, 0.0
  %2753 = vst.msk [vmem:[%s2710 + $0x152] sm:$0xff] %vm517, 0.0
  %2754 = vst.msk [vmem:[%s2710 + $0x172] sm:$0xff] %vm517, 0.0
  %2755 = vst.msk [vmem:[%s2710 + $0x192] sm:$0xff] %vm517, 0.0
  %2756 = vst.msk [vmem:[%s2710 + $0x1b2] sm:$0xff] %vm517, 0.0
  %2757 = vst.msk [vmem:[%s2710 + $0x1d2] sm:$0xff] %vm517, 0.0
  %2758 = vst.msk [vmem:[%s2710 + $0x1f2] sm:$0xff] %vm517, 0.0
  %2759 = vst.msk [vmem:[%s2710 + $0x292] sm:$0xff] %vm517, 0.0
  %2760 = vst.msk [vmem:[%s2710 + $0x2b2] sm:$0xff] %vm517, 0.0
  %2761 = vst.msk [vmem:[%s2710 + $0x2d2] sm:$0xff] %vm517, 0.0
  %2762 = vst.msk [vmem:[%s2710 + $0x2f2] sm:$0xff] %vm517, 0.0
  %2763 = vst.msk [vmem:[%s2710 + $0x312] sm:$0xff] %vm517, 0.0
  %2764 = vst.msk [vmem:[%s2710 + $0x332] sm:$0xff] %vm517, 0.0
  %2765 = vst.msk [vmem:[%s2710 + $0x352] sm:$0xff] %vm517, 0.0
  %2766 = vst.msk [vmem:[%s2710 + $0x372] sm:$0xff] %vm517, 0.0
  %2767 = vst.msk [vmem:[%s2710 + $0x392] sm:$0xff] %vm517, 0.0
  %2768 = vst.msk [vmem:[%s2710 + $0x3b2] sm:$0xff] %vm517, 0.0
  %2769 = vst.msk [vmem:[%s2710 + $0x3d2] sm:$0xff] %vm517, 0.0
  %2770 = vst.msk [vmem:[%s2710 + $0x3f2] sm:$0xff] %vm517, 0.0
  %2771 = vst.msk [vmem:[%s2710 + $0x412] sm:$0xff] %vm517, 0.0
  %2772 = vst.msk [vmem:[%s2710 + $0x432] sm:$0xff] %vm517, 0.0
  %2773 = vst.msk [vmem:[%s2710 + $0x452] sm:$0xff] %vm517, 0.0
  %2774 = vst.msk [vmem:[%s2710 + $0x472] sm:$0xff] %vm517, 0.0
  %2775 = vst.msk [vmem:[%s2710 + $0x2] sm:$0xff] %vm517, %v2612
  %2776 = vst.msk [vmem:[%s2710 + $0xa] sm:$0xff] %vm517, %v2613
  %2777 = vst.msk [vmem:[%s2710 + $0x22] sm:$0xff] %vm517, %v2614
  %2778 = vst.msk [vmem:[%s2710 + $0x2a] sm:$0xff] %vm517, %v2615
  %2779 = vst.msk [vmem:[%s2710 + $0x42] sm:$0xff] %vm517, %v2616
  %2780 = vst.msk [vmem:[%s2710 + $0x4a] sm:$0xff] %vm517, %v2617
  %2781 = vst.msk [vmem:[%s2710 + $0x62] sm:$0xff] %vm517, %v2618
  %2782 = vst.msk [vmem:[%s2710 + $0x6a] sm:$0xff] %vm517, %v2619
  %2783 = vst.msk [vmem:[%s2710 + $0x82] sm:$0xff] %vm517, %v2620
  %2784 = vst.msk [vmem:[%s2710 + $0x8a] sm:$0xff] %vm517, %v2621
  %2785 = vst.msk [vmem:[%s2710 + $0xa2] sm:$0xff] %vm517, %v2622
  %2786 = vst.msk [vmem:[%s2710 + $0xaa] sm:$0xff] %vm517, %v2623
  %2787 = vst.msk [vmem:[%s2710 + $0xc2] sm:$0xff] %vm517, %v2624
  %2788 = vst.msk [vmem:[%s2710 + $0xca] sm:$0xff] %vm517, %v2625
  %2789 = vst.msk [vmem:[%s2710 + $0xe2] sm:$0xff] %vm517, %v2626
  %2790 = vst.msk [vmem:[%s2710 + $0xea] sm:$0xff] %vm517, %v2627
  %2791 = vst.msk [vmem:[%s2710 + $0x102] sm:$0xff] %vm517, %v2628
  %2792 = vst.msk [vmem:[%s2710 + $0x10a] sm:$0xff] %vm517, %v2629
  %2793 = vst.msk [vmem:[%s2710 + $0x122] sm:$0xff] %vm517, %v2630
  %2794 = vst.msk [vmem:[%s2710 + $0x12a] sm:$0xff] %vm517, %v2631
  %2795 = vst.msk [vmem:[%s2710 + $0x142] sm:$0xff] %vm517, %v2632
  %2796 = vst.msk [vmem:[%s2710 + $0x14a] sm:$0xff] %vm517, %v2633
  %2797 = vst.msk [vmem:[%s2710 + $0x162] sm:$0xff] %vm517, %v2634
  %2798 = vst.msk [vmem:[%s2710 + $0x16a] sm:$0xff] %vm517, %v2635
  %2799 = vst.msk [vmem:[%s2710 + $0x182] sm:$0xff] %vm517, %v2636
  %2800 = vst.msk [vmem:[%s2710 + $0x18a] sm:$0xff] %vm517, %v2637
  %2801 = vst.msk [vmem:[%s2710 + $0x1a2] sm:$0xff] %vm517, %v2638
  %2802 = vst.msk [vmem:[%s2710 + $0x1aa] sm:$0xff] %vm517, %v2639
  %2803 = vst.msk [vmem:[%s2710 + $0x1c2] sm:$0xff] %vm517, %v2640
  %2804 = vst.msk [vmem:[%s2710 + $0x1ca] sm:$0xff] %vm517, %v2641
  %2805 = vst.msk [vmem:[%s2710 + $0x1e2] sm:$0xff] %vm517, %v2642
  %2806 = vst.msk [vmem:[%s2710 + $0x1ea] sm:$0xff] %vm517, %v2643
  %2807 = vst.msk [vmem:[%s2710 + $0x282] sm:$0xff] %vm517, %v2644
  %2808 = vst.msk [vmem:[%s2710 + $0x28a] sm:$0xff] %vm517, %v2645
  %2809 = vst.msk [vmem:[%s2710 + $0x2a2] sm:$0xff] %vm517, %v2646
  %2810 = vst.msk [vmem:[%s2710 + $0x2aa] sm:$0xff] %vm517, %v2647
  %2811 = vst.msk [vmem:[%s2710 + $0x2c2] sm:$0xff] %vm517, %v2648
  %2812 = vst.msk [vmem:[%s2710 + $0x2ca] sm:$0xff] %vm517, %v2649
  %2813 = vst.msk [vmem:[%s2710 + $0x2e2] sm:$0xff] %vm517, %v2650
  %2814 = vst.msk [vmem:[%s2710 + $0x2ea] sm:$0xff] %vm517, %v2651
  %2815 = vst.msk [vmem:[%s2710 + $0x302] sm:$0xff] %vm517, %v2652
  %2816 = vst.msk [vmem:[%s2710 + $0x30a] sm:$0xff] %vm517, %v2653
  %2817 = vst.msk [vmem:[%s2710 + $0x322] sm:$0xff] %vm517, %v2654
  %2818 = vst.msk [vmem:[%s2710 + $0x32a] sm:$0xff] %vm517, %v2655
  %2819 = vst.msk [vmem:[%s2710 + $0x342] sm:$0xff] %vm517, %v2656
  %2820 = vst.msk [vmem:[%s2710 + $0x34a] sm:$0xff] %vm517, %v2657
  %2821 = vst.msk [vmem:[%s2710 + $0x362] sm:$0xff] %vm517, %v2658
  %2822 = vst.msk [vmem:[%s2710 + $0x36a] sm:$0xff] %vm517, %v2659
  %2823 = vst.msk [vmem:[%s2710 + $0x382] sm:$0xff] %vm517, %v2660
  %2824 = vst.msk [vmem:[%s2710 + $0x38a] sm:$0xff] %vm517, %v2661
  %2825 = vst.msk [vmem:[%s2710 + $0x3a2] sm:$0xff] %vm517, %v2662
  %2826 = vst.msk [vmem:[%s2710 + $0x3aa] sm:$0xff] %vm517, %v2663
  %2827 = vst.msk [vmem:[%s2710 + $0x3c2] sm:$0xff] %vm517, %v2664
  %2828 = vst.msk [vmem:[%s2710 + $0x3ca] sm:$0xff] %vm517, %v2665
  %2829 = vst.msk [vmem:[%s2710 + $0x3e2] sm:$0xff] %vm517, %v2666
  %2830 = vst.msk [vmem:[%s2710 + $0x3ea] sm:$0xff] %vm517, %v2667
  %2831 = vst.msk [vmem:[%s2710 + $0x402] sm:$0xff] %vm517, %v2668
  %2832 = vst.msk [vmem:[%s2710 + $0x40a] sm:$0xff] %vm517, %v2669
  %2833 = vst.msk [vmem:[%s2710 + $0x422] sm:$0xff] %vm517, %v2670
  %2834 = vst.msk [vmem:[%s2710 + $0x42a] sm:$0xff] %vm517, %v2671
  %2835 = vst.msk [vmem:[%s2710 + $0x442] sm:$0xff] %vm517, %v2672
  %2836 = vst.msk [vmem:[%s2710 + $0x44a] sm:$0xff] %vm517, %v2673
  %2837 = vst.msk [vmem:[%s2710 + $0x462] sm:$0xff] %vm517, %v2674
  %2838 = vst.msk [vmem:[%s2710 + $0x46a] sm:$0xff] %vm517, %v2675
  %v2839 = vld [vmem:[#allocation2] sm:$0xff]
  %v2840 = vld [vmem:[#allocation2 + $0x8] sm:$0xff]
  %v2841 = vld [vmem:[#allocation2 + $0x10] sm:$0xff]
  %v2842 = vld [vmem:[#allocation2 + $0x20] sm:$0xff]
  %v2843 = vld [vmem:[#allocation2 + $0x28] sm:$0xff]
  %v2844 = vld [vmem:[#allocation2 + $0x30] sm:$0xff]
  %v2845 = vld [vmem:[#allocation2 + $0x40] sm:$0xff]
  %v2846 = vld [vmem:[#allocation2 + $0x48] sm:$0xff]
  %v2847 = vld [vmem:[#allocation2 + $0x50] sm:$0xff]
  %v2848 = vld [vmem:[#allocation2 + $0x60] sm:$0xff]
  %v2849 = vld [vmem:[#allocation2 + $0x68] sm:$0xff]
  %v2850 = vld [vmem:[#allocation2 + $0x70] sm:$0xff]
  %v2851 = vld [vmem:[#allocation2 + $0x80] sm:$0xff]
  %v2852 = vld [vmem:[#allocation2 + $0x88] sm:$0xff]
  %v2853 = vld [vmem:[#allocation2 + $0x90] sm:$0xff]
  %v2854 = vld [vmem:[#allocation2 + $0xa0] sm:$0xff]
  %v2855 = vld [vmem:[#allocation2 + $0xa8] sm:$0xff]
  %v2856 = vld [vmem:[#allocation2 + $0xb0] sm:$0xff]
  %v2857 = vld [vmem:[#allocation2 + $0xc0] sm:$0xff]
  %v2858 = vld [vmem:[#allocation2 + $0xc8] sm:$0xff]
  %v2859 = vld [vmem:[#allocation2 + $0xd0] sm:$0xff]
  %v2860 = vld [vmem:[#allocation2 + $0xe0] sm:$0xff]
  %v2861 = vld [vmem:[#allocation2 + $0xe8] sm:$0xff]
  %v2862 = vld [vmem:[#allocation2 + $0xf0] sm:$0xff]
  %v2863 = vld [vmem:[#allocation2 + $0x100] sm:$0xff]
  %v2864 = vld [vmem:[#allocation2 + $0x108] sm:$0xff]
  %v2865 = vld [vmem:[#allocation2 + $0x110] sm:$0xff]
  %v2866 = vld [vmem:[#allocation2 + $0x120] sm:$0xff]
  %v2867 = vld [vmem:[#allocation2 + $0x128] sm:$0xff]
  %v2868 = vld [vmem:[#allocation2 + $0x130] sm:$0xff]
  %v2869 = vld [vmem:[#allocation2 + $0x140] sm:$0xff]
  %v2870 = vld [vmem:[#allocation2 + $0x148] sm:$0xff]
  %v2871 = vld [vmem:[#allocation2 + $0x150] sm:$0xff]
  %v2872 = vld [vmem:[#allocation2 + $0x160] sm:$0xff]
  %v2873 = vld [vmem:[#allocation2 + $0x168] sm:$0xff]
  %v2874 = vld [vmem:[#allocation2 + $0x170] sm:$0xff]
  %v2875 = vld [vmem:[#allocation2 + $0x180] sm:$0xff]
  %v2876 = vld [vmem:[#allocation2 + $0x188] sm:$0xff]
  %v2877 = vld [vmem:[#allocation2 + $0x190] sm:$0xff]
  %v2878 = vld [vmem:[#allocation2 + $0x1a0] sm:$0xff]
  %v2879 = vld [vmem:[#allocation2 + $0x1a8] sm:$0xff]
  %v2880 = vld [vmem:[#allocation2 + $0x1b0] sm:$0xff]
  %v2881 = vld [vmem:[#allocation2 + $0x1c0] sm:$0xff]
  %v2882 = vld [vmem:[#allocation2 + $0x1c8] sm:$0xff]
  %v2883 = vld [vmem:[#allocation2 + $0x1d0] sm:$0xff]
  %v2884 = vld [vmem:[#allocation2 + $0x1e0] sm:$0xff]
  %v2885 = vld [vmem:[#allocation2 + $0x1e8] sm:$0xff]
  %v2886 = vld [vmem:[#allocation2 + $0x1f0] sm:$0xff]
  %v2887 = vld [vmem:[#allocation2 + $0x200] sm:$0xff]
  %v2888 = vld [vmem:[#allocation2 + $0x208] sm:$0xff]
  %v2889 = vld [vmem:[#allocation2 + $0x210] sm:$0xff]
  %v2890 = vld [vmem:[#allocation2 + $0x220] sm:$0xff]
  %v2891 = vld [vmem:[#allocation2 + $0x228] sm:$0xff]
  %v2892 = vld [vmem:[#allocation2 + $0x230] sm:$0xff]
  %v2893 = vld [vmem:[#allocation2 + $0x240] sm:$0xff]
  %v2894 = vld [vmem:[#allocation2 + $0x248] sm:$0xff]
  %v2895 = vld [vmem:[#allocation2 + $0x250] sm:$0xff]
  %v2896 = vld [vmem:[#allocation2 + $0x260] sm:$0xff]
  %v2897 = vld [vmem:[#allocation2 + $0x268] sm:$0xff]
  %v2898 = vld [vmem:[#allocation2 + $0x270] sm:$0xff]
  %v2899 = vld [vmem:[#allocation2 + $0x280] sm:$0xff]
  %v2900 = vld [vmem:[#allocation2 + $0x288] sm:$0xff]
  %v2901 = vld [vmem:[#allocation2 + $0x290] sm:$0xff]
  %v2902 = vld [vmem:[#allocation2 + $0x2a0] sm:$0xff]
  %v2903 = vld [vmem:[#allocation2 + $0x2a8] sm:$0xff]
  %v2904 = vld [vmem:[#allocation2 + $0x2b0] sm:$0xff]
  %v2905 = vld [vmem:[#allocation2 + $0x2c0] sm:$0xff]
  %v2906 = vld [vmem:[#allocation2 + $0x2c8] sm:$0xff]
  %v2907 = vld [vmem:[#allocation2 + $0x2d0] sm:$0xff]
  %v2908 = vld [vmem:[#allocation2 + $0x2e0] sm:$0xff]
  %v2909 = vld [vmem:[#allocation2 + $0x2e8] sm:$0xff]
  %v2910 = vld [vmem:[#allocation2 + $0x2f0] sm:$0xff]
  %v2911 = vld [vmem:[#allocation2 + $0x300] sm:$0xff]
  %v2912 = vld [vmem:[#allocation2 + $0x308] sm:$0xff]
  %v2913 = vld [vmem:[#allocation2 + $0x310] sm:$0xff]
  %v2914 = vld [vmem:[#allocation2 + $0x320] sm:$0xff]
  %v2915 = vld [vmem:[#allocation2 + $0x328] sm:$0xff]
  %v2916 = vld [vmem:[#allocation2 + $0x330] sm:$0xff]
  %v2917 = vld [vmem:[#allocation2 + $0x340] sm:$0xff]
  %v2918 = vld [vmem:[#allocation2 + $0x348] sm:$0xff]
  %v2919 = vld [vmem:[#allocation2 + $0x350] sm:$0xff]
  %v2920 = vld [vmem:[#allocation2 + $0x360] sm:$0xff]
  %v2921 = vld [vmem:[#allocation2 + $0x368] sm:$0xff]
  %v2922 = vld [vmem:[#allocation2 + $0x370] sm:$0xff]
  %v2923 = vld [vmem:[#allocation2 + $0x380] sm:$0xff]
  %v2924 = vld [vmem:[#allocation2 + $0x388] sm:$0xff]
  %v2925 = vld [vmem:[#allocation2 + $0x390] sm:$0xff]
  %v2926 = vld [vmem:[#allocation2 + $0x3a0] sm:$0xff]
  %v2927 = vld [vmem:[#allocation2 + $0x3a8] sm:$0xff]
  %v2928 = vld [vmem:[#allocation2 + $0x3b0] sm:$0xff]
  %v2929 = vld [vmem:[#allocation2 + $0x3c0] sm:$0xff]
  %v2930 = vld [vmem:[#allocation2 + $0x3c8] sm:$0xff]
  %v2931 = vld [vmem:[#allocation2 + $0x3d0] sm:$0xff]
  %v2932 = vld [vmem:[#allocation2 + $0x3e0] sm:$0xff]
  %v2933 = vld [vmem:[#allocation2 + $0x3e8] sm:$0xff]
  %v2934 = vld [vmem:[#allocation2 + $0x3f0] sm:$0xff]
  %v2935 = vld [vmem:[#allocation2 + $0x400] sm:$0xff]
  %v2936 = vld [vmem:[#allocation2 + $0x408] sm:$0xff]
  %v2937 = vld [vmem:[#allocation2 + $0x410] sm:$0xff]
  %v2938 = vld [vmem:[#allocation2 + $0x420] sm:$0xff]
  %v2939 = vld [vmem:[#allocation2 + $0x428] sm:$0xff]
  %v2940 = vld [vmem:[#allocation2 + $0x430] sm:$0xff]
  %v2941 = vld [vmem:[#allocation2 + $0x440] sm:$0xff]
  %v2942 = vld [vmem:[#allocation2 + $0x448] sm:$0xff]
  %v2943 = vld [vmem:[#allocation2 + $0x450] sm:$0xff]
  %v2944 = vld [vmem:[#allocation2 + $0x460] sm:$0xff]
  %v2945 = vld [vmem:[#allocation2 + $0x468] sm:$0xff]
  %v2946 = vld [vmem:[#allocation2 + $0x470] sm:$0xff]
  %v2947 = vld [vmem:[#allocation2 + $0x480] sm:$0xff]
  %v2948 = vld [vmem:[#allocation2 + $0x488] sm:$0xff]
  %v2949 = vld [vmem:[#allocation2 + $0x490] sm:$0xff]
  %v2950 = vld [vmem:[#allocation2 + $0x4a0] sm:$0xff]
  %v2951 = vld [vmem:[#allocation2 + $0x4a8] sm:$0xff]
  %v2952 = vld [vmem:[#allocation2 + $0x4b0] sm:$0xff]
  %v2953 = vld [vmem:[#allocation2 + $0x4c0] sm:$0xff]
  %v2954 = vld [vmem:[#allocation2 + $0x4c8] sm:$0xff]
  %v2955 = vld [vmem:[#allocation2 + $0x4d0] sm:$0xff]
  %v2956 = vld [vmem:[#allocation2 + $0x4e0] sm:$0xff]
  %v2957 = vld [vmem:[#allocation2 + $0x4e8] sm:$0xff]
  %v2958 = vld [vmem:[#allocation2 + $0x4f0] sm:$0xff]
  %v2959 = vld [vmem:[#allocation2 + $0x1] sm:$0xff]
  %v2960 = vld [vmem:[#allocation2 + $0x9] sm:$0xff]
  %v2961 = vld [vmem:[#allocation2 + $0x11] sm:$0xff]
  %v2962 = vld [vmem:[#allocation2 + $0x21] sm:$0xff]
  %v2963 = vld [vmem:[#allocation2 + $0x29] sm:$0xff]
  %v2964 = vld [vmem:[#allocation2 + $0x31] sm:$0xff]
  %v2965 = vld [vmem:[#allocation2 + $0x41] sm:$0xff]
  %v2966 = vld [vmem:[#allocation2 + $0x49] sm:$0xff]
  %v2967 = vld [vmem:[#allocation2 + $0x51] sm:$0xff]
  %v2968 = vld [vmem:[#allocation2 + $0x61] sm:$0xff]
  %v2969 = vld [vmem:[#allocation2 + $0x69] sm:$0xff]
  %v2970 = vld [vmem:[#allocation2 + $0x71] sm:$0xff]
  %v2971 = vld [vmem:[#allocation2 + $0x81] sm:$0xff]
  %v2972 = vld [vmem:[#allocation2 + $0x89] sm:$0xff]
  %v2973 = vld [vmem:[#allocation2 + $0x91] sm:$0xff]
  %v2974 = vld [vmem:[#allocation2 + $0xa1] sm:$0xff]
  %v2975 = vld [vmem:[#allocation2 + $0xa9] sm:$0xff]
  %v2976 = vld [vmem:[#allocation2 + $0xb1] sm:$0xff]
  %v2977 = vld [vmem:[#allocation2 + $0xc1] sm:$0xff]
  %v2978 = vld [vmem:[#allocation2 + $0xc9] sm:$0xff]
  %v2979 = vld [vmem:[#allocation2 + $0xd1] sm:$0xff]
  %v2980 = vld [vmem:[#allocation2 + $0xe1] sm:$0xff]
  %v2981 = vld [vmem:[#allocation2 + $0xe9] sm:$0xff]
  %v2982 = vld [vmem:[#allocation2 + $0xf1] sm:$0xff]
  %v2983 = vld [vmem:[#allocation2 + $0x101] sm:$0xff]
  %v2984 = vld [vmem:[#allocation2 + $0x109] sm:$0xff]
  %v2985 = vld [vmem:[#allocation2 + $0x111] sm:$0xff]
  %v2986 = vld [vmem:[#allocation2 + $0x121] sm:$0xff]
  %v2987 = vld [vmem:[#allocation2 + $0x129] sm:$0xff]
  %v2988 = vld [vmem:[#allocation2 + $0x131] sm:$0xff]
  %v2989 = vld [vmem:[#allocation2 + $0x141] sm:$0xff]
  %v2990 = vld [vmem:[#allocation2 + $0x149] sm:$0xff]
  %v2991 = vld [vmem:[#allocation2 + $0x151] sm:$0xff]
  %v2992 = vld [vmem:[#allocation2 + $0x161] sm:$0xff]
  %v2993 = vld [vmem:[#allocation2 + $0x169] sm:$0xff]
  %v2994 = vld [vmem:[#allocation2 + $0x171] sm:$0xff]
  %v2995 = vld [vmem:[#allocation2 + $0x181] sm:$0xff]
  %v2996 = vld [vmem:[#allocation2 + $0x189] sm:$0xff]
  %v2997 = vld [vmem:[#allocation2 + $0x191] sm:$0xff]
  %v2998 = vld [vmem:[#allocation2 + $0x1a1] sm:$0xff]
  %v2999 = vld [vmem:[#allocation2 + $0x1a9] sm:$0xff]
  %v3000 = vld [vmem:[#allocation2 + $0x1b1] sm:$0xff]
  %v3001 = vld [vmem:[#allocation2 + $0x1c1] sm:$0xff]
  %v3002 = vld [vmem:[#allocation2 + $0x1c9] sm:$0xff]
  %v3003 = vld [vmem:[#allocation2 + $0x1d1] sm:$0xff]
  %v3004 = vld [vmem:[#allocation2 + $0x1e1] sm:$0xff]
  %v3005 = vld [vmem:[#allocation2 + $0x1e9] sm:$0xff]
  %v3006 = vld [vmem:[#allocation2 + $0x1f1] sm:$0xff]
  %v3007 = vld [vmem:[#allocation2 + $0x201] sm:$0xff]
  %v3008 = vld [vmem:[#allocation2 + $0x209] sm:$0xff]
  %v3009 = vld [vmem:[#allocation2 + $0x211] sm:$0xff]
  %v3010 = vld [vmem:[#allocation2 + $0x221] sm:$0xff]
  %v3011 = vld [vmem:[#allocation2 + $0x229] sm:$0xff]
  %v3012 = vld [vmem:[#allocation2 + $0x231] sm:$0xff]
  %v3013 = vld [vmem:[#allocation2 + $0x241] sm:$0xff]
  %v3014 = vld [vmem:[#allocation2 + $0x249] sm:$0xff]
  %v3015 = vld [vmem:[#allocation2 + $0x251] sm:$0xff]
  %v3016 = vld [vmem:[#allocation2 + $0x261] sm:$0xff]
  %v3017 = vld [vmem:[#allocation2 + $0x269] sm:$0xff]
  %v3018 = vld [vmem:[#allocation2 + $0x271] sm:$0xff]
  %v3019 = vld [vmem:[#allocation2 + $0x281] sm:$0xff]
  %v3020 = vld [vmem:[#allocation2 + $0x289] sm:$0xff]
  %v3021 = vld [vmem:[#allocation2 + $0x291] sm:$0xff]
  %v3022 = vld [vmem:[#allocation2 + $0x2a1] sm:$0xff]
  %v3023 = vld [vmem:[#allocation2 + $0x2a9] sm:$0xff]
  %v3024 = vld [vmem:[#allocation2 + $0x2b1] sm:$0xff]
  %v3025 = vld [vmem:[#allocation2 + $0x2c1] sm:$0xff]
  %v3026 = vld [vmem:[#allocation2 + $0x2c9] sm:$0xff]
  %v3027 = vld [vmem:[#allocation2 + $0x2d1] sm:$0xff]
  %v3028 = vld [vmem:[#allocation2 + $0x2e1] sm:$0xff]
  %v3029 = vld [vmem:[#allocation2 + $0x2e9] sm:$0xff]
  %v3030 = vld [vmem:[#allocation2 + $0x2f1] sm:$0xff]
  %v3031 = vld [vmem:[#allocation2 + $0x301] sm:$0xff]
  %v3032 = vld [vmem:[#allocation2 + $0x309] sm:$0xff]
  %v3033 = vld [vmem:[#allocation2 + $0x311] sm:$0xff]
  %v3034 = vld [vmem:[#allocation2 + $0x321] sm:$0xff]
  %v3035 = vld [vmem:[#allocation2 + $0x329] sm:$0xff]
  %v3036 = vld [vmem:[#allocation2 + $0x331] sm:$0xff]
  %v3037 = vld [vmem:[#allocation2 + $0x341] sm:$0xff]
  %v3038 = vld [vmem:[#allocation2 + $0x349] sm:$0xff]
  %v3039 = vld [vmem:[#allocation2 + $0x351] sm:$0xff]
  %v3040 = vld [vmem:[#allocation2 + $0x361] sm:$0xff]
  %v3041 = vld [vmem:[#allocation2 + $0x369] sm:$0xff]
  %v3042 = vld [vmem:[#allocation2 + $0x371] sm:$0xff]
  %v3043 = vld [vmem:[#allocation2 + $0x381] sm:$0xff]
  %v3044 = vld [vmem:[#allocation2 + $0x389] sm:$0xff]
  %v3045 = vld [vmem:[#allocation2 + $0x391] sm:$0xff]
  %v3046 = vld [vmem:[#allocation2 + $0x3a1] sm:$0xff]
  %v3047 = vld [vmem:[#allocation2 + $0x3a9] sm:$0xff]
  %v3048 = vld [vmem:[#allocation2 + $0x3b1] sm:$0xff]
  %v3049 = vld [vmem:[#allocation2 + $0x3c1] sm:$0xff]
  %v3050 = vld [vmem:[#allocation2 + $0x3c9] sm:$0xff]
  %v3051 = vld [vmem:[#allocation2 + $0x3d1] sm:$0xff]
  %v3052 = vld [vmem:[#allocation2 + $0x3e1] sm:$0xff]
  %v3053 = vld [vmem:[#allocation2 + $0x3e9] sm:$0xff]
  %v3054 = vld [vmem:[#allocation2 + $0x3f1] sm:$0xff]
  %v3055 = vld [vmem:[#allocation2 + $0x401] sm:$0xff]
  %v3056 = vld [vmem:[#allocation2 + $0x409] sm:$0xff]
  %v3057 = vld [vmem:[#allocation2 + $0x411] sm:$0xff]
  %v3058 = vld [vmem:[#allocation2 + $0x421] sm:$0xff]
  %v3059 = vld [vmem:[#allocation2 + $0x429] sm:$0xff]
  %v3060 = vld [vmem:[#allocation2 + $0x431] sm:$0xff]
  %v3061 = vld [vmem:[#allocation2 + $0x441] sm:$0xff]
  %v3062 = vld [vmem:[#allocation2 + $0x449] sm:$0xff]
  %v3063 = vld [vmem:[#allocation2 + $0x451] sm:$0xff]
  %v3064 = vld [vmem:[#allocation2 + $0x461] sm:$0xff]
  %v3065 = vld [vmem:[#allocation2 + $0x469] sm:$0xff]
  %v3066 = vld [vmem:[#allocation2 + $0x471] sm:$0xff]
  %v3067 = vld [vmem:[#allocation2 + $0x481] sm:$0xff]
  %v3068 = vld [vmem:[#allocation2 + $0x489] sm:$0xff]
  %v3069 = vld [vmem:[#allocation2 + $0x491] sm:$0xff]
  %v3070 = vld [vmem:[#allocation2 + $0x4a1] sm:$0xff]
  %v3071 = vld [vmem:[#allocation2 + $0x4a9] sm:$0xff]
  %v3072 = vld [vmem:[#allocation2 + $0x4b1] sm:$0xff]
  %v3073 = vld [vmem:[#allocation2 + $0x4c1] sm:$0xff]
  %v3074 = vld [vmem:[#allocation2 + $0x4c9] sm:$0xff]
  %v3075 = vld [vmem:[#allocation2 + $0x4d1] sm:$0xff]
  %v3076 = vld [vmem:[#allocation2 + $0x4e1] sm:$0xff]
  %v3077 = vld [vmem:[#allocation2 + $0x4e9] sm:$0xff]
  %v3078 = vld [vmem:[#allocation2 + $0x4f1] sm:$0xff]
  %v3079 = vld [vmem:[#allocation2 + $0x2] sm:$0xff]
  %v3080 = vld [vmem:[#allocation2 + $0xa] sm:$0xff]
  %v3081 = vld [vmem:[#allocation2 + $0x12] sm:$0xff]
  %v3082 = vld [vmem:[#allocation2 + $0x22] sm:$0xff]
  %v3083 = vld [vmem:[#allocation2 + $0x2a] sm:$0xff]
  %v3084 = vld [vmem:[#allocation2 + $0x32] sm:$0xff]
  %v3085 = vld [vmem:[#allocation2 + $0x42] sm:$0xff]
  %v3086 = vld [vmem:[#allocation2 + $0x4a] sm:$0xff]
  %v3087 = vld [vmem:[#allocation2 + $0x52] sm:$0xff]
  %v3088 = vld [vmem:[#allocation2 + $0x62] sm:$0xff]
  %v3089 = vld [vmem:[#allocation2 + $0x6a] sm:$0xff]
  %v3090 = vld [vmem:[#allocation2 + $0x72] sm:$0xff]
  %v3091 = vld [vmem:[#allocation2 + $0x82] sm:$0xff]
  %v3092 = vld [vmem:[#allocation2 + $0x8a] sm:$0xff]
  %v3093 = vld [vmem:[#allocation2 + $0x92] sm:$0xff]
  %v3094 = vld [vmem:[#allocation2 + $0xa2] sm:$0xff]
  %v3095 = vld [vmem:[#allocation2 + $0xaa] sm:$0xff]
  %v3096 = vld [vmem:[#allocation2 + $0xb2] sm:$0xff]
  %v3097 = vld [vmem:[#allocation2 + $0xc2] sm:$0xff]
  %v3098 = vld [vmem:[#allocation2 + $0xca] sm:$0xff]
  %v3099 = vld [vmem:[#allocation2 + $0xd2] sm:$0xff]
  %v3100 = vld [vmem:[#allocation2 + $0xe2] sm:$0xff]
  %v3101 = vld [vmem:[#allocation2 + $0xea] sm:$0xff]
  %v3102 = vld [vmem:[#allocation2 + $0xf2] sm:$0xff]
  %v3103 = vld [vmem:[#allocation2 + $0x102] sm:$0xff]
  %v3104 = vld [vmem:[#allocation2 + $0x10a] sm:$0xff]
  %v3105 = vld [vmem:[#allocation2 + $0x112] sm:$0xff]
  %v3106 = vld [vmem:[#allocation2 + $0x122] sm:$0xff]
  %v3107 = vld [vmem:[#allocation2 + $0x12a] sm:$0xff]
  %v3108 = vld [vmem:[#allocation2 + $0x132] sm:$0xff]
  %v3109 = vld [vmem:[#allocation2 + $0x142] sm:$0xff]
  %v3110 = vld [vmem:[#allocation2 + $0x14a] sm:$0xff]
  %v3111 = vld [vmem:[#allocation2 + $0x152] sm:$0xff]
  %v3112 = vld [vmem:[#allocation2 + $0x162] sm:$0xff]
  %v3113 = vld [vmem:[#allocation2 + $0x16a] sm:$0xff]
  %v3114 = vld [vmem:[#allocation2 + $0x172] sm:$0xff]
  %v3115 = vld [vmem:[#allocation2 + $0x182] sm:$0xff]
  %v3116 = vld [vmem:[#allocation2 + $0x18a] sm:$0xff]
  %v3117 = vld [vmem:[#allocation2 + $0x192] sm:$0xff]
  %v3118 = vld [vmem:[#allocation2 + $0x1a2] sm:$0xff]
  %v3119 = vld [vmem:[#allocation2 + $0x1aa] sm:$0xff]
  %v3120 = vld [vmem:[#allocation2 + $0x1b2] sm:$0xff]
  %v3121 = vld [vmem:[#allocation2 + $0x1c2] sm:$0xff]
  %v3122 = vld [vmem:[#allocation2 + $0x1ca] sm:$0xff]
  %v3123 = vld [vmem:[#allocation2 + $0x1d2] sm:$0xff]
  %v3124 = vld [vmem:[#allocation2 + $0x1e2] sm:$0xff]
  %v3125 = vld [vmem:[#allocation2 + $0x1ea] sm:$0xff]
  %v3126 = vld [vmem:[#allocation2 + $0x1f2] sm:$0xff]
  %v3127 = vld [vmem:[#allocation2 + $0x202] sm:$0xff]
  %v3128 = vld [vmem:[#allocation2 + $0x20a] sm:$0xff]
  %v3129 = vld [vmem:[#allocation2 + $0x212] sm:$0xff]
  %v3130 = vld [vmem:[#allocation2 + $0x222] sm:$0xff]
  %v3131 = vld [vmem:[#allocation2 + $0x22a] sm:$0xff]
  %v3132 = vld [vmem:[#allocation2 + $0x232] sm:$0xff]
  %v3133 = vld [vmem:[#allocation2 + $0x242] sm:$0xff]
  %v3134 = vld [vmem:[#allocation2 + $0x24a] sm:$0xff]
  %v3135 = vld [vmem:[#allocation2 + $0x252] sm:$0xff]
  %v3136 = vld [vmem:[#allocation2 + $0x262] sm:$0xff]
  %v3137 = vld [vmem:[#allocation2 + $0x26a] sm:$0xff]
  %v3138 = vld [vmem:[#allocation2 + $0x272] sm:$0xff]
  %v3139 = vld [vmem:[#allocation2 + $0x282] sm:$0xff]
  %v3140 = vld [vmem:[#allocation2 + $0x28a] sm:$0xff]
  %v3141 = vld [vmem:[#allocation2 + $0x292] sm:$0xff]
  %v3142 = vld [vmem:[#allocation2 + $0x2a2] sm:$0xff]
  %v3143 = vld [vmem:[#allocation2 + $0x2aa] sm:$0xff]
  %v3144 = vld [vmem:[#allocation2 + $0x2b2] sm:$0xff]
  %v3145 = vld [vmem:[#allocation2 + $0x2c2] sm:$0xff]
  %v3146 = vld [vmem:[#allocation2 + $0x2ca] sm:$0xff]
  %v3147 = vld [vmem:[#allocation2 + $0x2d2] sm:$0xff]
  %v3148 = vld [vmem:[#allocation2 + $0x2e2] sm:$0xff]
  %v3149 = vld [vmem:[#allocation2 + $0x2ea] sm:$0xff]
  %v3150 = vld [vmem:[#allocation2 + $0x2f2] sm:$0xff]
  %v3151 = vld [vmem:[#allocation2 + $0x302] sm:$0xff]
  %v3152 = vld [vmem:[#allocation2 + $0x30a] sm:$0xff]
  %v3153 = vld [vmem:[#allocation2 + $0x312] sm:$0xff]
  %v3154 = vld [vmem:[#allocation2 + $0x322] sm:$0xff]
  %v3155 = vld [vmem:[#allocation2 + $0x32a] sm:$0xff]
  %v3156 = vld [vmem:[#allocation2 + $0x332] sm:$0xff]
  %v3157 = vld [vmem:[#allocation2 + $0x342] sm:$0xff]
  %v3158 = vld [vmem:[#allocation2 + $0x34a] sm:$0xff]
  %v3159 = vld [vmem:[#allocation2 + $0x352] sm:$0xff]
  %v3160 = vld [vmem:[#allocation2 + $0x362] sm:$0xff]
  %v3161 = vld [vmem:[#allocation2 + $0x36a] sm:$0xff]
  %v3162 = vld [vmem:[#allocation2 + $0x372] sm:$0xff]
  %v3163 = vld [vmem:[#allocation2 + $0x382] sm:$0xff]
  %v3164 = vld [vmem:[#allocation2 + $0x38a] sm:$0xff]
  %v3165 = vld [vmem:[#allocation2 + $0x392] sm:$0xff]
  %v3166 = vld [vmem:[#allocation2 + $0x3a2] sm:$0xff]
  %v3167 = vld [vmem:[#allocation2 + $0x3aa] sm:$0xff]
  %v3168 = vld [vmem:[#allocation2 + $0x3b2] sm:$0xff]
  %v3169 = vld [vmem:[#allocation2 + $0x3c2] sm:$0xff]
  %v3170 = vld [vmem:[#allocation2 + $0x3ca] sm:$0xff]
  %v3171 = vld [vmem:[#allocation2 + $0x3d2] sm:$0xff]
  %v3172 = vld [vmem:[#allocation2 + $0x3e2] sm:$0xff]
  %v3173 = vld [vmem:[#allocation2 + $0x3ea] sm:$0xff]
  %v3174 = vld [vmem:[#allocation2 + $0x3f2] sm:$0xff]
  %v3175 = vld [vmem:[#allocation2 + $0x402] sm:$0xff]
  %v3176 = vld [vmem:[#allocation2 + $0x40a] sm:$0xff]
  %v3177 = vld [vmem:[#allocation2 + $0x412] sm:$0xff]
  %v3178 = vld [vmem:[#allocation2 + $0x422] sm:$0xff]
  %v3179 = vld [vmem:[#allocation2 + $0x42a] sm:$0xff]
  %v3180 = vld [vmem:[#allocation2 + $0x432] sm:$0xff]
  %v3181 = vld [vmem:[#allocation2 + $0x442] sm:$0xff]
  %v3182 = vld [vmem:[#allocation2 + $0x44a] sm:$0xff]
  %v3183 = vld [vmem:[#allocation2 + $0x452] sm:$0xff]
  %v3184 = vld [vmem:[#allocation2 + $0x462] sm:$0xff]
  %v3185 = vld [vmem:[#allocation2 + $0x46a] sm:$0xff]
  %v3186 = vld [vmem:[#allocation2 + $0x472] sm:$0xff]
  %v3187 = vld [vmem:[#allocation2 + $0x482] sm:$0xff]
  %v3188 = vld [vmem:[#allocation2 + $0x48a] sm:$0xff]
  %v3189 = vld [vmem:[#allocation2 + $0x492] sm:$0xff]
  %v3190 = vld [vmem:[#allocation2 + $0x4a2] sm:$0xff]
  %v3191 = vld [vmem:[#allocation2 + $0x4aa] sm:$0xff]
  %v3192 = vld [vmem:[#allocation2 + $0x4b2] sm:$0xff]
  %v3193 = vld [vmem:[#allocation2 + $0x4c2] sm:$0xff]
  %v3194 = vld [vmem:[#allocation2 + $0x4ca] sm:$0xff]
  %v3195 = vld [vmem:[#allocation2 + $0x4d2] sm:$0xff]
  %v3196 = vld [vmem:[#allocation2 + $0x4e2] sm:$0xff]
  %v3197 = vld [vmem:[#allocation2 + $0x4ea] sm:$0xff]
  %v3198 = vld [vmem:[#allocation2 + $0x4f2] sm:$0xff]
  %3319 = vrot.lane.b32.xlu0 %v2959, 32
  %v3320 = vpop.permute.xlu0 %3319
  %3321 = vrot.lane.b32.xlu0 %v2960, 32
  %v3322 = vpop.permute.xlu0 %3321
  %3323 = vrot.lane.b32.xlu0 %v2961, 32
  %v3324 = vpop.permute.xlu0 %3323
  %3325 = vrot.lane.b32.xlu0 %v2962, 32
  %v3326 = vpop.permute.xlu0 %3325
  %3327 = vrot.lane.b32.xlu0 %v2963, 32
  %v3328 = vpop.permute.xlu0 %3327
  %3329 = vrot.lane.b32.xlu0 %v2964, 32
  %v3330 = vpop.permute.xlu0 %3329
  %3331 = vrot.lane.b32.xlu0 %v2965, 32
  %v3332 = vpop.permute.xlu0 %3331
  %3333 = vrot.lane.b32.xlu0 %v2966, 32
  %v3334 = vpop.permute.xlu0 %3333
  %3335 = vrot.lane.b32.xlu0 %v2967, 32
  %v3336 = vpop.permute.xlu0 %3335
  %3337 = vrot.lane.b32.xlu0 %v2968, 32
  %v3338 = vpop.permute.xlu0 %3337
  %3339 = vrot.lane.b32.xlu0 %v2969, 32
  %v3340 = vpop.permute.xlu0 %3339
  %3341 = vrot.lane.b32.xlu0 %v2970, 32
  %v3342 = vpop.permute.xlu0 %3341
  %3343 = vrot.lane.b32.xlu0 %v2971, 32
  %v3344 = vpop.permute.xlu0 %3343
  %3345 = vrot.lane.b32.xlu0 %v2972, 32
  %v3346 = vpop.permute.xlu0 %3345
  %3347 = vrot.lane.b32.xlu0 %v2973, 32
  %v3348 = vpop.permute.xlu0 %3347
  %3349 = vrot.lane.b32.xlu0 %v2974, 32
  %v3350 = vpop.permute.xlu0 %3349
  %3351 = vrot.lane.b32.xlu0 %v2975, 32
  %v3352 = vpop.permute.xlu0 %3351
  %3353 = vrot.lane.b32.xlu0 %v2976, 32
  %v3354 = vpop.permute.xlu0 %3353
  %3355 = vrot.lane.b32.xlu0 %v2977, 32
  %v3356 = vpop.permute.xlu0 %3355
  %3357 = vrot.lane.b32.xlu0 %v2978, 32
  %v3358 = vpop.permute.xlu0 %3357
  %3359 = vrot.lane.b32.xlu0 %v2979, 32
  %v3360 = vpop.permute.xlu0 %3359
  %3361 = vrot.lane.b32.xlu0 %v2980, 32
  %v3362 = vpop.permute.xlu0 %3361
  %3363 = vrot.lane.b32.xlu0 %v2981, 32
  %v3364 = vpop.permute.xlu0 %3363
  %3365 = vrot.lane.b32.xlu0 %v2982, 32
  %v3366 = vpop.permute.xlu0 %3365
  %3367 = vrot.lane.b32.xlu0 %v2983, 32
  %v3368 = vpop.permute.xlu0 %3367
  %3369 = vrot.lane.b32.xlu0 %v2984, 32
  %v3370 = vpop.permute.xlu0 %3369
  %3371 = vrot.lane.b32.xlu0 %v2985, 32
  %v3372 = vpop.permute.xlu0 %3371
  %3373 = vrot.lane.b32.xlu0 %v2986, 32
  %v3374 = vpop.permute.xlu0 %3373
  %3375 = vrot.lane.b32.xlu0 %v2987, 32
  %v3376 = vpop.permute.xlu0 %3375
  %3377 = vrot.lane.b32.xlu0 %v2988, 32
  %v3378 = vpop.permute.xlu0 %3377
  %3379 = vrot.lane.b32.xlu0 %v2989, 32
  %v3380 = vpop.permute.xlu0 %3379
  %3381 = vrot.lane.b32.xlu0 %v2990, 32
  %v3382 = vpop.permute.xlu0 %3381
  %3383 = vrot.lane.b32.xlu0 %v2991, 32
  %v3384 = vpop.permute.xlu0 %3383
  %3385 = vrot.lane.b32.xlu0 %v2992, 32
  %v3386 = vpop.permute.xlu0 %3385
  %3387 = vrot.lane.b32.xlu0 %v2993, 32
  %v3388 = vpop.permute.xlu0 %3387
  %3389 = vrot.lane.b32.xlu0 %v2994, 32
  %v3390 = vpop.permute.xlu0 %3389
  %3391 = vrot.lane.b32.xlu0 %v2995, 32
  %v3392 = vpop.permute.xlu0 %3391
  %3393 = vrot.lane.b32.xlu0 %v2996, 32
  %v3394 = vpop.permute.xlu0 %3393
  %3395 = vrot.lane.b32.xlu0 %v2997, 32
  %v3396 = vpop.permute.xlu0 %3395
  %3397 = vrot.lane.b32.xlu0 %v2998, 32
  %v3398 = vpop.permute.xlu0 %3397
  %3399 = vrot.lane.b32.xlu0 %v2999, 32
  %v3400 = vpop.permute.xlu0 %3399
  %3401 = vrot.lane.b32.xlu0 %v3000, 32
  %v3402 = vpop.permute.xlu0 %3401
  %3403 = vrot.lane.b32.xlu0 %v3001, 32
  %v3404 = vpop.permute.xlu0 %3403
  %3405 = vrot.lane.b32.xlu0 %v3002, 32
  %v3406 = vpop.permute.xlu0 %3405
  %3407 = vrot.lane.b32.xlu0 %v3003, 32
  %v3408 = vpop.permute.xlu0 %3407
  %3409 = vrot.lane.b32.xlu0 %v3004, 32
  %v3410 = vpop.permute.xlu0 %3409
  %3411 = vrot.lane.b32.xlu0 %v3005, 32
  %v3412 = vpop.permute.xlu0 %3411
  %3413 = vrot.lane.b32.xlu0 %v3006, 32
  %v3414 = vpop.permute.xlu0 %3413
  %3415 = vrot.lane.b32.xlu0 %v3007, 32
  %v3416 = vpop.permute.xlu0 %3415
  %3417 = vrot.lane.b32.xlu0 %v3008, 32
  %v3418 = vpop.permute.xlu0 %3417
  %3419 = vrot.lane.b32.xlu0 %v3009, 32
  %v3420 = vpop.permute.xlu0 %3419
  %3421 = vrot.lane.b32.xlu0 %v3010, 32
  %v3422 = vpop.permute.xlu0 %3421
  %3423 = vrot.lane.b32.xlu0 %v3011, 32
  %v3424 = vpop.permute.xlu0 %3423
  %3425 = vrot.lane.b32.xlu0 %v3012, 32
  %v3426 = vpop.permute.xlu0 %3425
  %3427 = vrot.lane.b32.xlu0 %v3013, 32
  %v3428 = vpop.permute.xlu0 %3427
  %3429 = vrot.lane.b32.xlu0 %v3014, 32
  %v3430 = vpop.permute.xlu0 %3429
  %3431 = vrot.lane.b32.xlu0 %v3015, 32
  %v3432 = vpop.permute.xlu0 %3431
  %3433 = vrot.lane.b32.xlu0 %v3016, 32
  %v3434 = vpop.permute.xlu0 %3433
  %3435 = vrot.lane.b32.xlu0 %v3017, 32
  %v3436 = vpop.permute.xlu0 %3435
  %3437 = vrot.lane.b32.xlu0 %v3018, 32
  %v3438 = vpop.permute.xlu0 %3437
  %3439 = vrot.lane.b32.xlu0 %v3019, 32
  %v3440 = vpop.permute.xlu0 %3439
  %3441 = vrot.lane.b32.xlu0 %v3020, 32
  %v3442 = vpop.permute.xlu0 %3441
  %3443 = vrot.lane.b32.xlu0 %v3021, 32
  %v3444 = vpop.permute.xlu0 %3443
  %3445 = vrot.lane.b32.xlu0 %v3022, 32
  %v3446 = vpop.permute.xlu0 %3445
  %3447 = vrot.lane.b32.xlu0 %v3023, 32
  %v3448 = vpop.permute.xlu0 %3447
  %3449 = vrot.lane.b32.xlu0 %v3024, 32
  %v3450 = vpop.permute.xlu0 %3449
  %3451 = vrot.lane.b32.xlu0 %v3025, 32
  %v3452 = vpop.permute.xlu0 %3451
  %3453 = vrot.lane.b32.xlu0 %v3026, 32
  %v3454 = vpop.permute.xlu0 %3453
  %3455 = vrot.lane.b32.xlu0 %v3027, 32
  %v3456 = vpop.permute.xlu0 %3455
  %3457 = vrot.lane.b32.xlu0 %v3028, 32
  %v3458 = vpop.permute.xlu0 %3457
  %3459 = vrot.lane.b32.xlu0 %v3029, 32
  %v3460 = vpop.permute.xlu0 %3459
  %3461 = vrot.lane.b32.xlu0 %v3030, 32
  %v3462 = vpop.permute.xlu0 %3461
  %3463 = vrot.lane.b32.xlu0 %v3031, 32
  %v3464 = vpop.permute.xlu0 %3463
  %3465 = vrot.lane.b32.xlu0 %v3032, 32
  %v3466 = vpop.permute.xlu0 %3465
  %3467 = vrot.lane.b32.xlu0 %v3033, 32
  %v3468 = vpop.permute.xlu0 %3467
  %3469 = vrot.lane.b32.xlu0 %v3034, 32
  %v3470 = vpop.permute.xlu0 %3469
  %3471 = vrot.lane.b32.xlu0 %v3035, 32
  %v3472 = vpop.permute.xlu0 %3471
  %3473 = vrot.lane.b32.xlu0 %v3036, 32
  %v3474 = vpop.permute.xlu0 %3473
  %3475 = vrot.lane.b32.xlu0 %v3037, 32
  %v3476 = vpop.permute.xlu0 %3475
  %3477 = vrot.lane.b32.xlu0 %v3038, 32
  %v3478 = vpop.permute.xlu0 %3477
  %3479 = vrot.lane.b32.xlu0 %v3039, 32
  %v3480 = vpop.permute.xlu0 %3479
  %3481 = vrot.lane.b32.xlu0 %v3040, 32
  %v3482 = vpop.permute.xlu0 %3481
  %3483 = vrot.lane.b32.xlu0 %v3041, 32
  %v3484 = vpop.permute.xlu0 %3483
  %3485 = vrot.lane.b32.xlu0 %v3042, 32
  %v3486 = vpop.permute.xlu0 %3485
  %3487 = vrot.lane.b32.xlu0 %v3043, 32
  %v3488 = vpop.permute.xlu0 %3487
  %3489 = vrot.lane.b32.xlu0 %v3044, 32
  %v3490 = vpop.permute.xlu0 %3489
  %3491 = vrot.lane.b32.xlu0 %v3045, 32
  %v3492 = vpop.permute.xlu0 %3491
  %3493 = vrot.lane.b32.xlu0 %v3046, 32
  %v3494 = vpop.permute.xlu0 %3493
  %3495 = vrot.lane.b32.xlu0 %v3047, 32
  %v3496 = vpop.permute.xlu0 %3495
  %3497 = vrot.lane.b32.xlu0 %v3048, 32
  %v3498 = vpop.permute.xlu0 %3497
  %3499 = vrot.lane.b32.xlu0 %v3049, 32
  %v3500 = vpop.permute.xlu0 %3499
  %3501 = vrot.lane.b32.xlu0 %v3050, 32
  %v3502 = vpop.permute.xlu0 %3501
  %3503 = vrot.lane.b32.xlu0 %v3051, 32
  %v3504 = vpop.permute.xlu0 %3503
  %3505 = vrot.lane.b32.xlu0 %v3052, 32
  %v3506 = vpop.permute.xlu0 %3505
  %3507 = vrot.lane.b32.xlu0 %v3053, 32
  %v3508 = vpop.permute.xlu0 %3507
  %3509 = vrot.lane.b32.xlu0 %v3054, 32
  %v3510 = vpop.permute.xlu0 %3509
  %3511 = vrot.lane.b32.xlu0 %v3055, 32
  %v3512 = vpop.permute.xlu0 %3511
  %3513 = vrot.lane.b32.xlu0 %v3056, 32
  %v3514 = vpop.permute.xlu0 %3513
  %3515 = vrot.lane.b32.xlu0 %v3057, 32
  %v3516 = vpop.permute.xlu0 %3515
  %3517 = vrot.lane.b32.xlu0 %v3058, 32
  %v3518 = vpop.permute.xlu0 %3517
  %3519 = vrot.lane.b32.xlu0 %v3059, 32
  %v3520 = vpop.permute.xlu0 %3519
  %3521 = vrot.lane.b32.xlu0 %v3060, 32
  %v3522 = vpop.permute.xlu0 %3521
  %3523 = vrot.lane.b32.xlu0 %v3061, 32
  %v3524 = vpop.permute.xlu0 %3523
  %3525 = vrot.lane.b32.xlu0 %v3062, 32
  %v3526 = vpop.permute.xlu0 %3525
  %3527 = vrot.lane.b32.xlu0 %v3063, 32
  %v3528 = vpop.permute.xlu0 %3527
  %3529 = vrot.lane.b32.xlu0 %v3064, 32
  %v3530 = vpop.permute.xlu0 %3529
  %3531 = vrot.lane.b32.xlu0 %v3065, 32
  %v3532 = vpop.permute.xlu0 %3531
  %3533 = vrot.lane.b32.xlu0 %v3066, 32
  %v3534 = vpop.permute.xlu0 %3533
  %3535 = vrot.lane.b32.xlu0 %v3067, 32
  %v3536 = vpop.permute.xlu0 %3535
  %3537 = vrot.lane.b32.xlu0 %v3068, 32
  %v3538 = vpop.permute.xlu0 %3537
  %3539 = vrot.lane.b32.xlu0 %v3069, 32
  %v3540 = vpop.permute.xlu0 %3539
  %3541 = vrot.lane.b32.xlu0 %v3070, 32
  %v3542 = vpop.permute.xlu0 %3541
  %3543 = vrot.lane.b32.xlu0 %v3071, 32
  %v3544 = vpop.permute.xlu0 %3543
  %3545 = vrot.lane.b32.xlu0 %v3072, 32
  %v3546 = vpop.permute.xlu0 %3545
  %3547 = vrot.lane.b32.xlu0 %v3073, 32
  %v3548 = vpop.permute.xlu0 %3547
  %3549 = vrot.lane.b32.xlu0 %v3074, 32
  %v3550 = vpop.permute.xlu0 %3549
  %3551 = vrot.lane.b32.xlu0 %v3075, 32
  %v3552 = vpop.permute.xlu0 %3551
  %3553 = vrot.lane.b32.xlu0 %v3076, 32
  %v3554 = vpop.permute.xlu0 %3553
  %3555 = vrot.lane.b32.xlu0 %v3077, 32
  %v3556 = vpop.permute.xlu0 %3555
  %3557 = vrot.lane.b32.xlu0 %v3078, 32
  %v3558 = vpop.permute.xlu0 %3557
  %3799 = vrot.lane.b32.xlu0 %v3079, 64
  %v3800 = vpop.permute.xlu0 %3799
  %3801 = vrot.lane.b32.xlu0 %v3080, 64
  %v3802 = vpop.permute.xlu0 %3801
  %3803 = vrot.lane.b32.xlu0 %v3081, 64
  %v3804 = vpop.permute.xlu0 %3803
  %3805 = vrot.lane.b32.xlu0 %v3082, 64
  %v3806 = vpop.permute.xlu0 %3805
  %3807 = vrot.lane.b32.xlu0 %v3083, 64
  %v3808 = vpop.permute.xlu0 %3807
  %3809 = vrot.lane.b32.xlu0 %v3084, 64
  %v3810 = vpop.permute.xlu0 %3809
  %3811 = vrot.lane.b32.xlu0 %v3085, 64
  %v3812 = vpop.permute.xlu0 %3811
  %3813 = vrot.lane.b32.xlu0 %v3086, 64
  %v3814 = vpop.permute.xlu0 %3813
  %3815 = vrot.lane.b32.xlu0 %v3087, 64
  %v3816 = vpop.permute.xlu0 %3815
  %3817 = vrot.lane.b32.xlu0 %v3088, 64
  %v3818 = vpop.permute.xlu0 %3817
  %3819 = vrot.lane.b32.xlu0 %v3089, 64
  %v3820 = vpop.permute.xlu0 %3819
  %3821 = vrot.lane.b32.xlu0 %v3090, 64
  %v3822 = vpop.permute.xlu0 %3821
  %3823 = vrot.lane.b32.xlu0 %v3091, 64
  %v3824 = vpop.permute.xlu0 %3823
  %3825 = vrot.lane.b32.xlu0 %v3092, 64
  %v3826 = vpop.permute.xlu0 %3825
  %3827 = vrot.lane.b32.xlu0 %v3093, 64
  %v3828 = vpop.permute.xlu0 %3827
  %3829 = vrot.lane.b32.xlu0 %v3094, 64
  %v3830 = vpop.permute.xlu0 %3829
  %3831 = vrot.lane.b32.xlu0 %v3095, 64
  %v3832 = vpop.permute.xlu0 %3831
  %3833 = vrot.lane.b32.xlu0 %v3096, 64
  %v3834 = vpop.permute.xlu0 %3833
  %3835 = vrot.lane.b32.xlu0 %v3097, 64
  %v3836 = vpop.permute.xlu0 %3835
  %3837 = vrot.lane.b32.xlu0 %v3098, 64
  %v3838 = vpop.permute.xlu0 %3837
  %3839 = vrot.lane.b32.xlu0 %v3099, 64
  %v3840 = vpop.permute.xlu0 %3839
  %3841 = vrot.lane.b32.xlu0 %v3100, 64
  %v3842 = vpop.permute.xlu0 %3841
  %3843 = vrot.lane.b32.xlu0 %v3101, 64
  %v3844 = vpop.permute.xlu0 %3843
  %3845 = vrot.lane.b32.xlu0 %v3102, 64
  %v3846 = vpop.permute.xlu0 %3845
  %3847 = vrot.lane.b32.xlu0 %v3103, 64
  %v3848 = vpop.permute.xlu0 %3847
  %3849 = vrot.lane.b32.xlu0 %v3104, 64
  %v3850 = vpop.permute.xlu0 %3849
  %3851 = vrot.lane.b32.xlu0 %v3105, 64
  %v3852 = vpop.permute.xlu0 %3851
  %3853 = vrot.lane.b32.xlu0 %v3106, 64
  %v3854 = vpop.permute.xlu0 %3853
  %3855 = vrot.lane.b32.xlu0 %v3107, 64
  %v3856 = vpop.permute.xlu0 %3855
  %3857 = vrot.lane.b32.xlu0 %v3108, 64
  %v3858 = vpop.permute.xlu0 %3857
  %3859 = vrot.lane.b32.xlu0 %v3109, 64
  %v3860 = vpop.permute.xlu0 %3859
  %3861 = vrot.lane.b32.xlu0 %v3110, 64
  %v3862 = vpop.permute.xlu0 %3861
  %3863 = vrot.lane.b32.xlu0 %v3111, 64
  %v3864 = vpop.permute.xlu0 %3863
  %3865 = vrot.lane.b32.xlu0 %v3112, 64
  %v3866 = vpop.permute.xlu0 %3865
  %3867 = vrot.lane.b32.xlu0 %v3113, 64
  %v3868 = vpop.permute.xlu0 %3867
  %3869 = vrot.lane.b32.xlu0 %v3114, 64
  %v3870 = vpop.permute.xlu0 %3869
  %3871 = vrot.lane.b32.xlu0 %v3115, 64
  %v3872 = vpop.permute.xlu0 %3871
  %3873 = vrot.lane.b32.xlu0 %v3116, 64
  %v3874 = vpop.permute.xlu0 %3873
  %3875 = vrot.lane.b32.xlu0 %v3117, 64
  %v3876 = vpop.permute.xlu0 %3875
  %3877 = vrot.lane.b32.xlu0 %v3118, 64
  %v3878 = vpop.permute.xlu0 %3877
  %3879 = vrot.lane.b32.xlu0 %v3119, 64
  %v3880 = vpop.permute.xlu0 %3879
  %3881 = vrot.lane.b32.xlu0 %v3120, 64
  %v3882 = vpop.permute.xlu0 %3881
  %3883 = vrot.lane.b32.xlu0 %v3121, 64
  %v3884 = vpop.permute.xlu0 %3883
  %3885 = vrot.lane.b32.xlu0 %v3122, 64
  %v3886 = vpop.permute.xlu0 %3885
  %3887 = vrot.lane.b32.xlu0 %v3123, 64
  %v3888 = vpop.permute.xlu0 %3887
  %3889 = vrot.lane.b32.xlu0 %v3124, 64
  %v3890 = vpop.permute.xlu0 %3889
  %3891 = vrot.lane.b32.xlu0 %v3125, 64
  %v3892 = vpop.permute.xlu0 %3891
  %3893 = vrot.lane.b32.xlu0 %v3126, 64
  %v3894 = vpop.permute.xlu0 %3893
  %3895 = vrot.lane.b32.xlu0 %v3127, 64
  %v3896 = vpop.permute.xlu0 %3895
  %3897 = vrot.lane.b32.xlu0 %v3128, 64
  %v3898 = vpop.permute.xlu0 %3897
  %3899 = vrot.lane.b32.xlu0 %v3129, 64
  %v3900 = vpop.permute.xlu0 %3899
  %3901 = vrot.lane.b32.xlu0 %v3130, 64
  %v3902 = vpop.permute.xlu0 %3901
  %3903 = vrot.lane.b32.xlu0 %v3131, 64
  %v3904 = vpop.permute.xlu0 %3903
  %3905 = vrot.lane.b32.xlu0 %v3132, 64
  %v3906 = vpop.permute.xlu0 %3905
  %3907 = vrot.lane.b32.xlu0 %v3133, 64
  %v3908 = vpop.permute.xlu0 %3907
  %3909 = vrot.lane.b32.xlu0 %v3134, 64
  %v3910 = vpop.permute.xlu0 %3909
  %3911 = vrot.lane.b32.xlu0 %v3135, 64
  %v3912 = vpop.permute.xlu0 %3911
  %3913 = vrot.lane.b32.xlu0 %v3136, 64
  %v3914 = vpop.permute.xlu0 %3913
  %3915 = vrot.lane.b32.xlu0 %v3137, 64
  %v3916 = vpop.permute.xlu0 %3915
  %3917 = vrot.lane.b32.xlu0 %v3138, 64
  %v3918 = vpop.permute.xlu0 %3917
  %3919 = vrot.lane.b32.xlu0 %v3139, 64
  %v3920 = vpop.permute.xlu0 %3919
  %3921 = vrot.lane.b32.xlu0 %v3140, 64
  %v3922 = vpop.permute.xlu0 %3921
  %3923 = vrot.lane.b32.xlu0 %v3141, 64
  %v3924 = vpop.permute.xlu0 %3923
  %3925 = vrot.lane.b32.xlu0 %v3142, 64
  %v3926 = vpop.permute.xlu0 %3925
  %3927 = vrot.lane.b32.xlu0 %v3143, 64
  %v3928 = vpop.permute.xlu0 %3927
  %3929 = vrot.lane.b32.xlu0 %v3144, 64
  %v3930 = vpop.permute.xlu0 %3929
  %3931 = vrot.lane.b32.xlu0 %v3145, 64
  %v3932 = vpop.permute.xlu0 %3931
  %3933 = vrot.lane.b32.xlu0 %v3146, 64
  %v3934 = vpop.permute.xlu0 %3933
  %3935 = vrot.lane.b32.xlu0 %v3147, 64
  %v3936 = vpop.permute.xlu0 %3935
  %3937 = vrot.lane.b32.xlu0 %v3148, 64
  %v3938 = vpop.permute.xlu0 %3937
  %3939 = vrot.lane.b32.xlu0 %v3149, 64
  %v3940 = vpop.permute.xlu0 %3939
  %3941 = vrot.lane.b32.xlu0 %v3150, 64
  %v3942 = vpop.permute.xlu0 %3941
  %3943 = vrot.lane.b32.xlu0 %v3151, 64
  %v3944 = vpop.permute.xlu0 %3943
  %3945 = vrot.lane.b32.xlu0 %v3152, 64
  %v3946 = vpop.permute.xlu0 %3945
  %3947 = vrot.lane.b32.xlu0 %v3153, 64
  %v3948 = vpop.permute.xlu0 %3947
  %3949 = vrot.lane.b32.xlu0 %v3154, 64
  %v3950 = vpop.permute.xlu0 %3949
  %3951 = vrot.lane.b32.xlu0 %v3155, 64
  %v3952 = vpop.permute.xlu0 %3951
  %3953 = vrot.lane.b32.xlu0 %v3156, 64
  %v3954 = vpop.permute.xlu0 %3953
  %3955 = vrot.lane.b32.xlu0 %v3157, 64
  %v3956 = vpop.permute.xlu0 %3955
  %3957 = vrot.lane.b32.xlu0 %v3158, 64
  %v3958 = vpop.permute.xlu0 %3957
  %3959 = vrot.lane.b32.xlu0 %v3159, 64
  %v3960 = vpop.permute.xlu0 %3959
  %3961 = vrot.lane.b32.xlu0 %v3160, 64
  %v3962 = vpop.permute.xlu0 %3961
  %3963 = vrot.lane.b32.xlu0 %v3161, 64
  %v3964 = vpop.permute.xlu0 %3963
  %3965 = vrot.lane.b32.xlu0 %v3162, 64
  %v3966 = vpop.permute.xlu0 %3965
  %3967 = vrot.lane.b32.xlu0 %v3163, 64
  %v3968 = vpop.permute.xlu0 %3967
  %3969 = vrot.lane.b32.xlu0 %v3164, 64
  %v3970 = vpop.permute.xlu0 %3969
  %3971 = vrot.lane.b32.xlu0 %v3165, 64
  %v3972 = vpop.permute.xlu0 %3971
  %3973 = vrot.lane.b32.xlu0 %v3166, 64
  %v3974 = vpop.permute.xlu0 %3973
  %3975 = vrot.lane.b32.xlu0 %v3167, 64
  %v3976 = vpop.permute.xlu0 %3975
  %3977 = vrot.lane.b32.xlu0 %v3168, 64
  %v3978 = vpop.permute.xlu0 %3977
  %3979 = vrot.lane.b32.xlu0 %v3169, 64
  %v3980 = vpop.permute.xlu0 %3979
  %3981 = vrot.lane.b32.xlu0 %v3170, 64
  %v3982 = vpop.permute.xlu0 %3981
  %3983 = vrot.lane.b32.xlu0 %v3171, 64
  %v3984 = vpop.permute.xlu0 %3983
  %3985 = vrot.lane.b32.xlu0 %v3172, 64
  %v3986 = vpop.permute.xlu0 %3985
  %3987 = vrot.lane.b32.xlu0 %v3173, 64
  %v3988 = vpop.permute.xlu0 %3987
  %3989 = vrot.lane.b32.xlu0 %v3174, 64
  %v3990 = vpop.permute.xlu0 %3989
  %3991 = vrot.lane.b32.xlu0 %v3175, 64
  %v3992 = vpop.permute.xlu0 %3991
  %3993 = vrot.lane.b32.xlu0 %v3176, 64
  %v3994 = vpop.permute.xlu0 %3993
  %3995 = vrot.lane.b32.xlu0 %v3177, 64
  %v3996 = vpop.permute.xlu0 %3995
  %3997 = vrot.lane.b32.xlu0 %v3178, 64
  %v3998 = vpop.permute.xlu0 %3997
  %3999 = vrot.lane.b32.xlu0 %v3179, 64
  %v4000 = vpop.permute.xlu0 %3999
  %4001 = vrot.lane.b32.xlu0 %v3180, 64
  %v4002 = vpop.permute.xlu0 %4001
  %4003 = vrot.lane.b32.xlu0 %v3181, 64
  %v4004 = vpop.permute.xlu0 %4003
  %4005 = vrot.lane.b32.xlu0 %v3182, 64
  %v4006 = vpop.permute.xlu0 %4005
  %4007 = vrot.lane.b32.xlu0 %v3183, 64
  %v4008 = vpop.permute.xlu0 %4007
  %4009 = vrot.lane.b32.xlu0 %v3184, 64
  %v4010 = vpop.permute.xlu0 %4009
  %4011 = vrot.lane.b32.xlu0 %v3185, 64
  %v4012 = vpop.permute.xlu0 %4011
  %4013 = vrot.lane.b32.xlu0 %v3186, 64
  %v4014 = vpop.permute.xlu0 %4013
  %4015 = vrot.lane.b32.xlu0 %v3187, 64
  %v4016 = vpop.permute.xlu0 %4015
  %4017 = vrot.lane.b32.xlu0 %v3188, 64
  %v4018 = vpop.permute.xlu0 %4017
  %4019 = vrot.lane.b32.xlu0 %v3189, 64
  %v4020 = vpop.permute.xlu0 %4019
  %4021 = vrot.lane.b32.xlu0 %v3190, 64
  %v4022 = vpop.permute.xlu0 %4021
  %4023 = vrot.lane.b32.xlu0 %v3191, 64
  %v4024 = vpop.permute.xlu0 %4023
  %4025 = vrot.lane.b32.xlu0 %v3192, 64
  %v4026 = vpop.permute.xlu0 %4025
  %4027 = vrot.lane.b32.xlu0 %v3193, 64
  %v4028 = vpop.permute.xlu0 %4027
  %4029 = vrot.lane.b32.xlu0 %v3194, 64
  %v4030 = vpop.permute.xlu0 %4029
  %4031 = vrot.lane.b32.xlu0 %v3195, 64
  %v4032 = vpop.permute.xlu0 %4031
  %4033 = vrot.lane.b32.xlu0 %v3196, 64
  %v4034 = vpop.permute.xlu0 %4033
  %4035 = vrot.lane.b32.xlu0 %v3197, 64
  %v4036 = vpop.permute.xlu0 %4035
  %4037 = vrot.lane.b32.xlu0 %v3198, 64
  %v4038 = vpop.permute.xlu0 %4037
  %v4159 = vsel %vm517, %v2839, %v3320
  %v4160 = vsel %vm517, %v2840, %v3322
  %v4161 = vsel %vm517, %v2841, %v3324
  %v4162 = vsel %vm517, %v2842, %v3326
  %v4163 = vsel %vm517, %v2843, %v3328
  %v4164 = vsel %vm517, %v2844, %v3330
  %v4165 = vsel %vm517, %v2845, %v3332
  %v4166 = vsel %vm517, %v2846, %v3334
  %v4167 = vsel %vm517, %v2847, %v3336
  %v4168 = vsel %vm517, %v2848, %v3338
  %v4169 = vsel %vm517, %v2849, %v3340
  %v4170 = vsel %vm517, %v2850, %v3342
  %v4171 = vsel %vm517, %v2851, %v3344
  %v4172 = vsel %vm517, %v2852, %v3346
  %v4173 = vsel %vm517, %v2853, %v3348
  %v4174 = vsel %vm517, %v2854, %v3350
  %v4175 = vsel %vm517, %v2855, %v3352
  %v4176 = vsel %vm517, %v2856, %v3354
  %v4177 = vsel %vm517, %v2857, %v3356
  %v4178 = vsel %vm517, %v2858, %v3358
  %v4179 = vsel %vm517, %v2859, %v3360
  %v4180 = vsel %vm517, %v2860, %v3362
  %v4181 = vsel %vm517, %v2861, %v3364
  %v4182 = vsel %vm517, %v2862, %v3366
  %v4183 = vsel %vm517, %v2863, %v3368
  %v4184 = vsel %vm517, %v2864, %v3370
  %v4185 = vsel %vm517, %v2865, %v3372
  %v4186 = vsel %vm517, %v2866, %v3374
  %v4187 = vsel %vm517, %v2867, %v3376
  %v4188 = vsel %vm517, %v2868, %v3378
  %v4189 = vsel %vm517, %v2869, %v3380
  %v4190 = vsel %vm517, %v2870, %v3382
  %v4191 = vsel %vm517, %v2871, %v3384
  %v4192 = vsel %vm517, %v2872, %v3386
  %v4193 = vsel %vm517, %v2873, %v3388
  %v4194 = vsel %vm517, %v2874, %v3390
  %v4195 = vsel %vm517, %v2875, %v3392
  %v4196 = vsel %vm517, %v2876, %v3394
  %v4197 = vsel %vm517, %v2877, %v3396
  %v4198 = vsel %vm517, %v2878, %v3398
  %v4199 = vsel %vm517, %v2879, %v3400
  %v4200 = vsel %vm517, %v2880, %v3402
  %v4201 = vsel %vm517, %v2881, %v3404
  %v4202 = vsel %vm517, %v2882, %v3406
  %v4203 = vsel %vm517, %v2883, %v3408
  %v4204 = vsel %vm517, %v2884, %v3410
  %v4205 = vsel %vm517, %v2885, %v3412
  %v4206 = vsel %vm517, %v2886, %v3414
  %v4207 = vsel %vm517, %v2887, %v3416
  %v4208 = vsel %vm517, %v2888, %v3418
  %v4209 = vsel %vm517, %v2889, %v3420
  %v4210 = vsel %vm517, %v2890, %v3422
  %v4211 = vsel %vm517, %v2891, %v3424
  %v4212 = vsel %vm517, %v2892, %v3426
  %v4213 = vsel %vm517, %v2893, %v3428
  %v4214 = vsel %vm517, %v2894, %v3430
  %v4215 = vsel %vm517, %v2895, %v3432
  %v4216 = vsel %vm517, %v2896, %v3434
  %v4217 = vsel %vm517, %v2897, %v3436
  %v4218 = vsel %vm517, %v2898, %v3438
  %v4219 = vsel %vm517, %v2899, %v3440
  %v4220 = vsel %vm517, %v2900, %v3442
  %v4221 = vsel %vm517, %v2901, %v3444
  %v4222 = vsel %vm517, %v2902, %v3446
  %v4223 = vsel %vm517, %v2903, %v3448
  %v4224 = vsel %vm517, %v2904, %v3450
  %v4225 = vsel %vm517, %v2905, %v3452
  %v4226 = vsel %vm517, %v2906, %v3454
  %v4227 = vsel %vm517, %v2907, %v3456
  %v4228 = vsel %vm517, %v2908, %v3458
  %v4229 = vsel %vm517, %v2909, %v3460
  %v4230 = vsel %vm517, %v2910, %v3462
  %v4231 = vsel %vm517, %v2911, %v3464
  %v4232 = vsel %vm517, %v2912, %v3466
  %v4233 = vsel %vm517, %v2913, %v3468
  %v4234 = vsel %vm517, %v2914, %v3470
  %v4235 = vsel %vm517, %v2915, %v3472
  %v4236 = vsel %vm517, %v2916, %v3474
  %v4237 = vsel %vm517, %v2917, %v3476
  %v4238 = vsel %vm517, %v2918, %v3478
  %v4239 = vsel %vm517, %v2919, %v3480
  %v4240 = vsel %vm517, %v2920, %v3482
  %v4241 = vsel %vm517, %v2921, %v3484
  %v4242 = vsel %vm517, %v2922, %v3486
  %v4243 = vsel %vm517, %v2923, %v3488
  %v4244 = vsel %vm517, %v2924, %v3490
  %v4245 = vsel %vm517, %v2925, %v3492
  %v4246 = vsel %vm517, %v2926, %v3494
  %v4247 = vsel %vm517, %v2927, %v3496
  %v4248 = vsel %vm517, %v2928, %v3498
  %v4249 = vsel %vm517, %v2929, %v3500
  %v4250 = vsel %vm517, %v2930, %v3502
  %v4251 = vsel %vm517, %v2931, %v3504
  %v4252 = vsel %vm517, %v2932, %v3506
  %v4253 = vsel %vm517, %v2933, %v3508
  %v4254 = vsel %vm517, %v2934, %v3510
  %v4255 = vsel %vm517, %v2935, %v3512
  %v4256 = vsel %vm517, %v2936, %v3514
  %v4257 = vsel %vm517, %v2937, %v3516
  %v4258 = vsel %vm517, %v2938, %v3518
  %v4259 = vsel %vm517, %v2939, %v3520
  %v4260 = vsel %vm517, %v2940, %v3522
  %v4261 = vsel %vm517, %v2941, %v3524
  %v4262 = vsel %vm517, %v2942, %v3526
  %v4263 = vsel %vm517, %v2943, %v3528
  %v4264 = vsel %vm517, %v2944, %v3530
  %v4265 = vsel %vm517, %v2945, %v3532
  %v4266 = vsel %vm517, %v2946, %v3534
  %v4267 = vsel %vm517, %v2947, %v3536
  %v4268 = vsel %vm517, %v2948, %v3538
  %v4269 = vsel %vm517, %v2949, %v3540
  %v4270 = vsel %vm517, %v2950, %v3542
  %v4271 = vsel %vm517, %v2951, %v3544
  %v4272 = vsel %vm517, %v2952, %v3546
  %v4273 = vsel %vm517, %v2953, %v3548
  %v4274 = vsel %vm517, %v2954, %v3550
  %v4275 = vsel %vm517, %v2955, %v3552
  %v4276 = vsel %vm517, %v2956, %v3554
  %v4277 = vsel %vm517, %v2957, %v3556
  %v4278 = vsel %vm517, %v2958, %v3558
  %v4279 = vsel %vm86, %v4159, %v3800
  %v4280 = vsel %vm86, %v4160, %v3802
  %v4281 = vsel %vm86, %v4161, %v3804
  %v4282 = vsel %vm86, %v4162, %v3806
  %v4283 = vsel %vm86, %v4163, %v3808
  %v4284 = vsel %vm86, %v4164, %v3810
  %v4285 = vsel %vm86, %v4165, %v3812
  %v4286 = vsel %vm86, %v4166, %v3814
  %v4287 = vsel %vm86, %v4167, %v3816
  %v4288 = vsel %vm86, %v4168, %v3818
  %v4289 = vsel %vm86, %v4169, %v3820
  %v4290 = vsel %vm86, %v4170, %v3822
  %v4291 = vsel %vm86, %v4171, %v3824
  %v4292 = vsel %vm86, %v4172, %v3826
  %v4293 = vsel %vm86, %v4173, %v3828
  %v4294 = vsel %vm86, %v4174, %v3830
  %v4295 = vsel %vm86, %v4175, %v3832
  %v4296 = vsel %vm86, %v4176, %v3834
  %v4297 = vsel %vm86, %v4177, %v3836
  %v4298 = vsel %vm86, %v4178, %v3838
  %v4299 = vsel %vm86, %v4179, %v3840
  %v4300 = vsel %vm86, %v4180, %v3842
  %v4301 = vsel %vm86, %v4181, %v3844
  %v4302 = vsel %vm86, %v4182, %v3846
  %v4303 = vsel %vm86, %v4183, %v3848
  %v4304 = vsel %vm86, %v4184, %v3850
  %v4305 = vsel %vm86, %v4185, %v3852
  %v4306 = vsel %vm86, %v4186, %v3854
  %v4307 = vsel %vm86, %v4187, %v3856
  %v4308 = vsel %vm86, %v4188, %v3858
  %v4309 = vsel %vm86, %v4189, %v3860
  %v4310 = vsel %vm86, %v4190, %v3862
  %v4311 = vsel %vm86, %v4191, %v3864
  %v4312 = vsel %vm86, %v4192, %v3866
  %v4313 = vsel %vm86, %v4193, %v3868
  %v4314 = vsel %vm86, %v4194, %v3870
  %v4315 = vsel %vm86, %v4195, %v3872
  %v4316 = vsel %vm86, %v4196, %v3874
  %v4317 = vsel %vm86, %v4197, %v3876
  %v4318 = vsel %vm86, %v4198, %v3878
  %v4319 = vsel %vm86, %v4199, %v3880
  %v4320 = vsel %vm86, %v4200, %v3882
  %v4321 = vsel %vm86, %v4201, %v3884
  %v4322 = vsel %vm86, %v4202, %v3886
  %v4323 = vsel %vm86, %v4203, %v3888
  %v4324 = vsel %vm86, %v4204, %v3890
  %v4325 = vsel %vm86, %v4205, %v3892
  %v4326 = vsel %vm86, %v4206, %v3894
  %v4327 = vsel %vm86, %v4207, %v3896
  %v4328 = vsel %vm86, %v4208, %v3898
  %v4329 = vsel %vm86, %v4209, %v3900
  %v4330 = vsel %vm86, %v4210, %v3902
  %v4331 = vsel %vm86, %v4211, %v3904
  %v4332 = vsel %vm86, %v4212, %v3906
  %v4333 = vsel %vm86, %v4213, %v3908
  %v4334 = vsel %vm86, %v4214, %v3910
  %v4335 = vsel %vm86, %v4215, %v3912
  %v4336 = vsel %vm86, %v4216, %v3914
  %v4337 = vsel %vm86, %v4217, %v3916
  %v4338 = vsel %vm86, %v4218, %v3918
  %v4339 = vsel %vm86, %v4219, %v3920
  %v4340 = vsel %vm86, %v4220, %v3922
  %v4341 = vsel %vm86, %v4221, %v3924
  %v4342 = vsel %vm86, %v4222, %v3926
  %v4343 = vsel %vm86, %v4223, %v3928
  %v4344 = vsel %vm86, %v4224, %v3930
  %v4345 = vsel %vm86, %v4225, %v3932
  %v4346 = vsel %vm86, %v4226, %v3934
  %v4347 = vsel %vm86, %v4227, %v3936
  %v4348 = vsel %vm86, %v4228, %v3938
  %v4349 = vsel %vm86, %v4229, %v3940
  %v4350 = vsel %vm86, %v4230, %v3942
  %v4351 = vsel %vm86, %v4231, %v3944
  %v4352 = vsel %vm86, %v4232, %v3946
  %v4353 = vsel %vm86, %v4233, %v3948
  %v4354 = vsel %vm86, %v4234, %v3950
  %v4355 = vsel %vm86, %v4235, %v3952
  %v4356 = vsel %vm86, %v4236, %v3954
  %v4357 = vsel %vm86, %v4237, %v3956
  %v4358 = vsel %vm86, %v4238, %v3958
  %v4359 = vsel %vm86, %v4239, %v3960
  %v4360 = vsel %vm86, %v4240, %v3962
  %v4361 = vsel %vm86, %v4241, %v3964
  %v4362 = vsel %vm86, %v4242, %v3966
  %v4363 = vsel %vm86, %v4243, %v3968
  %v4364 = vsel %vm86, %v4244, %v3970
  %v4365 = vsel %vm86, %v4245, %v3972
  %v4366 = vsel %vm86, %v4246, %v3974
  %v4367 = vsel %vm86, %v4247, %v3976
  %v4368 = vsel %vm86, %v4248, %v3978
  %v4369 = vsel %vm86, %v4249, %v3980
  %v4370 = vsel %vm86, %v4250, %v3982
  %v4371 = vsel %vm86, %v4251, %v3984
  %v4372 = vsel %vm86, %v4252, %v3986
  %v4373 = vsel %vm86, %v4253, %v3988
  %v4374 = vsel %vm86, %v4254, %v3990
  %v4375 = vsel %vm86, %v4255, %v3992
  %v4376 = vsel %vm86, %v4256, %v3994
  %v4377 = vsel %vm86, %v4257, %v3996
  %v4378 = vsel %vm86, %v4258, %v3998
  %v4379 = vsel %vm86, %v4259, %v4000
  %v4380 = vsel %vm86, %v4260, %v4002
  %v4381 = vsel %vm86, %v4261, %v4004
  %v4382 = vsel %vm86, %v4262, %v4006
  %v4383 = vsel %vm86, %v4263, %v4008
  %v4384 = vsel %vm86, %v4264, %v4010
  %v4385 = vsel %vm86, %v4265, %v4012
  %v4386 = vsel %vm86, %v4266, %v4014
  %v4387 = vsel %vm86, %v4267, %v4016
  %v4388 = vsel %vm86, %v4268, %v4018
  %v4389 = vsel %vm86, %v4269, %v4020
  %v4390 = vsel %vm86, %v4270, %v4022
  %v4391 = vsel %vm86, %v4271, %v4024
  %v4392 = vsel %vm86, %v4272, %v4026
  %v4393 = vsel %vm86, %v4273, %v4028
  %v4394 = vsel %vm86, %v4274, %v4030
  %v4395 = vsel %vm86, %v4275, %v4032
  %v4396 = vsel %vm86, %v4276, %v4034
  %v4397 = vsel %vm86, %v4277, %v4036
  %v4398 = vsel %vm86, %v4278, %v4038
  %v4399 = vld [vmem:[%s12] sm:$0xff]
  %v4400 = vld [vmem:[%s12 + $0x8] sm:$0xff]
  %v4401 = vld [vmem:[%s12 + $0x10] sm:$0xff]
  %v4402 = vld [vmem:[%s12 + $0x18] sm:$0xff]
  %v4403 = vld [vmem:[%s12 + $0x20] sm:$0xff]
  %v4404 = vld [vmem:[%s12 + $0x28] sm:$0xff]
  %v4405 = vld [vmem:[%s12 + $0x30] sm:$0xff]
  %v4406 = vld [vmem:[%s12 + $0x38] sm:$0xff]
  %v4407 = vld [vmem:[%s12 + $0x40] sm:$0xff]
  %v4408 = vld [vmem:[%s12 + $0x48] sm:$0xff]
  %v4409 = vld [vmem:[%s12 + $0x50] sm:$0xff]
  %v4410 = vld [vmem:[%s12 + $0x58] sm:$0xff]
  %s4411 = scalar_lea.vmem %s12, 96
  %v4412 = vld [vmem:[%s4411] sm:$0xff]
  %v4413 = vld [vmem:[%s4411 + $0x8] sm:$0xff]
  %v4414 = vld [vmem:[%s4411 + $0x10] sm:$0xff]
  %v4415 = vld [vmem:[%s4411 + $0x18] sm:$0xff]
  %v4416 = vld [vmem:[%s4411 + $0x20] sm:$0xff]
  %v4417 = vld [vmem:[%s4411 + $0x28] sm:$0xff]
  %v4418 = vld [vmem:[%s4411 + $0x30] sm:$0xff]
  %v4419 = vld [vmem:[%s4411 + $0x38] sm:$0xff]
  %v4420 = vld [vmem:[%s4411 + $0x40] sm:$0xff]
  %v4421 = vld [vmem:[%s4411 + $0x48] sm:$0xff]
  %v4422 = vld [vmem:[%s4411 + $0x50] sm:$0xff]
  %v4423 = vld [vmem:[%s4411 + $0x58] sm:$0xff]
  %vm4424 = vcmask 785408
  %v4426 = vsel %vm4424, %v4282, 0
  %v4429 = vsel %vm4424, %v4283, 0
  %v4432 = vsel %vm4424, %v4284, 0
  %v4435 = vsel %vm4424, %v4285, 0
  %v4438 = vsel %vm4424, %v4286, 0
  %v4441 = vsel %vm4424, %v4287, 0
  %v4444 = vsel %vm4424, %v4288, 0
  %v4447 = vsel %vm4424, %v4289, 0
  %v4450 = vsel %vm4424, %v4290, 0
  %v4453 = vsel %vm4424, %v4291, 0
  %v4456 = vsel %vm4424, %v4292, 0
  %v4459 = vsel %vm4424, %v4293, 0
  %v4462 = vsel %vm4424, %v4294, 0
  %v4465 = vsel %vm4424, %v4295, 0
  %v4468 = vsel %vm4424, %v4296, 0
  %v4471 = vsel %vm4424, %v4297, 0
  %v4474 = vsel %vm4424, %v4298, 0
  %v4477 = vsel %vm4424, %v4299, 0
  %v4480 = vsel %vm4424, %v4300, 0
  %v4483 = vsel %vm4424, %v4301, 0
  %v4486 = vsel %vm4424, %v4302, 0
  %v4489 = vsel %vm4424, %v4303, 0
  %v4492 = vsel %vm4424, %v4304, 0
  %v4495 = vsel %vm4424, %v4305, 0
  %v4498 = vsel %vm4424, %v4306, 0
  %v4501 = vsel %vm4424, %v4307, 0
  %v4504 = vsel %vm4424, %v4308, 0
  %v4507 = vsel %vm4424, %v4309, 0
  %v4510 = vsel %vm4424, %v4310, 0
  %v4513 = vsel %vm4424, %v4311, 0
  %v4516 = vsel %vm4424, %v4312, 0
  %v4519 = vsel %vm4424, %v4313, 0
  %v4522 = vsel %vm4424, %v4314, 0
  %v4525 = vsel %vm4424, %v4315, 0
  %v4528 = vsel %vm4424, %v4316, 0
  %v4531 = vsel %vm4424, %v4317, 0
  %v4534 = vsel %vm4424, %v4318, 0
  %v4537 = vsel %vm4424, %v4319, 0
  %v4540 = vsel %vm4424, %v4320, 0
  %v4543 = vsel %vm4424, %v4321, 0
  %v4546 = vsel %vm4424, %v4322, 0
  %v4549 = vsel %vm4424, %v4323, 0
  %v4552 = vsel %vm4424, %v4324, 0
  %v4555 = vsel %vm4424, %v4325, 0
  %v4558 = vsel %vm4424, %v4326, 0
  %v4561 = vsel %vm4424, %v4327, 0
  %v4564 = vsel %vm4424, %v4328, 0
  %v4567 = vsel %vm4424, %v4329, 0
  %v4570 = vsel %vm4424, %v4330, 0
  %v4573 = vsel %vm4424, %v4331, 0
  %v4576 = vsel %vm4424, %v4332, 0
  %v4579 = vsel %vm4424, %v4333, 0
  %v4582 = vsel %vm4424, %v4334, 0
  %v4585 = vsel %vm4424, %v4335, 0
  %v4588 = vsel %vm4424, %v4342, 0
  %v4591 = vsel %vm4424, %v4343, 0
  %v4594 = vsel %vm4424, %v4344, 0
  %v4597 = vsel %vm4424, %v4345, 0
  %v4600 = vsel %vm4424, %v4346, 0
  %v4603 = vsel %vm4424, %v4347, 0
  %v4606 = vsel %vm4424, %v4348, 0
  %v4609 = vsel %vm4424, %v4349, 0
  %v4612 = vsel %vm4424, %v4350, 0
  %v4615 = vsel %vm4424, %v4351, 0
  %v4618 = vsel %vm4424, %v4352, 0
  %v4621 = vsel %vm4424, %v4353, 0
  %v4624 = vsel %vm4424, %v4354, 0
  %v4627 = vsel %vm4424, %v4355, 0
  %v4630 = vsel %vm4424, %v4356, 0
  %v4633 = vsel %vm4424, %v4357, 0
  %v4636 = vsel %vm4424, %v4358, 0
  %v4639 = vsel %vm4424, %v4359, 0
  %v4642 = vsel %vm4424, %v4360, 0
  %v4645 = vsel %vm4424, %v4361, 0
  %v4648 = vsel %vm4424, %v4362, 0
  %v4651 = vsel %vm4424, %v4363, 0
  %v4654 = vsel %vm4424, %v4364, 0
  %v4657 = vsel %vm4424, %v4365, 0
  %v4660 = vsel %vm4424, %v4366, 0
  %v4663 = vsel %vm4424, %v4367, 0
  %v4666 = vsel %vm4424, %v4368, 0
  %v4669 = vsel %vm4424, %v4369, 0
  %v4672 = vsel %vm4424, %v4370, 0
  %v4675 = vsel %vm4424, %v4371, 0
  %v4678 = vsel %vm4424, %v4372, 0
  %v4681 = vsel %vm4424, %v4373, 0
  %v4684 = vsel %vm4424, %v4374, 0
  %v4687 = vsel %vm4424, %v4375, 0
  %v4690 = vsel %vm4424, %v4376, 0
  %v4693 = vsel %vm4424, %v4377, 0
  %v4696 = vsel %vm4424, %v4378, 0
  %v4699 = vsel %vm4424, %v4379, 0
  %v4702 = vsel %vm4424, %v4380, 0
  %v4705 = vsel %vm4424, %v4381, 0
  %v4708 = vsel %vm4424, %v4382, 0
  %v4711 = vsel %vm4424, %v4383, 0
  %v4714 = vsel %vm4424, %v4384, 0
  %v4717 = vsel %vm4424, %v4385, 0
  %v4720 = vsel %vm4424, %v4386, 0
  %v4723 = vsel %vm4424, %v4387, 0
  %v4726 = vsel %vm4424, %v4388, 0
  %v4729 = vsel %vm4424, %v4389, 0
  %v4732 = vsel %vm4424, %v4390, 0
  %v4735 = vsel %vm4424, %v4391, 0
  %v4738 = vsel %vm4424, %v4392, 0
  %v4741 = vsel %vm4424, %v4393, 0
  %v4744 = vsel %vm4424, %v4394, 0
  %v4747 = vsel %vm4424, %v4395, 0
  %4749 = vmatpush.msra.mxu0 0.0
  %4750 = vmatpush.msra.mxu0 0.0
  %4751 = vmatpush.msra.mxu0 0.0
  %4752 = vmatpush.msra.mxu0 0.0
  %4753 = vmatpush.msra.mxu0 %v4423
  %4754 = vmatpush.msra.mxu0 %v4422
  %4755 = vmatpush.msra.mxu0 %v4421
  %4756 = vmatpush.msra.mxu0 %v4420
  %4757 = vmatpush.msra.mxu0 %v4419
  %4758 = vmatpush.msra.mxu0 %v4418
  %4759 = vmatpush.msra.mxu0 %v4417
  %4760 = vmatpush.msra.mxu0 %v4416
  %4761 = vmatpush.msra.mxu0 %v4415
  %4762 = vmatpush.msra.mxu0 %v4414
  %4763 = vmatpush.msra.mxu0 %v4413
  %4764 = vmatpush.msra.mxu0 %v4412
  %4765 = vmatmul.f32.gmra.mxu0 %v4426
  %v4766 = vpop.f32.mrf.mxu0
  %v4767 = vadd.f32 0.0, %v4766
  %4768 = vmatmul.f32.gmra.mxu0 %v4429
  %v4769 = vpop.f32.mrf.mxu0
  %v4770 = vadd.f32 0.0, %v4769
  %4771 = vmatmul.f32.gmra.mxu0 %v4432
  %v4772 = vpop.f32.mrf.mxu0
  %v4773 = vadd.f32 0.0, %v4772
  %4774 = vmatmul.f32.gmra.mxu0 %v4435
  %v4775 = vpop.f32.mrf.mxu0
  %v4776 = vadd.f32 0.0, %v4775
  %4777 = vmatmul.f32.gmra.mxu0 %v4438
  %v4778 = vpop.f32.mrf.mxu0
  %v4779 = vadd.f32 0.0, %v4778
  %4780 = vmatmul.f32.gmra.mxu0 %v4441
  %v4781 = vpop.f32.mrf.mxu0
  %v4782 = vadd.f32 0.0, %v4781
  %4783 = vmatmul.f32.gmra.mxu0 %v4444
  %v4784 = vpop.f32.mrf.mxu0
  %v4785 = vadd.f32 0.0, %v4784
  %4786 = vmatmul.f32.gmra.mxu0 %v4447
  %v4787 = vpop.f32.mrf.mxu0
  %v4788 = vadd.f32 0.0, %v4787
  %4789 = vmatmul.f32.gmra.mxu0 %v4450
  %v4790 = vpop.f32.mrf.mxu0
  %v4791 = vadd.f32 0.0, %v4790
  %4792 = vmatmul.f32.gmra.mxu0 %v4453
  %v4793 = vpop.f32.mrf.mxu0
  %v4794 = vadd.f32 0.0, %v4793
  %4795 = vmatmul.f32.gmra.mxu0 %v4456
  %v4796 = vpop.f32.mrf.mxu0
  %v4797 = vadd.f32 0.0, %v4796
  %4798 = vmatmul.f32.gmra.mxu0 %v4459
  %v4799 = vpop.f32.mrf.mxu0
  %v4800 = vadd.f32 0.0, %v4799
  %4801 = vmatmul.f32.gmra.mxu0 %v4462
  %v4802 = vpop.f32.mrf.mxu0
  %v4803 = vadd.f32 0.0, %v4802
  %4804 = vmatmul.f32.gmra.mxu0 %v4465
  %v4805 = vpop.f32.mrf.mxu0
  %v4806 = vadd.f32 0.0, %v4805
  %4807 = vmatmul.f32.gmra.mxu0 %v4468
  %v4808 = vpop.f32.mrf.mxu0
  %v4809 = vadd.f32 0.0, %v4808
  %4810 = vmatmul.f32.gmra.mxu0 %v4471
  %v4811 = vpop.f32.mrf.mxu0
  %v4812 = vadd.f32 0.0, %v4811
  %4813 = vmatmul.f32.gmra.mxu0 %v4474
  %v4814 = vpop.f32.mrf.mxu0
  %v4815 = vadd.f32 0.0, %v4814
  %4816 = vmatmul.f32.gmra.mxu0 %v4477
  %v4817 = vpop.f32.mrf.mxu0
  %v4818 = vadd.f32 0.0, %v4817
  %4819 = vmatmul.f32.gmra.mxu0 %v4480
  %v4820 = vpop.f32.mrf.mxu0
  %v4821 = vadd.f32 0.0, %v4820
  %4822 = vmatmul.f32.gmra.mxu0 %v4483
  %v4823 = vpop.f32.mrf.mxu0
  %v4824 = vadd.f32 0.0, %v4823
  %4825 = vmatmul.f32.gmra.mxu0 %v4486
  %v4826 = vpop.f32.mrf.mxu0
  %v4827 = vadd.f32 0.0, %v4826
  %4828 = vmatmul.f32.gmra.mxu0 %v4489
  %v4829 = vpop.f32.mrf.mxu0
  %v4830 = vadd.f32 0.0, %v4829
  %4831 = vmatmul.f32.gmra.mxu0 %v4492
  %v4832 = vpop.f32.mrf.mxu0
  %v4833 = vadd.f32 0.0, %v4832
  %4834 = vmatmul.f32.gmra.mxu0 %v4495
  %v4835 = vpop.f32.mrf.mxu0
  %v4836 = vadd.f32 0.0, %v4835
  %4837 = vmatmul.f32.gmra.mxu0 %v4498
  %v4838 = vpop.f32.mrf.mxu0
  %v4839 = vadd.f32 0.0, %v4838
  %4840 = vmatmul.f32.gmra.mxu0 %v4501
  %v4841 = vpop.f32.mrf.mxu0
  %v4842 = vadd.f32 0.0, %v4841
  %4843 = vmatmul.f32.gmra.mxu0 %v4504
  %v4844 = vpop.f32.mrf.mxu0
  %v4845 = vadd.f32 0.0, %v4844
  %4846 = vmatmul.f32.gmra.mxu0 %v4507
  %v4847 = vpop.f32.mrf.mxu0
  %v4848 = vadd.f32 0.0, %v4847
  %4849 = vmatmul.f32.gmra.mxu0 %v4510
  %v4850 = vpop.f32.mrf.mxu0
  %v4851 = vadd.f32 0.0, %v4850
  %4852 = vmatmul.f32.gmra.mxu0 %v4513
  %v4853 = vpop.f32.mrf.mxu0
  %v4854 = vadd.f32 0.0, %v4853
  %4855 = vmatmul.f32.gmra.mxu0 %v4516
  %v4856 = vpop.f32.mrf.mxu0
  %v4857 = vadd.f32 0.0, %v4856
  %4858 = vmatmul.f32.gmra.mxu0 %v4519
  %v4859 = vpop.f32.mrf.mxu0
  %v4860 = vadd.f32 0.0, %v4859
  %4861 = vmatmul.f32.gmra.mxu0 %v4522
  %v4862 = vpop.f32.mrf.mxu0
  %v4863 = vadd.f32 0.0, %v4862
  %4864 = vmatmul.f32.gmra.mxu0 %v4525
  %v4865 = vpop.f32.mrf.mxu0
  %v4866 = vadd.f32 0.0, %v4865
  %4867 = vmatmul.f32.gmra.mxu0 %v4528
  %v4868 = vpop.f32.mrf.mxu0
  %v4869 = vadd.f32 0.0, %v4868
  %4870 = vmatmul.f32.gmra.mxu0 %v4531
  %v4871 = vpop.f32.mrf.mxu0
  %v4872 = vadd.f32 0.0, %v4871
  %4873 = vmatmul.f32.gmra.mxu0 %v4534
  %v4874 = vpop.f32.mrf.mxu0
  %v4875 = vadd.f32 0.0, %v4874
  %4876 = vmatmul.f32.gmra.mxu0 %v4537
  %v4877 = vpop.f32.mrf.mxu0
  %v4878 = vadd.f32 0.0, %v4877
  %4879 = vmatmul.f32.gmra.mxu0 %v4540
  %v4880 = vpop.f32.mrf.mxu0
  %v4881 = vadd.f32 0.0, %v4880
  %4882 = vmatmul.f32.gmra.mxu0 %v4543
  %v4883 = vpop.f32.mrf.mxu0
  %v4884 = vadd.f32 0.0, %v4883
  %4885 = vmatmul.f32.gmra.mxu0 %v4546
  %v4886 = vpop.f32.mrf.mxu0
  %v4887 = vadd.f32 0.0, %v4886
  %4888 = vmatmul.f32.gmra.mxu0 %v4549
  %v4889 = vpop.f32.mrf.mxu0
  %v4890 = vadd.f32 0.0, %v4889
  %4891 = vmatmul.f32.gmra.mxu0 %v4552
  %v4892 = vpop.f32.mrf.mxu0
  %v4893 = vadd.f32 0.0, %v4892
  %4894 = vmatmul.f32.gmra.mxu0 %v4555
  %v4895 = vpop.f32.mrf.mxu0
  %v4896 = vadd.f32 0.0, %v4895
  %4897 = vmatmul.f32.gmra.mxu0 %v4558
  %v4898 = vpop.f32.mrf.mxu0
  %v4899 = vadd.f32 0.0, %v4898
  %4900 = vmatmul.f32.gmra.mxu0 %v4561
  %v4901 = vpop.f32.mrf.mxu0
  %v4902 = vadd.f32 0.0, %v4901
  %4903 = vmatmul.f32.gmra.mxu0 %v4564
  %v4904 = vpop.f32.mrf.mxu0
  %v4905 = vadd.f32 0.0, %v4904
  %4906 = vmatmul.f32.gmra.mxu0 %v4567
  %v4907 = vpop.f32.mrf.mxu0
  %v4908 = vadd.f32 0.0, %v4907
  %4909 = vmatmul.f32.gmra.mxu0 %v4570
  %v4910 = vpop.f32.mrf.mxu0
  %v4911 = vadd.f32 0.0, %v4910
  %4912 = vmatmul.f32.gmra.mxu0 %v4573
  %v4913 = vpop.f32.mrf.mxu0
  %v4914 = vadd.f32 0.0, %v4913
  %4915 = vmatmul.f32.gmra.mxu0 %v4576
  %v4916 = vpop.f32.mrf.mxu0
  %v4917 = vadd.f32 0.0, %v4916
  %4918 = vmatmul.f32.gmra.mxu0 %v4579
  %v4919 = vpop.f32.mrf.mxu0
  %v4920 = vadd.f32 0.0, %v4919
  %4921 = vmatmul.f32.gmra.mxu0 %v4582
  %v4922 = vpop.f32.mrf.mxu0
  %v4923 = vadd.f32 0.0, %v4922
  %4924 = vmatmul.f32.gmra.mxu0 %v4585
  %v4925 = vpop.f32.mrf.mxu0
  %v4926 = vadd.f32 0.0, %v4925
  %4927 = vmatmul.f32.gmra.mxu0 %v4588
  %v4928 = vpop.f32.mrf.mxu0
  %v4929 = vadd.f32 0.0, %v4928
  %4930 = vmatmul.f32.gmra.mxu0 %v4591
  %v4931 = vpop.f32.mrf.mxu0
  %v4932 = vadd.f32 0.0, %v4931
  %4933 = vmatmul.f32.gmra.mxu0 %v4594
  %v4934 = vpop.f32.mrf.mxu0
  %v4935 = vadd.f32 0.0, %v4934
  %4936 = vmatmul.f32.gmra.mxu0 %v4597
  %v4937 = vpop.f32.mrf.mxu0
  %v4938 = vadd.f32 0.0, %v4937
  %4939 = vmatmul.f32.gmra.mxu0 %v4600
  %v4940 = vpop.f32.mrf.mxu0
  %v4941 = vadd.f32 0.0, %v4940
  %4942 = vmatmul.f32.gmra.mxu0 %v4603
  %v4943 = vpop.f32.mrf.mxu0
  %v4944 = vadd.f32 0.0, %v4943
  %4945 = vmatmul.f32.gmra.mxu0 %v4606
  %v4946 = vpop.f32.mrf.mxu0
  %v4947 = vadd.f32 0.0, %v4946
  %4948 = vmatmul.f32.gmra.mxu0 %v4609
  %v4949 = vpop.f32.mrf.mxu0
  %v4950 = vadd.f32 0.0, %v4949
  %4951 = vmatmul.f32.gmra.mxu0 %v4612
  %v4952 = vpop.f32.mrf.mxu0
  %v4953 = vadd.f32 0.0, %v4952
  %4954 = vmatmul.f32.gmra.mxu0 %v4615
  %v4955 = vpop.f32.mrf.mxu0
  %v4956 = vadd.f32 0.0, %v4955
  %4957 = vmatmul.f32.gmra.mxu0 %v4618
  %v4958 = vpop.f32.mrf.mxu0
  %v4959 = vadd.f32 0.0, %v4958
  %4960 = vmatmul.f32.gmra.mxu0 %v4621
  %v4961 = vpop.f32.mrf.mxu0
  %v4962 = vadd.f32 0.0, %v4961
  %4963 = vmatmul.f32.gmra.mxu0 %v4624
  %v4964 = vpop.f32.mrf.mxu0
  %v4965 = vadd.f32 0.0, %v4964
  %4966 = vmatmul.f32.gmra.mxu0 %v4627
  %v4967 = vpop.f32.mrf.mxu0
  %v4968 = vadd.f32 0.0, %v4967
  %4969 = vmatmul.f32.gmra.mxu0 %v4630
  %v4970 = vpop.f32.mrf.mxu0
  %v4971 = vadd.f32 0.0, %v4970
  %4972 = vmatmul.f32.gmra.mxu0 %v4633
  %v4973 = vpop.f32.mrf.mxu0
  %v4974 = vadd.f32 0.0, %v4973
  %4975 = vmatmul.f32.gmra.mxu0 %v4636
  %v4976 = vpop.f32.mrf.mxu0
  %v4977 = vadd.f32 0.0, %v4976
  %4978 = vmatmul.f32.gmra.mxu0 %v4639
  %v4979 = vpop.f32.mrf.mxu0
  %v4980 = vadd.f32 0.0, %v4979
  %4981 = vmatmul.f32.gmra.mxu0 %v4642
  %v4982 = vpop.f32.mrf.mxu0
  %v4983 = vadd.f32 0.0, %v4982
  %4984 = vmatmul.f32.gmra.mxu0 %v4645
  %v4985 = vpop.f32.mrf.mxu0
  %v4986 = vadd.f32 0.0, %v4985
  %4987 = vmatmul.f32.gmra.mxu0 %v4648
  %v4988 = vpop.f32.mrf.mxu0
  %v4989 = vadd.f32 0.0, %v4988
  %4990 = vmatmul.f32.gmra.mxu0 %v4651
  %v4991 = vpop.f32.mrf.mxu0
  %v4992 = vadd.f32 0.0, %v4991
  %4993 = vmatmul.f32.gmra.mxu0 %v4654
  %v4994 = vpop.f32.mrf.mxu0
  %v4995 = vadd.f32 0.0, %v4994
  %4996 = vmatmul.f32.gmra.mxu0 %v4657
  %v4997 = vpop.f32.mrf.mxu0
  %v4998 = vadd.f32 0.0, %v4997
  %4999 = vmatmul.f32.gmra.mxu0 %v4660
  %v5000 = vpop.f32.mrf.mxu0
  %v5001 = vadd.f32 0.0, %v5000
  %5002 = vmatmul.f32.gmra.mxu0 %v4663
  %v5003 = vpop.f32.mrf.mxu0
  %v5004 = vadd.f32 0.0, %v5003
  %5005 = vmatmul.f32.gmra.mxu0 %v4666
  %v5006 = vpop.f32.mrf.mxu0
  %v5007 = vadd.f32 0.0, %v5006
  %5008 = vmatmul.f32.gmra.mxu0 %v4669
  %v5009 = vpop.f32.mrf.mxu0
  %v5010 = vadd.f32 0.0, %v5009
  %5011 = vmatmul.f32.gmra.mxu0 %v4672
  %v5012 = vpop.f32.mrf.mxu0
  %v5013 = vadd.f32 0.0, %v5012
  %5014 = vmatmul.f32.gmra.mxu0 %v4675
  %v5015 = vpop.f32.mrf.mxu0
  %v5016 = vadd.f32 0.0, %v5015
  %5017 = vmatmul.f32.gmra.mxu0 %v4678
  %v5018 = vpop.f32.mrf.mxu0
  %v5019 = vadd.f32 0.0, %v5018
  %5020 = vmatmul.f32.gmra.mxu0 %v4681
  %v5021 = vpop.f32.mrf.mxu0
  %v5022 = vadd.f32 0.0, %v5021
  %5023 = vmatmul.f32.gmra.mxu0 %v4684
  %v5024 = vpop.f32.mrf.mxu0
  %v5025 = vadd.f32 0.0, %v5024
  %5026 = vmatmul.f32.gmra.mxu0 %v4687
  %v5027 = vpop.f32.mrf.mxu0
  %v5028 = vadd.f32 0.0, %v5027
  %5029 = vmatmul.f32.gmra.mxu0 %v4690
  %v5030 = vpop.f32.mrf.mxu0
  %v5031 = vadd.f32 0.0, %v5030
  %5032 = vmatmul.f32.gmra.mxu0 %v4693
  %v5033 = vpop.f32.mrf.mxu0
  %v5034 = vadd.f32 0.0, %v5033
  %5035 = vmatmul.f32.gmra.mxu0 %v4696
  %v5036 = vpop.f32.mrf.mxu0
  %v5037 = vadd.f32 0.0, %v5036
  %5038 = vmatmul.f32.gmra.mxu0 %v4699
  %v5039 = vpop.f32.mrf.mxu0
  %v5040 = vadd.f32 0.0, %v5039
  %5041 = vmatmul.f32.gmra.mxu0 %v4702
  %v5042 = vpop.f32.mrf.mxu0
  %v5043 = vadd.f32 0.0, %v5042
  %5044 = vmatmul.f32.gmra.mxu0 %v4705
  %v5045 = vpop.f32.mrf.mxu0
  %v5046 = vadd.f32 0.0, %v5045
  %5047 = vmatmul.f32.gmra.mxu0 %v4708
  %v5048 = vpop.f32.mrf.mxu0
  %v5049 = vadd.f32 0.0, %v5048
  %5050 = vmatmul.f32.gmra.mxu0 %v4711
  %v5051 = vpop.f32.mrf.mxu0
  %v5052 = vadd.f32 0.0, %v5051
  %5053 = vmatmul.f32.gmra.mxu0 %v4714
  %v5054 = vpop.f32.mrf.mxu0
  %v5055 = vadd.f32 0.0, %v5054
  %5056 = vmatmul.f32.gmra.mxu0 %v4717
  %v5057 = vpop.f32.mrf.mxu0
  %v5058 = vadd.f32 0.0, %v5057
  %5059 = vmatmul.f32.gmra.mxu0 %v4720
  %v5060 = vpop.f32.mrf.mxu0
  %v5061 = vadd.f32 0.0, %v5060
  %5062 = vmatmul.f32.gmra.mxu0 %v4723
  %v5063 = vpop.f32.mrf.mxu0
  %v5064 = vadd.f32 0.0, %v5063
  %5065 = vmatmul.f32.gmra.mxu0 %v4726
  %v5066 = vpop.f32.mrf.mxu0
  %v5067 = vadd.f32 0.0, %v5066
  %5068 = vmatmul.f32.gmra.mxu0 %v4729
  %v5069 = vpop.f32.mrf.mxu0
  %v5070 = vadd.f32 0.0, %v5069
  %5071 = vmatmul.f32.gmra.mxu0 %v4732
  %v5072 = vpop.f32.mrf.mxu0
  %v5073 = vadd.f32 0.0, %v5072
  %5074 = vmatmul.f32.gmra.mxu0 %v4735
  %v5075 = vpop.f32.mrf.mxu0
  %v5076 = vadd.f32 0.0, %v5075
  %5077 = vmatmul.f32.gmra.mxu0 %v4738
  %v5078 = vpop.f32.mrf.mxu0
  %v5079 = vadd.f32 0.0, %v5078
  %5080 = vmatmul.f32.gmra.mxu0 %v4741
  %v5081 = vpop.f32.mrf.mxu0
  %v5082 = vadd.f32 0.0, %v5081
  %5083 = vmatmul.f32.gmra.mxu0 %v4744
  %v5084 = vpop.f32.mrf.mxu0
  %v5085 = vadd.f32 0.0, %v5084
  %5086 = vmatmul.f32.gmra.mxu0 %v4747
  %v5087 = vpop.f32.mrf.mxu0
  %v5088 = vadd.f32 0.0, %v5087
  %5089 = vdwg.mxu0
  %v5091 = vsel %vm4424, %v4279, 0
  %v5094 = vsel %vm4424, %v4280, 0
  %v5097 = vsel %vm4424, %v4281, 0
  %v5100 = vsel %vm4424, %v4339, 0
  %v5103 = vsel %vm4424, %v4340, 0
  %v5106 = vsel %vm4424, %v4341, 0
  %5108 = vmatpush.msra.mxu0 0.0
  %5109 = vmatpush.msra.mxu0 0.0
  %5110 = vmatpush.msra.mxu0 0.0
  %5111 = vmatpush.msra.mxu0 0.0
  %5112 = vmatpush.msra.mxu0 %v4410
  %5113 = vmatpush.msra.mxu0 %v4409
  %5114 = vmatpush.msra.mxu0 %v4408
  %5115 = vmatpush.msra.mxu0 %v4407
  %5116 = vmatpush.msra.mxu0 %v4406
  %5117 = vmatpush.msra.mxu0 %v4405
  %5118 = vmatpush.msra.mxu0 %v4404
  %5119 = vmatpush.msra.mxu0 %v4403
  %5120 = vmatpush.msra.mxu0 %v4402
  %5121 = vmatpush.msra.mxu0 %v4401
  %5122 = vmatpush.msra.mxu0 %v4400
  %5123 = vmatpush.msra.mxu0 %v4399
  %5124 = vmatmul.f32.gmra.mxu0 %v5091
  %v5125 = vpop.f32.mrf.mxu0
  %v5126 = vadd.f32 %v4767, %v5125
  %5127 = vmatmul.f32.gmra.mxu0 %v5094
  %v5128 = vpop.f32.mrf.mxu0
  %v5129 = vadd.f32 %v4770, %v5128
  %5130 = vmatmul.f32.gmra.mxu0 %v5097
  %v5131 = vpop.f32.mrf.mxu0
  %v5132 = vadd.f32 %v4773, %v5131
  %5133 = vmatmul.f32.gmra.mxu0 %v4426
  %v5134 = vpop.f32.mrf.mxu0
  %v5135 = vadd.f32 %v4776, %v5134
  %5136 = vmatmul.f32.gmra.mxu0 %v4429
  %v5137 = vpop.f32.mrf.mxu0
  %v5138 = vadd.f32 %v4779, %v5137
  %5139 = vmatmul.f32.gmra.mxu0 %v4432
  %v5140 = vpop.f32.mrf.mxu0
  %v5141 = vadd.f32 %v4782, %v5140
  %5142 = vmatmul.f32.gmra.mxu0 %v4435
  %v5143 = vpop.f32.mrf.mxu0
  %v5144 = vadd.f32 %v4785, %v5143
  %5145 = vmatmul.f32.gmra.mxu0 %v4438
  %v5146 = vpop.f32.mrf.mxu0
  %v5147 = vadd.f32 %v4788, %v5146
  %5148 = vmatmul.f32.gmra.mxu0 %v4441
  %v5149 = vpop.f32.mrf.mxu0
  %v5150 = vadd.f32 %v4791, %v5149
  %5151 = vmatmul.f32.gmra.mxu0 %v4444
  %v5152 = vpop.f32.mrf.mxu0
  %v5153 = vadd.f32 %v4794, %v5152
  %5154 = vmatmul.f32.gmra.mxu0 %v4447
  %v5155 = vpop.f32.mrf.mxu0
  %v5156 = vadd.f32 %v4797, %v5155
  %5157 = vmatmul.f32.gmra.mxu0 %v4450
  %v5158 = vpop.f32.mrf.mxu0
  %v5159 = vadd.f32 %v4800, %v5158
  %5160 = vmatmul.f32.gmra.mxu0 %v4453
  %v5161 = vpop.f32.mrf.mxu0
  %v5162 = vadd.f32 %v4803, %v5161
  %5163 = vmatmul.f32.gmra.mxu0 %v4456
  %v5164 = vpop.f32.mrf.mxu0
  %v5165 = vadd.f32 %v4806, %v5164
  %5166 = vmatmul.f32.gmra.mxu0 %v4459
  %v5167 = vpop.f32.mrf.mxu0
  %v5168 = vadd.f32 %v4809, %v5167
  %5169 = vmatmul.f32.gmra.mxu0 %v4462
  %v5170 = vpop.f32.mrf.mxu0
  %v5171 = vadd.f32 %v4812, %v5170
  %5172 = vmatmul.f32.gmra.mxu0 %v4465
  %v5173 = vpop.f32.mrf.mxu0
  %v5174 = vadd.f32 %v4815, %v5173
  %5175 = vmatmul.f32.gmra.mxu0 %v4468
  %v5176 = vpop.f32.mrf.mxu0
  %v5177 = vadd.f32 %v4818, %v5176
  %5178 = vmatmul.f32.gmra.mxu0 %v4471
  %v5179 = vpop.f32.mrf.mxu0
  %v5180 = vadd.f32 %v4821, %v5179
  %5181 = vmatmul.f32.gmra.mxu0 %v4474
  %v5182 = vpop.f32.mrf.mxu0
  %v5183 = vadd.f32 %v4824, %v5182
  %5184 = vmatmul.f32.gmra.mxu0 %v4477
  %v5185 = vpop.f32.mrf.mxu0
  %v5186 = vadd.f32 %v4827, %v5185
  %5187 = vmatmul.f32.gmra.mxu0 %v4480
  %v5188 = vpop.f32.mrf.mxu0
  %v5189 = vadd.f32 %v4830, %v5188
  %5190 = vmatmul.f32.gmra.mxu0 %v4483
  %v5191 = vpop.f32.mrf.mxu0
  %v5192 = vadd.f32 %v4833, %v5191
  %5193 = vmatmul.f32.gmra.mxu0 %v4486
  %v5194 = vpop.f32.mrf.mxu0
  %v5195 = vadd.f32 %v4836, %v5194
  %5196 = vmatmul.f32.gmra.mxu0 %v4489
  %v5197 = vpop.f32.mrf.mxu0
  %v5198 = vadd.f32 %v4839, %v5197
  %5199 = vmatmul.f32.gmra.mxu0 %v4492
  %v5200 = vpop.f32.mrf.mxu0
  %v5201 = vadd.f32 %v4842, %v5200
  %5202 = vmatmul.f32.gmra.mxu0 %v4495
  %v5203 = vpop.f32.mrf.mxu0
  %v5204 = vadd.f32 %v4845, %v5203
  %5205 = vmatmul.f32.gmra.mxu0 %v4498
  %v5206 = vpop.f32.mrf.mxu0
  %v5207 = vadd.f32 %v4848, %v5206
  %5208 = vmatmul.f32.gmra.mxu0 %v4501
  %v5209 = vpop.f32.mrf.mxu0
  %v5210 = vadd.f32 %v4851, %v5209
  %5211 = vmatmul.f32.gmra.mxu0 %v4504
  %v5212 = vpop.f32.mrf.mxu0
  %v5213 = vadd.f32 %v4854, %v5212
  %5214 = vmatmul.f32.gmra.mxu0 %v4507
  %v5215 = vpop.f32.mrf.mxu0
  %v5216 = vadd.f32 %v4857, %v5215
  %5217 = vmatmul.f32.gmra.mxu0 %v4510
  %v5218 = vpop.f32.mrf.mxu0
  %v5219 = vadd.f32 %v4860, %v5218
  %5220 = vmatmul.f32.gmra.mxu0 %v4513
  %v5221 = vpop.f32.mrf.mxu0
  %v5222 = vadd.f32 %v4863, %v5221
  %5223 = vmatmul.f32.gmra.mxu0 %v4516
  %v5224 = vpop.f32.mrf.mxu0
  %v5225 = vadd.f32 %v4866, %v5224
  %5226 = vmatmul.f32.gmra.mxu0 %v4519
  %v5227 = vpop.f32.mrf.mxu0
  %v5228 = vadd.f32 %v4869, %v5227
  %5229 = vmatmul.f32.gmra.mxu0 %v4522
  %v5230 = vpop.f32.mrf.mxu0
  %v5231 = vadd.f32 %v4872, %v5230
  %5232 = vmatmul.f32.gmra.mxu0 %v4525
  %v5233 = vpop.f32.mrf.mxu0
  %v5234 = vadd.f32 %v4875, %v5233
  %5235 = vmatmul.f32.gmra.mxu0 %v4528
  %v5236 = vpop.f32.mrf.mxu0
  %v5237 = vadd.f32 %v4878, %v5236
  %5238 = vmatmul.f32.gmra.mxu0 %v4531
  %v5239 = vpop.f32.mrf.mxu0
  %v5240 = vadd.f32 %v4881, %v5239
  %5241 = vmatmul.f32.gmra.mxu0 %v4534
  %v5242 = vpop.f32.mrf.mxu0
  %v5243 = vadd.f32 %v4884, %v5242
  %5244 = vmatmul.f32.gmra.mxu0 %v4537
  %v5245 = vpop.f32.mrf.mxu0
  %v5246 = vadd.f32 %v4887, %v5245
  %5247 = vmatmul.f32.gmra.mxu0 %v4540
  %v5248 = vpop.f32.mrf.mxu0
  %v5249 = vadd.f32 %v4890, %v5248
  %5250 = vmatmul.f32.gmra.mxu0 %v4543
  %v5251 = vpop.f32.mrf.mxu0
  %v5252 = vadd.f32 %v4893, %v5251
  %5253 = vmatmul.f32.gmra.mxu0 %v4546
  %v5254 = vpop.f32.mrf.mxu0
  %v5255 = vadd.f32 %v4896, %v5254
  %5256 = vmatmul.f32.gmra.mxu0 %v4549
  %v5257 = vpop.f32.mrf.mxu0
  %v5258 = vadd.f32 %v4899, %v5257
  %5259 = vmatmul.f32.gmra.mxu0 %v4552
  %v5260 = vpop.f32.mrf.mxu0
  %v5261 = vadd.f32 %v4902, %v5260
  %5262 = vmatmul.f32.gmra.mxu0 %v4555
  %v5263 = vpop.f32.mrf.mxu0
  %v5264 = vadd.f32 %v4905, %v5263
  %5265 = vmatmul.f32.gmra.mxu0 %v4558
  %v5266 = vpop.f32.mrf.mxu0
  %v5267 = vadd.f32 %v4908, %v5266
  %5268 = vmatmul.f32.gmra.mxu0 %v4561
  %v5269 = vpop.f32.mrf.mxu0
  %v5270 = vadd.f32 %v4911, %v5269
  %5271 = vmatmul.f32.gmra.mxu0 %v4564
  %v5272 = vpop.f32.mrf.mxu0
  %v5273 = vadd.f32 %v4914, %v5272
  %5274 = vmatmul.f32.gmra.mxu0 %v4567
  %v5275 = vpop.f32.mrf.mxu0
  %v5276 = vadd.f32 %v4917, %v5275
  %5277 = vmatmul.f32.gmra.mxu0 %v4570
  %v5278 = vpop.f32.mrf.mxu0
  %v5279 = vadd.f32 %v4920, %v5278
  %5280 = vmatmul.f32.gmra.mxu0 %v4573
  %v5281 = vpop.f32.mrf.mxu0
  %v5282 = vadd.f32 %v4923, %v5281
  %5283 = vmatmul.f32.gmra.mxu0 %v4576
  %v5284 = vpop.f32.mrf.mxu0
  %v5285 = vadd.f32 %v4926, %v5284
  %5286 = vmatmul.f32.gmra.mxu0 %v5100
  %v5287 = vpop.f32.mrf.mxu0
  %v5288 = vadd.f32 %v4929, %v5287
  %5289 = vmatmul.f32.gmra.mxu0 %v5103
  %v5290 = vpop.f32.mrf.mxu0
  %v5291 = vadd.f32 %v4932, %v5290
  %5292 = vmatmul.f32.gmra.mxu0 %v5106
  %v5293 = vpop.f32.mrf.mxu0
  %v5294 = vadd.f32 %v4935, %v5293
  %5295 = vmatmul.f32.gmra.mxu0 %v4588
  %v5296 = vpop.f32.mrf.mxu0
  %v5297 = vadd.f32 %v4938, %v5296
  %5298 = vmatmul.f32.gmra.mxu0 %v4591
  %v5299 = vpop.f32.mrf.mxu0
  %v5300 = vadd.f32 %v4941, %v5299
  %5301 = vmatmul.f32.gmra.mxu0 %v4594
  %v5302 = vpop.f32.mrf.mxu0
  %v5303 = vadd.f32 %v4944, %v5302
  %5304 = vmatmul.f32.gmra.mxu0 %v4597
  %v5305 = vpop.f32.mrf.mxu0
  %v5306 = vadd.f32 %v4947, %v5305
  %5307 = vmatmul.f32.gmra.mxu0 %v4600
  %v5308 = vpop.f32.mrf.mxu0
  %v5309 = vadd.f32 %v4950, %v5308
  %5310 = vmatmul.f32.gmra.mxu0 %v4603
  %v5311 = vpop.f32.mrf.mxu0
  %v5312 = vadd.f32 %v4953, %v5311
  %5313 = vmatmul.f32.gmra.mxu0 %v4606
  %v5314 = vpop.f32.mrf.mxu0
  %v5315 = vadd.f32 %v4956, %v5314
  %5316 = vmatmul.f32.gmra.mxu0 %v4609
  %v5317 = vpop.f32.mrf.mxu0
  %v5318 = vadd.f32 %v4959, %v5317
  %5319 = vmatmul.f32.gmra.mxu0 %v4612
  %v5320 = vpop.f32.mrf.mxu0
  %v5321 = vadd.f32 %v4962, %v5320
  %5322 = vmatmul.f32.gmra.mxu0 %v4615
  %v5323 = vpop.f32.mrf.mxu0
  %v5324 = vadd.f32 %v4965, %v5323
  %5325 = vmatmul.f32.gmra.mxu0 %v4618
  %v5326 = vpop.f32.mrf.mxu0
  %v5327 = vadd.f32 %v4968, %v5326
  %5328 = vmatmul.f32.gmra.mxu0 %v4621
  %v5329 = vpop.f32.mrf.mxu0
  %v5330 = vadd.f32 %v4971, %v5329
  %5331 = vmatmul.f32.gmra.mxu0 %v4624
  %v5332 = vpop.f32.mrf.mxu0
  %v5333 = vadd.f32 %v4974, %v5332
  %5334 = vmatmul.f32.gmra.mxu0 %v4627
  %v5335 = vpop.f32.mrf.mxu0
  %v5336 = vadd.f32 %v4977, %v5335
  %5337 = vmatmul.f32.gmra.mxu0 %v4630
  %v5338 = vpop.f32.mrf.mxu0
  %v5339 = vadd.f32 %v4980, %v5338
  %5340 = vmatmul.f32.gmra.mxu0 %v4633
  %v5341 = vpop.f32.mrf.mxu0
  %v5342 = vadd.f32 %v4983, %v5341
  %5343 = vmatmul.f32.gmra.mxu0 %v4636
  %v5344 = vpop.f32.mrf.mxu0
  %v5345 = vadd.f32 %v4986, %v5344
  %5346 = vmatmul.f32.gmra.mxu0 %v4639
  %v5347 = vpop.f32.mrf.mxu0
  %v5348 = vadd.f32 %v4989, %v5347
  %5349 = vmatmul.f32.gmra.mxu0 %v4642
  %v5350 = vpop.f32.mrf.mxu0
  %v5351 = vadd.f32 %v4992, %v5350
  %5352 = vmatmul.f32.gmra.mxu0 %v4645
  %v5353 = vpop.f32.mrf.mxu0
  %v5354 = vadd.f32 %v4995, %v5353
  %5355 = vmatmul.f32.gmra.mxu0 %v4648
  %v5356 = vpop.f32.mrf.mxu0
  %v5357 = vadd.f32 %v4998, %v5356
  %5358 = vmatmul.f32.gmra.mxu0 %v4651
  %v5359 = vpop.f32.mrf.mxu0
  %v5360 = vadd.f32 %v5001, %v5359
  %5361 = vmatmul.f32.gmra.mxu0 %v4654
  %v5362 = vpop.f32.mrf.mxu0
  %v5363 = vadd.f32 %v5004, %v5362
  %5364 = vmatmul.f32.gmra.mxu0 %v4657
  %v5365 = vpop.f32.mrf.mxu0
  %v5366 = vadd.f32 %v5007, %v5365
  %5367 = vmatmul.f32.gmra.mxu0 %v4660
  %v5368 = vpop.f32.mrf.mxu0
  %v5369 = vadd.f32 %v5010, %v5368
  %5370 = vmatmul.f32.gmra.mxu0 %v4663
  %v5371 = vpop.f32.mrf.mxu0
  %v5372 = vadd.f32 %v5013, %v5371
  %5373 = vmatmul.f32.gmra.mxu0 %v4666
  %v5374 = vpop.f32.mrf.mxu0
  %v5375 = vadd.f32 %v5016, %v5374
  %5376 = vmatmul.f32.gmra.mxu0 %v4669
  %v5377 = vpop.f32.mrf.mxu0
  %v5378 = vadd.f32 %v5019, %v5377
  %5379 = vmatmul.f32.gmra.mxu0 %v4672
  %v5380 = vpop.f32.mrf.mxu0
  %v5381 = vadd.f32 %v5022, %v5380
  %5382 = vmatmul.f32.gmra.mxu0 %v4675
  %v5383 = vpop.f32.mrf.mxu0
  %v5384 = vadd.f32 %v5025, %v5383
  %5385 = vmatmul.f32.gmra.mxu0 %v4678
  %v5386 = vpop.f32.mrf.mxu0
  %v5387 = vadd.f32 %v5028, %v5386
  %5388 = vmatmul.f32.gmra.mxu0 %v4681
  %v5389 = vpop.f32.mrf.mxu0
  %v5390 = vadd.f32 %v5031, %v5389
  %5391 = vmatmul.f32.gmra.mxu0 %v4684
  %v5392 = vpop.f32.mrf.mxu0
  %v5393 = vadd.f32 %v5034, %v5392
  %5394 = vmatmul.f32.gmra.mxu0 %v4687
  %v5395 = vpop.f32.mrf.mxu0
  %v5396 = vadd.f32 %v5037, %v5395
  %5397 = vmatmul.f32.gmra.mxu0 %v4690
  %v5398 = vpop.f32.mrf.mxu0
  %v5399 = vadd.f32 %v5040, %v5398
  %5400 = vmatmul.f32.gmra.mxu0 %v4693
  %v5401 = vpop.f32.mrf.mxu0
  %v5402 = vadd.f32 %v5043, %v5401
  %5403 = vmatmul.f32.gmra.mxu0 %v4696
  %v5404 = vpop.f32.mrf.mxu0
  %v5405 = vadd.f32 %v5046, %v5404
  %5406 = vmatmul.f32.gmra.mxu0 %v4699
  %v5407 = vpop.f32.mrf.mxu0
  %v5408 = vadd.f32 %v5049, %v5407
  %5409 = vmatmul.f32.gmra.mxu0 %v4702
  %v5410 = vpop.f32.mrf.mxu0
  %v5411 = vadd.f32 %v5052, %v5410
  %5412 = vmatmul.f32.gmra.mxu0 %v4705
  %v5413 = vpop.f32.mrf.mxu0
  %v5414 = vadd.f32 %v5055, %v5413
  %5415 = vmatmul.f32.gmra.mxu0 %v4708
  %v5416 = vpop.f32.mrf.mxu0
  %v5417 = vadd.f32 %v5058, %v5416
  %5418 = vmatmul.f32.gmra.mxu0 %v4711
  %v5419 = vpop.f32.mrf.mxu0
  %v5420 = vadd.f32 %v5061, %v5419
  %5421 = vmatmul.f32.gmra.mxu0 %v4714
  %v5422 = vpop.f32.mrf.mxu0
  %v5423 = vadd.f32 %v5064, %v5422
  %5424 = vmatmul.f32.gmra.mxu0 %v4717
  %v5425 = vpop.f32.mrf.mxu0
  %v5426 = vadd.f32 %v5067, %v5425
  %5427 = vmatmul.f32.gmra.mxu0 %v4720
  %v5428 = vpop.f32.mrf.mxu0
  %v5429 = vadd.f32 %v5070, %v5428
  %5430 = vmatmul.f32.gmra.mxu0 %v4723
  %v5431 = vpop.f32.mrf.mxu0
  %v5432 = vadd.f32 %v5073, %v5431
  %5433 = vmatmul.f32.gmra.mxu0 %v4726
  %v5434 = vpop.f32.mrf.mxu0
  %v5435 = vadd.f32 %v5076, %v5434
  %5436 = vmatmul.f32.gmra.mxu0 %v4729
  %v5437 = vpop.f32.mrf.mxu0
  %v5438 = vadd.f32 %v5079, %v5437
  %5439 = vmatmul.f32.gmra.mxu0 %v4732
  %v5440 = vpop.f32.mrf.mxu0
  %v5441 = vadd.f32 %v5082, %v5440
  %5442 = vmatmul.f32.gmra.mxu0 %v4735
  %v5443 = vpop.f32.mrf.mxu0
  %v5444 = vadd.f32 %v5085, %v5443
  %5445 = vmatmul.f32.gmra.mxu0 %v4738
  %v5446 = vpop.f32.mrf.mxu0
  %v5447 = vadd.f32 %v5088, %v5446
  %5448 = vdwg.mxu0
  %s5449 = scalar_lea.vmem %s12, 192
  %v5450 = vld [vmem:[%s5449] sm:$0xff]
  %v5451 = vld [vmem:[%s5449 + $0x8] sm:$0xff]
  %v5452 = vld [vmem:[%s5449 + $0x10] sm:$0xff]
  %v5453 = vld [vmem:[%s5449 + $0x18] sm:$0xff]
  %v5454 = vld [vmem:[%s5449 + $0x20] sm:$0xff]
  %v5455 = vld [vmem:[%s5449 + $0x28] sm:$0xff]
  %v5456 = vld [vmem:[%s5449 + $0x30] sm:$0xff]
  %v5457 = vld [vmem:[%s5449 + $0x38] sm:$0xff]
  %v5458 = vld [vmem:[%s5449 + $0x40] sm:$0xff]
  %v5459 = vld [vmem:[%s5449 + $0x48] sm:$0xff]
  %v5460 = vld [vmem:[%s5449 + $0x50] sm:$0xff]
  %v5461 = vld [vmem:[%s5449 + $0x58] sm:$0xff]
  %v5463 = vsel %vm4424, %v4336, 0
  %v5466 = vsel %vm4424, %v4337, 0
  %v5469 = vsel %vm4424, %v4338, 0
  %v5472 = vsel %vm4424, %v4396, 0
  %v5475 = vsel %vm4424, %v4397, 0
  %v5478 = vsel %vm4424, %v4398, 0
  %5480 = vmatpush.msra.mxu0 0.0
  %5481 = vmatpush.msra.mxu0 0.0
  %5482 = vmatpush.msra.mxu0 0.0
  %5483 = vmatpush.msra.mxu0 0.0
  %5484 = vmatpush.msra.mxu0 %v5461
  %5485 = vmatpush.msra.mxu0 %v5460
  %5486 = vmatpush.msra.mxu0 %v5459
  %5487 = vmatpush.msra.mxu0 %v5458
  %5488 = vmatpush.msra.mxu0 %v5457
  %5489 = vmatpush.msra.mxu0 %v5456
  %5490 = vmatpush.msra.mxu0 %v5455
  %5491 = vmatpush.msra.mxu0 %v5454
  %5492 = vmatpush.msra.mxu0 %v5453
  %5493 = vmatpush.msra.mxu0 %v5452
  %5494 = vmatpush.msra.mxu0 %v5451
  %5495 = vmatpush.msra.mxu0 %v5450
  %5496 = vmatmul.f32.gmra.mxu0 %v4435
  %v5497 = vpop.f32.mrf.mxu0
  %v5498 = vadd.f32 0.0, %v5497
  %5499 = vmatmul.f32.gmra.mxu0 %v4438
  %v5500 = vpop.f32.mrf.mxu0
  %v5501 = vadd.f32 0.0, %v5500
  %5502 = vmatmul.f32.gmra.mxu0 %v4441
  %v5503 = vpop.f32.mrf.mxu0
  %v5504 = vadd.f32 0.0, %v5503
  %5505 = vmatmul.f32.gmra.mxu0 %v4444
  %v5506 = vpop.f32.mrf.mxu0
  %v5507 = vadd.f32 0.0, %v5506
  %5508 = vmatmul.f32.gmra.mxu0 %v4447
  %v5509 = vpop.f32.mrf.mxu0
  %v5510 = vadd.f32 0.0, %v5509
  %5511 = vmatmul.f32.gmra.mxu0 %v4450
  %v5512 = vpop.f32.mrf.mxu0
  %v5513 = vadd.f32 0.0, %v5512
  %5514 = vmatmul.f32.gmra.mxu0 %v4453
  %v5515 = vpop.f32.mrf.mxu0
  %v5516 = vadd.f32 0.0, %v5515
  %5517 = vmatmul.f32.gmra.mxu0 %v4456
  %v5518 = vpop.f32.mrf.mxu0
  %v5519 = vadd.f32 0.0, %v5518
  %5520 = vmatmul.f32.gmra.mxu0 %v4459
  %v5521 = vpop.f32.mrf.mxu0
  %v5522 = vadd.f32 0.0, %v5521
  %5523 = vmatmul.f32.gmra.mxu0 %v4462
  %v5524 = vpop.f32.mrf.mxu0
  %v5525 = vadd.f32 0.0, %v5524
  %5526 = vmatmul.f32.gmra.mxu0 %v4465
  %v5527 = vpop.f32.mrf.mxu0
  %v5528 = vadd.f32 0.0, %v5527
  %5529 = vmatmul.f32.gmra.mxu0 %v4468
  %v5530 = vpop.f32.mrf.mxu0
  %v5531 = vadd.f32 0.0, %v5530
  %5532 = vmatmul.f32.gmra.mxu0 %v4471
  %v5533 = vpop.f32.mrf.mxu0
  %v5534 = vadd.f32 0.0, %v5533
  %5535 = vmatmul.f32.gmra.mxu0 %v4474
  %v5536 = vpop.f32.mrf.mxu0
  %v5537 = vadd.f32 0.0, %v5536
  %5538 = vmatmul.f32.gmra.mxu0 %v4477
  %v5539 = vpop.f32.mrf.mxu0
  %v5540 = vadd.f32 0.0, %v5539
  %5541 = vmatmul.f32.gmra.mxu0 %v4480
  %v5542 = vpop.f32.mrf.mxu0
  %v5543 = vadd.f32 0.0, %v5542
  %5544 = vmatmul.f32.gmra.mxu0 %v4483
  %v5545 = vpop.f32.mrf.mxu0
  %v5546 = vadd.f32 0.0, %v5545
  %5547 = vmatmul.f32.gmra.mxu0 %v4486
  %v5548 = vpop.f32.mrf.mxu0
  %v5549 = vadd.f32 0.0, %v5548
  %5550 = vmatmul.f32.gmra.mxu0 %v4489
  %v5551 = vpop.f32.mrf.mxu0
  %v5552 = vadd.f32 0.0, %v5551
  %5553 = vmatmul.f32.gmra.mxu0 %v4492
  %v5554 = vpop.f32.mrf.mxu0
  %v5555 = vadd.f32 0.0, %v5554
  %5556 = vmatmul.f32.gmra.mxu0 %v4495
  %v5557 = vpop.f32.mrf.mxu0
  %v5558 = vadd.f32 0.0, %v5557
  %5559 = vmatmul.f32.gmra.mxu0 %v4498
  %v5560 = vpop.f32.mrf.mxu0
  %v5561 = vadd.f32 0.0, %v5560
  %5562 = vmatmul.f32.gmra.mxu0 %v4501
  %v5563 = vpop.f32.mrf.mxu0
  %v5564 = vadd.f32 0.0, %v5563
  %5565 = vmatmul.f32.gmra.mxu0 %v4504
  %v5566 = vpop.f32.mrf.mxu0
  %v5567 = vadd.f32 0.0, %v5566
  %5568 = vmatmul.f32.gmra.mxu0 %v4507
  %v5569 = vpop.f32.mrf.mxu0
  %v5570 = vadd.f32 0.0, %v5569
  %5571 = vmatmul.f32.gmra.mxu0 %v4510
  %v5572 = vpop.f32.mrf.mxu0
  %v5573 = vadd.f32 0.0, %v5572
  %5574 = vmatmul.f32.gmra.mxu0 %v4513
  %v5575 = vpop.f32.mrf.mxu0
  %v5576 = vadd.f32 0.0, %v5575
  %5577 = vmatmul.f32.gmra.mxu0 %v4516
  %v5578 = vpop.f32.mrf.mxu0
  %v5579 = vadd.f32 0.0, %v5578
  %5580 = vmatmul.f32.gmra.mxu0 %v4519
  %v5581 = vpop.f32.mrf.mxu0
  %v5582 = vadd.f32 0.0, %v5581
  %5583 = vmatmul.f32.gmra.mxu0 %v4522
  %v5584 = vpop.f32.mrf.mxu0
  %v5585 = vadd.f32 0.0, %v5584
  %5586 = vmatmul.f32.gmra.mxu0 %v4525
  %v5587 = vpop.f32.mrf.mxu0
  %v5588 = vadd.f32 0.0, %v5587
  %5589 = vmatmul.f32.gmra.mxu0 %v4528
  %v5590 = vpop.f32.mrf.mxu0
  %v5591 = vadd.f32 0.0, %v5590
  %5592 = vmatmul.f32.gmra.mxu0 %v4531
  %v5593 = vpop.f32.mrf.mxu0
  %v5594 = vadd.f32 0.0, %v5593
  %5595 = vmatmul.f32.gmra.mxu0 %v4534
  %v5596 = vpop.f32.mrf.mxu0
  %v5597 = vadd.f32 0.0, %v5596
  %5598 = vmatmul.f32.gmra.mxu0 %v4537
  %v5599 = vpop.f32.mrf.mxu0
  %v5600 = vadd.f32 0.0, %v5599
  %5601 = vmatmul.f32.gmra.mxu0 %v4540
  %v5602 = vpop.f32.mrf.mxu0
  %v5603 = vadd.f32 0.0, %v5602
  %5604 = vmatmul.f32.gmra.mxu0 %v4543
  %v5605 = vpop.f32.mrf.mxu0
  %v5606 = vadd.f32 0.0, %v5605
  %5607 = vmatmul.f32.gmra.mxu0 %v4546
  %v5608 = vpop.f32.mrf.mxu0
  %v5609 = vadd.f32 0.0, %v5608
  %5610 = vmatmul.f32.gmra.mxu0 %v4549
  %v5611 = vpop.f32.mrf.mxu0
  %v5612 = vadd.f32 0.0, %v5611
  %5613 = vmatmul.f32.gmra.mxu0 %v4552
  %v5614 = vpop.f32.mrf.mxu0
  %v5615 = vadd.f32 0.0, %v5614
  %5616 = vmatmul.f32.gmra.mxu0 %v4555
  %v5617 = vpop.f32.mrf.mxu0
  %v5618 = vadd.f32 0.0, %v5617
  %5619 = vmatmul.f32.gmra.mxu0 %v4558
  %v5620 = vpop.f32.mrf.mxu0
  %v5621 = vadd.f32 0.0, %v5620
  %5622 = vmatmul.f32.gmra.mxu0 %v4561
  %v5623 = vpop.f32.mrf.mxu0
  %v5624 = vadd.f32 0.0, %v5623
  %5625 = vmatmul.f32.gmra.mxu0 %v4564
  %v5626 = vpop.f32.mrf.mxu0
  %v5627 = vadd.f32 0.0, %v5626
  %5628 = vmatmul.f32.gmra.mxu0 %v4567
  %v5629 = vpop.f32.mrf.mxu0
  %v5630 = vadd.f32 0.0, %v5629
  %5631 = vmatmul.f32.gmra.mxu0 %v4570
  %v5632 = vpop.f32.mrf.mxu0
  %v5633 = vadd.f32 0.0, %v5632
  %5634 = vmatmul.f32.gmra.mxu0 %v4573
  %v5635 = vpop.f32.mrf.mxu0
  %v5636 = vadd.f32 0.0, %v5635
  %5637 = vmatmul.f32.gmra.mxu0 %v4576
  %v5638 = vpop.f32.mrf.mxu0
  %v5639 = vadd.f32 0.0, %v5638
  %5640 = vmatmul.f32.gmra.mxu0 %v4579
  %v5641 = vpop.f32.mrf.mxu0
  %v5642 = vadd.f32 0.0, %v5641
  %5643 = vmatmul.f32.gmra.mxu0 %v4582
  %v5644 = vpop.f32.mrf.mxu0
  %v5645 = vadd.f32 0.0, %v5644
  %5646 = vmatmul.f32.gmra.mxu0 %v4585
  %v5647 = vpop.f32.mrf.mxu0
  %v5648 = vadd.f32 0.0, %v5647
  %5649 = vmatmul.f32.gmra.mxu0 %v5463
  %v5650 = vpop.f32.mrf.mxu0
  %v5651 = vadd.f32 0.0, %v5650
  %5652 = vmatmul.f32.gmra.mxu0 %v5466
  %v5653 = vpop.f32.mrf.mxu0
  %v5654 = vadd.f32 0.0, %v5653
  %5655 = vmatmul.f32.gmra.mxu0 %v5469
  %v5656 = vpop.f32.mrf.mxu0
  %v5657 = vadd.f32 0.0, %v5656
  %5658 = vmatmul.f32.gmra.mxu0 %v4597
  %v5659 = vpop.f32.mrf.mxu0
  %v5660 = vadd.f32 0.0, %v5659
  %5661 = vmatmul.f32.gmra.mxu0 %v4600
  %v5662 = vpop.f32.mrf.mxu0
  %v5663 = vadd.f32 0.0, %v5662
  %5664 = vmatmul.f32.gmra.mxu0 %v4603
  %v5665 = vpop.f32.mrf.mxu0
  %v5666 = vadd.f32 0.0, %v5665
  %5667 = vmatmul.f32.gmra.mxu0 %v4606
  %v5668 = vpop.f32.mrf.mxu0
  %v5669 = vadd.f32 0.0, %v5668
  %5670 = vmatmul.f32.gmra.mxu0 %v4609
  %v5671 = vpop.f32.mrf.mxu0
  %v5672 = vadd.f32 0.0, %v5671
  %5673 = vmatmul.f32.gmra.mxu0 %v4612
  %v5674 = vpop.f32.mrf.mxu0
  %v5675 = vadd.f32 0.0, %v5674
  %5676 = vmatmul.f32.gmra.mxu0 %v4615
  %v5677 = vpop.f32.mrf.mxu0
  %v5678 = vadd.f32 0.0, %v5677
  %5679 = vmatmul.f32.gmra.mxu0 %v4618
  %v5680 = vpop.f32.mrf.mxu0
  %v5681 = vadd.f32 0.0, %v5680
  %5682 = vmatmul.f32.gmra.mxu0 %v4621
  %v5683 = vpop.f32.mrf.mxu0
  %v5684 = vadd.f32 0.0, %v5683
  %5685 = vmatmul.f32.gmra.mxu0 %v4624
  %v5686 = vpop.f32.mrf.mxu0
  %v5687 = vadd.f32 0.0, %v5686
  %5688 = vmatmul.f32.gmra.mxu0 %v4627
  %v5689 = vpop.f32.mrf.mxu0
  %v5690 = vadd.f32 0.0, %v5689
  %5691 = vmatmul.f32.gmra.mxu0 %v4630
  %v5692 = vpop.f32.mrf.mxu0
  %v5693 = vadd.f32 0.0, %v5692
  %5694 = vmatmul.f32.gmra.mxu0 %v4633
  %v5695 = vpop.f32.mrf.mxu0
  %v5696 = vadd.f32 0.0, %v5695
  %5697 = vmatmul.f32.gmra.mxu0 %v4636
  %v5698 = vpop.f32.mrf.mxu0
  %v5699 = vadd.f32 0.0, %v5698
  %5700 = vmatmul.f32.gmra.mxu0 %v4639
  %v5701 = vpop.f32.mrf.mxu0
  %v5702 = vadd.f32 0.0, %v5701
  %5703 = vmatmul.f32.gmra.mxu0 %v4642
  %v5704 = vpop.f32.mrf.mxu0
  %v5705 = vadd.f32 0.0, %v5704
  %5706 = vmatmul.f32.gmra.mxu0 %v4645
  %v5707 = vpop.f32.mrf.mxu0
  %v5708 = vadd.f32 0.0, %v5707
  %5709 = vmatmul.f32.gmra.mxu0 %v4648
  %v5710 = vpop.f32.mrf.mxu0
  %v5711 = vadd.f32 0.0, %v5710
  %5712 = vmatmul.f32.gmra.mxu0 %v4651
  %v5713 = vpop.f32.mrf.mxu0
  %v5714 = vadd.f32 0.0, %v5713
  %5715 = vmatmul.f32.gmra.mxu0 %v4654
  %v5716 = vpop.f32.mrf.mxu0
  %v5717 = vadd.f32 0.0, %v5716
  %5718 = vmatmul.f32.gmra.mxu0 %v4657
  %v5719 = vpop.f32.mrf.mxu0
  %v5720 = vadd.f32 0.0, %v5719
  %5721 = vmatmul.f32.gmra.mxu0 %v4660
  %v5722 = vpop.f32.mrf.mxu0
  %v5723 = vadd.f32 0.0, %v5722
  %5724 = vmatmul.f32.gmra.mxu0 %v4663
  %v5725 = vpop.f32.mrf.mxu0
  %v5726 = vadd.f32 0.0, %v5725
  %5727 = vmatmul.f32.gmra.mxu0 %v4666
  %v5728 = vpop.f32.mrf.mxu0
  %v5729 = vadd.f32 0.0, %v5728
  %5730 = vmatmul.f32.gmra.mxu0 %v4669
  %v5731 = vpop.f32.mrf.mxu0
  %v5732 = vadd.f32 0.0, %v5731
  %5733 = vmatmul.f32.gmra.mxu0 %v4672
  %v5734 = vpop.f32.mrf.mxu0
  %v5735 = vadd.f32 0.0, %v5734
  %5736 = vmatmul.f32.gmra.mxu0 %v4675
  %v5737 = vpop.f32.mrf.mxu0
  %v5738 = vadd.f32 0.0, %v5737
  %5739 = vmatmul.f32.gmra.mxu0 %v4678
  %v5740 = vpop.f32.mrf.mxu0
  %v5741 = vadd.f32 0.0, %v5740
  %5742 = vmatmul.f32.gmra.mxu0 %v4681
  %v5743 = vpop.f32.mrf.mxu0
  %v5744 = vadd.f32 0.0, %v5743
  %5745 = vmatmul.f32.gmra.mxu0 %v4684
  %v5746 = vpop.f32.mrf.mxu0
  %v5747 = vadd.f32 0.0, %v5746
  %5748 = vmatmul.f32.gmra.mxu0 %v4687
  %v5749 = vpop.f32.mrf.mxu0
  %v5750 = vadd.f32 0.0, %v5749
  %5751 = vmatmul.f32.gmra.mxu0 %v4690
  %v5752 = vpop.f32.mrf.mxu0
  %v5753 = vadd.f32 0.0, %v5752
  %5754 = vmatmul.f32.gmra.mxu0 %v4693
  %v5755 = vpop.f32.mrf.mxu0
  %v5756 = vadd.f32 0.0, %v5755
  %5757 = vmatmul.f32.gmra.mxu0 %v4696
  %v5758 = vpop.f32.mrf.mxu0
  %v5759 = vadd.f32 0.0, %v5758
  %5760 = vmatmul.f32.gmra.mxu0 %v4699
  %v5761 = vpop.f32.mrf.mxu0
  %v5762 = vadd.f32 0.0, %v5761
  %5763 = vmatmul.f32.gmra.mxu0 %v4702
  %v5764 = vpop.f32.mrf.mxu0
  %v5765 = vadd.f32 0.0, %v5764
  %5766 = vmatmul.f32.gmra.mxu0 %v4705
  %v5767 = vpop.f32.mrf.mxu0
  %v5768 = vadd.f32 0.0, %v5767
  %5769 = vmatmul.f32.gmra.mxu0 %v4708
  %v5770 = vpop.f32.mrf.mxu0
  %v5771 = vadd.f32 0.0, %v5770
  %5772 = vmatmul.f32.gmra.mxu0 %v4711
  %v5773 = vpop.f32.mrf.mxu0
  %v5774 = vadd.f32 0.0, %v5773
  %5775 = vmatmul.f32.gmra.mxu0 %v4714
  %v5776 = vpop.f32.mrf.mxu0
  %v5777 = vadd.f32 0.0, %v5776
  %5778 = vmatmul.f32.gmra.mxu0 %v4717
  %v5779 = vpop.f32.mrf.mxu0
  %v5780 = vadd.f32 0.0, %v5779
  %5781 = vmatmul.f32.gmra.mxu0 %v4720
  %v5782 = vpop.f32.mrf.mxu0
  %v5783 = vadd.f32 0.0, %v5782
  %5784 = vmatmul.f32.gmra.mxu0 %v4723
  %v5785 = vpop.f32.mrf.mxu0
  %v5786 = vadd.f32 0.0, %v5785
  %5787 = vmatmul.f32.gmra.mxu0 %v4726
  %v5788 = vpop.f32.mrf.mxu0
  %v5789 = vadd.f32 0.0, %v5788
  %5790 = vmatmul.f32.gmra.mxu0 %v4729
  %v5791 = vpop.f32.mrf.mxu0
  %v5792 = vadd.f32 0.0, %v5791
  %5793 = vmatmul.f32.gmra.mxu0 %v4732
  %v5794 = vpop.f32.mrf.mxu0
  %v5795 = vadd.f32 0.0, %v5794
  %5796 = vmatmul.f32.gmra.mxu0 %v4735
  %v5797 = vpop.f32.mrf.mxu0
  %v5798 = vadd.f32 0.0, %v5797
  %5799 = vmatmul.f32.gmra.mxu0 %v4738
  %v5800 = vpop.f32.mrf.mxu0
  %v5801 = vadd.f32 0.0, %v5800
  %5802 = vmatmul.f32.gmra.mxu0 %v4741
  %v5803 = vpop.f32.mrf.mxu0
  %v5804 = vadd.f32 0.0, %v5803
  %5805 = vmatmul.f32.gmra.mxu0 %v4744
  %v5806 = vpop.f32.mrf.mxu0
  %v5807 = vadd.f32 0.0, %v5806
  %5808 = vmatmul.f32.gmra.mxu0 %v4747
  %v5809 = vpop.f32.mrf.mxu0
  %v5810 = vadd.f32 0.0, %v5809
  %5811 = vmatmul.f32.gmra.mxu0 %v5472
  %v5812 = vpop.f32.mrf.mxu0
  %v5813 = vadd.f32 0.0, %v5812
  %5814 = vmatmul.f32.gmra.mxu0 %v5475
  %v5815 = vpop.f32.mrf.mxu0
  %v5816 = vadd.f32 0.0, %v5815
  %5817 = vmatmul.f32.gmra.mxu0 %v5478
  %v5818 = vpop.f32.mrf.mxu0
  %v5819 = vadd.f32 0.0, %v5818
  %5820 = vdwg.mxu0
  %v5821 = vadd.f32 %v5126, %v5498
  %v5822 = vadd.f32 %v5129, %v5501
  %v5823 = vadd.f32 %v5132, %v5504
  %v5824 = vadd.f32 %v5135, %v5507
  %v5825 = vadd.f32 %v5138, %v5510
  %v5826 = vadd.f32 %v5141, %v5513
  %v5827 = vadd.f32 %v5144, %v5516
  %v5828 = vadd.f32 %v5147, %v5519
  %v5829 = vadd.f32 %v5150, %v5522
  %v5830 = vadd.f32 %v5153, %v5525
  %v5831 = vadd.f32 %v5156, %v5528
  %v5832 = vadd.f32 %v5159, %v5531
  %v5833 = vadd.f32 %v5162, %v5534
  %v5834 = vadd.f32 %v5165, %v5537
  %v5835 = vadd.f32 %v5168, %v5540
  %v5836 = vadd.f32 %v5171, %v5543
  %v5837 = vadd.f32 %v5174, %v5546
  %v5838 = vadd.f32 %v5177, %v5549
  %v5839 = vadd.f32 %v5180, %v5552
  %v5840 = vadd.f32 %v5183, %v5555
  %v5841 = vadd.f32 %v5186, %v5558
  %v5842 = vadd.f32 %v5189, %v5561
  %v5843 = vadd.f32 %v5192, %v5564
  %v5844 = vadd.f32 %v5195, %v5567
  %v5845 = vadd.f32 %v5198, %v5570
  %v5846 = vadd.f32 %v5201, %v5573
  %v5847 = vadd.f32 %v5204, %v5576
  %v5848 = vadd.f32 %v5207, %v5579
  %v5849 = vadd.f32 %v5210, %v5582
  %v5850 = vadd.f32 %v5213, %v5585
  %v5851 = vadd.f32 %v5216, %v5588
  %v5852 = vadd.f32 %v5219, %v5591
  %v5853 = vadd.f32 %v5222, %v5594
  %v5854 = vadd.f32 %v5225, %v5597
  %v5855 = vadd.f32 %v5228, %v5600
  %v5856 = vadd.f32 %v5231, %v5603
  %v5857 = vadd.f32 %v5234, %v5606
  %v5858 = vadd.f32 %v5237, %v5609
  %v5859 = vadd.f32 %v5240, %v5612
  %v5860 = vadd.f32 %v5243, %v5615
  %v5861 = vadd.f32 %v5246, %v5618
  %v5862 = vadd.f32 %v5249, %v5621
  %v5863 = vadd.f32 %v5252, %v5624
  %v5864 = vadd.f32 %v5255, %v5627
  %v5865 = vadd.f32 %v5258, %v5630
  %v5866 = vadd.f32 %v5261, %v5633
  %v5867 = vadd.f32 %v5264, %v5636
  %v5868 = vadd.f32 %v5267, %v5639
  %v5869 = vadd.f32 %v5270, %v5642
  %v5870 = vadd.f32 %v5273, %v5645
  %v5871 = vadd.f32 %v5276, %v5648
  %v5872 = vadd.f32 %v5279, %v5651
  %v5873 = vadd.f32 %v5282, %v5654
  %v5874 = vadd.f32 %v5285, %v5657
  %v5875 = vadd.f32 %v5288, %v5660
  %v5876 = vadd.f32 %v5291, %v5663
  %v5877 = vadd.f32 %v5294, %v5666
  %v5878 = vadd.f32 %v5297, %v5669
  %v5879 = vadd.f32 %v5300, %v5672
  %v5880 = vadd.f32 %v5303, %v5675
  %v5881 = vadd.f32 %v5306, %v5678
  %v5882 = vadd.f32 %v5309, %v5681
  %v5883 = vadd.f32 %v5312, %v5684
  %v5884 = vadd.f32 %v5315, %v5687
  %v5885 = vadd.f32 %v5318, %v5690
  %v5886 = vadd.f32 %v5321, %v5693
  %v5887 = vadd.f32 %v5324, %v5696
  %v5888 = vadd.f32 %v5327, %v5699
  %v5889 = vadd.f32 %v5330, %v5702
  %v5890 = vadd.f32 %v5333, %v5705
  %v5891 = vadd.f32 %v5336, %v5708
  %v5892 = vadd.f32 %v5339, %v5711
  %v5893 = vadd.f32 %v5342, %v5714
  %v5894 = vadd.f32 %v5345, %v5717
  %v5895 = vadd.f32 %v5348, %v5720
  %v5896 = vadd.f32 %v5351, %v5723
  %v5897 = vadd.f32 %v5354, %v5726
  %v5898 = vadd.f32 %v5357, %v5729
  %v5899 = vadd.f32 %v5360, %v5732
  %v5900 = vadd.f32 %v5363, %v5735
  %v5901 = vadd.f32 %v5366, %v5738
  %v5902 = vadd.f32 %v5369, %v5741
  %v5903 = vadd.f32 %v5372, %v5744
  %v5904 = vadd.f32 %v5375, %v5747
  %v5905 = vadd.f32 %v5378, %v5750
  %v5906 = vadd.f32 %v5381, %v5753
  %v5907 = vadd.f32 %v5384, %v5756
  %v5908 = vadd.f32 %v5387, %v5759
  %v5909 = vadd.f32 %v5390, %v5762
  %v5910 = vadd.f32 %v5393, %v5765
  %v5911 = vadd.f32 %v5396, %v5768
  %v5912 = vadd.f32 %v5399, %v5771
  %v5913 = vadd.f32 %v5402, %v5774
  %v5914 = vadd.f32 %v5405, %v5777
  %v5915 = vadd.f32 %v5408, %v5780
  %v5916 = vadd.f32 %v5411, %v5783
  %v5917 = vadd.f32 %v5414, %v5786
  %v5918 = vadd.f32 %v5417, %v5789
  %v5919 = vadd.f32 %v5420, %v5792
  %v5920 = vadd.f32 %v5423, %v5795
  %v5921 = vadd.f32 %v5426, %v5798
  %v5922 = vadd.f32 %v5429, %v5801
  %v5923 = vadd.f32 %v5432, %v5804
  %v5924 = vadd.f32 %v5435, %v5807
  %v5925 = vadd.f32 %v5438, %v5810
  %v5926 = vadd.f32 %v5441, %v5813
  %v5927 = vadd.f32 %v5444, %v5816
  %v5928 = vadd.f32 %v5447, %v5819
  %v5929 = vld [vmem:[%s13] sm:$0x1]
  %v5931 = vperm.slane %v5929, 0
  %v5933 = vadd.f32 %v5821, %v5931
  %v5934 = vadd.f32 %v5822, %v5931
  %v5935 = vadd.f32 %v5823, %v5931
  %v5936 = vadd.f32 %v5824, %v5931
  %v5937 = vadd.f32 %v5825, %v5931
  %v5938 = vadd.f32 %v5826, %v5931
  %v5939 = vadd.f32 %v5827, %v5931
  %v5940 = vadd.f32 %v5828, %v5931
  %v5941 = vadd.f32 %v5829, %v5931
  %v5942 = vadd.f32 %v5830, %v5931
  %v5943 = vadd.f32 %v5831, %v5931
  %v5944 = vadd.f32 %v5832, %v5931
  %v5945 = vadd.f32 %v5833, %v5931
  %v5946 = vadd.f32 %v5834, %v5931
  %v5947 = vadd.f32 %v5835, %v5931
  %v5948 = vadd.f32 %v5836, %v5931
  %v5949 = vadd.f32 %v5837, %v5931
  %v5950 = vadd.f32 %v5838, %v5931
  %v5951 = vadd.f32 %v5839, %v5931
  %v5952 = vadd.f32 %v5840, %v5931
  %v5953 = vadd.f32 %v5841, %v5931
  %v5954 = vadd.f32 %v5842, %v5931
  %v5955 = vadd.f32 %v5843, %v5931
  %v5956 = vadd.f32 %v5844, %v5931
  %v5957 = vadd.f32 %v5845, %v5931
  %v5958 = vadd.f32 %v5846, %v5931
  %v5959 = vadd.f32 %v5847, %v5931
  %v5960 = vadd.f32 %v5848, %v5931
  %v5961 = vadd.f32 %v5849, %v5931
  %v5962 = vadd.f32 %v5850, %v5931
  %v5963 = vadd.f32 %v5851, %v5931
  %v5964 = vadd.f32 %v5852, %v5931
  %v5965 = vadd.f32 %v5853, %v5931
  %v5966 = vadd.f32 %v5854, %v5931
  %v5967 = vadd.f32 %v5855, %v5931
  %v5968 = vadd.f32 %v5856, %v5931
  %v5969 = vadd.f32 %v5857, %v5931
  %v5970 = vadd.f32 %v5858, %v5931
  %v5971 = vadd.f32 %v5859, %v5931
  %v5972 = vadd.f32 %v5860, %v5931
  %v5973 = vadd.f32 %v5861, %v5931
  %v5974 = vadd.f32 %v5862, %v5931
  %v5975 = vadd.f32 %v5863, %v5931
  %v5976 = vadd.f32 %v5864, %v5931
  %v5977 = vadd.f32 %v5865, %v5931
  %v5978 = vadd.f32 %v5866, %v5931
  %v5979 = vadd.f32 %v5867, %v5931
  %v5980 = vadd.f32 %v5868, %v5931
  %v5981 = vadd.f32 %v5869, %v5931
  %v5982 = vadd.f32 %v5870, %v5931
  %v5983 = vadd.f32 %v5871, %v5931
  %v5984 = vadd.f32 %v5872, %v5931
  %v5985 = vadd.f32 %v5873, %v5931
  %v5986 = vadd.f32 %v5874, %v5931
  %v5987 = vadd.f32 %v5875, %v5931
  %v5988 = vadd.f32 %v5876, %v5931
  %v5989 = vadd.f32 %v5877, %v5931
  %v5990 = vadd.f32 %v5878, %v5931
  %v5991 = vadd.f32 %v5879, %v5931
  %v5992 = vadd.f32 %v5880, %v5931
  %v5993 = vadd.f32 %v5881, %v5931
  %v5994 = vadd.f32 %v5882, %v5931
  %v5995 = vadd.f32 %v5883, %v5931
  %v5996 = vadd.f32 %v5884, %v5931
  %v5997 = vadd.f32 %v5885, %v5931
  %v5998 = vadd.f32 %v5886, %v5931
  %v5999 = vadd.f32 %v5887, %v5931
  %v6000 = vadd.f32 %v5888, %v5931
  %v6001 = vadd.f32 %v5889, %v5931
  %v6002 = vadd.f32 %v5890, %v5931
  %v6003 = vadd.f32 %v5891, %v5931
  %v6004 = vadd.f32 %v5892, %v5931
  %v6005 = vadd.f32 %v5893, %v5931
  %v6006 = vadd.f32 %v5894, %v5931
  %v6007 = vadd.f32 %v5895, %v5931
  %v6008 = vadd.f32 %v5896, %v5931
  %v6009 = vadd.f32 %v5897, %v5931
  %v6010 = vadd.f32 %v5898, %v5931
  %v6011 = vadd.f32 %v5899, %v5931
  %v6012 = vadd.f32 %v5900, %v5931
  %v6013 = vadd.f32 %v5901, %v5931
  %v6014 = vadd.f32 %v5902, %v5931
  %v6015 = vadd.f32 %v5903, %v5931
  %v6016 = vadd.f32 %v5904, %v5931
  %v6017 = vadd.f32 %v5905, %v5931
  %v6018 = vadd.f32 %v5906, %v5931
  %v6019 = vadd.f32 %v5907, %v5931
  %v6020 = vadd.f32 %v5908, %v5931
  %v6021 = vadd.f32 %v5909, %v5931
  %v6022 = vadd.f32 %v5910, %v5931
  %v6023 = vadd.f32 %v5911, %v5931
  %v6024 = vadd.f32 %v5912, %v5931
  %v6025 = vadd.f32 %v5913, %v5931
  %v6026 = vadd.f32 %v5914, %v5931
  %v6027 = vadd.f32 %v5915, %v5931
  %v6028 = vadd.f32 %v5916, %v5931
  %v6029 = vadd.f32 %v5917, %v5931
  %v6030 = vadd.f32 %v5918, %v5931
  %v6031 = vadd.f32 %v5919, %v5931
  %v6032 = vadd.f32 %v5920, %v5931
  %v6033 = vadd.f32 %v5921, %v5931
  %v6034 = vadd.f32 %v5922, %v5931
  %v6035 = vadd.f32 %v5923, %v5931
  %v6036 = vadd.f32 %v5924, %v5931
  %v6037 = vadd.f32 %v5925, %v5931
  %v6038 = vadd.f32 %v5926, %v5931
  %v6039 = vadd.f32 %v5927, %v5931
  %v6040 = vadd.f32 %v5928, %v5931
  %v6041 = vmax.f32 %v5933, 0.0
  %v6042 = vmax.f32 %v5934, 0.0
  %v6043 = vmax.f32 %v5935, 0.0
  %v6044 = vmax.f32 %v5936, 0.0
  %v6045 = vmax.f32 %v5937, 0.0
  %v6046 = vmax.f32 %v5938, 0.0
  %v6047 = vmax.f32 %v5939, 0.0
  %v6048 = vmax.f32 %v5940, 0.0
  %v6049 = vmax.f32 %v5941, 0.0
  %v6050 = vmax.f32 %v5942, 0.0
  %v6051 = vmax.f32 %v5943, 0.0
  %v6052 = vmax.f32 %v5944, 0.0
  %v6053 = vmax.f32 %v5945, 0.0
  %v6054 = vmax.f32 %v5946, 0.0
  %v6055 = vmax.f32 %v5947, 0.0
  %v6056 = vmax.f32 %v5948, 0.0
  %v6057 = vmax.f32 %v5949, 0.0
  %v6058 = vmax.f32 %v5950, 0.0
  %v6059 = vmax.f32 %v5951, 0.0
  %v6060 = vmax.f32 %v5952, 0.0
  %v6061 = vmax.f32 %v5953, 0.0
  %v6062 = vmax.f32 %v5954, 0.0
  %v6063 = vmax.f32 %v5955, 0.0
  %v6064 = vmax.f32 %v5956, 0.0
  %v6065 = vmax.f32 %v5957, 0.0
  %v6066 = vmax.f32 %v5958, 0.0
  %v6067 = vmax.f32 %v5959, 0.0
  %v6068 = vmax.f32 %v5960, 0.0
  %v6069 = vmax.f32 %v5961, 0.0
  %v6070 = vmax.f32 %v5962, 0.0
  %v6071 = vmax.f32 %v5963, 0.0
  %v6072 = vmax.f32 %v5964, 0.0
  %v6073 = vmax.f32 %v5965, 0.0
  %v6074 = vmax.f32 %v5966, 0.0
  %v6075 = vmax.f32 %v5967, 0.0
  %v6076 = vmax.f32 %v5968, 0.0
  %v6077 = vmax.f32 %v5969, 0.0
  %v6078 = vmax.f32 %v5970, 0.0
  %v6079 = vmax.f32 %v5971, 0.0
  %v6080 = vmax.f32 %v5972, 0.0
  %v6081 = vmax.f32 %v5973, 0.0
  %v6082 = vmax.f32 %v5974, 0.0
  %v6083 = vmax.f32 %v5975, 0.0
  %v6084 = vmax.f32 %v5976, 0.0
  %v6085 = vmax.f32 %v5977, 0.0
  %v6086 = vmax.f32 %v5978, 0.0
  %v6087 = vmax.f32 %v5979, 0.0
  %v6088 = vmax.f32 %v5980, 0.0
  %v6089 = vmax.f32 %v5981, 0.0
  %v6090 = vmax.f32 %v5982, 0.0
  %v6091 = vmax.f32 %v5983, 0.0
  %v6092 = vmax.f32 %v5984, 0.0
  %v6093 = vmax.f32 %v5985, 0.0
  %v6094 = vmax.f32 %v5986, 0.0
  %v6095 = vmax.f32 %v5987, 0.0
  %v6096 = vmax.f32 %v5988, 0.0
  %v6097 = vmax.f32 %v5989, 0.0
  %v6098 = vmax.f32 %v5990, 0.0
  %v6099 = vmax.f32 %v5991, 0.0
  %v6100 = vmax.f32 %v5992, 0.0
  %v6101 = vmax.f32 %v5993, 0.0
  %v6102 = vmax.f32 %v5994, 0.0
  %v6103 = vmax.f32 %v5995, 0.0
  %v6104 = vmax.f32 %v5996, 0.0
  %v6105 = vmax.f32 %v5997, 0.0
  %v6106 = vmax.f32 %v5998, 0.0
  %v6107 = vmax.f32 %v5999, 0.0
  %v6108 = vmax.f32 %v6000, 0.0
  %v6109 = vmax.f32 %v6001, 0.0
  %v6110 = vmax.f32 %v6002, 0.0
  %v6111 = vmax.f32 %v6003, 0.0
  %v6112 = vmax.f32 %v6004, 0.0
  %v6113 = vmax.f32 %v6005, 0.0
  %v6114 = vmax.f32 %v6006, 0.0
  %v6115 = vmax.f32 %v6007, 0.0
  %v6116 = vmax.f32 %v6008, 0.0
  %v6117 = vmax.f32 %v6009, 0.0
  %v6118 = vmax.f32 %v6010, 0.0
  %v6119 = vmax.f32 %v6011, 0.0
  %v6120 = vmax.f32 %v6012, 0.0
  %v6121 = vmax.f32 %v6013, 0.0
  %v6122 = vmax.f32 %v6014, 0.0
  %v6123 = vmax.f32 %v6015, 0.0
  %v6124 = vmax.f32 %v6016, 0.0
  %v6125 = vmax.f32 %v6017, 0.0
  %v6126 = vmax.f32 %v6018, 0.0
  %v6127 = vmax.f32 %v6019, 0.0
  %v6128 = vmax.f32 %v6020, 0.0
  %v6129 = vmax.f32 %v6021, 0.0
  %v6130 = vmax.f32 %v6022, 0.0
  %v6131 = vmax.f32 %v6023, 0.0
  %v6132 = vmax.f32 %v6024, 0.0
  %v6133 = vmax.f32 %v6025, 0.0
  %v6134 = vmax.f32 %v6026, 0.0
  %v6135 = vmax.f32 %v6027, 0.0
  %v6136 = vmax.f32 %v6028, 0.0
  %v6137 = vmax.f32 %v6029, 0.0
  %v6138 = vmax.f32 %v6030, 0.0
  %v6139 = vmax.f32 %v6031, 0.0
  %v6140 = vmax.f32 %v6032, 0.0
  %v6141 = vmax.f32 %v6033, 0.0
  %v6142 = vmax.f32 %v6034, 0.0
  %v6143 = vmax.f32 %v6035, 0.0
  %v6144 = vmax.f32 %v6036, 0.0
  %v6145 = vmax.f32 %v6037, 0.0
  %v6146 = vmax.f32 %v6038, 0.0
  %v6147 = vmax.f32 %v6039, 0.0
  %v6148 = vmax.f32 %v6040, 0.0
  %v6149 = vld [vmem:[%s14] sm:$0xff]
  %v6150 = vld [vmem:[%s14 + $0x8] sm:$0xff]
  %v6151 = vld [vmem:[%s14 + $0x10] sm:$0xff]
  %v6152 = vld [vmem:[%s14 + $0x18] sm:$0xff]
  %v6153 = vld [vmem:[%s14 + $0x20] sm:$0xff]
  %v6154 = vld [vmem:[%s14 + $0x28] sm:$0xff]
  %v6155 = vld [vmem:[%s14 + $0x30] sm:$0xff]
  %v6156 = vld [vmem:[%s14 + $0x38] sm:$0xff]
  %v6157 = vld [vmem:[%s14 + $0x40] sm:$0xff]
  %v6158 = vld [vmem:[%s14 + $0x48] sm:$0xff]
  %v6159 = vld [vmem:[%s14 + $0x50] sm:$0xff]
  %v6160 = vld [vmem:[%s14 + $0x58] sm:$0xff]
  %v6161 = vld [vmem:[%s14 + $0x60] sm:$0xff]
  %v6162 = vld [vmem:[%s14 + $0x68] sm:$0xff]
  %v6163 = vld [vmem:[%s14 + $0x70] sm:$0xff]
  %v6164 = vld [vmem:[%s14 + $0x78] sm:$0xff]
  %v6165 = vld [vmem:[%s14 + $0x80] sm:$0xff]
  %v6166 = vld [vmem:[%s14 + $0x88] sm:$0xff]
  %v6167 = vld [vmem:[%s14 + $0x90] sm:$0xff]
  %v6168 = vld [vmem:[%s14 + $0x98] sm:$0xff]
  %v6169 = vld [vmem:[%s14 + $0xa0] sm:$0xff]
  %v6170 = vld [vmem:[%s14 + $0xa8] sm:$0xff]
  %v6171 = vld [vmem:[%s14 + $0xb0] sm:$0xff]
  %v6172 = vld [vmem:[%s14 + $0xb8] sm:$0xff]
  %v6173 = vld [vmem:[%s14 + $0xc0] sm:$0xff]
  %v6174 = vld [vmem:[%s14 + $0xc8] sm:$0xff]
  %v6175 = vld [vmem:[%s14 + $0xd0] sm:$0xff]
  %v6176 = vld [vmem:[%s14 + $0xd8] sm:$0xff]
  %v6177 = vld [vmem:[%s14 + $0xe0] sm:$0xff]
  %v6178 = vld [vmem:[%s14 + $0xe8] sm:$0xff]
  %v6179 = vld [vmem:[%s14 + $0xf0] sm:$0xff]
  %v6180 = vld [vmem:[%s14 + $0xf8] sm:$0xff]
  %v6181 = vld [vmem:[%s14 + $0x100] sm:$0xff]
  %v6182 = vld [vmem:[%s14 + $0x108] sm:$0xff]
  %v6183 = vld [vmem:[%s14 + $0x110] sm:$0xff]
  %v6184 = vld [vmem:[%s14 + $0x118] sm:$0xff]
  %v6185 = vld [vmem:[%s14 + $0x120] sm:$0xff]
  %v6186 = vld [vmem:[%s14 + $0x128] sm:$0xff]
  %v6187 = vld [vmem:[%s14 + $0x130] sm:$0xff]
  %v6188 = vld [vmem:[%s14 + $0x138] sm:$0xff]
  %v6189 = vld [vmem:[%s14 + $0x140] sm:$0xff]
  %v6190 = vld [vmem:[%s14 + $0x148] sm:$0xff]
  %v6191 = vld [vmem:[%s14 + $0x150] sm:$0xff]
  %v6192 = vld [vmem:[%s14 + $0x158] sm:$0xff]
  %v6193 = vld [vmem:[%s14 + $0x160] sm:$0xff]
  %v6194 = vld [vmem:[%s14 + $0x168] sm:$0xff]
  %v6195 = vld [vmem:[%s14 + $0x170] sm:$0xff]
  %v6196 = vld [vmem:[%s14 + $0x178] sm:$0xff]
  %v6197 = vld [vmem:[%s14 + $0x180] sm:$0xff]
  %v6198 = vld [vmem:[%s14 + $0x188] sm:$0xff]
  %v6199 = vld [vmem:[%s14 + $0x190] sm:$0xff]
  %v6200 = vld [vmem:[%s14 + $0x198] sm:$0xff]
  %v6201 = vld [vmem:[%s14 + $0x1a0] sm:$0xff]
  %v6202 = vld [vmem:[%s14 + $0x1a8] sm:$0xff]
  %6204 = vset.pattern.permute.xlu0 0
  %6205 = vperm.xlu0 %6204, %v6149
  %v6206 = vpop.permute.xlu0 %6205
  %6209 = vset.pattern.permute.xlu0 0
  %6210 = vperm.xlu0 %6209, %v6150
  %v6211 = vpop.permute.xlu0 %6210
  %6214 = vset.pattern.permute.xlu0 0
  %6215 = vperm.xlu0 %6214, %v6151
  %v6216 = vpop.permute.xlu0 %6215
  %6219 = vset.pattern.permute.xlu0 0
  %6220 = vperm.xlu0 %6219, %v6152
  %v6221 = vpop.permute.xlu0 %6220
  %6224 = vset.pattern.permute.xlu0 0
  %6225 = vperm.xlu0 %6224, %v6153
  %v6226 = vpop.permute.xlu0 %6225
  %6229 = vset.pattern.permute.xlu0 0
  %6230 = vperm.xlu0 %6229, %v6154
  %v6231 = vpop.permute.xlu0 %6230
  %6234 = vset.pattern.permute.xlu0 0
  %6235 = vperm.xlu0 %6234, %v6155
  %v6236 = vpop.permute.xlu0 %6235
  %6239 = vset.pattern.permute.xlu0 0
  %6240 = vperm.xlu0 %6239, %v6156
  %v6241 = vpop.permute.xlu0 %6240
  %6244 = vset.pattern.permute.xlu0 0
  %6245 = vperm.xlu0 %6244, %v6157
  %v6246 = vpop.permute.xlu0 %6245
  %6249 = vset.pattern.permute.xlu0 0
  %6250 = vperm.xlu0 %6249, %v6158
  %v6251 = vpop.permute.xlu0 %6250
  %6254 = vset.pattern.permute.xlu0 0
  %6255 = vperm.xlu0 %6254, %v6159
  %v6256 = vpop.permute.xlu0 %6255
  %6259 = vset.pattern.permute.xlu0 0
  %6260 = vperm.xlu0 %6259, %v6160
  %v6261 = vpop.permute.xlu0 %6260
  %6264 = vset.pattern.permute.xlu0 0
  %6265 = vperm.xlu0 %6264, %v6161
  %v6266 = vpop.permute.xlu0 %6265
  %6269 = vset.pattern.permute.xlu0 0
  %6270 = vperm.xlu0 %6269, %v6162
  %v6271 = vpop.permute.xlu0 %6270
  %6274 = vset.pattern.permute.xlu0 0
  %6275 = vperm.xlu0 %6274, %v6163
  %v6276 = vpop.permute.xlu0 %6275
  %6279 = vset.pattern.permute.xlu0 0
  %6280 = vperm.xlu0 %6279, %v6164
  %v6281 = vpop.permute.xlu0 %6280
  %6284 = vset.pattern.permute.xlu0 0
  %6285 = vperm.xlu0 %6284, %v6165
  %v6286 = vpop.permute.xlu0 %6285
  %6289 = vset.pattern.permute.xlu0 0
  %6290 = vperm.xlu0 %6289, %v6166
  %v6291 = vpop.permute.xlu0 %6290
  %6294 = vset.pattern.permute.xlu0 0
  %6295 = vperm.xlu0 %6294, %v6167
  %v6296 = vpop.permute.xlu0 %6295
  %6299 = vset.pattern.permute.xlu0 0
  %6300 = vperm.xlu0 %6299, %v6168
  %v6301 = vpop.permute.xlu0 %6300
  %6304 = vset.pattern.permute.xlu0 0
  %6305 = vperm.xlu0 %6304, %v6169
  %v6306 = vpop.permute.xlu0 %6305
  %6309 = vset.pattern.permute.xlu0 0
  %6310 = vperm.xlu0 %6309, %v6170
  %v6311 = vpop.permute.xlu0 %6310
  %6314 = vset.pattern.permute.xlu0 0
  %6315 = vperm.xlu0 %6314, %v6171
  %v6316 = vpop.permute.xlu0 %6315
  %6319 = vset.pattern.permute.xlu0 0
  %6320 = vperm.xlu0 %6319, %v6172
  %v6321 = vpop.permute.xlu0 %6320
  %6324 = vset.pattern.permute.xlu0 0
  %6325 = vperm.xlu0 %6324, %v6173
  %v6326 = vpop.permute.xlu0 %6325
  %6329 = vset.pattern.permute.xlu0 0
  %6330 = vperm.xlu0 %6329, %v6174
  %v6331 = vpop.permute.xlu0 %6330
  %6334 = vset.pattern.permute.xlu0 0
  %6335 = vperm.xlu0 %6334, %v6175
  %v6336 = vpop.permute.xlu0 %6335
  %6339 = vset.pattern.permute.xlu0 0
  %6340 = vperm.xlu0 %6339, %v6176
  %v6341 = vpop.permute.xlu0 %6340
  %6344 = vset.pattern.permute.xlu0 0
  %6345 = vperm.xlu0 %6344, %v6177
  %v6346 = vpop.permute.xlu0 %6345
  %6349 = vset.pattern.permute.xlu0 0
  %6350 = vperm.xlu0 %6349, %v6178
  %v6351 = vpop.permute.xlu0 %6350
  %6354 = vset.pattern.permute.xlu0 0
  %6355 = vperm.xlu0 %6354, %v6179
  %v6356 = vpop.permute.xlu0 %6355
  %6359 = vset.pattern.permute.xlu0 0
  %6360 = vperm.xlu0 %6359, %v6180
  %v6361 = vpop.permute.xlu0 %6360
  %6364 = vset.pattern.permute.xlu0 0
  %6365 = vperm.xlu0 %6364, %v6181
  %v6366 = vpop.permute.xlu0 %6365
  %6369 = vset.pattern.permute.xlu0 0
  %6370 = vperm.xlu0 %6369, %v6182
  %v6371 = vpop.permute.xlu0 %6370
  %6374 = vset.pattern.permute.xlu0 0
  %6375 = vperm.xlu0 %6374, %v6183
  %v6376 = vpop.permute.xlu0 %6375
  %6379 = vset.pattern.permute.xlu0 0
  %6380 = vperm.xlu0 %6379, %v6184
  %v6381 = vpop.permute.xlu0 %6380
  %6384 = vset.pattern.permute.xlu0 0
  %6385 = vperm.xlu0 %6384, %v6185
  %v6386 = vpop.permute.xlu0 %6385
  %6389 = vset.pattern.permute.xlu0 0
  %6390 = vperm.xlu0 %6389, %v6186
  %v6391 = vpop.permute.xlu0 %6390
  %6394 = vset.pattern.permute.xlu0 0
  %6395 = vperm.xlu0 %6394, %v6187
  %v6396 = vpop.permute.xlu0 %6395
  %6399 = vset.pattern.permute.xlu0 0
  %6400 = vperm.xlu0 %6399, %v6188
  %v6401 = vpop.permute.xlu0 %6400
  %6404 = vset.pattern.permute.xlu0 0
  %6405 = vperm.xlu0 %6404, %v6189
  %v6406 = vpop.permute.xlu0 %6405
  %6409 = vset.pattern.permute.xlu0 0
  %6410 = vperm.xlu0 %6409, %v6190
  %v6411 = vpop.permute.xlu0 %6410
  %6414 = vset.pattern.permute.xlu0 0
  %6415 = vperm.xlu0 %6414, %v6191
  %v6416 = vpop.permute.xlu0 %6415
  %6419 = vset.pattern.permute.xlu0 0
  %6420 = vperm.xlu0 %6419, %v6192
  %v6421 = vpop.permute.xlu0 %6420
  %6424 = vset.pattern.permute.xlu0 0
  %6425 = vperm.xlu0 %6424, %v6193
  %v6426 = vpop.permute.xlu0 %6425
  %6429 = vset.pattern.permute.xlu0 0
  %6430 = vperm.xlu0 %6429, %v6194
  %v6431 = vpop.permute.xlu0 %6430
  %6434 = vset.pattern.permute.xlu0 0
  %6435 = vperm.xlu0 %6434, %v6195
  %v6436 = vpop.permute.xlu0 %6435
  %6439 = vset.pattern.permute.xlu0 0
  %6440 = vperm.xlu0 %6439, %v6196
  %v6441 = vpop.permute.xlu0 %6440
  %6444 = vset.pattern.permute.xlu0 0
  %6445 = vperm.xlu0 %6444, %v6197
  %v6446 = vpop.permute.xlu0 %6445
  %6449 = vset.pattern.permute.xlu0 0
  %6450 = vperm.xlu0 %6449, %v6198
  %v6451 = vpop.permute.xlu0 %6450
  %6454 = vset.pattern.permute.xlu0 0
  %6455 = vperm.xlu0 %6454, %v6199
  %v6456 = vpop.permute.xlu0 %6455
  %6459 = vset.pattern.permute.xlu0 0
  %6460 = vperm.xlu0 %6459, %v6200
  %v6461 = vpop.permute.xlu0 %6460
  %6464 = vset.pattern.permute.xlu0 0
  %6465 = vperm.xlu0 %6464, %v6201
  %v6466 = vpop.permute.xlu0 %6465
  %6469 = vset.pattern.permute.xlu0 0
  %6470 = vperm.xlu0 %6469, %v6202
  %v6471 = vpop.permute.xlu0 %6470
  %v6473 = vmul.f32 %v6041, %v6206
  %v6474 = vmul.f32 %v6042, %v6211
  %v6475 = vmul.f32 %v6043, %v6216
  %v6476 = vmul.f32 %v6044, %v6221
  %v6477 = vmul.f32 %v6045, %v6226
  %v6478 = vmul.f32 %v6046, %v6231
  %v6479 = vmul.f32 %v6047, %v6236
  %v6480 = vmul.f32 %v6048, %v6241
  %v6481 = vmul.f32 %v6049, %v6246
  %v6482 = vmul.f32 %v6050, %v6251
  %v6483 = vmul.f32 %v6051, %v6256
  %v6484 = vmul.f32 %v6052, %v6261
  %v6485 = vmul.f32 %v6053, %v6266
  %v6486 = vmul.f32 %v6054, %v6271
  %v6487 = vmul.f32 %v6055, %v6276
  %v6488 = vmul.f32 %v6056, %v6281
  %v6489 = vmul.f32 %v6057, %v6286
  %v6490 = vmul.f32 %v6058, %v6291
  %v6491 = vmul.f32 %v6059, %v6296
  %v6492 = vmul.f32 %v6060, %v6301
  %v6493 = vmul.f32 %v6061, %v6306
  %v6494 = vmul.f32 %v6062, %v6311
  %v6495 = vmul.f32 %v6063, %v6316
  %v6496 = vmul.f32 %v6064, %v6321
  %v6497 = vmul.f32 %v6065, %v6326
  %v6498 = vmul.f32 %v6066, %v6331
  %v6499 = vmul.f32 %v6067, %v6336
  %v6500 = vmul.f32 %v6068, %v6341
  %v6501 = vmul.f32 %v6069, %v6346
  %v6502 = vmul.f32 %v6070, %v6351
  %v6503 = vmul.f32 %v6071, %v6356
  %v6504 = vmul.f32 %v6072, %v6361
  %v6505 = vmul.f32 %v6073, %v6366
  %v6506 = vmul.f32 %v6074, %v6371
  %v6507 = vmul.f32 %v6075, %v6376
  %v6508 = vmul.f32 %v6076, %v6381
  %v6509 = vmul.f32 %v6077, %v6386
  %v6510 = vmul.f32 %v6078, %v6391
  %v6511 = vmul.f32 %v6079, %v6396
  %v6512 = vmul.f32 %v6080, %v6401
  %v6513 = vmul.f32 %v6081, %v6406
  %v6514 = vmul.f32 %v6082, %v6411
  %v6515 = vmul.f32 %v6083, %v6416
  %v6516 = vmul.f32 %v6084, %v6421
  %v6517 = vmul.f32 %v6085, %v6426
  %v6518 = vmul.f32 %v6086, %v6431
  %v6519 = vmul.f32 %v6087, %v6436
  %v6520 = vmul.f32 %v6088, %v6441
  %v6521 = vmul.f32 %v6089, %v6446
  %v6522 = vmul.f32 %v6090, %v6451
  %v6523 = vmul.f32 %v6091, %v6456
  %v6524 = vmul.f32 %v6092, %v6461
  %v6525 = vmul.f32 %v6093, %v6466
  %v6526 = vmul.f32 %v6094, %v6471
  %v6527 = vmul.f32 %v6095, %v6206
  %v6528 = vmul.f32 %v6096, %v6211
  %v6529 = vmul.f32 %v6097, %v6216
  %v6530 = vmul.f32 %v6098, %v6221
  %v6531 = vmul.f32 %v6099, %v6226
  %v6532 = vmul.f32 %v6100, %v6231
  %v6533 = vmul.f32 %v6101, %v6236
  %v6534 = vmul.f32 %v6102, %v6241
  %v6535 = vmul.f32 %v6103, %v6246
  %v6536 = vmul.f32 %v6104, %v6251
  %v6537 = vmul.f32 %v6105, %v6256
  %v6538 = vmul.f32 %v6106, %v6261
  %v6539 = vmul.f32 %v6107, %v6266
  %v6540 = vmul.f32 %v6108, %v6271
  %v6541 = vmul.f32 %v6109, %v6276
  %v6542 = vmul.f32 %v6110, %v6281
  %v6543 = vmul.f32 %v6111, %v6286
  %v6544 = vmul.f32 %v6112, %v6291
  %v6545 = vmul.f32 %v6113, %v6296
  %v6546 = vmul.f32 %v6114, %v6301
  %v6547 = vmul.f32 %v6115, %v6306
  %v6548 = vmul.f32 %v6116, %v6311
  %v6549 = vmul.f32 %v6117, %v6316
  %v6550 = vmul.f32 %v6118, %v6321
  %v6551 = vmul.f32 %v6119, %v6326
  %v6552 = vmul.f32 %v6120, %v6331
  %v6553 = vmul.f32 %v6121, %v6336
  %v6554 = vmul.f32 %v6122, %v6341
  %v6555 = vmul.f32 %v6123, %v6346
  %v6556 = vmul.f32 %v6124, %v6351
  %v6557 = vmul.f32 %v6125, %v6356
  %v6558 = vmul.f32 %v6126, %v6361
  %v6559 = vmul.f32 %v6127, %v6366
  %v6560 = vmul.f32 %v6128, %v6371
  %v6561 = vmul.f32 %v6129, %v6376
  %v6562 = vmul.f32 %v6130, %v6381
  %v6563 = vmul.f32 %v6131, %v6386
  %v6564 = vmul.f32 %v6132, %v6391
  %v6565 = vmul.f32 %v6133, %v6396
  %v6566 = vmul.f32 %v6134, %v6401
  %v6567 = vmul.f32 %v6135, %v6406
  %v6568 = vmul.f32 %v6136, %v6411
  %v6569 = vmul.f32 %v6137, %v6416
  %v6570 = vmul.f32 %v6138, %v6421
  %v6571 = vmul.f32 %v6139, %v6426
  %v6572 = vmul.f32 %v6140, %v6431
  %v6573 = vmul.f32 %v6141, %v6436
  %v6574 = vmul.f32 %v6142, %v6441
  %v6575 = vmul.f32 %v6143, %v6446
  %v6576 = vmul.f32 %v6144, %v6451
  %v6577 = vmul.f32 %v6145, %v6456
  %v6578 = vmul.f32 %v6146, %v6461
  %v6579 = vmul.f32 %v6147, %v6466
  %v6580 = vmul.f32 %v6148, %v6471
  %vm6689 = vcmask 1046528
  %v6690 = vrot.slane %v6473, 1
  %v6691 = vrot.slane %v6474, 1
  %v6692 = vsel %vm6689, %v6690, %v6691
  %v6693 = vrot.slane %v6475, 1
  %v6694 = vsel %vm6689, %v6691, %v6693
  %v6695 = vrot.slane %v6476, 1
  %v6696 = vrot.slane %v6477, 1
  %v6697 = vsel %vm6689, %v6695, %v6696
  %v6698 = vrot.slane %v6478, 1
  %v6699 = vsel %vm6689, %v6696, %v6698
  %v6700 = vrot.slane %v6479, 1
  %v6701 = vrot.slane %v6480, 1
  %v6702 = vsel %vm6689, %v6700, %v6701
  %v6703 = vrot.slane %v6481, 1
  %v6704 = vsel %vm6689, %v6701, %v6703
  %v6705 = vrot.slane %v6482, 1
  %v6706 = vrot.slane %v6483, 1
  %v6707 = vsel %vm6689, %v6705, %v6706
  %v6708 = vrot.slane %v6484, 1
  %v6709 = vsel %vm6689, %v6706, %v6708
  %v6710 = vrot.slane %v6485, 1
  %v6711 = vrot.slane %v6486, 1
  %v6712 = vsel %vm6689, %v6710, %v6711
  %v6713 = vrot.slane %v6487, 1
  %v6714 = vsel %vm6689, %v6711, %v6713
  %v6715 = vrot.slane %v6488, 1
  %v6716 = vrot.slane %v6489, 1
  %v6717 = vsel %vm6689, %v6715, %v6716
  %v6718 = vrot.slane %v6490, 1
  %v6719 = vsel %vm6689, %v6716, %v6718
  %v6720 = vrot.slane %v6491, 1
  %v6721 = vrot.slane %v6492, 1
  %v6722 = vsel %vm6689, %v6720, %v6721
  %v6723 = vrot.slane %v6493, 1
  %v6724 = vsel %vm6689, %v6721, %v6723
  %v6725 = vrot.slane %v6494, 1
  %v6726 = vrot.slane %v6495, 1
  %v6727 = vsel %vm6689, %v6725, %v6726
  %v6728 = vrot.slane %v6496, 1
  %v6729 = vsel %vm6689, %v6726, %v6728
  %v6730 = vrot.slane %v6497, 1
  %v6731 = vrot.slane %v6498, 1
  %v6732 = vsel %vm6689, %v6730, %v6731
  %v6733 = vrot.slane %v6499, 1
  %v6734 = vsel %vm6689, %v6731, %v6733
  %v6735 = vrot.slane %v6500, 1
  %v6736 = vrot.slane %v6501, 1
  %v6737 = vsel %vm6689, %v6735, %v6736
  %v6738 = vrot.slane %v6502, 1
  %v6739 = vsel %vm6689, %v6736, %v6738
  %v6740 = vrot.slane %v6503, 1
  %v6741 = vrot.slane %v6504, 1
  %v6742 = vsel %vm6689, %v6740, %v6741
  %v6743 = vrot.slane %v6505, 1
  %v6744 = vsel %vm6689, %v6741, %v6743
  %v6745 = vrot.slane %v6506, 1
  %v6746 = vrot.slane %v6507, 1
  %v6747 = vsel %vm6689, %v6745, %v6746
  %v6748 = vrot.slane %v6508, 1
  %v6749 = vsel %vm6689, %v6746, %v6748
  %v6750 = vrot.slane %v6509, 1
  %v6751 = vrot.slane %v6510, 1
  %v6752 = vsel %vm6689, %v6750, %v6751
  %v6753 = vrot.slane %v6511, 1
  %v6754 = vsel %vm6689, %v6751, %v6753
  %v6755 = vrot.slane %v6512, 1
  %v6756 = vrot.slane %v6513, 1
  %v6757 = vsel %vm6689, %v6755, %v6756
  %v6758 = vrot.slane %v6514, 1
  %v6759 = vsel %vm6689, %v6756, %v6758
  %v6760 = vrot.slane %v6515, 1
  %v6761 = vrot.slane %v6516, 1
  %v6762 = vsel %vm6689, %v6760, %v6761
  %v6763 = vrot.slane %v6517, 1
  %v6764 = vsel %vm6689, %v6761, %v6763
  %v6765 = vrot.slane %v6518, 1
  %v6766 = vrot.slane %v6519, 1
  %v6767 = vsel %vm6689, %v6765, %v6766
  %v6768 = vrot.slane %v6520, 1
  %v6769 = vsel %vm6689, %v6766, %v6768
  %v6770 = vrot.slane %v6521, 1
  %v6771 = vrot.slane %v6522, 1
  %v6772 = vsel %vm6689, %v6770, %v6771
  %v6773 = vrot.slane %v6523, 1
  %v6774 = vsel %vm6689, %v6771, %v6773
  %v6775 = vrot.slane %v6524, 1
  %v6776 = vrot.slane %v6525, 1
  %v6777 = vsel %vm6689, %v6775, %v6776
  %v6778 = vrot.slane %v6526, 1
  %v6779 = vsel %vm6689, %v6776, %v6778
  %v6780 = vrot.slane %v6527, 1
  %v6781 = vrot.slane %v6528, 1
  %v6782 = vsel %vm6689, %v6780, %v6781
  %v6783 = vrot.slane %v6529, 1
  %v6784 = vsel %vm6689, %v6781, %v6783
  %v6785 = vrot.slane %v6530, 1
  %v6786 = vrot.slane %v6531, 1
  %v6787 = vsel %vm6689, %v6785, %v6786
  %v6788 = vrot.slane %v6532, 1
  %v6789 = vsel %vm6689, %v6786, %v6788
  %v6790 = vrot.slane %v6533, 1
  %v6791 = vrot.slane %v6534, 1
  %v6792 = vsel %vm6689, %v6790, %v6791
  %v6793 = vrot.slane %v6535, 1
  %v6794 = vsel %vm6689, %v6791, %v6793
  %v6795 = vrot.slane %v6536, 1
  %v6796 = vrot.slane %v6537, 1
  %v6797 = vsel %vm6689, %v6795, %v6796
  %v6798 = vrot.slane %v6538, 1
  %v6799 = vsel %vm6689, %v6796, %v6798
  %v6800 = vrot.slane %v6539, 1
  %v6801 = vrot.slane %v6540, 1
  %v6802 = vsel %vm6689, %v6800, %v6801
  %v6803 = vrot.slane %v6541, 1
  %v6804 = vsel %vm6689, %v6801, %v6803
  %v6805 = vrot.slane %v6542, 1
  %v6806 = vrot.slane %v6543, 1
  %v6807 = vsel %vm6689, %v6805, %v6806
  %v6808 = vrot.slane %v6544, 1
  %v6809 = vsel %vm6689, %v6806, %v6808
  %v6810 = vrot.slane %v6545, 1
  %v6811 = vrot.slane %v6546, 1
  %v6812 = vsel %vm6689, %v6810, %v6811
  %v6813 = vrot.slane %v6547, 1
  %v6814 = vsel %vm6689, %v6811, %v6813
  %v6815 = vrot.slane %v6548, 1
  %v6816 = vrot.slane %v6549, 1
  %v6817 = vsel %vm6689, %v6815, %v6816
  %v6818 = vrot.slane %v6550, 1
  %v6819 = vsel %vm6689, %v6816, %v6818
  %v6820 = vrot.slane %v6551, 1
  %v6821 = vrot.slane %v6552, 1
  %v6822 = vsel %vm6689, %v6820, %v6821
  %v6823 = vrot.slane %v6553, 1
  %v6824 = vsel %vm6689, %v6821, %v6823
  %v6825 = vrot.slane %v6554, 1
  %v6826 = vrot.slane %v6555, 1
  %v6827 = vsel %vm6689, %v6825, %v6826
  %v6828 = vrot.slane %v6556, 1
  %v6829 = vsel %vm6689, %v6826, %v6828
  %v6830 = vrot.slane %v6557, 1
  %v6831 = vrot.slane %v6558, 1
  %v6832 = vsel %vm6689, %v6830, %v6831
  %v6833 = vrot.slane %v6559, 1
  %v6834 = vsel %vm6689, %v6831, %v6833
  %v6835 = vrot.slane %v6560, 1
  %v6836 = vrot.slane %v6561, 1
  %v6837 = vsel %vm6689, %v6835, %v6836
  %v6838 = vrot.slane %v6562, 1
  %v6839 = vsel %vm6689, %v6836, %v6838
  %v6840 = vrot.slane %v6563, 1
  %v6841 = vrot.slane %v6564, 1
  %v6842 = vsel %vm6689, %v6840, %v6841
  %v6843 = vrot.slane %v6565, 1
  %v6844 = vsel %vm6689, %v6841, %v6843
  %v6845 = vrot.slane %v6566, 1
  %v6846 = vrot.slane %v6567, 1
  %v6847 = vsel %vm6689, %v6845, %v6846
  %v6848 = vrot.slane %v6568, 1
  %v6849 = vsel %vm6689, %v6846, %v6848
  %v6850 = vrot.slane %v6569, 1
  %v6851 = vrot.slane %v6570, 1
  %v6852 = vsel %vm6689, %v6850, %v6851
  %v6853 = vrot.slane %v6571, 1
  %v6854 = vsel %vm6689, %v6851, %v6853
  %v6855 = vrot.slane %v6572, 1
  %v6856 = vrot.slane %v6573, 1
  %v6857 = vsel %vm6689, %v6855, %v6856
  %v6858 = vrot.slane %v6574, 1
  %v6859 = vsel %vm6689, %v6856, %v6858
  %v6860 = vrot.slane %v6575, 1
  %v6861 = vrot.slane %v6576, 1
  %v6862 = vsel %vm6689, %v6860, %v6861
  %v6863 = vrot.slane %v6577, 1
  %v6864 = vsel %vm6689, %v6861, %v6863
  %v6865 = vrot.slane %v6578, 1
  %v6866 = vrot.slane %v6579, 1
  %v6867 = vsel %vm6689, %v6865, %v6866
  %v6868 = vrot.slane %v6580, 1
  %v6869 = vsel %vm6689, %v6866, %v6868
  %6870 = vrot.lane.b32.xlu0 %v6692, 32
  %v6871 = vpop.permute.xlu0 %6870
  %6872 = vrot.lane.b32.xlu0 %v6694, 32
  %v6873 = vpop.permute.xlu0 %6872
  %6874 = vrot.lane.b32.xlu0 %v6697, 32
  %v6875 = vpop.permute.xlu0 %6874
  %6876 = vrot.lane.b32.xlu0 %v6699, 32
  %v6877 = vpop.permute.xlu0 %6876
  %6878 = vrot.lane.b32.xlu0 %v6702, 32
  %v6879 = vpop.permute.xlu0 %6878
  %6880 = vrot.lane.b32.xlu0 %v6704, 32
  %v6881 = vpop.permute.xlu0 %6880
  %6882 = vrot.lane.b32.xlu0 %v6707, 32
  %v6883 = vpop.permute.xlu0 %6882
  %6884 = vrot.lane.b32.xlu0 %v6709, 32
  %v6885 = vpop.permute.xlu0 %6884
  %6886 = vrot.lane.b32.xlu0 %v6712, 32
  %v6887 = vpop.permute.xlu0 %6886
  %6888 = vrot.lane.b32.xlu0 %v6714, 32
  %v6889 = vpop.permute.xlu0 %6888
  %6890 = vrot.lane.b32.xlu0 %v6717, 32
  %v6891 = vpop.permute.xlu0 %6890
  %6892 = vrot.lane.b32.xlu0 %v6719, 32
  %v6893 = vpop.permute.xlu0 %6892
  %6894 = vrot.lane.b32.xlu0 %v6722, 32
  %v6895 = vpop.permute.xlu0 %6894
  %6896 = vrot.lane.b32.xlu0 %v6724, 32
  %v6897 = vpop.permute.xlu0 %6896
  %6898 = vrot.lane.b32.xlu0 %v6727, 32
  %v6899 = vpop.permute.xlu0 %6898
  %6900 = vrot.lane.b32.xlu0 %v6729, 32
  %v6901 = vpop.permute.xlu0 %6900
  %6902 = vrot.lane.b32.xlu0 %v6732, 32
  %v6903 = vpop.permute.xlu0 %6902
  %6904 = vrot.lane.b32.xlu0 %v6734, 32
  %v6905 = vpop.permute.xlu0 %6904
  %6906 = vrot.lane.b32.xlu0 %v6737, 32
  %v6907 = vpop.permute.xlu0 %6906
  %6908 = vrot.lane.b32.xlu0 %v6739, 32
  %v6909 = vpop.permute.xlu0 %6908
  %6910 = vrot.lane.b32.xlu0 %v6742, 32
  %v6911 = vpop.permute.xlu0 %6910
  %6912 = vrot.lane.b32.xlu0 %v6744, 32
  %v6913 = vpop.permute.xlu0 %6912
  %6914 = vrot.lane.b32.xlu0 %v6747, 32
  %v6915 = vpop.permute.xlu0 %6914
  %6916 = vrot.lane.b32.xlu0 %v6749, 32
  %v6917 = vpop.permute.xlu0 %6916
  %6918 = vrot.lane.b32.xlu0 %v6752, 32
  %v6919 = vpop.permute.xlu0 %6918
  %6920 = vrot.lane.b32.xlu0 %v6754, 32
  %v6921 = vpop.permute.xlu0 %6920
  %6922 = vrot.lane.b32.xlu0 %v6757, 32
  %v6923 = vpop.permute.xlu0 %6922
  %6924 = vrot.lane.b32.xlu0 %v6759, 32
  %v6925 = vpop.permute.xlu0 %6924
  %6926 = vrot.lane.b32.xlu0 %v6762, 32
  %v6927 = vpop.permute.xlu0 %6926
  %6928 = vrot.lane.b32.xlu0 %v6764, 32
  %v6929 = vpop.permute.xlu0 %6928
  %6930 = vrot.lane.b32.xlu0 %v6767, 32
  %v6931 = vpop.permute.xlu0 %6930
  %6932 = vrot.lane.b32.xlu0 %v6769, 32
  %v6933 = vpop.permute.xlu0 %6932
  %6934 = vrot.lane.b32.xlu0 %v6772, 32
  %v6935 = vpop.permute.xlu0 %6934
  %6936 = vrot.lane.b32.xlu0 %v6774, 32
  %v6937 = vpop.permute.xlu0 %6936
  %6938 = vrot.lane.b32.xlu0 %v6777, 32
  %v6939 = vpop.permute.xlu0 %6938
  %6940 = vrot.lane.b32.xlu0 %v6779, 32
  %v6941 = vpop.permute.xlu0 %6940
  %6942 = vrot.lane.b32.xlu0 %v6782, 32
  %v6943 = vpop.permute.xlu0 %6942
  %6944 = vrot.lane.b32.xlu0 %v6784, 32
  %v6945 = vpop.permute.xlu0 %6944
  %6946 = vrot.lane.b32.xlu0 %v6787, 32
  %v6947 = vpop.permute.xlu0 %6946
  %6948 = vrot.lane.b32.xlu0 %v6789, 32
  %v6949 = vpop.permute.xlu0 %6948
  %6950 = vrot.lane.b32.xlu0 %v6792, 32
  %v6951 = vpop.permute.xlu0 %6950
  %6952 = vrot.lane.b32.xlu0 %v6794, 32
  %v6953 = vpop.permute.xlu0 %6952
  %6954 = vrot.lane.b32.xlu0 %v6797, 32
  %v6955 = vpop.permute.xlu0 %6954
  %6956 = vrot.lane.b32.xlu0 %v6799, 32
  %v6957 = vpop.permute.xlu0 %6956
  %6958 = vrot.lane.b32.xlu0 %v6802, 32
  %v6959 = vpop.permute.xlu0 %6958
  %6960 = vrot.lane.b32.xlu0 %v6804, 32
  %v6961 = vpop.permute.xlu0 %6960
  %6962 = vrot.lane.b32.xlu0 %v6807, 32
  %v6963 = vpop.permute.xlu0 %6962
  %6964 = vrot.lane.b32.xlu0 %v6809, 32
  %v6965 = vpop.permute.xlu0 %6964
  %6966 = vrot.lane.b32.xlu0 %v6812, 32
  %v6967 = vpop.permute.xlu0 %6966
  %6968 = vrot.lane.b32.xlu0 %v6814, 32
  %v6969 = vpop.permute.xlu0 %6968
  %6970 = vrot.lane.b32.xlu0 %v6817, 32
  %v6971 = vpop.permute.xlu0 %6970
  %6972 = vrot.lane.b32.xlu0 %v6819, 32
  %v6973 = vpop.permute.xlu0 %6972
  %6974 = vrot.lane.b32.xlu0 %v6822, 32
  %v6975 = vpop.permute.xlu0 %6974
  %6976 = vrot.lane.b32.xlu0 %v6824, 32
  %v6977 = vpop.permute.xlu0 %6976
  %6978 = vrot.lane.b32.xlu0 %v6827, 32
  %v6979 = vpop.permute.xlu0 %6978
  %6980 = vrot.lane.b32.xlu0 %v6829, 32
  %v6981 = vpop.permute.xlu0 %6980
  %6982 = vrot.lane.b32.xlu0 %v6832, 32
  %v6983 = vpop.permute.xlu0 %6982
  %6984 = vrot.lane.b32.xlu0 %v6834, 32
  %v6985 = vpop.permute.xlu0 %6984
  %6986 = vrot.lane.b32.xlu0 %v6837, 32
  %v6987 = vpop.permute.xlu0 %6986
  %6988 = vrot.lane.b32.xlu0 %v6839, 32
  %v6989 = vpop.permute.xlu0 %6988
  %6990 = vrot.lane.b32.xlu0 %v6842, 32
  %v6991 = vpop.permute.xlu0 %6990
  %6992 = vrot.lane.b32.xlu0 %v6844, 32
  %v6993 = vpop.permute.xlu0 %6992
  %6994 = vrot.lane.b32.xlu0 %v6847, 32
  %v6995 = vpop.permute.xlu0 %6994
  %6996 = vrot.lane.b32.xlu0 %v6849, 32
  %v6997 = vpop.permute.xlu0 %6996
  %6998 = vrot.lane.b32.xlu0 %v6852, 32
  %v6999 = vpop.permute.xlu0 %6998
  %7000 = vrot.lane.b32.xlu0 %v6854, 32
  %v7001 = vpop.permute.xlu0 %7000
  %7002 = vrot.lane.b32.xlu0 %v6857, 32
  %v7003 = vpop.permute.xlu0 %7002
  %7004 = vrot.lane.b32.xlu0 %v6859, 32
  %v7005 = vpop.permute.xlu0 %7004
  %7006 = vrot.lane.b32.xlu0 %v6862, 32
  %v7007 = vpop.permute.xlu0 %7006
  %7008 = vrot.lane.b32.xlu0 %v6864, 32
  %v7009 = vpop.permute.xlu0 %7008
  %7010 = vrot.lane.b32.xlu0 %v6867, 32
  %v7011 = vpop.permute.xlu0 %7010
  %7012 = vrot.lane.b32.xlu0 %v6869, 32
  %v7013 = vpop.permute.xlu0 %7012
  %vm7086 = vcmask 1045504
  %v7087 = vrot.slane %v6473, 2
  %v7088 = vrot.slane %v6474, 2
  %v7089 = vsel %vm7086, %v7087, %v7088
  %v7090 = vrot.slane %v6475, 2
  %v7091 = vsel %vm7086, %v7088, %v7090
  %v7092 = vrot.slane %v6476, 2
  %v7093 = vrot.slane %v6477, 2
  %v7094 = vsel %vm7086, %v7092, %v7093
  %v7095 = vrot.slane %v6478, 2
  %v7096 = vsel %vm7086, %v7093, %v7095
  %v7097 = vrot.slane %v6479, 2
  %v7098 = vrot.slane %v6480, 2
  %v7099 = vsel %vm7086, %v7097, %v7098
  %v7100 = vrot.slane %v6481, 2
  %v7101 = vsel %vm7086, %v7098, %v7100
  %v7102 = vrot.slane %v6482, 2
  %v7103 = vrot.slane %v6483, 2
  %v7104 = vsel %vm7086, %v7102, %v7103
  %v7105 = vrot.slane %v6484, 2
  %v7106 = vsel %vm7086, %v7103, %v7105
  %v7107 = vrot.slane %v6485, 2
  %v7108 = vrot.slane %v6486, 2
  %v7109 = vsel %vm7086, %v7107, %v7108
  %v7110 = vrot.slane %v6487, 2
  %v7111 = vsel %vm7086, %v7108, %v7110
  %v7112 = vrot.slane %v6488, 2
  %v7113 = vrot.slane %v6489, 2
  %v7114 = vsel %vm7086, %v7112, %v7113
  %v7115 = vrot.slane %v6490, 2
  %v7116 = vsel %vm7086, %v7113, %v7115
  %v7117 = vrot.slane %v6491, 2
  %v7118 = vrot.slane %v6492, 2
  %v7119 = vsel %vm7086, %v7117, %v7118
  %v7120 = vrot.slane %v6493, 2
  %v7121 = vsel %vm7086, %v7118, %v7120
  %v7122 = vrot.slane %v6494, 2
  %v7123 = vrot.slane %v6495, 2
  %v7124 = vsel %vm7086, %v7122, %v7123
  %v7125 = vrot.slane %v6496, 2
  %v7126 = vsel %vm7086, %v7123, %v7125
  %v7127 = vrot.slane %v6497, 2
  %v7128 = vrot.slane %v6498, 2
  %v7129 = vsel %vm7086, %v7127, %v7128
  %v7130 = vrot.slane %v6499, 2
  %v7131 = vsel %vm7086, %v7128, %v7130
  %v7132 = vrot.slane %v6500, 2
  %v7133 = vrot.slane %v6501, 2
  %v7134 = vsel %vm7086, %v7132, %v7133
  %v7135 = vrot.slane %v6502, 2
  %v7136 = vsel %vm7086, %v7133, %v7135
  %v7137 = vrot.slane %v6503, 2
  %v7138 = vrot.slane %v6504, 2
  %v7139 = vsel %vm7086, %v7137, %v7138
  %v7140 = vrot.slane %v6505, 2
  %v7141 = vsel %vm7086, %v7138, %v7140
  %v7142 = vrot.slane %v6506, 2
  %v7143 = vrot.slane %v6507, 2
  %v7144 = vsel %vm7086, %v7142, %v7143
  %v7145 = vrot.slane %v6508, 2
  %v7146 = vsel %vm7086, %v7143, %v7145
  %v7147 = vrot.slane %v6509, 2
  %v7148 = vrot.slane %v6510, 2
  %v7149 = vsel %vm7086, %v7147, %v7148
  %v7150 = vrot.slane %v6511, 2
  %v7151 = vsel %vm7086, %v7148, %v7150
  %v7152 = vrot.slane %v6512, 2
  %v7153 = vrot.slane %v6513, 2
  %v7154 = vsel %vm7086, %v7152, %v7153
  %v7155 = vrot.slane %v6514, 2
  %v7156 = vsel %vm7086, %v7153, %v7155
  %v7157 = vrot.slane %v6515, 2
  %v7158 = vrot.slane %v6516, 2
  %v7159 = vsel %vm7086, %v7157, %v7158
  %v7160 = vrot.slane %v6517, 2
  %v7161 = vsel %vm7086, %v7158, %v7160
  %v7162 = vrot.slane %v6518, 2
  %v7163 = vrot.slane %v6519, 2
  %v7164 = vsel %vm7086, %v7162, %v7163
  %v7165 = vrot.slane %v6520, 2
  %v7166 = vsel %vm7086, %v7163, %v7165
  %v7167 = vrot.slane %v6521, 2
  %v7168 = vrot.slane %v6522, 2
  %v7169 = vsel %vm7086, %v7167, %v7168
  %v7170 = vrot.slane %v6523, 2
  %v7171 = vsel %vm7086, %v7168, %v7170
  %v7172 = vrot.slane %v6524, 2
  %v7173 = vrot.slane %v6525, 2
  %v7174 = vsel %vm7086, %v7172, %v7173
  %v7175 = vrot.slane %v6526, 2
  %v7176 = vsel %vm7086, %v7173, %v7175
  %v7177 = vrot.slane %v6527, 2
  %v7178 = vrot.slane %v6528, 2
  %v7179 = vsel %vm7086, %v7177, %v7178
  %v7180 = vrot.slane %v6529, 2
  %v7181 = vsel %vm7086, %v7178, %v7180
  %v7182 = vrot.slane %v6530, 2
  %v7183 = vrot.slane %v6531, 2
  %v7184 = vsel %vm7086, %v7182, %v7183
  %v7185 = vrot.slane %v6532, 2
  %v7186 = vsel %vm7086, %v7183, %v7185
  %v7187 = vrot.slane %v6533, 2
  %v7188 = vrot.slane %v6534, 2
  %v7189 = vsel %vm7086, %v7187, %v7188
  %v7190 = vrot.slane %v6535, 2
  %v7191 = vsel %vm7086, %v7188, %v7190
  %v7192 = vrot.slane %v6536, 2
  %v7193 = vrot.slane %v6537, 2
  %v7194 = vsel %vm7086, %v7192, %v7193
  %v7195 = vrot.slane %v6538, 2
  %v7196 = vsel %vm7086, %v7193, %v7195
  %v7197 = vrot.slane %v6539, 2
  %v7198 = vrot.slane %v6540, 2
  %v7199 = vsel %vm7086, %v7197, %v7198
  %v7200 = vrot.slane %v6541, 2
  %v7201 = vsel %vm7086, %v7198, %v7200
  %v7202 = vrot.slane %v6542, 2
  %v7203 = vrot.slane %v6543, 2
  %v7204 = vsel %vm7086, %v7202, %v7203
  %v7205 = vrot.slane %v6544, 2
  %v7206 = vsel %vm7086, %v7203, %v7205
  %v7207 = vrot.slane %v6545, 2
  %v7208 = vrot.slane %v6546, 2
  %v7209 = vsel %vm7086, %v7207, %v7208
  %v7210 = vrot.slane %v6547, 2
  %v7211 = vsel %vm7086, %v7208, %v7210
  %v7212 = vrot.slane %v6548, 2
  %v7213 = vrot.slane %v6549, 2
  %v7214 = vsel %vm7086, %v7212, %v7213
  %v7215 = vrot.slane %v6550, 2
  %v7216 = vsel %vm7086, %v7213, %v7215
  %v7217 = vrot.slane %v6551, 2
  %v7218 = vrot.slane %v6552, 2
  %v7219 = vsel %vm7086, %v7217, %v7218
  %v7220 = vrot.slane %v6553, 2
  %v7221 = vsel %vm7086, %v7218, %v7220
  %v7222 = vrot.slane %v6554, 2
  %v7223 = vrot.slane %v6555, 2
  %v7224 = vsel %vm7086, %v7222, %v7223
  %v7225 = vrot.slane %v6556, 2
  %v7226 = vsel %vm7086, %v7223, %v7225
  %v7227 = vrot.slane %v6557, 2
  %v7228 = vrot.slane %v6558, 2
  %v7229 = vsel %vm7086, %v7227, %v7228
  %v7230 = vrot.slane %v6559, 2
  %v7231 = vsel %vm7086, %v7228, %v7230
  %v7232 = vrot.slane %v6560, 2
  %v7233 = vrot.slane %v6561, 2
  %v7234 = vsel %vm7086, %v7232, %v7233
  %v7235 = vrot.slane %v6562, 2
  %v7236 = vsel %vm7086, %v7233, %v7235
  %v7237 = vrot.slane %v6563, 2
  %v7238 = vrot.slane %v6564, 2
  %v7239 = vsel %vm7086, %v7237, %v7238
  %v7240 = vrot.slane %v6565, 2
  %v7241 = vsel %vm7086, %v7238, %v7240
  %v7242 = vrot.slane %v6566, 2
  %v7243 = vrot.slane %v6567, 2
  %v7244 = vsel %vm7086, %v7242, %v7243
  %v7245 = vrot.slane %v6568, 2
  %v7246 = vsel %vm7086, %v7243, %v7245
  %v7247 = vrot.slane %v6569, 2
  %v7248 = vrot.slane %v6570, 2
  %v7249 = vsel %vm7086, %v7247, %v7248
  %v7250 = vrot.slane %v6571, 2
  %v7251 = vsel %vm7086, %v7248, %v7250
  %v7252 = vrot.slane %v6572, 2
  %v7253 = vrot.slane %v6573, 2
  %v7254 = vsel %vm7086, %v7252, %v7253
  %v7255 = vrot.slane %v6574, 2
  %v7256 = vsel %vm7086, %v7253, %v7255
  %v7257 = vrot.slane %v6575, 2
  %v7258 = vrot.slane %v6576, 2
  %v7259 = vsel %vm7086, %v7257, %v7258
  %v7260 = vrot.slane %v6577, 2
  %v7261 = vsel %vm7086, %v7258, %v7260
  %v7262 = vrot.slane %v6578, 2
  %v7263 = vrot.slane %v6579, 2
  %v7264 = vsel %vm7086, %v7262, %v7263
  %v7265 = vrot.slane %v6580, 2
  %v7266 = vsel %vm7086, %v7263, %v7265
  %7267 = vrot.lane.b32.xlu0 %v7089, 64
  %v7268 = vpop.permute.xlu0 %7267
  %7269 = vrot.lane.b32.xlu0 %v7091, 64
  %v7270 = vpop.permute.xlu0 %7269
  %7271 = vrot.lane.b32.xlu0 %v7094, 64
  %v7272 = vpop.permute.xlu0 %7271
  %7273 = vrot.lane.b32.xlu0 %v7096, 64
  %v7274 = vpop.permute.xlu0 %7273
  %7275 = vrot.lane.b32.xlu0 %v7099, 64
  %v7276 = vpop.permute.xlu0 %7275
  %7277 = vrot.lane.b32.xlu0 %v7101, 64
  %v7278 = vpop.permute.xlu0 %7277
  %7279 = vrot.lane.b32.xlu0 %v7104, 64
  %v7280 = vpop.permute.xlu0 %7279
  %7281 = vrot.lane.b32.xlu0 %v7106, 64
  %v7282 = vpop.permute.xlu0 %7281
  %7283 = vrot.lane.b32.xlu0 %v7109, 64
  %v7284 = vpop.permute.xlu0 %7283
  %7285 = vrot.lane.b32.xlu0 %v7111, 64
  %v7286 = vpop.permute.xlu0 %7285
  %7287 = vrot.lane.b32.xlu0 %v7114, 64
  %v7288 = vpop.permute.xlu0 %7287
  %7289 = vrot.lane.b32.xlu0 %v7116, 64
  %v7290 = vpop.permute.xlu0 %7289
  %7291 = vrot.lane.b32.xlu0 %v7119, 64
  %v7292 = vpop.permute.xlu0 %7291
  %7293 = vrot.lane.b32.xlu0 %v7121, 64
  %v7294 = vpop.permute.xlu0 %7293
  %7295 = vrot.lane.b32.xlu0 %v7124, 64
  %v7296 = vpop.permute.xlu0 %7295
  %7297 = vrot.lane.b32.xlu0 %v7126, 64
  %v7298 = vpop.permute.xlu0 %7297
  %7299 = vrot.lane.b32.xlu0 %v7129, 64
  %v7300 = vpop.permute.xlu0 %7299
  %7301 = vrot.lane.b32.xlu0 %v7131, 64
  %v7302 = vpop.permute.xlu0 %7301
  %7303 = vrot.lane.b32.xlu0 %v7134, 64
  %v7304 = vpop.permute.xlu0 %7303
  %7305 = vrot.lane.b32.xlu0 %v7136, 64
  %v7306 = vpop.permute.xlu0 %7305
  %7307 = vrot.lane.b32.xlu0 %v7139, 64
  %v7308 = vpop.permute.xlu0 %7307
  %7309 = vrot.lane.b32.xlu0 %v7141, 64
  %v7310 = vpop.permute.xlu0 %7309
  %7311 = vrot.lane.b32.xlu0 %v7144, 64
  %v7312 = vpop.permute.xlu0 %7311
  %7313 = vrot.lane.b32.xlu0 %v7146, 64
  %v7314 = vpop.permute.xlu0 %7313
  %7315 = vrot.lane.b32.xlu0 %v7149, 64
  %v7316 = vpop.permute.xlu0 %7315
  %7317 = vrot.lane.b32.xlu0 %v7151, 64
  %v7318 = vpop.permute.xlu0 %7317
  %7319 = vrot.lane.b32.xlu0 %v7154, 64
  %v7320 = vpop.permute.xlu0 %7319
  %7321 = vrot.lane.b32.xlu0 %v7156, 64
  %v7322 = vpop.permute.xlu0 %7321
  %7323 = vrot.lane.b32.xlu0 %v7159, 64
  %v7324 = vpop.permute.xlu0 %7323
  %7325 = vrot.lane.b32.xlu0 %v7161, 64
  %v7326 = vpop.permute.xlu0 %7325
  %7327 = vrot.lane.b32.xlu0 %v7164, 64
  %v7328 = vpop.permute.xlu0 %7327
  %7329 = vrot.lane.b32.xlu0 %v7166, 64
  %v7330 = vpop.permute.xlu0 %7329
  %7331 = vrot.lane.b32.xlu0 %v7169, 64
  %v7332 = vpop.permute.xlu0 %7331
  %7333 = vrot.lane.b32.xlu0 %v7171, 64
  %v7334 = vpop.permute.xlu0 %7333
  %7335 = vrot.lane.b32.xlu0 %v7174, 64
  %v7336 = vpop.permute.xlu0 %7335
  %7337 = vrot.lane.b32.xlu0 %v7176, 64
  %v7338 = vpop.permute.xlu0 %7337
  %7339 = vrot.lane.b32.xlu0 %v7179, 64
  %v7340 = vpop.permute.xlu0 %7339
  %7341 = vrot.lane.b32.xlu0 %v7181, 64
  %v7342 = vpop.permute.xlu0 %7341
  %7343 = vrot.lane.b32.xlu0 %v7184, 64
  %v7344 = vpop.permute.xlu0 %7343
  %7345 = vrot.lane.b32.xlu0 %v7186, 64
  %v7346 = vpop.permute.xlu0 %7345
  %7347 = vrot.lane.b32.xlu0 %v7189, 64
  %v7348 = vpop.permute.xlu0 %7347
  %7349 = vrot.lane.b32.xlu0 %v7191, 64
  %v7350 = vpop.permute.xlu0 %7349
  %7351 = vrot.lane.b32.xlu0 %v7194, 64
  %v7352 = vpop.permute.xlu0 %7351
  %7353 = vrot.lane.b32.xlu0 %v7196, 64
  %v7354 = vpop.permute.xlu0 %7353
  %7355 = vrot.lane.b32.xlu0 %v7199, 64
  %v7356 = vpop.permute.xlu0 %7355
  %7357 = vrot.lane.b32.xlu0 %v7201, 64
  %v7358 = vpop.permute.xlu0 %7357
  %7359 = vrot.lane.b32.xlu0 %v7204, 64
  %v7360 = vpop.permute.xlu0 %7359
  %7361 = vrot.lane.b32.xlu0 %v7206, 64
  %v7362 = vpop.permute.xlu0 %7361
  %7363 = vrot.lane.b32.xlu0 %v7209, 64
  %v7364 = vpop.permute.xlu0 %7363
  %7365 = vrot.lane.b32.xlu0 %v7211, 64
  %v7366 = vpop.permute.xlu0 %7365
  %7367 = vrot.lane.b32.xlu0 %v7214, 64
  %v7368 = vpop.permute.xlu0 %7367
  %7369 = vrot.lane.b32.xlu0 %v7216, 64
  %v7370 = vpop.permute.xlu0 %7369
  %7371 = vrot.lane.b32.xlu0 %v7219, 64
  %v7372 = vpop.permute.xlu0 %7371
  %7373 = vrot.lane.b32.xlu0 %v7221, 64
  %v7374 = vpop.permute.xlu0 %7373
  %7375 = vrot.lane.b32.xlu0 %v7224, 64
  %v7376 = vpop.permute.xlu0 %7375
  %7377 = vrot.lane.b32.xlu0 %v7226, 64
  %v7378 = vpop.permute.xlu0 %7377
  %7379 = vrot.lane.b32.xlu0 %v7229, 64
  %v7380 = vpop.permute.xlu0 %7379
  %7381 = vrot.lane.b32.xlu0 %v7231, 64
  %v7382 = vpop.permute.xlu0 %7381
  %7383 = vrot.lane.b32.xlu0 %v7234, 64
  %v7384 = vpop.permute.xlu0 %7383
  %7385 = vrot.lane.b32.xlu0 %v7236, 64
  %v7386 = vpop.permute.xlu0 %7385
  %7387 = vrot.lane.b32.xlu0 %v7239, 64
  %v7388 = vpop.permute.xlu0 %7387
  %7389 = vrot.lane.b32.xlu0 %v7241, 64
  %v7390 = vpop.permute.xlu0 %7389
  %7391 = vrot.lane.b32.xlu0 %v7244, 64
  %v7392 = vpop.permute.xlu0 %7391
  %7393 = vrot.lane.b32.xlu0 %v7246, 64
  %v7394 = vpop.permute.xlu0 %7393
  %7395 = vrot.lane.b32.xlu0 %v7249, 64
  %v7396 = vpop.permute.xlu0 %7395
  %7397 = vrot.lane.b32.xlu0 %v7251, 64
  %v7398 = vpop.permute.xlu0 %7397
  %7399 = vrot.lane.b32.xlu0 %v7254, 64
  %v7400 = vpop.permute.xlu0 %7399
  %7401 = vrot.lane.b32.xlu0 %v7256, 64
  %v7402 = vpop.permute.xlu0 %7401
  %7403 = vrot.lane.b32.xlu0 %v7259, 64
  %v7404 = vpop.permute.xlu0 %7403
  %7405 = vrot.lane.b32.xlu0 %v7261, 64
  %v7406 = vpop.permute.xlu0 %7405
  %7407 = vrot.lane.b32.xlu0 %v7264, 64
  %v7408 = vpop.permute.xlu0 %7407
  %7409 = vrot.lane.b32.xlu0 %v7266, 64
  %v7410 = vpop.permute.xlu0 %7409
  %v7483 = vsel %vm517, %v6473, %v6871
  %v7484 = vsel %vm517, %v6474, %v6873
  %v7485 = vsel %vm517, %v6476, %v6875
  %v7486 = vsel %vm517, %v6477, %v6877
  %v7487 = vsel %vm517, %v6479, %v6879
  %v7488 = vsel %vm517, %v6480, %v6881
  %v7489 = vsel %vm517, %v6482, %v6883
  %v7490 = vsel %vm517, %v6483, %v6885
  %v7491 = vsel %vm517, %v6485, %v6887
  %v7492 = vsel %vm517, %v6486, %v6889
  %v7493 = vsel %vm517, %v6488, %v6891
  %v7494 = vsel %vm517, %v6489, %v6893
  %v7495 = vsel %vm517, %v6491, %v6895
  %v7496 = vsel %vm517, %v6492, %v6897
  %v7497 = vsel %vm517, %v6494, %v6899
  %v7498 = vsel %vm517, %v6495, %v6901
  %v7499 = vsel %vm517, %v6497, %v6903
  %v7500 = vsel %vm517, %v6498, %v6905
  %v7501 = vsel %vm517, %v6500, %v6907
  %v7502 = vsel %vm517, %v6501, %v6909
  %v7503 = vsel %vm517, %v6503, %v6911
  %v7504 = vsel %vm517, %v6504, %v6913
  %v7505 = vsel %vm517, %v6506, %v6915
  %v7506 = vsel %vm517, %v6507, %v6917
  %v7507 = vsel %vm517, %v6509, %v6919
  %v7508 = vsel %vm517, %v6510, %v6921
  %v7509 = vsel %vm517, %v6512, %v6923
  %v7510 = vsel %vm517, %v6513, %v6925
  %v7511 = vsel %vm517, %v6515, %v6927
  %v7512 = vsel %vm517, %v6516, %v6929
  %v7513 = vsel %vm517, %v6518, %v6931
  %v7514 = vsel %vm517, %v6519, %v6933
  %v7515 = vsel %vm517, %v6521, %v6935
  %v7516 = vsel %vm517, %v6522, %v6937
  %v7517 = vsel %vm517, %v6524, %v6939
  %v7518 = vsel %vm517, %v6525, %v6941
  %v7519 = vsel %vm517, %v6527, %v6943
  %v7520 = vsel %vm517, %v6528, %v6945
  %v7521 = vsel %vm517, %v6530, %v6947
  %v7522 = vsel %vm517, %v6531, %v6949
  %v7523 = vsel %vm517, %v6533, %v6951
  %v7524 = vsel %vm517, %v6534, %v6953
  %v7525 = vsel %vm517, %v6536, %v6955
  %v7526 = vsel %vm517, %v6537, %v6957
  %v7527 = vsel %vm517, %v6539, %v6959
  %v7528 = vsel %vm517, %v6540, %v6961
  %v7529 = vsel %vm517, %v6542, %v6963
  %v7530 = vsel %vm517, %v6543, %v6965
  %v7531 = vsel %vm517, %v6545, %v6967
  %v7532 = vsel %vm517, %v6546, %v6969
  %v7533 = vsel %vm517, %v6548, %v6971
  %v7534 = vsel %vm517, %v6549, %v6973
  %v7535 = vsel %vm517, %v6551, %v6975
  %v7536 = vsel %vm517, %v6552, %v6977
  %v7537 = vsel %vm517, %v6554, %v6979
  %v7538 = vsel %vm517, %v6555, %v6981
  %v7539 = vsel %vm517, %v6557, %v6983
  %v7540 = vsel %vm517, %v6558, %v6985
  %v7541 = vsel %vm517, %v6560, %v6987
  %v7542 = vsel %vm517, %v6561, %v6989
  %v7543 = vsel %vm517, %v6563, %v6991
  %v7544 = vsel %vm517, %v6564, %v6993
  %v7545 = vsel %vm517, %v6566, %v6995
  %v7546 = vsel %vm517, %v6567, %v6997
  %v7547 = vsel %vm517, %v6569, %v6999
  %v7548 = vsel %vm517, %v6570, %v7001
  %v7549 = vsel %vm517, %v6572, %v7003
  %v7550 = vsel %vm517, %v6573, %v7005
  %v7551 = vsel %vm517, %v6575, %v7007
  %v7552 = vsel %vm517, %v6576, %v7009
  %v7553 = vsel %vm517, %v6578, %v7011
  %v7554 = vsel %vm517, %v6579, %v7013
  %v7555 = vsel %vm86, %v7483, %v7268
  %v7556 = vsel %vm86, %v7484, %v7270
  %v7557 = vsel %vm86, %v7485, %v7272
  %v7558 = vsel %vm86, %v7486, %v7274
  %v7559 = vsel %vm86, %v7487, %v7276
  %v7560 = vsel %vm86, %v7488, %v7278
  %v7561 = vsel %vm86, %v7489, %v7280
  %v7562 = vsel %vm86, %v7490, %v7282
  %v7563 = vsel %vm86, %v7491, %v7284
  %v7564 = vsel %vm86, %v7492, %v7286
  %v7565 = vsel %vm86, %v7493, %v7288
  %v7566 = vsel %vm86, %v7494, %v7290
  %v7567 = vsel %vm86, %v7495, %v7292
  %v7568 = vsel %vm86, %v7496, %v7294
  %v7569 = vsel %vm86, %v7497, %v7296
  %v7570 = vsel %vm86, %v7498, %v7298
  %v7571 = vsel %vm86, %v7499, %v7300
  %v7572 = vsel %vm86, %v7500, %v7302
  %v7573 = vsel %vm86, %v7501, %v7304
  %v7574 = vsel %vm86, %v7502, %v7306
  %v7575 = vsel %vm86, %v7503, %v7308
  %v7576 = vsel %vm86, %v7504, %v7310
  %v7577 = vsel %vm86, %v7505, %v7312
  %v7578 = vsel %vm86, %v7506, %v7314
  %v7579 = vsel %vm86, %v7507, %v7316
  %v7580 = vsel %vm86, %v7508, %v7318
  %v7581 = vsel %vm86, %v7509, %v7320
  %v7582 = vsel %vm86, %v7510, %v7322
  %v7583 = vsel %vm86, %v7511, %v7324
  %v7584 = vsel %vm86, %v7512, %v7326
  %v7585 = vsel %vm86, %v7513, %v7328
  %v7586 = vsel %vm86, %v7514, %v7330
  %v7587 = vsel %vm86, %v7515, %v7332
  %v7588 = vsel %vm86, %v7516, %v7334
  %v7589 = vsel %vm86, %v7517, %v7336
  %v7590 = vsel %vm86, %v7518, %v7338
  %v7591 = vsel %vm86, %v7519, %v7340
  %v7592 = vsel %vm86, %v7520, %v7342
  %v7593 = vsel %vm86, %v7521, %v7344
  %v7594 = vsel %vm86, %v7522, %v7346
  %v7595 = vsel %vm86, %v7523, %v7348
  %v7596 = vsel %vm86, %v7524, %v7350
  %v7597 = vsel %vm86, %v7525, %v7352
  %v7598 = vsel %vm86, %v7526, %v7354
  %v7599 = vsel %vm86, %v7527, %v7356
  %v7600 = vsel %vm86, %v7528, %v7358
  %v7601 = vsel %vm86, %v7529, %v7360
  %v7602 = vsel %vm86, %v7530, %v7362
  %v7603 = vsel %vm86, %v7531, %v7364
  %v7604 = vsel %vm86, %v7532, %v7366
  %v7605 = vsel %vm86, %v7533, %v7368
  %v7606 = vsel %vm86, %v7534, %v7370
  %v7607 = vsel %vm86, %v7535, %v7372
  %v7608 = vsel %vm86, %v7536, %v7374
  %v7609 = vsel %vm86, %v7537, %v7376
  %v7610 = vsel %vm86, %v7538, %v7378
  %v7611 = vsel %vm86, %v7539, %v7380
  %v7612 = vsel %vm86, %v7540, %v7382
  %v7613 = vsel %vm86, %v7541, %v7384
  %v7614 = vsel %vm86, %v7542, %v7386
  %v7615 = vsel %vm86, %v7543, %v7388
  %v7616 = vsel %vm86, %v7544, %v7390
  %v7617 = vsel %vm86, %v7545, %v7392
  %v7618 = vsel %vm86, %v7546, %v7394
  %v7619 = vsel %vm86, %v7547, %v7396
  %v7620 = vsel %vm86, %v7548, %v7398
  %v7621 = vsel %vm86, %v7549, %v7400
  %v7622 = vsel %vm86, %v7550, %v7402
  %v7623 = vsel %vm86, %v7551, %v7404
  %v7624 = vsel %vm86, %v7552, %v7406
  %v7625 = vsel %vm86, %v7553, %v7408
  %v7626 = vsel %vm86, %v7554, %v7410
  %v7627 = vld [vmem:[%s15] sm:$0xff]
  %v7628 = vld [vmem:[%s15 + $0x8] sm:$0xff]
  %v7629 = vld [vmem:[%s15 + $0x10] sm:$0xff]
  %v7630 = vld [vmem:[%s15 + $0x18] sm:$0xff]
  %v7631 = vld [vmem:[%s15 + $0x20] sm:$0xff]
  %v7632 = vld [vmem:[%s15 + $0x28] sm:$0xff]
  %v7633 = vld [vmem:[%s15 + $0x30] sm:$0xff]
  %v7634 = vld [vmem:[%s15 + $0x38] sm:$0xff]
  %v7635 = vld [vmem:[%s15 + $0x40] sm:$0xff]
  %v7636 = vld [vmem:[%s15 + $0x48] sm:$0xff]
  %v7637 = vld [vmem:[%s15 + $0x50] sm:$0xff]
  %v7638 = vld [vmem:[%s15 + $0x58] sm:$0xff]
  %s7639 = scalar_lea.vmem %s15, 96
  %v7640 = vld [vmem:[%s7639] sm:$0xff]
  %v7641 = vld [vmem:[%s7639 + $0x8] sm:$0xff]
  %v7642 = vld [vmem:[%s7639 + $0x10] sm:$0xff]
  %v7643 = vld [vmem:[%s7639 + $0x18] sm:$0xff]
  %v7644 = vld [vmem:[%s7639 + $0x20] sm:$0xff]
  %v7645 = vld [vmem:[%s7639 + $0x28] sm:$0xff]
  %v7646 = vld [vmem:[%s7639 + $0x30] sm:$0xff]
  %v7647 = vld [vmem:[%s7639 + $0x38] sm:$0xff]
  %v7648 = vld [vmem:[%s7639 + $0x40] sm:$0xff]
  %v7649 = vld [vmem:[%s7639 + $0x48] sm:$0xff]
  %v7650 = vld [vmem:[%s7639 + $0x50] sm:$0xff]
  %v7651 = vld [vmem:[%s7639 + $0x58] sm:$0xff]
  %v7653 = vsel %vm4424, %v7557, 0
  %v7656 = vsel %vm4424, %v7558, 0
  %v7659 = vsel %vm4424, %v7559, 0
  %v7662 = vsel %vm4424, %v7560, 0
  %v7665 = vsel %vm4424, %v7561, 0
  %v7668 = vsel %vm4424, %v7562, 0
  %v7671 = vsel %vm4424, %v7563, 0
  %v7674 = vsel %vm4424, %v7564, 0
  %v7677 = vsel %vm4424, %v7565, 0
  %v7680 = vsel %vm4424, %v7566, 0
  %v7683 = vsel %vm4424, %v7567, 0
  %v7686 = vsel %vm4424, %v7568, 0
  %v7689 = vsel %vm4424, %v7569, 0
  %v7692 = vsel %vm4424, %v7570, 0
  %v7695 = vsel %vm4424, %v7571, 0
  %v7698 = vsel %vm4424, %v7572, 0
  %v7701 = vsel %vm4424, %v7573, 0
  %v7704 = vsel %vm4424, %v7574, 0
  %v7707 = vsel %vm4424, %v7575, 0
  %v7710 = vsel %vm4424, %v7576, 0
  %v7713 = vsel %vm4424, %v7577, 0
  %v7716 = vsel %vm4424, %v7578, 0
  %v7719 = vsel %vm4424, %v7579, 0
  %v7722 = vsel %vm4424, %v7580, 0
  %v7725 = vsel %vm4424, %v7581, 0
  %v7728 = vsel %vm4424, %v7582, 0
  %v7731 = vsel %vm4424, %v7583, 0
  %v7734 = vsel %vm4424, %v7584, 0
  %v7737 = vsel %vm4424, %v7585, 0
  %v7740 = vsel %vm4424, %v7586, 0
  %v7743 = vsel %vm4424, %v7587, 0
  %v7746 = vsel %vm4424, %v7588, 0
  %v7749 = vsel %vm4424, %v7593, 0
  %v7752 = vsel %vm4424, %v7594, 0
  %v7755 = vsel %vm4424, %v7595, 0
  %v7758 = vsel %vm4424, %v7596, 0
  %v7761 = vsel %vm4424, %v7597, 0
  %v7764 = vsel %vm4424, %v7598, 0
  %v7767 = vsel %vm4424, %v7599, 0
  %v7770 = vsel %vm4424, %v7600, 0
  %v7773 = vsel %vm4424, %v7601, 0
  %v7776 = vsel %vm4424, %v7602, 0
  %v7779 = vsel %vm4424, %v7603, 0
  %v7782 = vsel %vm4424, %v7604, 0
  %v7785 = vsel %vm4424, %v7605, 0
  %v7788 = vsel %vm4424, %v7606, 0
  %v7791 = vsel %vm4424, %v7607, 0
  %v7794 = vsel %vm4424, %v7608, 0
  %v7797 = vsel %vm4424, %v7609, 0
  %v7800 = vsel %vm4424, %v7610, 0
  %v7803 = vsel %vm4424, %v7611, 0
  %v7806 = vsel %vm4424, %v7612, 0
  %v7809 = vsel %vm4424, %v7613, 0
  %v7812 = vsel %vm4424, %v7614, 0
  %v7815 = vsel %vm4424, %v7615, 0
  %v7818 = vsel %vm4424, %v7616, 0
  %v7821 = vsel %vm4424, %v7617, 0
  %v7824 = vsel %vm4424, %v7618, 0
  %v7827 = vsel %vm4424, %v7619, 0
  %v7830 = vsel %vm4424, %v7620, 0
  %v7833 = vsel %vm4424, %v7621, 0
  %v7836 = vsel %vm4424, %v7622, 0
  %v7839 = vsel %vm4424, %v7623, 0
  %v7842 = vsel %vm4424, %v7624, 0
  %7844 = vmatpush.msra.mxu0 0.0
  %7845 = vmatpush.msra.mxu0 0.0
  %7846 = vmatpush.msra.mxu0 0.0
  %7847 = vmatpush.msra.mxu0 0.0
  %7848 = vmatpush.msra.mxu0 %v7651
  %7849 = vmatpush.msra.mxu0 %v7650
  %7850 = vmatpush.msra.mxu0 %v7649
  %7851 = vmatpush.msra.mxu0 %v7648
  %7852 = vmatpush.msra.mxu0 %v7647
  %7853 = vmatpush.msra.mxu0 %v7646
  %7854 = vmatpush.msra.mxu0 %v7645
  %7855 = vmatpush.msra.mxu0 %v7644
  %7856 = vmatpush.msra.mxu0 %v7643
  %7857 = vmatpush.msra.mxu0 %v7642
  %7858 = vmatpush.msra.mxu0 %v7641
  %7859 = vmatpush.msra.mxu0 %v7640
  %7860 = vmatmul.f32.gmra.mxu0 %v7653
  %v7861 = vpop.f32.mrf.mxu0
  %v7862 = vadd.f32 0.0, %v7861
  %7863 = vmatmul.f32.gmra.mxu0 %v7656
  %v7864 = vpop.f32.mrf.mxu0
  %v7865 = vadd.f32 0.0, %v7864
  %7866 = vmatmul.f32.gmra.mxu0 %v7659
  %v7867 = vpop.f32.mrf.mxu0
  %v7868 = vadd.f32 0.0, %v7867
  %7869 = vmatmul.f32.gmra.mxu0 %v7662
  %v7870 = vpop.f32.mrf.mxu0
  %v7871 = vadd.f32 0.0, %v7870
  %7872 = vmatmul.f32.gmra.mxu0 %v7665
  %v7873 = vpop.f32.mrf.mxu0
  %v7874 = vadd.f32 0.0, %v7873
  %7875 = vmatmul.f32.gmra.mxu0 %v7668
  %v7876 = vpop.f32.mrf.mxu0
  %v7877 = vadd.f32 0.0, %v7876
  %7878 = vmatmul.f32.gmra.mxu0 %v7671
  %v7879 = vpop.f32.mrf.mxu0
  %v7880 = vadd.f32 0.0, %v7879
  %7881 = vmatmul.f32.gmra.mxu0 %v7674
  %v7882 = vpop.f32.mrf.mxu0
  %v7883 = vadd.f32 0.0, %v7882
  %7884 = vmatmul.f32.gmra.mxu0 %v7677
  %v7885 = vpop.f32.mrf.mxu0
  %v7886 = vadd.f32 0.0, %v7885
  %7887 = vmatmul.f32.gmra.mxu0 %v7680
  %v7888 = vpop.f32.mrf.mxu0
  %v7889 = vadd.f32 0.0, %v7888
  %7890 = vmatmul.f32.gmra.mxu0 %v7683
  %v7891 = vpop.f32.mrf.mxu0
  %v7892 = vadd.f32 0.0, %v7891
  %7893 = vmatmul.f32.gmra.mxu0 %v7686
  %v7894 = vpop.f32.mrf.mxu0
  %v7895 = vadd.f32 0.0, %v7894
  %7896 = vmatmul.f32.gmra.mxu0 %v7689
  %v7897 = vpop.f32.mrf.mxu0
  %v7898 = vadd.f32 0.0, %v7897
  %7899 = vmatmul.f32.gmra.mxu0 %v7692
  %v7900 = vpop.f32.mrf.mxu0
  %v7901 = vadd.f32 0.0, %v7900
  %7902 = vmatmul.f32.gmra.mxu0 %v7695
  %v7903 = vpop.f32.mrf.mxu0
  %v7904 = vadd.f32 0.0, %v7903
  %7905 = vmatmul.f32.gmra.mxu0 %v7698
  %v7906 = vpop.f32.mrf.mxu0
  %v7907 = vadd.f32 0.0, %v7906
  %7908 = vmatmul.f32.gmra.mxu0 %v7701
  %v7909 = vpop.f32.mrf.mxu0
  %v7910 = vadd.f32 0.0, %v7909
  %7911 = vmatmul.f32.gmra.mxu0 %v7704
  %v7912 = vpop.f32.mrf.mxu0
  %v7913 = vadd.f32 0.0, %v7912
  %7914 = vmatmul.f32.gmra.mxu0 %v7707
  %v7915 = vpop.f32.mrf.mxu0
  %v7916 = vadd.f32 0.0, %v7915
  %7917 = vmatmul.f32.gmra.mxu0 %v7710
  %v7918 = vpop.f32.mrf.mxu0
  %v7919 = vadd.f32 0.0, %v7918
  %7920 = vmatmul.f32.gmra.mxu0 %v7713
  %v7921 = vpop.f32.mrf.mxu0
  %v7922 = vadd.f32 0.0, %v7921
  %7923 = vmatmul.f32.gmra.mxu0 %v7716
  %v7924 = vpop.f32.mrf.mxu0
  %v7925 = vadd.f32 0.0, %v7924
  %7926 = vmatmul.f32.gmra.mxu0 %v7719
  %v7927 = vpop.f32.mrf.mxu0
  %v7928 = vadd.f32 0.0, %v7927
  %7929 = vmatmul.f32.gmra.mxu0 %v7722
  %v7930 = vpop.f32.mrf.mxu0
  %v7931 = vadd.f32 0.0, %v7930
  %7932 = vmatmul.f32.gmra.mxu0 %v7725
  %v7933 = vpop.f32.mrf.mxu0
  %v7934 = vadd.f32 0.0, %v7933
  %7935 = vmatmul.f32.gmra.mxu0 %v7728
  %v7936 = vpop.f32.mrf.mxu0
  %v7937 = vadd.f32 0.0, %v7936
  %7938 = vmatmul.f32.gmra.mxu0 %v7731
  %v7939 = vpop.f32.mrf.mxu0
  %v7940 = vadd.f32 0.0, %v7939
  %7941 = vmatmul.f32.gmra.mxu0 %v7734
  %v7942 = vpop.f32.mrf.mxu0
  %v7943 = vadd.f32 0.0, %v7942
  %7944 = vmatmul.f32.gmra.mxu0 %v7737
  %v7945 = vpop.f32.mrf.mxu0
  %v7946 = vadd.f32 0.0, %v7945
  %7947 = vmatmul.f32.gmra.mxu0 %v7740
  %v7948 = vpop.f32.mrf.mxu0
  %v7949 = vadd.f32 0.0, %v7948
  %7950 = vmatmul.f32.gmra.mxu0 %v7743
  %v7951 = vpop.f32.mrf.mxu0
  %v7952 = vadd.f32 0.0, %v7951
  %7953 = vmatmul.f32.gmra.mxu0 %v7746
  %v7954 = vpop.f32.mrf.mxu0
  %v7955 = vadd.f32 0.0, %v7954
  %7956 = vmatmul.f32.gmra.mxu0 %v7749
  %v7957 = vpop.f32.mrf.mxu0
  %v7958 = vadd.f32 0.0, %v7957
  %7959 = vmatmul.f32.gmra.mxu0 %v7752
  %v7960 = vpop.f32.mrf.mxu0
  %v7961 = vadd.f32 0.0, %v7960
  %7962 = vmatmul.f32.gmra.mxu0 %v7755
  %v7963 = vpop.f32.mrf.mxu0
  %v7964 = vadd.f32 0.0, %v7963
  %7965 = vmatmul.f32.gmra.mxu0 %v7758
  %v7966 = vpop.f32.mrf.mxu0
  %v7967 = vadd.f32 0.0, %v7966
  %7968 = vmatmul.f32.gmra.mxu0 %v7761
  %v7969 = vpop.f32.mrf.mxu0
  %v7970 = vadd.f32 0.0, %v7969
  %7971 = vmatmul.f32.gmra.mxu0 %v7764
  %v7972 = vpop.f32.mrf.mxu0
  %v7973 = vadd.f32 0.0, %v7972
  %7974 = vmatmul.f32.gmra.mxu0 %v7767
  %v7975 = vpop.f32.mrf.mxu0
  %v7976 = vadd.f32 0.0, %v7975
  %7977 = vmatmul.f32.gmra.mxu0 %v7770
  %v7978 = vpop.f32.mrf.mxu0
  %v7979 = vadd.f32 0.0, %v7978
  %7980 = vmatmul.f32.gmra.mxu0 %v7773
  %v7981 = vpop.f32.mrf.mxu0
  %v7982 = vadd.f32 0.0, %v7981
  %7983 = vmatmul.f32.gmra.mxu0 %v7776
  %v7984 = vpop.f32.mrf.mxu0
  %v7985 = vadd.f32 0.0, %v7984
  %7986 = vmatmul.f32.gmra.mxu0 %v7779
  %v7987 = vpop.f32.mrf.mxu0
  %v7988 = vadd.f32 0.0, %v7987
  %7989 = vmatmul.f32.gmra.mxu0 %v7782
  %v7990 = vpop.f32.mrf.mxu0
  %v7991 = vadd.f32 0.0, %v7990
  %7992 = vmatmul.f32.gmra.mxu0 %v7785
  %v7993 = vpop.f32.mrf.mxu0
  %v7994 = vadd.f32 0.0, %v7993
  %7995 = vmatmul.f32.gmra.mxu0 %v7788
  %v7996 = vpop.f32.mrf.mxu0
  %v7997 = vadd.f32 0.0, %v7996
  %7998 = vmatmul.f32.gmra.mxu0 %v7791
  %v7999 = vpop.f32.mrf.mxu0
  %v8000 = vadd.f32 0.0, %v7999
  %8001 = vmatmul.f32.gmra.mxu0 %v7794
  %v8002 = vpop.f32.mrf.mxu0
  %v8003 = vadd.f32 0.0, %v8002
  %8004 = vmatmul.f32.gmra.mxu0 %v7797
  %v8005 = vpop.f32.mrf.mxu0
  %v8006 = vadd.f32 0.0, %v8005
  %8007 = vmatmul.f32.gmra.mxu0 %v7800
  %v8008 = vpop.f32.mrf.mxu0
  %v8009 = vadd.f32 0.0, %v8008
  %8010 = vmatmul.f32.gmra.mxu0 %v7803
  %v8011 = vpop.f32.mrf.mxu0
  %v8012 = vadd.f32 0.0, %v8011
  %8013 = vmatmul.f32.gmra.mxu0 %v7806
  %v8014 = vpop.f32.mrf.mxu0
  %v8015 = vadd.f32 0.0, %v8014
  %8016 = vmatmul.f32.gmra.mxu0 %v7809
  %v8017 = vpop.f32.mrf.mxu0
  %v8018 = vadd.f32 0.0, %v8017
  %8019 = vmatmul.f32.gmra.mxu0 %v7812
  %v8020 = vpop.f32.mrf.mxu0
  %v8021 = vadd.f32 0.0, %v8020
  %8022 = vmatmul.f32.gmra.mxu0 %v7815
  %v8023 = vpop.f32.mrf.mxu0
  %v8024 = vadd.f32 0.0, %v8023
  %8025 = vmatmul.f32.gmra.mxu0 %v7818
  %v8026 = vpop.f32.mrf.mxu0
  %v8027 = vadd.f32 0.0, %v8026
  %8028 = vmatmul.f32.gmra.mxu0 %v7821
  %v8029 = vpop.f32.mrf.mxu0
  %v8030 = vadd.f32 0.0, %v8029
  %8031 = vmatmul.f32.gmra.mxu0 %v7824
  %v8032 = vpop.f32.mrf.mxu0
  %v8033 = vadd.f32 0.0, %v8032
  %8034 = vmatmul.f32.gmra.mxu0 %v7827
  %v8035 = vpop.f32.mrf.mxu0
  %v8036 = vadd.f32 0.0, %v8035
  %8037 = vmatmul.f32.gmra.mxu0 %v7830
  %v8038 = vpop.f32.mrf.mxu0
  %v8039 = vadd.f32 0.0, %v8038
  %8040 = vmatmul.f32.gmra.mxu0 %v7833
  %v8041 = vpop.f32.mrf.mxu0
  %v8042 = vadd.f32 0.0, %v8041
  %8043 = vmatmul.f32.gmra.mxu0 %v7836
  %v8044 = vpop.f32.mrf.mxu0
  %v8045 = vadd.f32 0.0, %v8044
  %8046 = vmatmul.f32.gmra.mxu0 %v7839
  %v8047 = vpop.f32.mrf.mxu0
  %v8048 = vadd.f32 0.0, %v8047
  %8049 = vmatmul.f32.gmra.mxu0 %v7842
  %v8050 = vpop.f32.mrf.mxu0
  %v8051 = vadd.f32 0.0, %v8050
  %8052 = vdwg.mxu0
  %v8054 = vsel %vm4424, %v7555, 0
  %v8057 = vsel %vm4424, %v7556, 0
  %v8060 = vsel %vm4424, %v7591, 0
  %v8063 = vsel %vm4424, %v7592, 0
  %8065 = vmatpush.msra.mxu0 0.0
  %8066 = vmatpush.msra.mxu0 0.0
  %8067 = vmatpush.msra.mxu0 0.0
  %8068 = vmatpush.msra.mxu0 0.0
  %8069 = vmatpush.msra.mxu0 %v7638
  %8070 = vmatpush.msra.mxu0 %v7637
  %8071 = vmatpush.msra.mxu0 %v7636
  %8072 = vmatpush.msra.mxu0 %v7635
  %8073 = vmatpush.msra.mxu0 %v7634
  %8074 = vmatpush.msra.mxu0 %v7633
  %8075 = vmatpush.msra.mxu0 %v7632
  %8076 = vmatpush.msra.mxu0 %v7631
  %8077 = vmatpush.msra.mxu0 %v7630
  %8078 = vmatpush.msra.mxu0 %v7629
  %8079 = vmatpush.msra.mxu0 %v7628
  %8080 = vmatpush.msra.mxu0 %v7627
  %8081 = vmatmul.f32.gmra.mxu0 %v8054
  %v8082 = vpop.f32.mrf.mxu0
  %v8083 = vadd.f32 %v7862, %v8082
  %8084 = vmatmul.f32.gmra.mxu0 %v8057
  %v8085 = vpop.f32.mrf.mxu0
  %v8086 = vadd.f32 %v7865, %v8085
  %8087 = vmatmul.f32.gmra.mxu0 %v7653
  %v8088 = vpop.f32.mrf.mxu0
  %v8089 = vadd.f32 %v7868, %v8088
  %8090 = vmatmul.f32.gmra.mxu0 %v7656
  %v8091 = vpop.f32.mrf.mxu0
  %v8092 = vadd.f32 %v7871, %v8091
  %8093 = vmatmul.f32.gmra.mxu0 %v7659
  %v8094 = vpop.f32.mrf.mxu0
  %v8095 = vadd.f32 %v7874, %v8094
  %8096 = vmatmul.f32.gmra.mxu0 %v7662
  %v8097 = vpop.f32.mrf.mxu0
  %v8098 = vadd.f32 %v7877, %v8097
  %8099 = vmatmul.f32.gmra.mxu0 %v7665
  %v8100 = vpop.f32.mrf.mxu0
  %v8101 = vadd.f32 %v7880, %v8100
  %8102 = vmatmul.f32.gmra.mxu0 %v7668
  %v8103 = vpop.f32.mrf.mxu0
  %v8104 = vadd.f32 %v7883, %v8103
  %8105 = vmatmul.f32.gmra.mxu0 %v7671
  %v8106 = vpop.f32.mrf.mxu0
  %v8107 = vadd.f32 %v7886, %v8106
  %8108 = vmatmul.f32.gmra.mxu0 %v7674
  %v8109 = vpop.f32.mrf.mxu0
  %v8110 = vadd.f32 %v7889, %v8109
  %8111 = vmatmul.f32.gmra.mxu0 %v7677
  %v8112 = vpop.f32.mrf.mxu0
  %v8113 = vadd.f32 %v7892, %v8112
  %8114 = vmatmul.f32.gmra.mxu0 %v7680
  %v8115 = vpop.f32.mrf.mxu0
  %v8116 = vadd.f32 %v7895, %v8115
  %8117 = vmatmul.f32.gmra.mxu0 %v7683
  %v8118 = vpop.f32.mrf.mxu0
  %v8119 = vadd.f32 %v7898, %v8118
  %8120 = vmatmul.f32.gmra.mxu0 %v7686
  %v8121 = vpop.f32.mrf.mxu0
  %v8122 = vadd.f32 %v7901, %v8121
  %8123 = vmatmul.f32.gmra.mxu0 %v7689
  %v8124 = vpop.f32.mrf.mxu0
  %v8125 = vadd.f32 %v7904, %v8124
  %8126 = vmatmul.f32.gmra.mxu0 %v7692
  %v8127 = vpop.f32.mrf.mxu0
  %v8128 = vadd.f32 %v7907, %v8127
  %8129 = vmatmul.f32.gmra.mxu0 %v7695
  %v8130 = vpop.f32.mrf.mxu0
  %v8131 = vadd.f32 %v7910, %v8130
  %8132 = vmatmul.f32.gmra.mxu0 %v7698
  %v8133 = vpop.f32.mrf.mxu0
  %v8134 = vadd.f32 %v7913, %v8133
  %8135 = vmatmul.f32.gmra.mxu0 %v7701
  %v8136 = vpop.f32.mrf.mxu0
  %v8137 = vadd.f32 %v7916, %v8136
  %8138 = vmatmul.f32.gmra.mxu0 %v7704
  %v8139 = vpop.f32.mrf.mxu0
  %v8140 = vadd.f32 %v7919, %v8139
  %8141 = vmatmul.f32.gmra.mxu0 %v7707
  %v8142 = vpop.f32.mrf.mxu0
  %v8143 = vadd.f32 %v7922, %v8142
  %8144 = vmatmul.f32.gmra.mxu0 %v7710
  %v8145 = vpop.f32.mrf.mxu0
  %v8146 = vadd.f32 %v7925, %v8145
  %8147 = vmatmul.f32.gmra.mxu0 %v7713
  %v8148 = vpop.f32.mrf.mxu0
  %v8149 = vadd.f32 %v7928, %v8148
  %8150 = vmatmul.f32.gmra.mxu0 %v7716
  %v8151 = vpop.f32.mrf.mxu0
  %v8152 = vadd.f32 %v7931, %v8151
  %8153 = vmatmul.f32.gmra.mxu0 %v7719
  %v8154 = vpop.f32.mrf.mxu0
  %v8155 = vadd.f32 %v7934, %v8154
  %8156 = vmatmul.f32.gmra.mxu0 %v7722
  %v8157 = vpop.f32.mrf.mxu0
  %v8158 = vadd.f32 %v7937, %v8157
  %8159 = vmatmul.f32.gmra.mxu0 %v7725
  %v8160 = vpop.f32.mrf.mxu0
  %v8161 = vadd.f32 %v7940, %v8160
  %8162 = vmatmul.f32.gmra.mxu0 %v7728
  %v8163 = vpop.f32.mrf.mxu0
  %v8164 = vadd.f32 %v7943, %v8163
  %8165 = vmatmul.f32.gmra.mxu0 %v7731
  %v8166 = vpop.f32.mrf.mxu0
  %v8167 = vadd.f32 %v7946, %v8166
  %8168 = vmatmul.f32.gmra.mxu0 %v7734
  %v8169 = vpop.f32.mrf.mxu0
  %v8170 = vadd.f32 %v7949, %v8169
  %8171 = vmatmul.f32.gmra.mxu0 %v7737
  %v8172 = vpop.f32.mrf.mxu0
  %v8173 = vadd.f32 %v7952, %v8172
  %8174 = vmatmul.f32.gmra.mxu0 %v7740
  %v8175 = vpop.f32.mrf.mxu0
  %v8176 = vadd.f32 %v7955, %v8175
  %8177 = vmatmul.f32.gmra.mxu0 %v8060
  %v8178 = vpop.f32.mrf.mxu0
  %v8179 = vadd.f32 %v7958, %v8178
  %8180 = vmatmul.f32.gmra.mxu0 %v8063
  %v8181 = vpop.f32.mrf.mxu0
  %v8182 = vadd.f32 %v7961, %v8181
  %8183 = vmatmul.f32.gmra.mxu0 %v7749
  %v8184 = vpop.f32.mrf.mxu0
  %v8185 = vadd.f32 %v7964, %v8184
  %8186 = vmatmul.f32.gmra.mxu0 %v7752
  %v8187 = vpop.f32.mrf.mxu0
  %v8188 = vadd.f32 %v7967, %v8187
  %8189 = vmatmul.f32.gmra.mxu0 %v7755
  %v8190 = vpop.f32.mrf.mxu0
  %v8191 = vadd.f32 %v7970, %v8190
  %8192 = vmatmul.f32.gmra.mxu0 %v7758
  %v8193 = vpop.f32.mrf.mxu0
  %v8194 = vadd.f32 %v7973, %v8193
  %8195 = vmatmul.f32.gmra.mxu0 %v7761
  %v8196 = vpop.f32.mrf.mxu0
  %v8197 = vadd.f32 %v7976, %v8196
  %8198 = vmatmul.f32.gmra.mxu0 %v7764
  %v8199 = vpop.f32.mrf.mxu0
  %v8200 = vadd.f32 %v7979, %v8199
  %8201 = vmatmul.f32.gmra.mxu0 %v7767
  %v8202 = vpop.f32.mrf.mxu0
  %v8203 = vadd.f32 %v7982, %v8202
  %8204 = vmatmul.f32.gmra.mxu0 %v7770
  %v8205 = vpop.f32.mrf.mxu0
  %v8206 = vadd.f32 %v7985, %v8205
  %8207 = vmatmul.f32.gmra.mxu0 %v7773
  %v8208 = vpop.f32.mrf.mxu0
  %v8209 = vadd.f32 %v7988, %v8208
  %8210 = vmatmul.f32.gmra.mxu0 %v7776
  %v8211 = vpop.f32.mrf.mxu0
  %v8212 = vadd.f32 %v7991, %v8211
  %8213 = vmatmul.f32.gmra.mxu0 %v7779
  %v8214 = vpop.f32.mrf.mxu0
  %v8215 = vadd.f32 %v7994, %v8214
  %8216 = vmatmul.f32.gmra.mxu0 %v7782
  %v8217 = vpop.f32.mrf.mxu0
  %v8218 = vadd.f32 %v7997, %v8217
  %8219 = vmatmul.f32.gmra.mxu0 %v7785
  %v8220 = vpop.f32.mrf.mxu0
  %v8221 = vadd.f32 %v8000, %v8220
  %8222 = vmatmul.f32.gmra.mxu0 %v7788
  %v8223 = vpop.f32.mrf.mxu0
  %v8224 = vadd.f32 %v8003, %v8223
  %8225 = vmatmul.f32.gmra.mxu0 %v7791
  %v8226 = vpop.f32.mrf.mxu0
  %v8227 = vadd.f32 %v8006, %v8226
  %8228 = vmatmul.f32.gmra.mxu0 %v7794
  %v8229 = vpop.f32.mrf.mxu0
  %v8230 = vadd.f32 %v8009, %v8229
  %8231 = vmatmul.f32.gmra.mxu0 %v7797
  %v8232 = vpop.f32.mrf.mxu0
  %v8233 = vadd.f32 %v8012, %v8232
  %8234 = vmatmul.f32.gmra.mxu0 %v7800
  %v8235 = vpop.f32.mrf.mxu0
  %v8236 = vadd.f32 %v8015, %v8235
  %8237 = vmatmul.f32.gmra.mxu0 %v7803
  %v8238 = vpop.f32.mrf.mxu0
  %v8239 = vadd.f32 %v8018, %v8238
  %8240 = vmatmul.f32.gmra.mxu0 %v7806
  %v8241 = vpop.f32.mrf.mxu0
  %v8242 = vadd.f32 %v8021, %v8241
  %8243 = vmatmul.f32.gmra.mxu0 %v7809
  %v8244 = vpop.f32.mrf.mxu0
  %v8245 = vadd.f32 %v8024, %v8244
  %8246 = vmatmul.f32.gmra.mxu0 %v7812
  %v8247 = vpop.f32.mrf.mxu0
  %v8248 = vadd.f32 %v8027, %v8247
  %8249 = vmatmul.f32.gmra.mxu0 %v7815
  %v8250 = vpop.f32.mrf.mxu0
  %v8251 = vadd.f32 %v8030, %v8250
  %8252 = vmatmul.f32.gmra.mxu0 %v7818
  %v8253 = vpop.f32.mrf.mxu0
  %v8254 = vadd.f32 %v8033, %v8253
  %8255 = vmatmul.f32.gmra.mxu0 %v7821
  %v8256 = vpop.f32.mrf.mxu0
  %v8257 = vadd.f32 %v8036, %v8256
  %8258 = vmatmul.f32.gmra.mxu0 %v7824
  %v8259 = vpop.f32.mrf.mxu0
  %v8260 = vadd.f32 %v8039, %v8259
  %8261 = vmatmul.f32.gmra.mxu0 %v7827
  %v8262 = vpop.f32.mrf.mxu0
  %v8263 = vadd.f32 %v8042, %v8262
  %8264 = vmatmul.f32.gmra.mxu0 %v7830
  %v8265 = vpop.f32.mrf.mxu0
  %v8266 = vadd.f32 %v8045, %v8265
  %8267 = vmatmul.f32.gmra.mxu0 %v7833
  %v8268 = vpop.f32.mrf.mxu0
  %v8269 = vadd.f32 %v8048, %v8268
  %8270 = vmatmul.f32.gmra.mxu0 %v7836
  %v8271 = vpop.f32.mrf.mxu0
  %v8272 = vadd.f32 %v8051, %v8271
  %8273 = vdwg.mxu0
  %s8274 = scalar_lea.vmem %s15, 192
  %v8275 = vld [vmem:[%s8274] sm:$0xff]
  %v8276 = vld [vmem:[%s8274 + $0x8] sm:$0xff]
  %v8277 = vld [vmem:[%s8274 + $0x10] sm:$0xff]
  %v8278 = vld [vmem:[%s8274 + $0x18] sm:$0xff]
  %v8279 = vld [vmem:[%s8274 + $0x20] sm:$0xff]
  %v8280 = vld [vmem:[%s8274 + $0x28] sm:$0xff]
  %v8281 = vld [vmem:[%s8274 + $0x30] sm:$0xff]
  %v8282 = vld [vmem:[%s8274 + $0x38] sm:$0xff]
  %v8283 = vld [vmem:[%s8274 + $0x40] sm:$0xff]
  %v8284 = vld [vmem:[%s8274 + $0x48] sm:$0xff]
  %v8285 = vld [vmem:[%s8274 + $0x50] sm:$0xff]
  %v8286 = vld [vmem:[%s8274 + $0x58] sm:$0xff]
  %v8288 = vsel %vm4424, %v7589, 0
  %v8291 = vsel %vm4424, %v7590, 0
  %v8294 = vsel %vm4424, %v7625, 0
  %v8297 = vsel %vm4424, %v7626, 0
  %8299 = vmatpush.msra.mxu0 0.0
  %8300 = vmatpush.msra.mxu0 0.0
  %8301 = vmatpush.msra.mxu0 0.0
  %8302 = vmatpush.msra.mxu0 0.0
  %8303 = vmatpush.msra.mxu0 %v8286
  %8304 = vmatpush.msra.mxu0 %v8285
  %8305 = vmatpush.msra.mxu0 %v8284
  %8306 = vmatpush.msra.mxu0 %v8283
  %8307 = vmatpush.msra.mxu0 %v8282
  %8308 = vmatpush.msra.mxu0 %v8281
  %8309 = vmatpush.msra.mxu0 %v8280
  %8310 = vmatpush.msra.mxu0 %v8279
  %8311 = vmatpush.msra.mxu0 %v8278
  %8312 = vmatpush.msra.mxu0 %v8277
  %8313 = vmatpush.msra.mxu0 %v8276
  %8314 = vmatpush.msra.mxu0 %v8275
  %8315 = vmatmul.f32.gmra.mxu0 %v7659
  %v8316 = vpop.f32.mrf.mxu0
  %v8317 = vadd.f32 0.0, %v8316
  %8318 = vmatmul.f32.gmra.mxu0 %v7662
  %v8319 = vpop.f32.mrf.mxu0
  %v8320 = vadd.f32 0.0, %v8319
  %8321 = vmatmul.f32.gmra.mxu0 %v7665
  %v8322 = vpop.f32.mrf.mxu0
  %v8323 = vadd.f32 0.0, %v8322
  %8324 = vmatmul.f32.gmra.mxu0 %v7668
  %v8325 = vpop.f32.mrf.mxu0
  %v8326 = vadd.f32 0.0, %v8325
  %8327 = vmatmul.f32.gmra.mxu0 %v7671
  %v8328 = vpop.f32.mrf.mxu0
  %v8329 = vadd.f32 0.0, %v8328
  %8330 = vmatmul.f32.gmra.mxu0 %v7674
  %v8331 = vpop.f32.mrf.mxu0
  %v8332 = vadd.f32 0.0, %v8331
  %8333 = vmatmul.f32.gmra.mxu0 %v7677
  %v8334 = vpop.f32.mrf.mxu0
  %v8335 = vadd.f32 0.0, %v8334
  %8336 = vmatmul.f32.gmra.mxu0 %v7680
  %v8337 = vpop.f32.mrf.mxu0
  %v8338 = vadd.f32 0.0, %v8337
  %8339 = vmatmul.f32.gmra.mxu0 %v7683
  %v8340 = vpop.f32.mrf.mxu0
  %v8341 = vadd.f32 0.0, %v8340
  %8342 = vmatmul.f32.gmra.mxu0 %v7686
  %v8343 = vpop.f32.mrf.mxu0
  %v8344 = vadd.f32 0.0, %v8343
  %8345 = vmatmul.f32.gmra.mxu0 %v7689
  %v8346 = vpop.f32.mrf.mxu0
  %v8347 = vadd.f32 0.0, %v8346
  %8348 = vmatmul.f32.gmra.mxu0 %v7692
  %v8349 = vpop.f32.mrf.mxu0
  %v8350 = vadd.f32 0.0, %v8349
  %8351 = vmatmul.f32.gmra.mxu0 %v7695
  %v8352 = vpop.f32.mrf.mxu0
  %v8353 = vadd.f32 0.0, %v8352
  %8354 = vmatmul.f32.gmra.mxu0 %v7698
  %v8355 = vpop.f32.mrf.mxu0
  %v8356 = vadd.f32 0.0, %v8355
  %8357 = vmatmul.f32.gmra.mxu0 %v7701
  %v8358 = vpop.f32.mrf.mxu0
  %v8359 = vadd.f32 0.0, %v8358
  %8360 = vmatmul.f32.gmra.mxu0 %v7704
  %v8361 = vpop.f32.mrf.mxu0
  %v8362 = vadd.f32 0.0, %v8361
  %8363 = vmatmul.f32.gmra.mxu0 %v7707
  %v8364 = vpop.f32.mrf.mxu0
  %v8365 = vadd.f32 0.0, %v8364
  %8366 = vmatmul.f32.gmra.mxu0 %v7710
  %v8367 = vpop.f32.mrf.mxu0
  %v8368 = vadd.f32 0.0, %v8367
  %8369 = vmatmul.f32.gmra.mxu0 %v7713
  %v8370 = vpop.f32.mrf.mxu0
  %v8371 = vadd.f32 0.0, %v8370
  %8372 = vmatmul.f32.gmra.mxu0 %v7716
  %v8373 = vpop.f32.mrf.mxu0
  %v8374 = vadd.f32 0.0, %v8373
  %8375 = vmatmul.f32.gmra.mxu0 %v7719
  %v8376 = vpop.f32.mrf.mxu0
  %v8377 = vadd.f32 0.0, %v8376
  %8378 = vmatmul.f32.gmra.mxu0 %v7722
  %v8379 = vpop.f32.mrf.mxu0
  %v8380 = vadd.f32 0.0, %v8379
  %8381 = vmatmul.f32.gmra.mxu0 %v7725
  %v8382 = vpop.f32.mrf.mxu0
  %v8383 = vadd.f32 0.0, %v8382
  %8384 = vmatmul.f32.gmra.mxu0 %v7728
  %v8385 = vpop.f32.mrf.mxu0
  %v8386 = vadd.f32 0.0, %v8385
  %8387 = vmatmul.f32.gmra.mxu0 %v7731
  %v8388 = vpop.f32.mrf.mxu0
  %v8389 = vadd.f32 0.0, %v8388
  %8390 = vmatmul.f32.gmra.mxu0 %v7734
  %v8391 = vpop.f32.mrf.mxu0
  %v8392 = vadd.f32 0.0, %v8391
  %8393 = vmatmul.f32.gmra.mxu0 %v7737
  %v8394 = vpop.f32.mrf.mxu0
  %v8395 = vadd.f32 0.0, %v8394
  %8396 = vmatmul.f32.gmra.mxu0 %v7740
  %v8397 = vpop.f32.mrf.mxu0
  %v8398 = vadd.f32 0.0, %v8397
  %8399 = vmatmul.f32.gmra.mxu0 %v7743
  %v8400 = vpop.f32.mrf.mxu0
  %v8401 = vadd.f32 0.0, %v8400
  %8402 = vmatmul.f32.gmra.mxu0 %v7746
  %v8403 = vpop.f32.mrf.mxu0
  %v8404 = vadd.f32 0.0, %v8403
  %8405 = vmatmul.f32.gmra.mxu0 %v8288
  %v8406 = vpop.f32.mrf.mxu0
  %v8407 = vadd.f32 0.0, %v8406
  %8408 = vmatmul.f32.gmra.mxu0 %v8291
  %v8409 = vpop.f32.mrf.mxu0
  %v8410 = vadd.f32 0.0, %v8409
  %8411 = vmatmul.f32.gmra.mxu0 %v7755
  %v8412 = vpop.f32.mrf.mxu0
  %v8413 = vadd.f32 0.0, %v8412
  %8414 = vmatmul.f32.gmra.mxu0 %v7758
  %v8415 = vpop.f32.mrf.mxu0
  %v8416 = vadd.f32 0.0, %v8415
  %8417 = vmatmul.f32.gmra.mxu0 %v7761
  %v8418 = vpop.f32.mrf.mxu0
  %v8419 = vadd.f32 0.0, %v8418
  %8420 = vmatmul.f32.gmra.mxu0 %v7764
  %v8421 = vpop.f32.mrf.mxu0
  %v8422 = vadd.f32 0.0, %v8421
  %8423 = vmatmul.f32.gmra.mxu0 %v7767
  %v8424 = vpop.f32.mrf.mxu0
  %v8425 = vadd.f32 0.0, %v8424
  %8426 = vmatmul.f32.gmra.mxu0 %v7770
  %v8427 = vpop.f32.mrf.mxu0
  %v8428 = vadd.f32 0.0, %v8427
  %8429 = vmatmul.f32.gmra.mxu0 %v7773
  %v8430 = vpop.f32.mrf.mxu0
  %v8431 = vadd.f32 0.0, %v8430
  %8432 = vmatmul.f32.gmra.mxu0 %v7776
  %v8433 = vpop.f32.mrf.mxu0
  %v8434 = vadd.f32 0.0, %v8433
  %8435 = vmatmul.f32.gmra.mxu0 %v7779
  %v8436 = vpop.f32.mrf.mxu0
  %v8437 = vadd.f32 0.0, %v8436
  %8438 = vmatmul.f32.gmra.mxu0 %v7782
  %v8439 = vpop.f32.mrf.mxu0
  %v8440 = vadd.f32 0.0, %v8439
  %8441 = vmatmul.f32.gmra.mxu0 %v7785
  %v8442 = vpop.f32.mrf.mxu0
  %v8443 = vadd.f32 0.0, %v8442
  %8444 = vmatmul.f32.gmra.mxu0 %v7788
  %v8445 = vpop.f32.mrf.mxu0
  %v8446 = vadd.f32 0.0, %v8445
  %8447 = vmatmul.f32.gmra.mxu0 %v7791
  %v8448 = vpop.f32.mrf.mxu0
  %v8449 = vadd.f32 0.0, %v8448
  %8450 = vmatmul.f32.gmra.mxu0 %v7794
  %v8451 = vpop.f32.mrf.mxu0
  %v8452 = vadd.f32 0.0, %v8451
  %8453 = vmatmul.f32.gmra.mxu0 %v7797
  %v8454 = vpop.f32.mrf.mxu0
  %v8455 = vadd.f32 0.0, %v8454
  %8456 = vmatmul.f32.gmra.mxu0 %v7800
  %v8457 = vpop.f32.mrf.mxu0
  %v8458 = vadd.f32 0.0, %v8457
  %8459 = vmatmul.f32.gmra.mxu0 %v7803
  %v8460 = vpop.f32.mrf.mxu0
  %v8461 = vadd.f32 0.0, %v8460
  %8462 = vmatmul.f32.gmra.mxu0 %v7806
  %v8463 = vpop.f32.mrf.mxu0
  %v8464 = vadd.f32 0.0, %v8463
  %8465 = vmatmul.f32.gmra.mxu0 %v7809
  %v8466 = vpop.f32.mrf.mxu0
  %v8467 = vadd.f32 0.0, %v8466
  %8468 = vmatmul.f32.gmra.mxu0 %v7812
  %v8469 = vpop.f32.mrf.mxu0
  %v8470 = vadd.f32 0.0, %v8469
  %8471 = vmatmul.f32.gmra.mxu0 %v7815
  %v8472 = vpop.f32.mrf.mxu0
  %v8473 = vadd.f32 0.0, %v8472
  %8474 = vmatmul.f32.gmra.mxu0 %v7818
  %v8475 = vpop.f32.mrf.mxu0
  %v8476 = vadd.f32 0.0, %v8475
  %8477 = vmatmul.f32.gmra.mxu0 %v7821
  %v8478 = vpop.f32.mrf.mxu0
  %v8479 = vadd.f32 0.0, %v8478
  %8480 = vmatmul.f32.gmra.mxu0 %v7824
  %v8481 = vpop.f32.mrf.mxu0
  %v8482 = vadd.f32 0.0, %v8481
  %8483 = vmatmul.f32.gmra.mxu0 %v7827
  %v8484 = vpop.f32.mrf.mxu0
  %v8485 = vadd.f32 0.0, %v8484
  %8486 = vmatmul.f32.gmra.mxu0 %v7830
  %v8487 = vpop.f32.mrf.mxu0
  %v8488 = vadd.f32 0.0, %v8487
  %8489 = vmatmul.f32.gmra.mxu0 %v7833
  %v8490 = vpop.f32.mrf.mxu0
  %v8491 = vadd.f32 0.0, %v8490
  %8492 = vmatmul.f32.gmra.mxu0 %v7836
  %v8493 = vpop.f32.mrf.mxu0
  %v8494 = vadd.f32 0.0, %v8493
  %8495 = vmatmul.f32.gmra.mxu0 %v7839
  %v8496 = vpop.f32.mrf.mxu0
  %v8497 = vadd.f32 0.0, %v8496
  %8498 = vmatmul.f32.gmra.mxu0 %v7842
  %v8499 = vpop.f32.mrf.mxu0
  %v8500 = vadd.f32 0.0, %v8499
  %8501 = vmatmul.f32.gmra.mxu0 %v8294
  %v8502 = vpop.f32.mrf.mxu0
  %v8503 = vadd.f32 0.0, %v8502
  %8504 = vmatmul.f32.gmra.mxu0 %v8297
  %v8505 = vpop.f32.mrf.mxu0
  %v8506 = vadd.f32 0.0, %v8505
  %8507 = vdwg.mxu0
  %v8508 = vadd.f32 %v8083, %v8317
  %v8509 = vadd.f32 %v8086, %v8320
  %v8510 = vadd.f32 %v8089, %v8323
  %v8511 = vadd.f32 %v8092, %v8326
  %v8512 = vadd.f32 %v8095, %v8329
  %v8513 = vadd.f32 %v8098, %v8332
  %v8514 = vadd.f32 %v8101, %v8335
  %v8515 = vadd.f32 %v8104, %v8338
  %v8516 = vadd.f32 %v8107, %v8341
  %v8517 = vadd.f32 %v8110, %v8344
  %v8518 = vadd.f32 %v8113, %v8347
  %v8519 = vadd.f32 %v8116, %v8350
  %v8520 = vadd.f32 %v8119, %v8353
  %v8521 = vadd.f32 %v8122, %v8356
  %v8522 = vadd.f32 %v8125, %v8359
  %v8523 = vadd.f32 %v8128, %v8362
  %v8524 = vadd.f32 %v8131, %v8365
  %v8525 = vadd.f32 %v8134, %v8368
  %v8526 = vadd.f32 %v8137, %v8371
  %v8527 = vadd.f32 %v8140, %v8374
  %v8528 = vadd.f32 %v8143, %v8377
  %v8529 = vadd.f32 %v8146, %v8380
  %v8530 = vadd.f32 %v8149, %v8383
  %v8531 = vadd.f32 %v8152, %v8386
  %v8532 = vadd.f32 %v8155, %v8389
  %v8533 = vadd.f32 %v8158, %v8392
  %v8534 = vadd.f32 %v8161, %v8395
  %v8535 = vadd.f32 %v8164, %v8398
  %v8536 = vadd.f32 %v8167, %v8401
  %v8537 = vadd.f32 %v8170, %v8404
  %v8538 = vadd.f32 %v8173, %v8407
  %v8539 = vadd.f32 %v8176, %v8410
  %v8540 = vadd.f32 %v8179, %v8413
  %v8541 = vadd.f32 %v8182, %v8416
  %v8542 = vadd.f32 %v8185, %v8419
  %v8543 = vadd.f32 %v8188, %v8422
  %v8544 = vadd.f32 %v8191, %v8425
  %v8545 = vadd.f32 %v8194, %v8428
  %v8546 = vadd.f32 %v8197, %v8431
  %v8547 = vadd.f32 %v8200, %v8434
  %v8548 = vadd.f32 %v8203, %v8437
  %v8549 = vadd.f32 %v8206, %v8440
  %v8550 = vadd.f32 %v8209, %v8443
  %v8551 = vadd.f32 %v8212, %v8446
  %v8552 = vadd.f32 %v8215, %v8449
  %v8553 = vadd.f32 %v8218, %v8452
  %v8554 = vadd.f32 %v8221, %v8455
  %v8555 = vadd.f32 %v8224, %v8458
  %v8556 = vadd.f32 %v8227, %v8461
  %v8557 = vadd.f32 %v8230, %v8464
  %v8558 = vadd.f32 %v8233, %v8467
  %v8559 = vadd.f32 %v8236, %v8470
  %v8560 = vadd.f32 %v8239, %v8473
  %v8561 = vadd.f32 %v8242, %v8476
  %v8562 = vadd.f32 %v8245, %v8479
  %v8563 = vadd.f32 %v8248, %v8482
  %v8564 = vadd.f32 %v8251, %v8485
  %v8565 = vadd.f32 %v8254, %v8488
  %v8566 = vadd.f32 %v8257, %v8491
  %v8567 = vadd.f32 %v8260, %v8494
  %v8568 = vadd.f32 %v8263, %v8497
  %v8569 = vadd.f32 %v8266, %v8500
  %v8570 = vadd.f32 %v8269, %v8503
  %v8571 = vadd.f32 %v8272, %v8506
  %v8572 = vld [vmem:[%s16] sm:$0x1]
  %v8574 = vperm.slane %v8572, 0
  %v8576 = vadd.f32 %v8508, %v8574
  %v8577 = vadd.f32 %v8509, %v8574
  %v8578 = vadd.f32 %v8510, %v8574
  %v8579 = vadd.f32 %v8511, %v8574
  %v8580 = vadd.f32 %v8512, %v8574
  %v8581 = vadd.f32 %v8513, %v8574
  %v8582 = vadd.f32 %v8514, %v8574
  %v8583 = vadd.f32 %v8515, %v8574
  %v8584 = vadd.f32 %v8516, %v8574
  %v8585 = vadd.f32 %v8517, %v8574
  %v8586 = vadd.f32 %v8518, %v8574
  %v8587 = vadd.f32 %v8519, %v8574
  %v8588 = vadd.f32 %v8520, %v8574
  %v8589 = vadd.f32 %v8521, %v8574
  %v8590 = vadd.f32 %v8522, %v8574
  %v8591 = vadd.f32 %v8523, %v8574
  %v8592 = vadd.f32 %v8524, %v8574
  %v8593 = vadd.f32 %v8525, %v8574
  %v8594 = vadd.f32 %v8526, %v8574
  %v8595 = vadd.f32 %v8527, %v8574
  %v8596 = vadd.f32 %v8528, %v8574
  %v8597 = vadd.f32 %v8529, %v8574
  %v8598 = vadd.f32 %v8530, %v8574
  %v8599 = vadd.f32 %v8531, %v8574
  %v8600 = vadd.f32 %v8532, %v8574
  %v8601 = vadd.f32 %v8533, %v8574
  %v8602 = vadd.f32 %v8534, %v8574
  %v8603 = vadd.f32 %v8535, %v8574
  %v8604 = vadd.f32 %v8536, %v8574
  %v8605 = vadd.f32 %v8537, %v8574
  %v8606 = vadd.f32 %v8538, %v8574
  %v8607 = vadd.f32 %v8539, %v8574
  %v8608 = vadd.f32 %v8540, %v8574
  %v8609 = vadd.f32 %v8541, %v8574
  %v8610 = vadd.f32 %v8542, %v8574
  %v8611 = vadd.f32 %v8543, %v8574
  %v8612 = vadd.f32 %v8544, %v8574
  %v8613 = vadd.f32 %v8545, %v8574
  %v8614 = vadd.f32 %v8546, %v8574
  %v8615 = vadd.f32 %v8547, %v8574
  %v8616 = vadd.f32 %v8548, %v8574
  %v8617 = vadd.f32 %v8549, %v8574
  %v8618 = vadd.f32 %v8550, %v8574
  %v8619 = vadd.f32 %v8551, %v8574
  %v8620 = vadd.f32 %v8552, %v8574
  %v8621 = vadd.f32 %v8553, %v8574
  %v8622 = vadd.f32 %v8554, %v8574
  %v8623 = vadd.f32 %v8555, %v8574
  %v8624 = vadd.f32 %v8556, %v8574
  %v8625 = vadd.f32 %v8557, %v8574
  %v8626 = vadd.f32 %v8558, %v8574
  %v8627 = vadd.f32 %v8559, %v8574
  %v8628 = vadd.f32 %v8560, %v8574
  %v8629 = vadd.f32 %v8561, %v8574
  %v8630 = vadd.f32 %v8562, %v8574
  %v8631 = vadd.f32 %v8563, %v8574
  %v8632 = vadd.f32 %v8564, %v8574
  %v8633 = vadd.f32 %v8565, %v8574
  %v8634 = vadd.f32 %v8566, %v8574
  %v8635 = vadd.f32 %v8567, %v8574
  %v8636 = vadd.f32 %v8568, %v8574
  %v8637 = vadd.f32 %v8569, %v8574
  %v8638 = vadd.f32 %v8570, %v8574
  %v8639 = vadd.f32 %v8571, %v8574
  %v8640 = vmax.f32 %v8576, 0.0
  %v8641 = vmax.f32 %v8577, 0.0
  %v8642 = vmax.f32 %v8578, 0.0
  %v8643 = vmax.f32 %v8579, 0.0
  %v8644 = vmax.f32 %v8580, 0.0
  %v8645 = vmax.f32 %v8581, 0.0
  %v8646 = vmax.f32 %v8582, 0.0
  %v8647 = vmax.f32 %v8583, 0.0
  %v8648 = vmax.f32 %v8584, 0.0
  %v8649 = vmax.f32 %v8585, 0.0
  %v8650 = vmax.f32 %v8586, 0.0
  %v8651 = vmax.f32 %v8587, 0.0
  %v8652 = vmax.f32 %v8588, 0.0
  %v8653 = vmax.f32 %v8589, 0.0
  %v8654 = vmax.f32 %v8590, 0.0
  %v8655 = vmax.f32 %v8591, 0.0
  %v8656 = vmax.f32 %v8592, 0.0
  %v8657 = vmax.f32 %v8593, 0.0
  %v8658 = vmax.f32 %v8594, 0.0
  %v8659 = vmax.f32 %v8595, 0.0
  %v8660 = vmax.f32 %v8596, 0.0
  %v8661 = vmax.f32 %v8597, 0.0
  %v8662 = vmax.f32 %v8598, 0.0
  %v8663 = vmax.f32 %v8599, 0.0
  %v8664 = vmax.f32 %v8600, 0.0
  %v8665 = vmax.f32 %v8601, 0.0
  %v8666 = vmax.f32 %v8602, 0.0
  %v8667 = vmax.f32 %v8603, 0.0
  %v8668 = vmax.f32 %v8604, 0.0
  %v8669 = vmax.f32 %v8605, 0.0
  %v8670 = vmax.f32 %v8606, 0.0
  %v8671 = vmax.f32 %v8607, 0.0
  %v8672 = vmax.f32 %v8608, 0.0
  %v8673 = vmax.f32 %v8609, 0.0
  %v8674 = vmax.f32 %v8610, 0.0
  %v8675 = vmax.f32 %v8611, 0.0
  %v8676 = vmax.f32 %v8612, 0.0
  %v8677 = vmax.f32 %v8613, 0.0
  %v8678 = vmax.f32 %v8614, 0.0
  %v8679 = vmax.f32 %v8615, 0.0
  %v8680 = vmax.f32 %v8616, 0.0
  %v8681 = vmax.f32 %v8617, 0.0
  %v8682 = vmax.f32 %v8618, 0.0
  %v8683 = vmax.f32 %v8619, 0.0
  %v8684 = vmax.f32 %v8620, 0.0
  %v8685 = vmax.f32 %v8621, 0.0
  %v8686 = vmax.f32 %v8622, 0.0
  %v8687 = vmax.f32 %v8623, 0.0
  %v8688 = vmax.f32 %v8624, 0.0
  %v8689 = vmax.f32 %v8625, 0.0
  %v8690 = vmax.f32 %v8626, 0.0
  %v8691 = vmax.f32 %v8627, 0.0
  %v8692 = vmax.f32 %v8628, 0.0
  %v8693 = vmax.f32 %v8629, 0.0
  %v8694 = vmax.f32 %v8630, 0.0
  %v8695 = vmax.f32 %v8631, 0.0
  %v8696 = vmax.f32 %v8632, 0.0
  %v8697 = vmax.f32 %v8633, 0.0
  %v8698 = vmax.f32 %v8634, 0.0
  %v8699 = vmax.f32 %v8635, 0.0
  %v8700 = vmax.f32 %v8636, 0.0
  %v8701 = vmax.f32 %v8637, 0.0
  %v8702 = vmax.f32 %v8638, 0.0
  %v8703 = vmax.f32 %v8639, 0.0
  %v8704 = vld [vmem:[%s17] sm:$0xff]
  %v8705 = vld [vmem:[%s17 + $0x8] sm:$0xff]
  %v8706 = vld [vmem:[%s17 + $0x10] sm:$0xff]
  %v8707 = vld [vmem:[%s17 + $0x18] sm:$0xff]
  %v8708 = vld [vmem:[%s17 + $0x20] sm:$0xff]
  %v8709 = vld [vmem:[%s17 + $0x28] sm:$0xff]
  %v8710 = vld [vmem:[%s17 + $0x30] sm:$0xff]
  %v8711 = vld [vmem:[%s17 + $0x38] sm:$0xff]
  %v8712 = vld [vmem:[%s17 + $0x40] sm:$0xff]
  %v8713 = vld [vmem:[%s17 + $0x48] sm:$0xff]
  %v8714 = vld [vmem:[%s17 + $0x50] sm:$0xff]
  %v8715 = vld [vmem:[%s17 + $0x58] sm:$0xff]
  %v8716 = vld [vmem:[%s17 + $0x60] sm:$0xff]
  %v8717 = vld [vmem:[%s17 + $0x68] sm:$0xff]
  %v8718 = vld [vmem:[%s17 + $0x70] sm:$0xff]
  %v8719 = vld [vmem:[%s17 + $0x78] sm:$0xff]
  %v8720 = vld [vmem:[%s17 + $0x80] sm:$0xff]
  %v8721 = vld [vmem:[%s17 + $0x88] sm:$0xff]
  %v8722 = vld [vmem:[%s17 + $0x90] sm:$0xff]
  %v8723 = vld [vmem:[%s17 + $0x98] sm:$0xff]
  %v8724 = vld [vmem:[%s17 + $0xa0] sm:$0xff]
  %v8725 = vld [vmem:[%s17 + $0xa8] sm:$0xff]
  %v8726 = vld [vmem:[%s17 + $0xb0] sm:$0xff]
  %v8727 = vld [vmem:[%s17 + $0xb8] sm:$0xff]
  %v8728 = vld [vmem:[%s17 + $0xc0] sm:$0xff]
  %v8729 = vld [vmem:[%s17 + $0xc8] sm:$0xff]
  %v8730 = vld [vmem:[%s17 + $0xd0] sm:$0xff]
  %v8731 = vld [vmem:[%s17 + $0xd8] sm:$0xff]
  %v8732 = vld [vmem:[%s17 + $0xe0] sm:$0xff]
  %v8733 = vld [vmem:[%s17 + $0xe8] sm:$0xff]
  %v8734 = vld [vmem:[%s17 + $0xf0] sm:$0xff]
  %v8735 = vld [vmem:[%s17 + $0xf8] sm:$0xff]
  %8737 = vset.pattern.permute.xlu0 0
  %8738 = vperm.xlu0 %8737, %v8704
  %v8739 = vpop.permute.xlu0 %8738
  %8742 = vset.pattern.permute.xlu0 0
  %8743 = vperm.xlu0 %8742, %v8705
  %v8744 = vpop.permute.xlu0 %8743
  %8747 = vset.pattern.permute.xlu0 0
  %8748 = vperm.xlu0 %8747, %v8706
  %v8749 = vpop.permute.xlu0 %8748
  %8752 = vset.pattern.permute.xlu0 0
  %8753 = vperm.xlu0 %8752, %v8707
  %v8754 = vpop.permute.xlu0 %8753
  %8757 = vset.pattern.permute.xlu0 0
  %8758 = vperm.xlu0 %8757, %v8708
  %v8759 = vpop.permute.xlu0 %8758
  %8762 = vset.pattern.permute.xlu0 0
  %8763 = vperm.xlu0 %8762, %v8709
  %v8764 = vpop.permute.xlu0 %8763
  %8767 = vset.pattern.permute.xlu0 0
  %8768 = vperm.xlu0 %8767, %v8710
  %v8769 = vpop.permute.xlu0 %8768
  %8772 = vset.pattern.permute.xlu0 0
  %8773 = vperm.xlu0 %8772, %v8711
  %v8774 = vpop.permute.xlu0 %8773
  %8777 = vset.pattern.permute.xlu0 0
  %8778 = vperm.xlu0 %8777, %v8712
  %v8779 = vpop.permute.xlu0 %8778
  %8782 = vset.pattern.permute.xlu0 0
  %8783 = vperm.xlu0 %8782, %v8713
  %v8784 = vpop.permute.xlu0 %8783
  %8787 = vset.pattern.permute.xlu0 0
  %8788 = vperm.xlu0 %8787, %v8714
  %v8789 = vpop.permute.xlu0 %8788
  %8792 = vset.pattern.permute.xlu0 0
  %8793 = vperm.xlu0 %8792, %v8715
  %v8794 = vpop.permute.xlu0 %8793
  %8797 = vset.pattern.permute.xlu0 0
  %8798 = vperm.xlu0 %8797, %v8716
  %v8799 = vpop.permute.xlu0 %8798
  %8802 = vset.pattern.permute.xlu0 0
  %8803 = vperm.xlu0 %8802, %v8717
  %v8804 = vpop.permute.xlu0 %8803
  %8807 = vset.pattern.permute.xlu0 0
  %8808 = vperm.xlu0 %8807, %v8718
  %v8809 = vpop.permute.xlu0 %8808
  %8812 = vset.pattern.permute.xlu0 0
  %8813 = vperm.xlu0 %8812, %v8719
  %v8814 = vpop.permute.xlu0 %8813
  %8817 = vset.pattern.permute.xlu0 0
  %8818 = vperm.xlu0 %8817, %v8720
  %v8819 = vpop.permute.xlu0 %8818
  %8822 = vset.pattern.permute.xlu0 0
  %8823 = vperm.xlu0 %8822, %v8721
  %v8824 = vpop.permute.xlu0 %8823
  %8827 = vset.pattern.permute.xlu0 0
  %8828 = vperm.xlu0 %8827, %v8722
  %v8829 = vpop.permute.xlu0 %8828
  %8832 = vset.pattern.permute.xlu0 0
  %8833 = vperm.xlu0 %8832, %v8723
  %v8834 = vpop.permute.xlu0 %8833
  %8837 = vset.pattern.permute.xlu0 0
  %8838 = vperm.xlu0 %8837, %v8724
  %v8839 = vpop.permute.xlu0 %8838
  %8842 = vset.pattern.permute.xlu0 0
  %8843 = vperm.xlu0 %8842, %v8725
  %v8844 = vpop.permute.xlu0 %8843
  %8847 = vset.pattern.permute.xlu0 0
  %8848 = vperm.xlu0 %8847, %v8726
  %v8849 = vpop.permute.xlu0 %8848
  %8852 = vset.pattern.permute.xlu0 0
  %8853 = vperm.xlu0 %8852, %v8727
  %v8854 = vpop.permute.xlu0 %8853
  %8857 = vset.pattern.permute.xlu0 0
  %8858 = vperm.xlu0 %8857, %v8728
  %v8859 = vpop.permute.xlu0 %8858
  %8862 = vset.pattern.permute.xlu0 0
  %8863 = vperm.xlu0 %8862, %v8729
  %v8864 = vpop.permute.xlu0 %8863
  %8867 = vset.pattern.permute.xlu0 0
  %8868 = vperm.xlu0 %8867, %v8730
  %v8869 = vpop.permute.xlu0 %8868
  %8872 = vset.pattern.permute.xlu0 0
  %8873 = vperm.xlu0 %8872, %v8731
  %v8874 = vpop.permute.xlu0 %8873
  %8877 = vset.pattern.permute.xlu0 0
  %8878 = vperm.xlu0 %8877, %v8732
  %v8879 = vpop.permute.xlu0 %8878
  %8882 = vset.pattern.permute.xlu0 0
  %8883 = vperm.xlu0 %8882, %v8733
  %v8884 = vpop.permute.xlu0 %8883
  %8887 = vset.pattern.permute.xlu0 0
  %8888 = vperm.xlu0 %8887, %v8734
  %v8889 = vpop.permute.xlu0 %8888
  %8892 = vset.pattern.permute.xlu0 0
  %8893 = vperm.xlu0 %8892, %v8735
  %v8894 = vpop.permute.xlu0 %8893
  %v8896 = vmul.f32 %v8640, %v8739
  %v8897 = vmul.f32 %v8641, %v8744
  %v8898 = vmul.f32 %v8642, %v8749
  %v8899 = vmul.f32 %v8643, %v8754
  %v8900 = vmul.f32 %v8644, %v8759
  %v8901 = vmul.f32 %v8645, %v8764
  %v8902 = vmul.f32 %v8646, %v8769
  %v8903 = vmul.f32 %v8647, %v8774
  %v8904 = vmul.f32 %v8648, %v8779
  %v8905 = vmul.f32 %v8649, %v8784
  %v8906 = vmul.f32 %v8650, %v8789
  %v8907 = vmul.f32 %v8651, %v8794
  %v8908 = vmul.f32 %v8652, %v8799
  %v8909 = vmul.f32 %v8653, %v8804
  %v8910 = vmul.f32 %v8654, %v8809
  %v8911 = vmul.f32 %v8655, %v8814
  %v8912 = vmul.f32 %v8656, %v8819
  %v8913 = vmul.f32 %v8657, %v8824
  %v8914 = vmul.f32 %v8658, %v8829
  %v8915 = vmul.f32 %v8659, %v8834
  %v8916 = vmul.f32 %v8660, %v8839
  %v8917 = vmul.f32 %v8661, %v8844
  %v8918 = vmul.f32 %v8662, %v8849
  %v8919 = vmul.f32 %v8663, %v8854
  %v8920 = vmul.f32 %v8664, %v8859
  %v8921 = vmul.f32 %v8665, %v8864
  %v8922 = vmul.f32 %v8666, %v8869
  %v8923 = vmul.f32 %v8667, %v8874
  %v8924 = vmul.f32 %v8668, %v8879
  %v8925 = vmul.f32 %v8669, %v8884
  %v8926 = vmul.f32 %v8670, %v8889
  %v8927 = vmul.f32 %v8671, %v8894
  %v8928 = vmul.f32 %v8672, %v8739
  %v8929 = vmul.f32 %v8673, %v8744
  %v8930 = vmul.f32 %v8674, %v8749
  %v8931 = vmul.f32 %v8675, %v8754
  %v8932 = vmul.f32 %v8676, %v8759
  %v8933 = vmul.f32 %v8677, %v8764
  %v8934 = vmul.f32 %v8678, %v8769
  %v8935 = vmul.f32 %v8679, %v8774
  %v8936 = vmul.f32 %v8680, %v8779
  %v8937 = vmul.f32 %v8681, %v8784
  %v8938 = vmul.f32 %v8682, %v8789
  %v8939 = vmul.f32 %v8683, %v8794
  %v8940 = vmul.f32 %v8684, %v8799
  %v8941 = vmul.f32 %v8685, %v8804
  %v8942 = vmul.f32 %v8686, %v8809
  %v8943 = vmul.f32 %v8687, %v8814
  %v8944 = vmul.f32 %v8688, %v8819
  %v8945 = vmul.f32 %v8689, %v8824
  %v8946 = vmul.f32 %v8690, %v8829
  %v8947 = vmul.f32 %v8691, %v8834
  %v8948 = vmul.f32 %v8692, %v8839
  %v8949 = vmul.f32 %v8693, %v8844
  %v8950 = vmul.f32 %v8694, %v8849
  %v8951 = vmul.f32 %v8695, %v8854
  %v8952 = vmul.f32 %v8696, %v8859
  %v8953 = vmul.f32 %v8697, %v8864
  %v8954 = vmul.f32 %v8698, %v8869
  %v8955 = vmul.f32 %v8699, %v8874
  %v8956 = vmul.f32 %v8700, %v8879
  %v8957 = vmul.f32 %v8701, %v8884
  %v8958 = vmul.f32 %v8702, %v8889
  %v8959 = vmul.f32 %v8703, %v8894
  %v8960 = vld [vmem:[%s18] sm:$0x1]
  %v8962 = vperm.slane %v8960, 0
  %v8964 = vmul.f32 %v8896, %v8962
  %v8965 = vmul.f32 %v8897, %v8962
  %v8966 = vmul.f32 %v8898, %v8962
  %v8967 = vmul.f32 %v8899, %v8962
  %v8968 = vmul.f32 %v8900, %v8962
  %v8969 = vmul.f32 %v8901, %v8962
  %v8970 = vmul.f32 %v8902, %v8962
  %v8971 = vmul.f32 %v8903, %v8962
  %v8972 = vmul.f32 %v8904, %v8962
  %v8973 = vmul.f32 %v8905, %v8962
  %v8974 = vmul.f32 %v8906, %v8962
  %v8975 = vmul.f32 %v8907, %v8962
  %v8976 = vmul.f32 %v8908, %v8962
  %v8977 = vmul.f32 %v8909, %v8962
  %v8978 = vmul.f32 %v8910, %v8962
  %v8979 = vmul.f32 %v8911, %v8962
  %v8980 = vmul.f32 %v8912, %v8962
  %v8981 = vmul.f32 %v8913, %v8962
  %v8982 = vmul.f32 %v8914, %v8962
  %v8983 = vmul.f32 %v8915, %v8962
  %v8984 = vmul.f32 %v8916, %v8962
  %v8985 = vmul.f32 %v8917, %v8962
  %v8986 = vmul.f32 %v8918, %v8962
  %v8987 = vmul.f32 %v8919, %v8962
  %v8988 = vmul.f32 %v8920, %v8962
  %v8989 = vmul.f32 %v8921, %v8962
  %v8990 = vmul.f32 %v8922, %v8962
  %v8991 = vmul.f32 %v8923, %v8962
  %v8992 = vmul.f32 %v8924, %v8962
  %v8993 = vmul.f32 %v8925, %v8962
  %v8994 = vmul.f32 %v8926, %v8962
  %v8995 = vmul.f32 %v8927, %v8962
  %v8996 = vmul.f32 %v8928, %v8962
  %v8997 = vmul.f32 %v8929, %v8962
  %v8998 = vmul.f32 %v8930, %v8962
  %v8999 = vmul.f32 %v8931, %v8962
  %v9000 = vmul.f32 %v8932, %v8962
  %v9001 = vmul.f32 %v8933, %v8962
  %v9002 = vmul.f32 %v8934, %v8962
  %v9003 = vmul.f32 %v8935, %v8962
  %v9004 = vmul.f32 %v8936, %v8962
  %v9005 = vmul.f32 %v8937, %v8962
  %v9006 = vmul.f32 %v8938, %v8962
  %v9007 = vmul.f32 %v8939, %v8962
  %v9008 = vmul.f32 %v8940, %v8962
  %v9009 = vmul.f32 %v8941, %v8962
  %v9010 = vmul.f32 %v8942, %v8962
  %v9011 = vmul.f32 %v8943, %v8962
  %v9012 = vmul.f32 %v8944, %v8962
  %v9013 = vmul.f32 %v8945, %v8962
  %v9014 = vmul.f32 %v8946, %v8962
  %v9015 = vmul.f32 %v8947, %v8962
  %v9016 = vmul.f32 %v8948, %v8962
  %v9017 = vmul.f32 %v8949, %v8962
  %v9018 = vmul.f32 %v8950, %v8962
  %v9019 = vmul.f32 %v8951, %v8962
  %v9020 = vmul.f32 %v8952, %v8962
  %v9021 = vmul.f32 %v8953, %v8962
  %v9022 = vmul.f32 %v8954, %v8962
  %v9023 = vmul.f32 %v8955, %v8962
  %v9024 = vmul.f32 %v8956, %v8962
  %v9025 = vmul.f32 %v8957, %v8962
  %v9026 = vmul.f32 %v8958, %v8962
  %v9027 = vmul.f32 %v8959, %v8962
  %v9028 = vsel %vm517, %v8964, 0.0
  %9029 = vadd.xlane.f32.xlu0 %v9028
  %v9030 = vpop.xlane.xlu0 %9029
  %v9031 = vsel %vm517, %v8965, 0.0
  %9032 = vadd.xlane.f32.xlu0 %v9031
  %v9033 = vpop.xlane.xlu0 %9032
  %v9034 = vsel %vm517, %v8966, 0.0
  %9035 = vadd.xlane.f32.xlu0 %v9034
  %v9036 = vpop.xlane.xlu0 %9035
  %v9037 = vsel %vm517, %v8967, 0.0
  %9038 = vadd.xlane.f32.xlu0 %v9037
  %v9039 = vpop.xlane.xlu0 %9038
  %v9040 = vsel %vm517, %v8968, 0.0
  %9041 = vadd.xlane.f32.xlu0 %v9040
  %v9042 = vpop.xlane.xlu0 %9041
  %v9043 = vsel %vm517, %v8969, 0.0
  %9044 = vadd.xlane.f32.xlu0 %v9043
  %v9045 = vpop.xlane.xlu0 %9044
  %v9046 = vsel %vm517, %v8970, 0.0
  %9047 = vadd.xlane.f32.xlu0 %v9046
  %v9048 = vpop.xlane.xlu0 %9047
  %v9049 = vsel %vm517, %v8971, 0.0
  %9050 = vadd.xlane.f32.xlu0 %v9049
  %v9051 = vpop.xlane.xlu0 %9050
  %v9052 = vsel %vm517, %v8972, 0.0
  %9053 = vadd.xlane.f32.xlu0 %v9052
  %v9054 = vpop.xlane.xlu0 %9053
  %v9055 = vsel %vm517, %v8973, 0.0
  %9056 = vadd.xlane.f32.xlu0 %v9055
  %v9057 = vpop.xlane.xlu0 %9056
  %v9058 = vsel %vm517, %v8974, 0.0
  %9059 = vadd.xlane.f32.xlu0 %v9058
  %v9060 = vpop.xlane.xlu0 %9059
  %v9061 = vsel %vm517, %v8975, 0.0
  %9062 = vadd.xlane.f32.xlu0 %v9061
  %v9063 = vpop.xlane.xlu0 %9062
  %v9064 = vsel %vm517, %v8976, 0.0
  %9065 = vadd.xlane.f32.xlu0 %v9064
  %v9066 = vpop.xlane.xlu0 %9065
  %v9067 = vsel %vm517, %v8977, 0.0
  %9068 = vadd.xlane.f32.xlu0 %v9067
  %v9069 = vpop.xlane.xlu0 %9068
  %v9070 = vsel %vm517, %v8978, 0.0
  %9071 = vadd.xlane.f32.xlu0 %v9070
  %v9072 = vpop.xlane.xlu0 %9071
  %v9073 = vsel %vm517, %v8979, 0.0
  %9074 = vadd.xlane.f32.xlu0 %v9073
  %v9075 = vpop.xlane.xlu0 %9074
  %v9076 = vsel %vm517, %v8980, 0.0
  %9077 = vadd.xlane.f32.xlu0 %v9076
  %v9078 = vpop.xlane.xlu0 %9077
  %v9079 = vsel %vm517, %v8981, 0.0
  %9080 = vadd.xlane.f32.xlu0 %v9079
  %v9081 = vpop.xlane.xlu0 %9080
  %v9082 = vsel %vm517, %v8982, 0.0
  %9083 = vadd.xlane.f32.xlu0 %v9082
  %v9084 = vpop.xlane.xlu0 %9083
  %v9085 = vsel %vm517, %v8983, 0.0
  %9086 = vadd.xlane.f32.xlu0 %v9085
  %v9087 = vpop.xlane.xlu0 %9086
  %v9088 = vsel %vm517, %v8984, 0.0
  %9089 = vadd.xlane.f32.xlu0 %v9088
  %v9090 = vpop.xlane.xlu0 %9089
  %v9091 = vsel %vm517, %v8985, 0.0
  %9092 = vadd.xlane.f32.xlu0 %v9091
  %v9093 = vpop.xlane.xlu0 %9092
  %v9094 = vsel %vm517, %v8986, 0.0
  %9095 = vadd.xlane.f32.xlu0 %v9094
  %v9096 = vpop.xlane.xlu0 %9095
  %v9097 = vsel %vm517, %v8987, 0.0
  %9098 = vadd.xlane.f32.xlu0 %v9097
  %v9099 = vpop.xlane.xlu0 %9098
  %v9100 = vsel %vm517, %v8988, 0.0
  %9101 = vadd.xlane.f32.xlu0 %v9100
  %v9102 = vpop.xlane.xlu0 %9101
  %v9103 = vsel %vm517, %v8989, 0.0
  %9104 = vadd.xlane.f32.xlu0 %v9103
  %v9105 = vpop.xlane.xlu0 %9104
  %v9106 = vsel %vm517, %v8990, 0.0
  %9107 = vadd.xlane.f32.xlu0 %v9106
  %v9108 = vpop.xlane.xlu0 %9107
  %v9109 = vsel %vm517, %v8991, 0.0
  %9110 = vadd.xlane.f32.xlu0 %v9109
  %v9111 = vpop.xlane.xlu0 %9110
  %v9112 = vsel %vm517, %v8992, 0.0
  %9113 = vadd.xlane.f32.xlu0 %v9112
  %v9114 = vpop.xlane.xlu0 %9113
  %v9115 = vsel %vm517, %v8993, 0.0
  %9116 = vadd.xlane.f32.xlu0 %v9115
  %v9117 = vpop.xlane.xlu0 %9116
  %v9118 = vsel %vm517, %v8994, 0.0
  %9119 = vadd.xlane.f32.xlu0 %v9118
  %v9120 = vpop.xlane.xlu0 %9119
  %v9121 = vsel %vm517, %v8995, 0.0
  %9122 = vadd.xlane.f32.xlu0 %v9121
  %v9123 = vpop.xlane.xlu0 %9122
  %v9124 = vsel %vm517, %v8996, 0.0
  %9125 = vadd.xlane.f32.xlu0 %v9124
  %v9126 = vpop.xlane.xlu0 %9125
  %v9127 = vsel %vm517, %v8997, 0.0
  %9128 = vadd.xlane.f32.xlu0 %v9127
  %v9129 = vpop.xlane.xlu0 %9128
  %v9130 = vsel %vm517, %v8998, 0.0
  %9131 = vadd.xlane.f32.xlu0 %v9130
  %v9132 = vpop.xlane.xlu0 %9131
  %v9133 = vsel %vm517, %v8999, 0.0
  %9134 = vadd.xlane.f32.xlu0 %v9133
  %v9135 = vpop.xlane.xlu0 %9134
  %v9136 = vsel %vm517, %v9000, 0.0
  %9137 = vadd.xlane.f32.xlu0 %v9136
  %v9138 = vpop.xlane.xlu0 %9137
  %v9139 = vsel %vm517, %v9001, 0.0
  %9140 = vadd.xlane.f32.xlu0 %v9139
  %v9141 = vpop.xlane.xlu0 %9140
  %v9142 = vsel %vm517, %v9002, 0.0
  %9143 = vadd.xlane.f32.xlu0 %v9142
  %v9144 = vpop.xlane.xlu0 %9143
  %v9145 = vsel %vm517, %v9003, 0.0
  %9146 = vadd.xlane.f32.xlu0 %v9145
  %v9147 = vpop.xlane.xlu0 %9146
  %v9148 = vsel %vm517, %v9004, 0.0
  %9149 = vadd.xlane.f32.xlu0 %v9148
  %v9150 = vpop.xlane.xlu0 %9149
  %v9151 = vsel %vm517, %v9005, 0.0
  %9152 = vadd.xlane.f32.xlu0 %v9151
  %v9153 = vpop.xlane.xlu0 %9152
  %v9154 = vsel %vm517, %v9006, 0.0
  %9155 = vadd.xlane.f32.xlu0 %v9154
  %v9156 = vpop.xlane.xlu0 %9155
  %v9157 = vsel %vm517, %v9007, 0.0
  %9158 = vadd.xlane.f32.xlu0 %v9157
  %v9159 = vpop.xlane.xlu0 %9158
  %v9160 = vsel %vm517, %v9008, 0.0
  %9161 = vadd.xlane.f32.xlu0 %v9160
  %v9162 = vpop.xlane.xlu0 %9161
  %v9163 = vsel %vm517, %v9009, 0.0
  %9164 = vadd.xlane.f32.xlu0 %v9163
  %v9165 = vpop.xlane.xlu0 %9164
  %v9166 = vsel %vm517, %v9010, 0.0
  %9167 = vadd.xlane.f32.xlu0 %v9166
  %v9168 = vpop.xlane.xlu0 %9167
  %v9169 = vsel %vm517, %v9011, 0.0
  %9170 = vadd.xlane.f32.xlu0 %v9169
  %v9171 = vpop.xlane.xlu0 %9170
  %v9172 = vsel %vm517, %v9012, 0.0
  %9173 = vadd.xlane.f32.xlu0 %v9172
  %v9174 = vpop.xlane.xlu0 %9173
  %v9175 = vsel %vm517, %v9013, 0.0
  %9176 = vadd.xlane.f32.xlu0 %v9175
  %v9177 = vpop.xlane.xlu0 %9176
  %v9178 = vsel %vm517, %v9014, 0.0
  %9179 = vadd.xlane.f32.xlu0 %v9178
  %v9180 = vpop.xlane.xlu0 %9179
  %v9181 = vsel %vm517, %v9015, 0.0
  %9182 = vadd.xlane.f32.xlu0 %v9181
  %v9183 = vpop.xlane.xlu0 %9182
  %v9184 = vsel %vm517, %v9016, 0.0
  %9185 = vadd.xlane.f32.xlu0 %v9184
  %v9186 = vpop.xlane.xlu0 %9185
  %v9187 = vsel %vm517, %v9017, 0.0
  %9188 = vadd.xlane.f32.xlu0 %v9187
  %v9189 = vpop.xlane.xlu0 %9188
  %v9190 = vsel %vm517, %v9018, 0.0
  %9191 = vadd.xlane.f32.xlu0 %v9190
  %v9192 = vpop.xlane.xlu0 %9191
  %v9193 = vsel %vm517, %v9019, 0.0
  %9194 = vadd.xlane.f32.xlu0 %v9193
  %v9195 = vpop.xlane.xlu0 %9194
  %v9196 = vsel %vm517, %v9020, 0.0
  %9197 = vadd.xlane.f32.xlu0 %v9196
  %v9198 = vpop.xlane.xlu0 %9197
  %v9199 = vsel %vm517, %v9021, 0.0
  %9200 = vadd.xlane.f32.xlu0 %v9199
  %v9201 = vpop.xlane.xlu0 %9200
  %v9202 = vsel %vm517, %v9022, 0.0
  %9203 = vadd.xlane.f32.xlu0 %v9202
  %v9204 = vpop.xlane.xlu0 %9203
  %v9205 = vsel %vm517, %v9023, 0.0
  %9206 = vadd.xlane.f32.xlu0 %v9205
  %v9207 = vpop.xlane.xlu0 %9206
  %v9208 = vsel %vm517, %v9024, 0.0
  %9209 = vadd.xlane.f32.xlu0 %v9208
  %v9210 = vpop.xlane.xlu0 %9209
  %v9211 = vsel %vm517, %v9025, 0.0
  %9212 = vadd.xlane.f32.xlu0 %v9211
  %v9213 = vpop.xlane.xlu0 %9212
  %v9214 = vsel %vm517, %v9026, 0.0
  %9215 = vadd.xlane.f32.xlu0 %v9214
  %v9216 = vpop.xlane.xlu0 %9215
  %v9217 = vsel %vm517, %v9027, 0.0
  %9218 = vadd.xlane.f32.xlu0 %v9217
  %v9219 = vpop.xlane.xlu0 %9218
  %v9220 = vld [vmem:[#allocation3] sm:$0x1]
  %v9222 = vperm.slane %v9220, 0
  %9223 = vset.pattern.permute.xlu0 0
  %9224 = vperm.xlu0 %9223, %v9222
  %v9225 = vpop.permute.xlu0 %9224
  %v9227 = vadd.f32 %v9030, %v9225
  %v9228 = vadd.f32 %v9033, %v9225
  %v9229 = vadd.f32 %v9036, %v9225
  %v9230 = vadd.f32 %v9039, %v9225
  %v9231 = vadd.f32 %v9042, %v9225
  %v9232 = vadd.f32 %v9045, %v9225
  %v9233 = vadd.f32 %v9048, %v9225
  %v9234 = vadd.f32 %v9051, %v9225
  %v9235 = vadd.f32 %v9054, %v9225
  %v9236 = vadd.f32 %v9057, %v9225
  %v9237 = vadd.f32 %v9060, %v9225
  %v9238 = vadd.f32 %v9063, %v9225
  %v9239 = vadd.f32 %v9066, %v9225
  %v9240 = vadd.f32 %v9069, %v9225
  %v9241 = vadd.f32 %v9072, %v9225
  %v9242 = vadd.f32 %v9075, %v9225
  %v9243 = vadd.f32 %v9078, %v9225
  %v9244 = vadd.f32 %v9081, %v9225
  %v9245 = vadd.f32 %v9084, %v9225
  %v9246 = vadd.f32 %v9087, %v9225
  %v9247 = vadd.f32 %v9090, %v9225
  %v9248 = vadd.f32 %v9093, %v9225
  %v9249 = vadd.f32 %v9096, %v9225
  %v9250 = vadd.f32 %v9099, %v9225
  %v9251 = vadd.f32 %v9102, %v9225
  %v9252 = vadd.f32 %v9105, %v9225
  %v9253 = vadd.f32 %v9108, %v9225
  %v9254 = vadd.f32 %v9111, %v9225
  %v9255 = vadd.f32 %v9114, %v9225
  %v9256 = vadd.f32 %v9117, %v9225
  %v9257 = vadd.f32 %v9120, %v9225
  %v9258 = vadd.f32 %v9123, %v9225
  %v9259 = vadd.f32 %v9126, %v9225
  %v9260 = vadd.f32 %v9129, %v9225
  %v9261 = vadd.f32 %v9132, %v9225
  %v9262 = vadd.f32 %v9135, %v9225
  %v9263 = vadd.f32 %v9138, %v9225
  %v9264 = vadd.f32 %v9141, %v9225
  %v9265 = vadd.f32 %v9144, %v9225
  %v9266 = vadd.f32 %v9147, %v9225
  %v9267 = vadd.f32 %v9150, %v9225
  %v9268 = vadd.f32 %v9153, %v9225
  %v9269 = vadd.f32 %v9156, %v9225
  %v9270 = vadd.f32 %v9159, %v9225
  %v9271 = vadd.f32 %v9162, %v9225
  %v9272 = vadd.f32 %v9165, %v9225
  %v9273 = vadd.f32 %v9168, %v9225
  %v9274 = vadd.f32 %v9171, %v9225
  %v9275 = vadd.f32 %v9174, %v9225
  %v9276 = vadd.f32 %v9177, %v9225
  %v9277 = vadd.f32 %v9180, %v9225
  %v9278 = vadd.f32 %v9183, %v9225
  %v9279 = vadd.f32 %v9186, %v9225
  %v9280 = vadd.f32 %v9189, %v9225
  %v9281 = vadd.f32 %v9192, %v9225
  %v9282 = vadd.f32 %v9195, %v9225
  %v9283 = vadd.f32 %v9198, %v9225
  %v9284 = vadd.f32 %v9201, %v9225
  %v9285 = vadd.f32 %v9204, %v9225
  %v9286 = vadd.f32 %v9207, %v9225
  %v9287 = vadd.f32 %v9210, %v9225
  %v9288 = vadd.f32 %v9213, %v9225
  %v9289 = vadd.f32 %v9216, %v9225
  %v9290 = vadd.f32 %v9219, %v9225
  %v9291 = vxor.u32 %v9227, 2147483648
  %v9292 = vxor.u32 %v9228, 2147483648
  %v9293 = vxor.u32 %v9229, 2147483648
  %v9294 = vxor.u32 %v9230, 2147483648
  %v9295 = vxor.u32 %v9231, 2147483648
  %v9296 = vxor.u32 %v9232, 2147483648
  %v9297 = vxor.u32 %v9233, 2147483648
  %v9298 = vxor.u32 %v9234, 2147483648
  %v9299 = vxor.u32 %v9235, 2147483648
  %v9300 = vxor.u32 %v9236, 2147483648
  %v9301 = vxor.u32 %v9237, 2147483648
  %v9302 = vxor.u32 %v9238, 2147483648
  %v9303 = vxor.u32 %v9239, 2147483648
  %v9304 = vxor.u32 %v9240, 2147483648
  %v9305 = vxor.u32 %v9241, 2147483648
  %v9306 = vxor.u32 %v9242, 2147483648
  %v9307 = vxor.u32 %v9243, 2147483648
  %v9308 = vxor.u32 %v9244, 2147483648
  %v9309 = vxor.u32 %v9245, 2147483648
  %v9310 = vxor.u32 %v9246, 2147483648
  %v9311 = vxor.u32 %v9247, 2147483648
  %v9312 = vxor.u32 %v9248, 2147483648
  %v9313 = vxor.u32 %v9249, 2147483648
  %v9314 = vxor.u32 %v9250, 2147483648
  %v9315 = vxor.u32 %v9251, 2147483648
  %v9316 = vxor.u32 %v9252, 2147483648
  %v9317 = vxor.u32 %v9253, 2147483648
  %v9318 = vxor.u32 %v9254, 2147483648
  %v9319 = vxor.u32 %v9255, 2147483648
  %v9320 = vxor.u32 %v9256, 2147483648
  %v9321 = vxor.u32 %v9257, 2147483648
  %v9322 = vxor.u32 %v9258, 2147483648
  %v9323 = vxor.u32 %v9259, 2147483648
  %v9324 = vxor.u32 %v9260, 2147483648
  %v9325 = vxor.u32 %v9261, 2147483648
  %v9326 = vxor.u32 %v9262, 2147483648
  %v9327 = vxor.u32 %v9263, 2147483648
  %v9328 = vxor.u32 %v9264, 2147483648
  %v9329 = vxor.u32 %v9265, 2147483648
  %v9330 = vxor.u32 %v9266, 2147483648
  %v9331 = vxor.u32 %v9267, 2147483648
  %v9332 = vxor.u32 %v9268, 2147483648
  %v9333 = vxor.u32 %v9269, 2147483648
  %v9334 = vxor.u32 %v9270, 2147483648
  %v9335 = vxor.u32 %v9271, 2147483648
  %v9336 = vxor.u32 %v9272, 2147483648
  %v9337 = vxor.u32 %v9273, 2147483648
  %v9338 = vxor.u32 %v9274, 2147483648
  %v9339 = vxor.u32 %v9275, 2147483648
  %v9340 = vxor.u32 %v9276, 2147483648
  %v9341 = vxor.u32 %v9277, 2147483648
  %v9342 = vxor.u32 %v9278, 2147483648
  %v9343 = vxor.u32 %v9279, 2147483648
  %v9344 = vxor.u32 %v9280, 2147483648
  %v9345 = vxor.u32 %v9281, 2147483648
  %v9346 = vxor.u32 %v9282, 2147483648
  %v9347 = vxor.u32 %v9283, 2147483648
  %v9348 = vxor.u32 %v9284, 2147483648
  %v9349 = vxor.u32 %v9285, 2147483648
  %v9350 = vxor.u32 %v9286, 2147483648
  %v9351 = vxor.u32 %v9287, 2147483648
  %v9352 = vxor.u32 %v9288, 2147483648
  %v9353 = vxor.u32 %v9289, 2147483648
  %v9354 = vxor.u32 %v9290, 2147483648
  %v9355 = vmul.f32 %v9291, 1.442695
  %v9356 = vpow.pop %v9355
  %v9357 = vmul.f32 %v9292, 1.442695
  %v9358 = vpow.pop %v9357
  %v9359 = vmul.f32 %v9293, 1.442695
  %v9360 = vpow.pop %v9359
  %v9361 = vmul.f32 %v9294, 1.442695
  %v9362 = vpow.pop %v9361
  %v9363 = vmul.f32 %v9295, 1.442695
  %v9364 = vpow.pop %v9363
  %v9365 = vmul.f32 %v9296, 1.442695
  %v9366 = vpow.pop %v9365
  %v9367 = vmul.f32 %v9297, 1.442695
  %v9368 = vpow.pop %v9367
  %v9369 = vmul.f32 %v9298, 1.442695
  %v9370 = vpow.pop %v9369
  %v9371 = vmul.f32 %v9299, 1.442695
  %v9372 = vpow.pop %v9371
  %v9373 = vmul.f32 %v9300, 1.442695
  %v9374 = vpow.pop %v9373
  %v9375 = vmul.f32 %v9301, 1.442695
  %v9376 = vpow.pop %v9375
  %v9377 = vmul.f32 %v9302, 1.442695
  %v9378 = vpow.pop %v9377
  %v9379 = vmul.f32 %v9303, 1.442695
  %v9380 = vpow.pop %v9379
  %v9381 = vmul.f32 %v9304, 1.442695
  %v9382 = vpow.pop %v9381
  %v9383 = vmul.f32 %v9305, 1.442695
  %v9384 = vpow.pop %v9383
  %v9385 = vmul.f32 %v9306, 1.442695
  %v9386 = vpow.pop %v9385
  %v9387 = vmul.f32 %v9307, 1.442695
  %v9388 = vpow.pop %v9387
  %v9389 = vmul.f32 %v9308, 1.442695
  %v9390 = vpow.pop %v9389
  %v9391 = vmul.f32 %v9309, 1.442695
  %v9392 = vpow.pop %v9391
  %v9393 = vmul.f32 %v9310, 1.442695
  %v9394 = vpow.pop %v9393
  %v9395 = vmul.f32 %v9311, 1.442695
  %v9396 = vpow.pop %v9395
  %v9397 = vmul.f32 %v9312, 1.442695
  %v9398 = vpow.pop %v9397
  %v9399 = vmul.f32 %v9313, 1.442695
  %v9400 = vpow.pop %v9399
  %v9401 = vmul.f32 %v9314, 1.442695
  %v9402 = vpow.pop %v9401
  %v9403 = vmul.f32 %v9315, 1.442695
  %v9404 = vpow.pop %v9403
  %v9405 = vmul.f32 %v9316, 1.442695
  %v9406 = vpow.pop %v9405
  %v9407 = vmul.f32 %v9317, 1.442695
  %v9408 = vpow.pop %v9407
  %v9409 = vmul.f32 %v9318, 1.442695
  %v9410 = vpow.pop %v9409
  %v9411 = vmul.f32 %v9319, 1.442695
  %v9412 = vpow.pop %v9411
  %v9413 = vmul.f32 %v9320, 1.442695
  %v9414 = vpow.pop %v9413
  %v9415 = vmul.f32 %v9321, 1.442695
  %v9416 = vpow.pop %v9415
  %v9417 = vmul.f32 %v9322, 1.442695
  %v9418 = vpow.pop %v9417
  %v9419 = vmul.f32 %v9323, 1.442695
  %v9420 = vpow.pop %v9419
  %v9421 = vmul.f32 %v9324, 1.442695
  %v9422 = vpow.pop %v9421
  %v9423 = vmul.f32 %v9325, 1.442695
  %v9424 = vpow.pop %v9423
  %v9425 = vmul.f32 %v9326, 1.442695
  %v9426 = vpow.pop %v9425
  %v9427 = vmul.f32 %v9327, 1.442695
  %v9428 = vpow.pop %v9427
  %v9429 = vmul.f32 %v9328, 1.442695
  %v9430 = vpow.pop %v9429
  %v9431 = vmul.f32 %v9329, 1.442695
  %v9432 = vpow.pop %v9431
  %v9433 = vmul.f32 %v9330, 1.442695
  %v9434 = vpow.pop %v9433
  %v9435 = vmul.f32 %v9331, 1.442695
  %v9436 = vpow.pop %v9435
  %v9437 = vmul.f32 %v9332, 1.442695
  %v9438 = vpow.pop %v9437
  %v9439 = vmul.f32 %v9333, 1.442695
  %v9440 = vpow.pop %v9439
  %v9441 = vmul.f32 %v9334, 1.442695
  %v9442 = vpow.pop %v9441
  %v9443 = vmul.f32 %v9335, 1.442695
  %v9444 = vpow.pop %v9443
  %v9445 = vmul.f32 %v9336, 1.442695
  %v9446 = vpow.pop %v9445
  %v9447 = vmul.f32 %v9337, 1.442695
  %v9448 = vpow.pop %v9447
  %v9449 = vmul.f32 %v9338, 1.442695
  %v9450 = vpow.pop %v9449
  %v9451 = vmul.f32 %v9339, 1.442695
  %v9452 = vpow.pop %v9451
  %v9453 = vmul.f32 %v9340, 1.442695
  %v9454 = vpow.pop %v9453
  %v9455 = vmul.f32 %v9341, 1.442695
  %v9456 = vpow.pop %v9455
  %v9457 = vmul.f32 %v9342, 1.442695
  %v9458 = vpow.pop %v9457
  %v9459 = vmul.f32 %v9343, 1.442695
  %v9460 = vpow.pop %v9459
  %v9461 = vmul.f32 %v9344, 1.442695
  %v9462 = vpow.pop %v9461
  %v9463 = vmul.f32 %v9345, 1.442695
  %v9464 = vpow.pop %v9463
  %v9465 = vmul.f32 %v9346, 1.442695
  %v9466 = vpow.pop %v9465
  %v9467 = vmul.f32 %v9347, 1.442695
  %v9468 = vpow.pop %v9467
  %v9469 = vmul.f32 %v9348, 1.442695
  %v9470 = vpow.pop %v9469
  %v9471 = vmul.f32 %v9349, 1.442695
  %v9472 = vpow.pop %v9471
  %v9473 = vmul.f32 %v9350, 1.442695
  %v9474 = vpow.pop %v9473
  %v9475 = vmul.f32 %v9351, 1.442695
  %v9476 = vpow.pop %v9475
  %v9477 = vmul.f32 %v9352, 1.442695
  %v9478 = vpow.pop %v9477
  %v9479 = vmul.f32 %v9353, 1.442695
  %v9480 = vpow.pop %v9479
  %v9481 = vmul.f32 %v9354, 1.442695
  %v9482 = vpow.pop %v9481
  %v9483 = vadd.f32 %v9356, 1.0
  %v9484 = vadd.f32 %v9358, 1.0
  %v9485 = vadd.f32 %v9360, 1.0
  %v9486 = vadd.f32 %v9362, 1.0
  %v9487 = vadd.f32 %v9364, 1.0
  %v9488 = vadd.f32 %v9366, 1.0
  %v9489 = vadd.f32 %v9368, 1.0
  %v9490 = vadd.f32 %v9370, 1.0
  %v9491 = vadd.f32 %v9372, 1.0
  %v9492 = vadd.f32 %v9374, 1.0
  %v9493 = vadd.f32 %v9376, 1.0
  %v9494 = vadd.f32 %v9378, 1.0
  %v9495 = vadd.f32 %v9380, 1.0
  %v9496 = vadd.f32 %v9382, 1.0
  %v9497 = vadd.f32 %v9384, 1.0
  %v9498 = vadd.f32 %v9386, 1.0
  %v9499 = vadd.f32 %v9388, 1.0
  %v9500 = vadd.f32 %v9390, 1.0
  %v9501 = vadd.f32 %v9392, 1.0
  %v9502 = vadd.f32 %v9394, 1.0
  %v9503 = vadd.f32 %v9396, 1.0
  %v9504 = vadd.f32 %v9398, 1.0
  %v9505 = vadd.f32 %v9400, 1.0
  %v9506 = vadd.f32 %v9402, 1.0
  %v9507 = vadd.f32 %v9404, 1.0
  %v9508 = vadd.f32 %v9406, 1.0
  %v9509 = vadd.f32 %v9408, 1.0
  %v9510 = vadd.f32 %v9410, 1.0
  %v9511 = vadd.f32 %v9412, 1.0
  %v9512 = vadd.f32 %v9414, 1.0
  %v9513 = vadd.f32 %v9416, 1.0
  %v9514 = vadd.f32 %v9418, 1.0
  %v9515 = vadd.f32 %v9420, 1.0
  %v9516 = vadd.f32 %v9422, 1.0
  %v9517 = vadd.f32 %v9424, 1.0
  %v9518 = vadd.f32 %v9426, 1.0
  %v9519 = vadd.f32 %v9428, 1.0
  %v9520 = vadd.f32 %v9430, 1.0
  %v9521 = vadd.f32 %v9432, 1.0
  %v9522 = vadd.f32 %v9434, 1.0
  %v9523 = vadd.f32 %v9436, 1.0
  %v9524 = vadd.f32 %v9438, 1.0
  %v9525 = vadd.f32 %v9440, 1.0
  %v9526 = vadd.f32 %v9442, 1.0
  %v9527 = vadd.f32 %v9444, 1.0
  %v9528 = vadd.f32 %v9446, 1.0
  %v9529 = vadd.f32 %v9448, 1.0
  %v9530 = vadd.f32 %v9450, 1.0
  %v9531 = vadd.f32 %v9452, 1.0
  %v9532 = vadd.f32 %v9454, 1.0
  %v9533 = vadd.f32 %v9456, 1.0
  %v9534 = vadd.f32 %v9458, 1.0
  %v9535 = vadd.f32 %v9460, 1.0
  %v9536 = vadd.f32 %v9462, 1.0
  %v9537 = vadd.f32 %v9464, 1.0
  %v9538 = vadd.f32 %v9466, 1.0
  %v9539 = vadd.f32 %v9468, 1.0
  %v9540 = vadd.f32 %v9470, 1.0
  %v9541 = vadd.f32 %v9472, 1.0
  %v9542 = vadd.f32 %v9474, 1.0
  %v9543 = vadd.f32 %v9476, 1.0
  %v9544 = vadd.f32 %v9478, 1.0
  %v9545 = vadd.f32 %v9480, 1.0
  %v9546 = vadd.f32 %v9482, 1.0
  %v9547 = vrcp.pop %v9483
  %v9548 = vmul.f32 %v9483, %v9547
  %v9549 = vsub.f32 1.0, %v9548
  %v9550 = vmul.f32 %v9547, %v9549
  %v9551 = vadd.f32 %v9547, %v9550
  %vm9552 = vweird.f32 %v9483
  %vm9553 = vweird.f32 %v9547
  %vm9554 = vmor %vm9552, %vm9553
  %v9555 = vsel %vm9554, %v9547, %v9551
  %v9556 = vand.u32 2147483647, %v9483
  %vm9557 = vcmp.eq.f32.partialorder %v9556, 8.507059e+37
  %v9558 = vand.u32 %v9483, 2147483648
  %v9559 = vor.u32 1.1754944e-38, %v9558
  %v9560 = vsel %vm9557, %v9559, %v9555
  %v9561 = vmul.f32 1.0, %v9560
  %v9562 = vrcp.pop %v9484
  %v9563 = vmul.f32 %v9484, %v9562
  %v9564 = vsub.f32 1.0, %v9563
  %v9565 = vmul.f32 %v9562, %v9564
  %v9566 = vadd.f32 %v9562, %v9565
  %vm9567 = vweird.f32 %v9484
  %vm9568 = vweird.f32 %v9562
  %vm9569 = vmor %vm9567, %vm9568
  %v9570 = vsel %vm9569, %v9562, %v9566
  %v9571 = vand.u32 2147483647, %v9484
  %vm9572 = vcmp.eq.f32.partialorder %v9571, 8.507059e+37
  %v9573 = vand.u32 %v9484, 2147483648
  %v9574 = vor.u32 1.1754944e-38, %v9573
  %v9575 = vsel %vm9572, %v9574, %v9570
  %v9576 = vmul.f32 1.0, %v9575
  %v9577 = vrcp.pop %v9485
  %v9578 = vmul.f32 %v9485, %v9577
  %v9579 = vsub.f32 1.0, %v9578
  %v9580 = vmul.f32 %v9577, %v9579
  %v9581 = vadd.f32 %v9577, %v9580
  %vm9582 = vweird.f32 %v9485
  %vm9583 = vweird.f32 %v9577
  %vm9584 = vmor %vm9582, %vm9583
  %v9585 = vsel %vm9584, %v9577, %v9581
  %v9586 = vand.u32 2147483647, %v9485
  %vm9587 = vcmp.eq.f32.partialorder %v9586, 8.507059e+37
  %v9588 = vand.u32 %v9485, 2147483648
  %v9589 = vor.u32 1.1754944e-38, %v9588
  %v9590 = vsel %vm9587, %v9589, %v9585
  %v9591 = vmul.f32 1.0, %v9590
  %v9592 = vrcp.pop %v9486
  %v9593 = vmul.f32 %v9486, %v9592
  %v9594 = vsub.f32 1.0, %v9593
  %v9595 = vmul.f32 %v9592, %v9594
  %v9596 = vadd.f32 %v9592, %v9595
  %vm9597 = vweird.f32 %v9486
  %vm9598 = vweird.f32 %v9592
  %vm9599 = vmor %vm9597, %vm9598
  %v9600 = vsel %vm9599, %v9592, %v9596
  %v9601 = vand.u32 2147483647, %v9486
  %vm9602 = vcmp.eq.f32.partialorder %v9601, 8.507059e+37
  %v9603 = vand.u32 %v9486, 2147483648
  %v9604 = vor.u32 1.1754944e-38, %v9603
  %v9605 = vsel %vm9602, %v9604, %v9600
  %v9606 = vmul.f32 1.0, %v9605
  %v9607 = vrcp.pop %v9487
  %v9608 = vmul.f32 %v9487, %v9607
  %v9609 = vsub.f32 1.0, %v9608
  %v9610 = vmul.f32 %v9607, %v9609
  %v9611 = vadd.f32 %v9607, %v9610
  %vm9612 = vweird.f32 %v9487
  %vm9613 = vweird.f32 %v9607
  %vm9614 = vmor %vm9612, %vm9613
  %v9615 = vsel %vm9614, %v9607, %v9611
  %v9616 = vand.u32 2147483647, %v9487
  %vm9617 = vcmp.eq.f32.partialorder %v9616, 8.507059e+37
  %v9618 = vand.u32 %v9487, 2147483648
  %v9619 = vor.u32 1.1754944e-38, %v9618
  %v9620 = vsel %vm9617, %v9619, %v9615
  %v9621 = vmul.f32 1.0, %v9620
  %v9622 = vrcp.pop %v9488
  %v9623 = vmul.f32 %v9488, %v9622
  %v9624 = vsub.f32 1.0, %v9623
  %v9625 = vmul.f32 %v9622, %v9624
  %v9626 = vadd.f32 %v9622, %v9625
  %vm9627 = vweird.f32 %v9488
  %vm9628 = vweird.f32 %v9622
  %vm9629 = vmor %vm9627, %vm9628
  %v9630 = vsel %vm9629, %v9622, %v9626
  %v9631 = vand.u32 2147483647, %v9488
  %vm9632 = vcmp.eq.f32.partialorder %v9631, 8.507059e+37
  %v9633 = vand.u32 %v9488, 2147483648
  %v9634 = vor.u32 1.1754944e-38, %v9633
  %v9635 = vsel %vm9632, %v9634, %v9630
  %v9636 = vmul.f32 1.0, %v9635
  %v9637 = vrcp.pop %v9489
  %v9638 = vmul.f32 %v9489, %v9637
  %v9639 = vsub.f32 1.0, %v9638
  %v9640 = vmul.f32 %v9637, %v9639
  %v9641 = vadd.f32 %v9637, %v9640
  %vm9642 = vweird.f32 %v9489
  %vm9643 = vweird.f32 %v9637
  %vm9644 = vmor %vm9642, %vm9643
  %v9645 = vsel %vm9644, %v9637, %v9641
  %v9646 = vand.u32 2147483647, %v9489
  %vm9647 = vcmp.eq.f32.partialorder %v9646, 8.507059e+37
  %v9648 = vand.u32 %v9489, 2147483648
  %v9649 = vor.u32 1.1754944e-38, %v9648
  %v9650 = vsel %vm9647, %v9649, %v9645
  %v9651 = vmul.f32 1.0, %v9650
  %v9652 = vrcp.pop %v9490
  %v9653 = vmul.f32 %v9490, %v9652
  %v9654 = vsub.f32 1.0, %v9653
  %v9655 = vmul.f32 %v9652, %v9654
  %v9656 = vadd.f32 %v9652, %v9655
  %vm9657 = vweird.f32 %v9490
  %vm9658 = vweird.f32 %v9652
  %vm9659 = vmor %vm9657, %vm9658
  %v9660 = vsel %vm9659, %v9652, %v9656
  %v9661 = vand.u32 2147483647, %v9490
  %vm9662 = vcmp.eq.f32.partialorder %v9661, 8.507059e+37
  %v9663 = vand.u32 %v9490, 2147483648
  %v9664 = vor.u32 1.1754944e-38, %v9663
  %v9665 = vsel %vm9662, %v9664, %v9660
  %v9666 = vmul.f32 1.0, %v9665
  %v9667 = vrcp.pop %v9491
  %v9668 = vmul.f32 %v9491, %v9667
  %v9669 = vsub.f32 1.0, %v9668
  %v9670 = vmul.f32 %v9667, %v9669
  %v9671 = vadd.f32 %v9667, %v9670
  %vm9672 = vweird.f32 %v9491
  %vm9673 = vweird.f32 %v9667
  %vm9674 = vmor %vm9672, %vm9673
  %v9675 = vsel %vm9674, %v9667, %v9671
  %v9676 = vand.u32 2147483647, %v9491
  %vm9677 = vcmp.eq.f32.partialorder %v9676, 8.507059e+37
  %v9678 = vand.u32 %v9491, 2147483648
  %v9679 = vor.u32 1.1754944e-38, %v9678
  %v9680 = vsel %vm9677, %v9679, %v9675
  %v9681 = vmul.f32 1.0, %v9680
  %v9682 = vrcp.pop %v9492
  %v9683 = vmul.f32 %v9492, %v9682
  %v9684 = vsub.f32 1.0, %v9683
  %v9685 = vmul.f32 %v9682, %v9684
  %v9686 = vadd.f32 %v9682, %v9685
  %vm9687 = vweird.f32 %v9492
  %vm9688 = vweird.f32 %v9682
  %vm9689 = vmor %vm9687, %vm9688
  %v9690 = vsel %vm9689, %v9682, %v9686
  %v9691 = vand.u32 2147483647, %v9492
  %vm9692 = vcmp.eq.f32.partialorder %v9691, 8.507059e+37
  %v9693 = vand.u32 %v9492, 2147483648
  %v9694 = vor.u32 1.1754944e-38, %v9693
  %v9695 = vsel %vm9692, %v9694, %v9690
  %v9696 = vmul.f32 1.0, %v9695
  %v9697 = vrcp.pop %v9493
  %v9698 = vmul.f32 %v9493, %v9697
  %v9699 = vsub.f32 1.0, %v9698
  %v9700 = vmul.f32 %v9697, %v9699
  %v9701 = vadd.f32 %v9697, %v9700
  %vm9702 = vweird.f32 %v9493
  %vm9703 = vweird.f32 %v9697
  %vm9704 = vmor %vm9702, %vm9703
  %v9705 = vsel %vm9704, %v9697, %v9701
  %v9706 = vand.u32 2147483647, %v9493
  %vm9707 = vcmp.eq.f32.partialorder %v9706, 8.507059e+37
  %v9708 = vand.u32 %v9493, 2147483648
  %v9709 = vor.u32 1.1754944e-38, %v9708
  %v9710 = vsel %vm9707, %v9709, %v9705
  %v9711 = vmul.f32 1.0, %v9710
  %v9712 = vrcp.pop %v9494
  %v9713 = vmul.f32 %v9494, %v9712
  %v9714 = vsub.f32 1.0, %v9713
  %v9715 = vmul.f32 %v9712, %v9714
  %v9716 = vadd.f32 %v9712, %v9715
  %vm9717 = vweird.f32 %v9494
  %vm9718 = vweird.f32 %v9712
  %vm9719 = vmor %vm9717, %vm9718
  %v9720 = vsel %vm9719, %v9712, %v9716
  %v9721 = vand.u32 2147483647, %v9494
  %vm9722 = vcmp.eq.f32.partialorder %v9721, 8.507059e+37
  %v9723 = vand.u32 %v9494, 2147483648
  %v9724 = vor.u32 1.1754944e-38, %v9723
  %v9725 = vsel %vm9722, %v9724, %v9720
  %v9726 = vmul.f32 1.0, %v9725
  %v9727 = vrcp.pop %v9495
  %v9728 = vmul.f32 %v9495, %v9727
  %v9729 = vsub.f32 1.0, %v9728
  %v9730 = vmul.f32 %v9727, %v9729
  %v9731 = vadd.f32 %v9727, %v9730
  %vm9732 = vweird.f32 %v9495
  %vm9733 = vweird.f32 %v9727
  %vm9734 = vmor %vm9732, %vm9733
  %v9735 = vsel %vm9734, %v9727, %v9731
  %v9736 = vand.u32 2147483647, %v9495
  %vm9737 = vcmp.eq.f32.partialorder %v9736, 8.507059e+37
  %v9738 = vand.u32 %v9495, 2147483648
  %v9739 = vor.u32 1.1754944e-38, %v9738
  %v9740 = vsel %vm9737, %v9739, %v9735
  %v9741 = vmul.f32 1.0, %v9740
  %v9742 = vrcp.pop %v9496
  %v9743 = vmul.f32 %v9496, %v9742
  %v9744 = vsub.f32 1.0, %v9743
  %v9745 = vmul.f32 %v9742, %v9744
  %v9746 = vadd.f32 %v9742, %v9745
  %vm9747 = vweird.f32 %v9496
  %vm9748 = vweird.f32 %v9742
  %vm9749 = vmor %vm9747, %vm9748
  %v9750 = vsel %vm9749, %v9742, %v9746
  %v9751 = vand.u32 2147483647, %v9496
  %vm9752 = vcmp.eq.f32.partialorder %v9751, 8.507059e+37
  %v9753 = vand.u32 %v9496, 2147483648
  %v9754 = vor.u32 1.1754944e-38, %v9753
  %v9755 = vsel %vm9752, %v9754, %v9750
  %v9756 = vmul.f32 1.0, %v9755
  %v9757 = vrcp.pop %v9497
  %v9758 = vmul.f32 %v9497, %v9757
  %v9759 = vsub.f32 1.0, %v9758
  %v9760 = vmul.f32 %v9757, %v9759
  %v9761 = vadd.f32 %v9757, %v9760
  %vm9762 = vweird.f32 %v9497
  %vm9763 = vweird.f32 %v9757
  %vm9764 = vmor %vm9762, %vm9763
  %v9765 = vsel %vm9764, %v9757, %v9761
  %v9766 = vand.u32 2147483647, %v9497
  %vm9767 = vcmp.eq.f32.partialorder %v9766, 8.507059e+37
  %v9768 = vand.u32 %v9497, 2147483648
  %v9769 = vor.u32 1.1754944e-38, %v9768
  %v9770 = vsel %vm9767, %v9769, %v9765
  %v9771 = vmul.f32 1.0, %v9770
  %v9772 = vrcp.pop %v9498
  %v9773 = vmul.f32 %v9498, %v9772
  %v9774 = vsub.f32 1.0, %v9773
  %v9775 = vmul.f32 %v9772, %v9774
  %v9776 = vadd.f32 %v9772, %v9775
  %vm9777 = vweird.f32 %v9498
  %vm9778 = vweird.f32 %v9772
  %vm9779 = vmor %vm9777, %vm9778
  %v9780 = vsel %vm9779, %v9772, %v9776
  %v9781 = vand.u32 2147483647, %v9498
  %vm9782 = vcmp.eq.f32.partialorder %v9781, 8.507059e+37
  %v9783 = vand.u32 %v9498, 2147483648
  %v9784 = vor.u32 1.1754944e-38, %v9783
  %v9785 = vsel %vm9782, %v9784, %v9780
  %v9786 = vmul.f32 1.0, %v9785
  %v9787 = vrcp.pop %v9499
  %v9788 = vmul.f32 %v9499, %v9787
  %v9789 = vsub.f32 1.0, %v9788
  %v9790 = vmul.f32 %v9787, %v9789
  %v9791 = vadd.f32 %v9787, %v9790
  %vm9792 = vweird.f32 %v9499
  %vm9793 = vweird.f32 %v9787
  %vm9794 = vmor %vm9792, %vm9793
  %v9795 = vsel %vm9794, %v9787, %v9791
  %v9796 = vand.u32 2147483647, %v9499
  %vm9797 = vcmp.eq.f32.partialorder %v9796, 8.507059e+37
  %v9798 = vand.u32 %v9499, 2147483648
  %v9799 = vor.u32 1.1754944e-38, %v9798
  %v9800 = vsel %vm9797, %v9799, %v9795
  %v9801 = vmul.f32 1.0, %v9800
  %v9802 = vrcp.pop %v9500
  %v9803 = vmul.f32 %v9500, %v9802
  %v9804 = vsub.f32 1.0, %v9803
  %v9805 = vmul.f32 %v9802, %v9804
  %v9806 = vadd.f32 %v9802, %v9805
  %vm9807 = vweird.f32 %v9500
  %vm9808 = vweird.f32 %v9802
  %vm9809 = vmor %vm9807, %vm9808
  %v9810 = vsel %vm9809, %v9802, %v9806
  %v9811 = vand.u32 2147483647, %v9500
  %vm9812 = vcmp.eq.f32.partialorder %v9811, 8.507059e+37
  %v9813 = vand.u32 %v9500, 2147483648
  %v9814 = vor.u32 1.1754944e-38, %v9813
  %v9815 = vsel %vm9812, %v9814, %v9810
  %v9816 = vmul.f32 1.0, %v9815
  %v9817 = vrcp.pop %v9501
  %v9818 = vmul.f32 %v9501, %v9817
  %v9819 = vsub.f32 1.0, %v9818
  %v9820 = vmul.f32 %v9817, %v9819
  %v9821 = vadd.f32 %v9817, %v9820
  %vm9822 = vweird.f32 %v9501
  %vm9823 = vweird.f32 %v9817
  %vm9824 = vmor %vm9822, %vm9823
  %v9825 = vsel %vm9824, %v9817, %v9821
  %v9826 = vand.u32 2147483647, %v9501
  %vm9827 = vcmp.eq.f32.partialorder %v9826, 8.507059e+37
  %v9828 = vand.u32 %v9501, 2147483648
  %v9829 = vor.u32 1.1754944e-38, %v9828
  %v9830 = vsel %vm9827, %v9829, %v9825
  %v9831 = vmul.f32 1.0, %v9830
  %v9832 = vrcp.pop %v9502
  %v9833 = vmul.f32 %v9502, %v9832
  %v9834 = vsub.f32 1.0, %v9833
  %v9835 = vmul.f32 %v9832, %v9834
  %v9836 = vadd.f32 %v9832, %v9835
  %vm9837 = vweird.f32 %v9502
  %vm9838 = vweird.f32 %v9832
  %vm9839 = vmor %vm9837, %vm9838
  %v9840 = vsel %vm9839, %v9832, %v9836
  %v9841 = vand.u32 2147483647, %v9502
  %vm9842 = vcmp.eq.f32.partialorder %v9841, 8.507059e+37
  %v9843 = vand.u32 %v9502, 2147483648
  %v9844 = vor.u32 1.1754944e-38, %v9843
  %v9845 = vsel %vm9842, %v9844, %v9840
  %v9846 = vmul.f32 1.0, %v9845
  %v9847 = vrcp.pop %v9503
  %v9848 = vmul.f32 %v9503, %v9847
  %v9849 = vsub.f32 1.0, %v9848
  %v9850 = vmul.f32 %v9847, %v9849
  %v9851 = vadd.f32 %v9847, %v9850
  %vm9852 = vweird.f32 %v9503
  %vm9853 = vweird.f32 %v9847
  %vm9854 = vmor %vm9852, %vm9853
  %v9855 = vsel %vm9854, %v9847, %v9851
  %v9856 = vand.u32 2147483647, %v9503
  %vm9857 = vcmp.eq.f32.partialorder %v9856, 8.507059e+37
  %v9858 = vand.u32 %v9503, 2147483648
  %v9859 = vor.u32 1.1754944e-38, %v9858
  %v9860 = vsel %vm9857, %v9859, %v9855
  %v9861 = vmul.f32 1.0, %v9860
  %v9862 = vrcp.pop %v9504
  %v9863 = vmul.f32 %v9504, %v9862
  %v9864 = vsub.f32 1.0, %v9863
  %v9865 = vmul.f32 %v9862, %v9864
  %v9866 = vadd.f32 %v9862, %v9865
  %vm9867 = vweird.f32 %v9504
  %vm9868 = vweird.f32 %v9862
  %vm9869 = vmor %vm9867, %vm9868
  %v9870 = vsel %vm9869, %v9862, %v9866
  %v9871 = vand.u32 2147483647, %v9504
  %vm9872 = vcmp.eq.f32.partialorder %v9871, 8.507059e+37
  %v9873 = vand.u32 %v9504, 2147483648
  %v9874 = vor.u32 1.1754944e-38, %v9873
  %v9875 = vsel %vm9872, %v9874, %v9870
  %v9876 = vmul.f32 1.0, %v9875
  %v9877 = vrcp.pop %v9505
  %v9878 = vmul.f32 %v9505, %v9877
  %v9879 = vsub.f32 1.0, %v9878
  %v9880 = vmul.f32 %v9877, %v9879
  %v9881 = vadd.f32 %v9877, %v9880
  %vm9882 = vweird.f32 %v9505
  %vm9883 = vweird.f32 %v9877
  %vm9884 = vmor %vm9882, %vm9883
  %v9885 = vsel %vm9884, %v9877, %v9881
  %v9886 = vand.u32 2147483647, %v9505
  %vm9887 = vcmp.eq.f32.partialorder %v9886, 8.507059e+37
  %v9888 = vand.u32 %v9505, 2147483648
  %v9889 = vor.u32 1.1754944e-38, %v9888
  %v9890 = vsel %vm9887, %v9889, %v9885
  %v9891 = vmul.f32 1.0, %v9890
  %v9892 = vrcp.pop %v9506
  %v9893 = vmul.f32 %v9506, %v9892
  %v9894 = vsub.f32 1.0, %v9893
  %v9895 = vmul.f32 %v9892, %v9894
  %v9896 = vadd.f32 %v9892, %v9895
  %vm9897 = vweird.f32 %v9506
  %vm9898 = vweird.f32 %v9892
  %vm9899 = vmor %vm9897, %vm9898
  %v9900 = vsel %vm9899, %v9892, %v9896
  %v9901 = vand.u32 2147483647, %v9506
  %vm9902 = vcmp.eq.f32.partialorder %v9901, 8.507059e+37
  %v9903 = vand.u32 %v9506, 2147483648
  %v9904 = vor.u32 1.1754944e-38, %v9903
  %v9905 = vsel %vm9902, %v9904, %v9900
  %v9906 = vmul.f32 1.0, %v9905
  %v9907 = vrcp.pop %v9507
  %v9908 = vmul.f32 %v9507, %v9907
  %v9909 = vsub.f32 1.0, %v9908
  %v9910 = vmul.f32 %v9907, %v9909
  %v9911 = vadd.f32 %v9907, %v9910
  %vm9912 = vweird.f32 %v9507
  %vm9913 = vweird.f32 %v9907
  %vm9914 = vmor %vm9912, %vm9913
  %v9915 = vsel %vm9914, %v9907, %v9911
  %v9916 = vand.u32 2147483647, %v9507
  %vm9917 = vcmp.eq.f32.partialorder %v9916, 8.507059e+37
  %v9918 = vand.u32 %v9507, 2147483648
  %v9919 = vor.u32 1.1754944e-38, %v9918
  %v9920 = vsel %vm9917, %v9919, %v9915
  %v9921 = vmul.f32 1.0, %v9920
  %v9922 = vrcp.pop %v9508
  %v9923 = vmul.f32 %v9508, %v9922
  %v9924 = vsub.f32 1.0, %v9923
  %v9925 = vmul.f32 %v9922, %v9924
  %v9926 = vadd.f32 %v9922, %v9925
  %vm9927 = vweird.f32 %v9508
  %vm9928 = vweird.f32 %v9922
  %vm9929 = vmor %vm9927, %vm9928
  %v9930 = vsel %vm9929, %v9922, %v9926
  %v9931 = vand.u32 2147483647, %v9508
  %vm9932 = vcmp.eq.f32.partialorder %v9931, 8.507059e+37
  %v9933 = vand.u32 %v9508, 2147483648
  %v9934 = vor.u32 1.1754944e-38, %v9933
  %v9935 = vsel %vm9932, %v9934, %v9930
  %v9936 = vmul.f32 1.0, %v9935
  %v9937 = vrcp.pop %v9509
  %v9938 = vmul.f32 %v9509, %v9937
  %v9939 = vsub.f32 1.0, %v9938
  %v9940 = vmul.f32 %v9937, %v9939
  %v9941 = vadd.f32 %v9937, %v9940
  %vm9942 = vweird.f32 %v9509
  %vm9943 = vweird.f32 %v9937
  %vm9944 = vmor %vm9942, %vm9943
  %v9945 = vsel %vm9944, %v9937, %v9941
  %v9946 = vand.u32 2147483647, %v9509
  %vm9947 = vcmp.eq.f32.partialorder %v9946, 8.507059e+37
  %v9948 = vand.u32 %v9509, 2147483648
  %v9949 = vor.u32 1.1754944e-38, %v9948
  %v9950 = vsel %vm9947, %v9949, %v9945
  %v9951 = vmul.f32 1.0, %v9950
  %v9952 = vrcp.pop %v9510
  %v9953 = vmul.f32 %v9510, %v9952
  %v9954 = vsub.f32 1.0, %v9953
  %v9955 = vmul.f32 %v9952, %v9954
  %v9956 = vadd.f32 %v9952, %v9955
  %vm9957 = vweird.f32 %v9510
  %vm9958 = vweird.f32 %v9952
  %vm9959 = vmor %vm9957, %vm9958
  %v9960 = vsel %vm9959, %v9952, %v9956
  %v9961 = vand.u32 2147483647, %v9510
  %vm9962 = vcmp.eq.f32.partialorder %v9961, 8.507059e+37
  %v9963 = vand.u32 %v9510, 2147483648
  %v9964 = vor.u32 1.1754944e-38, %v9963
  %v9965 = vsel %vm9962, %v9964, %v9960
  %v9966 = vmul.f32 1.0, %v9965
  %v9967 = vrcp.pop %v9511
  %v9968 = vmul.f32 %v9511, %v9967
  %v9969 = vsub.f32 1.0, %v9968
  %v9970 = vmul.f32 %v9967, %v9969
  %v9971 = vadd.f32 %v9967, %v9970
  %vm9972 = vweird.f32 %v9511
  %vm9973 = vweird.f32 %v9967
  %vm9974 = vmor %vm9972, %vm9973
  %v9975 = vsel %vm9974, %v9967, %v9971
  %v9976 = vand.u32 2147483647, %v9511
  %vm9977 = vcmp.eq.f32.partialorder %v9976, 8.507059e+37
  %v9978 = vand.u32 %v9511, 2147483648
  %v9979 = vor.u32 1.1754944e-38, %v9978
  %v9980 = vsel %vm9977, %v9979, %v9975
  %v9981 = vmul.f32 1.0, %v9980
  %v9982 = vrcp.pop %v9512
  %v9983 = vmul.f32 %v9512, %v9982
  %v9984 = vsub.f32 1.0, %v9983
  %v9985 = vmul.f32 %v9982, %v9984
  %v9986 = vadd.f32 %v9982, %v9985
  %vm9987 = vweird.f32 %v9512
  %vm9988 = vweird.f32 %v9982
  %vm9989 = vmor %vm9987, %vm9988
  %v9990 = vsel %vm9989, %v9982, %v9986
  %v9991 = vand.u32 2147483647, %v9512
  %vm9992 = vcmp.eq.f32.partialorder %v9991, 8.507059e+37
  %v9993 = vand.u32 %v9512, 2147483648
  %v9994 = vor.u32 1.1754944e-38, %v9993
  %v9995 = vsel %vm9992, %v9994, %v9990
  %v9996 = vmul.f32 1.0, %v9995
  %v9997 = vrcp.pop %v9513
  %v9998 = vmul.f32 %v9513, %v9997
  %v9999 = vsub.f32 1.0, %v9998
  %v10000 = vmul.f32 %v9997, %v9999
  %v10001 = vadd.f32 %v9997, %v10000
  %vm10002 = vweird.f32 %v9513
  %vm10003 = vweird.f32 %v9997
  %vm10004 = vmor %vm10002, %vm10003
  %v10005 = vsel %vm10004, %v9997, %v10001
  %v10006 = vand.u32 2147483647, %v9513
  %vm10007 = vcmp.eq.f32.partialorder %v10006, 8.507059e+37
  %v10008 = vand.u32 %v9513, 2147483648
  %v10009 = vor.u32 1.1754944e-38, %v10008
  %v10010 = vsel %vm10007, %v10009, %v10005
  %v10011 = vmul.f32 1.0, %v10010
  %v10012 = vrcp.pop %v9514
  %v10013 = vmul.f32 %v9514, %v10012
  %v10014 = vsub.f32 1.0, %v10013
  %v10015 = vmul.f32 %v10012, %v10014
  %v10016 = vadd.f32 %v10012, %v10015
  %vm10017 = vweird.f32 %v9514
  %vm10018 = vweird.f32 %v10012
  %vm10019 = vmor %vm10017, %vm10018
  %v10020 = vsel %vm10019, %v10012, %v10016
  %v10021 = vand.u32 2147483647, %v9514
  %vm10022 = vcmp.eq.f32.partialorder %v10021, 8.507059e+37
  %v10023 = vand.u32 %v9514, 2147483648
  %v10024 = vor.u32 1.1754944e-38, %v10023
  %v10025 = vsel %vm10022, %v10024, %v10020
  %v10026 = vmul.f32 1.0, %v10025
  %v10027 = vrcp.pop %v9515
  %v10028 = vmul.f32 %v9515, %v10027
  %v10029 = vsub.f32 1.0, %v10028
  %v10030 = vmul.f32 %v10027, %v10029
  %v10031 = vadd.f32 %v10027, %v10030
  %vm10032 = vweird.f32 %v9515
  %vm10033 = vweird.f32 %v10027
  %vm10034 = vmor %vm10032, %vm10033
  %v10035 = vsel %vm10034, %v10027, %v10031
  %v10036 = vand.u32 2147483647, %v9515
  %vm10037 = vcmp.eq.f32.partialorder %v10036, 8.507059e+37
  %v10038 = vand.u32 %v9515, 2147483648
  %v10039 = vor.u32 1.1754944e-38, %v10038
  %v10040 = vsel %vm10037, %v10039, %v10035
  %v10041 = vmul.f32 1.0, %v10040
  %v10042 = vrcp.pop %v9516
  %v10043 = vmul.f32 %v9516, %v10042
  %v10044 = vsub.f32 1.0, %v10043
  %v10045 = vmul.f32 %v10042, %v10044
  %v10046 = vadd.f32 %v10042, %v10045
  %vm10047 = vweird.f32 %v9516
  %vm10048 = vweird.f32 %v10042
  %vm10049 = vmor %vm10047, %vm10048
  %v10050 = vsel %vm10049, %v10042, %v10046
  %v10051 = vand.u32 2147483647, %v9516
  %vm10052 = vcmp.eq.f32.partialorder %v10051, 8.507059e+37
  %v10053 = vand.u32 %v9516, 2147483648
  %v10054 = vor.u32 1.1754944e-38, %v10053
  %v10055 = vsel %vm10052, %v10054, %v10050
  %v10056 = vmul.f32 1.0, %v10055
  %v10057 = vrcp.pop %v9517
  %v10058 = vmul.f32 %v9517, %v10057
  %v10059 = vsub.f32 1.0, %v10058
  %v10060 = vmul.f32 %v10057, %v10059
  %v10061 = vadd.f32 %v10057, %v10060
  %vm10062 = vweird.f32 %v9517
  %vm10063 = vweird.f32 %v10057
  %vm10064 = vmor %vm10062, %vm10063
  %v10065 = vsel %vm10064, %v10057, %v10061
  %v10066 = vand.u32 2147483647, %v9517
  %vm10067 = vcmp.eq.f32.partialorder %v10066, 8.507059e+37
  %v10068 = vand.u32 %v9517, 2147483648
  %v10069 = vor.u32 1.1754944e-38, %v10068
  %v10070 = vsel %vm10067, %v10069, %v10065
  %v10071 = vmul.f32 1.0, %v10070
  %v10072 = vrcp.pop %v9518
  %v10073 = vmul.f32 %v9518, %v10072
  %v10074 = vsub.f32 1.0, %v10073
  %v10075 = vmul.f32 %v10072, %v10074
  %v10076 = vadd.f32 %v10072, %v10075
  %vm10077 = vweird.f32 %v9518
  %vm10078 = vweird.f32 %v10072
  %vm10079 = vmor %vm10077, %vm10078
  %v10080 = vsel %vm10079, %v10072, %v10076
  %v10081 = vand.u32 2147483647, %v9518
  %vm10082 = vcmp.eq.f32.partialorder %v10081, 8.507059e+37
  %v10083 = vand.u32 %v9518, 2147483648
  %v10084 = vor.u32 1.1754944e-38, %v10083
  %v10085 = vsel %vm10082, %v10084, %v10080
  %v10086 = vmul.f32 1.0, %v10085
  %v10087 = vrcp.pop %v9519
  %v10088 = vmul.f32 %v9519, %v10087
  %v10089 = vsub.f32 1.0, %v10088
  %v10090 = vmul.f32 %v10087, %v10089
  %v10091 = vadd.f32 %v10087, %v10090
  %vm10092 = vweird.f32 %v9519
  %vm10093 = vweird.f32 %v10087
  %vm10094 = vmor %vm10092, %vm10093
  %v10095 = vsel %vm10094, %v10087, %v10091
  %v10096 = vand.u32 2147483647, %v9519
  %vm10097 = vcmp.eq.f32.partialorder %v10096, 8.507059e+37
  %v10098 = vand.u32 %v9519, 2147483648
  %v10099 = vor.u32 1.1754944e-38, %v10098
  %v10100 = vsel %vm10097, %v10099, %v10095
  %v10101 = vmul.f32 1.0, %v10100
  %v10102 = vrcp.pop %v9520
  %v10103 = vmul.f32 %v9520, %v10102
  %v10104 = vsub.f32 1.0, %v10103
  %v10105 = vmul.f32 %v10102, %v10104
  %v10106 = vadd.f32 %v10102, %v10105
  %vm10107 = vweird.f32 %v9520
  %vm10108 = vweird.f32 %v10102
  %vm10109 = vmor %vm10107, %vm10108
  %v10110 = vsel %vm10109, %v10102, %v10106
  %v10111 = vand.u32 2147483647, %v9520
  %vm10112 = vcmp.eq.f32.partialorder %v10111, 8.507059e+37
  %v10113 = vand.u32 %v9520, 2147483648
  %v10114 = vor.u32 1.1754944e-38, %v10113
  %v10115 = vsel %vm10112, %v10114, %v10110
  %v10116 = vmul.f32 1.0, %v10115
  %v10117 = vrcp.pop %v9521
  %v10118 = vmul.f32 %v9521, %v10117
  %v10119 = vsub.f32 1.0, %v10118
  %v10120 = vmul.f32 %v10117, %v10119
  %v10121 = vadd.f32 %v10117, %v10120
  %vm10122 = vweird.f32 %v9521
  %vm10123 = vweird.f32 %v10117
  %vm10124 = vmor %vm10122, %vm10123
  %v10125 = vsel %vm10124, %v10117, %v10121
  %v10126 = vand.u32 2147483647, %v9521
  %vm10127 = vcmp.eq.f32.partialorder %v10126, 8.507059e+37
  %v10128 = vand.u32 %v9521, 2147483648
  %v10129 = vor.u32 1.1754944e-38, %v10128
  %v10130 = vsel %vm10127, %v10129, %v10125
  %v10131 = vmul.f32 1.0, %v10130
  %v10132 = vrcp.pop %v9522
  %v10133 = vmul.f32 %v9522, %v10132
  %v10134 = vsub.f32 1.0, %v10133
  %v10135 = vmul.f32 %v10132, %v10134
  %v10136 = vadd.f32 %v10132, %v10135
  %vm10137 = vweird.f32 %v9522
  %vm10138 = vweird.f32 %v10132
  %vm10139 = vmor %vm10137, %vm10138
  %v10140 = vsel %vm10139, %v10132, %v10136
  %v10141 = vand.u32 2147483647, %v9522
  %vm10142 = vcmp.eq.f32.partialorder %v10141, 8.507059e+37
  %v10143 = vand.u32 %v9522, 2147483648
  %v10144 = vor.u32 1.1754944e-38, %v10143
  %v10145 = vsel %vm10142, %v10144, %v10140
  %v10146 = vmul.f32 1.0, %v10145
  %v10147 = vrcp.pop %v9523
  %v10148 = vmul.f32 %v9523, %v10147
  %v10149 = vsub.f32 1.0, %v10148
  %v10150 = vmul.f32 %v10147, %v10149
  %v10151 = vadd.f32 %v10147, %v10150
  %vm10152 = vweird.f32 %v9523
  %vm10153 = vweird.f32 %v10147
  %vm10154 = vmor %vm10152, %vm10153
  %v10155 = vsel %vm10154, %v10147, %v10151
  %v10156 = vand.u32 2147483647, %v9523
  %vm10157 = vcmp.eq.f32.partialorder %v10156, 8.507059e+37
  %v10158 = vand.u32 %v9523, 2147483648
  %v10159 = vor.u32 1.1754944e-38, %v10158
  %v10160 = vsel %vm10157, %v10159, %v10155
  %v10161 = vmul.f32 1.0, %v10160
  %v10162 = vrcp.pop %v9524
  %v10163 = vmul.f32 %v9524, %v10162
  %v10164 = vsub.f32 1.0, %v10163
  %v10165 = vmul.f32 %v10162, %v10164
  %v10166 = vadd.f32 %v10162, %v10165
  %vm10167 = vweird.f32 %v9524
  %vm10168 = vweird.f32 %v10162
  %vm10169 = vmor %vm10167, %vm10168
  %v10170 = vsel %vm10169, %v10162, %v10166
  %v10171 = vand.u32 2147483647, %v9524
  %vm10172 = vcmp.eq.f32.partialorder %v10171, 8.507059e+37
  %v10173 = vand.u32 %v9524, 2147483648
  %v10174 = vor.u32 1.1754944e-38, %v10173
  %v10175 = vsel %vm10172, %v10174, %v10170
  %v10176 = vmul.f32 1.0, %v10175
  %v10177 = vrcp.pop %v9525
  %v10178 = vmul.f32 %v9525, %v10177
  %v10179 = vsub.f32 1.0, %v10178
  %v10180 = vmul.f32 %v10177, %v10179
  %v10181 = vadd.f32 %v10177, %v10180
  %vm10182 = vweird.f32 %v9525
  %vm10183 = vweird.f32 %v10177
  %vm10184 = vmor %vm10182, %vm10183
  %v10185 = vsel %vm10184, %v10177, %v10181
  %v10186 = vand.u32 2147483647, %v9525
  %vm10187 = vcmp.eq.f32.partialorder %v10186, 8.507059e+37
  %v10188 = vand.u32 %v9525, 2147483648
  %v10189 = vor.u32 1.1754944e-38, %v10188
  %v10190 = vsel %vm10187, %v10189, %v10185
  %v10191 = vmul.f32 1.0, %v10190
  %v10192 = vrcp.pop %v9526
  %v10193 = vmul.f32 %v9526, %v10192
  %v10194 = vsub.f32 1.0, %v10193
  %v10195 = vmul.f32 %v10192, %v10194
  %v10196 = vadd.f32 %v10192, %v10195
  %vm10197 = vweird.f32 %v9526
  %vm10198 = vweird.f32 %v10192
  %vm10199 = vmor %vm10197, %vm10198
  %v10200 = vsel %vm10199, %v10192, %v10196
  %v10201 = vand.u32 2147483647, %v9526
  %vm10202 = vcmp.eq.f32.partialorder %v10201, 8.507059e+37
  %v10203 = vand.u32 %v9526, 2147483648
  %v10204 = vor.u32 1.1754944e-38, %v10203
  %v10205 = vsel %vm10202, %v10204, %v10200
  %v10206 = vmul.f32 1.0, %v10205
  %v10207 = vrcp.pop %v9527
  %v10208 = vmul.f32 %v9527, %v10207
  %v10209 = vsub.f32 1.0, %v10208
  %v10210 = vmul.f32 %v10207, %v10209
  %v10211 = vadd.f32 %v10207, %v10210
  %vm10212 = vweird.f32 %v9527
  %vm10213 = vweird.f32 %v10207
  %vm10214 = vmor %vm10212, %vm10213
  %v10215 = vsel %vm10214, %v10207, %v10211
  %v10216 = vand.u32 2147483647, %v9527
  %vm10217 = vcmp.eq.f32.partialorder %v10216, 8.507059e+37
  %v10218 = vand.u32 %v9527, 2147483648
  %v10219 = vor.u32 1.1754944e-38, %v10218
  %v10220 = vsel %vm10217, %v10219, %v10215
  %v10221 = vmul.f32 1.0, %v10220
  %v10222 = vrcp.pop %v9528
  %v10223 = vmul.f32 %v9528, %v10222
  %v10224 = vsub.f32 1.0, %v10223
  %v10225 = vmul.f32 %v10222, %v10224
  %v10226 = vadd.f32 %v10222, %v10225
  %vm10227 = vweird.f32 %v9528
  %vm10228 = vweird.f32 %v10222
  %vm10229 = vmor %vm10227, %vm10228
  %v10230 = vsel %vm10229, %v10222, %v10226
  %v10231 = vand.u32 2147483647, %v9528
  %vm10232 = vcmp.eq.f32.partialorder %v10231, 8.507059e+37
  %v10233 = vand.u32 %v9528, 2147483648
  %v10234 = vor.u32 1.1754944e-38, %v10233
  %v10235 = vsel %vm10232, %v10234, %v10230
  %v10236 = vmul.f32 1.0, %v10235
  %v10237 = vrcp.pop %v9529
  %v10238 = vmul.f32 %v9529, %v10237
  %v10239 = vsub.f32 1.0, %v10238
  %v10240 = vmul.f32 %v10237, %v10239
  %v10241 = vadd.f32 %v10237, %v10240
  %vm10242 = vweird.f32 %v9529
  %vm10243 = vweird.f32 %v10237
  %vm10244 = vmor %vm10242, %vm10243
  %v10245 = vsel %vm10244, %v10237, %v10241
  %v10246 = vand.u32 2147483647, %v9529
  %vm10247 = vcmp.eq.f32.partialorder %v10246, 8.507059e+37
  %v10248 = vand.u32 %v9529, 2147483648
  %v10249 = vor.u32 1.1754944e-38, %v10248
  %v10250 = vsel %vm10247, %v10249, %v10245
  %v10251 = vmul.f32 1.0, %v10250
  %v10252 = vrcp.pop %v9530
  %v10253 = vmul.f32 %v9530, %v10252
  %v10254 = vsub.f32 1.0, %v10253
  %v10255 = vmul.f32 %v10252, %v10254
  %v10256 = vadd.f32 %v10252, %v10255
  %vm10257 = vweird.f32 %v9530
  %vm10258 = vweird.f32 %v10252
  %vm10259 = vmor %vm10257, %vm10258
  %v10260 = vsel %vm10259, %v10252, %v10256
  %v10261 = vand.u32 2147483647, %v9530
  %vm10262 = vcmp.eq.f32.partialorder %v10261, 8.507059e+37
  %v10263 = vand.u32 %v9530, 2147483648
  %v10264 = vor.u32 1.1754944e-38, %v10263
  %v10265 = vsel %vm10262, %v10264, %v10260
  %v10266 = vmul.f32 1.0, %v10265
  %v10267 = vrcp.pop %v9531
  %v10268 = vmul.f32 %v9531, %v10267
  %v10269 = vsub.f32 1.0, %v10268
  %v10270 = vmul.f32 %v10267, %v10269
  %v10271 = vadd.f32 %v10267, %v10270
  %vm10272 = vweird.f32 %v9531
  %vm10273 = vweird.f32 %v10267
  %vm10274 = vmor %vm10272, %vm10273
  %v10275 = vsel %vm10274, %v10267, %v10271
  %v10276 = vand.u32 2147483647, %v9531
  %vm10277 = vcmp.eq.f32.partialorder %v10276, 8.507059e+37
  %v10278 = vand.u32 %v9531, 2147483648
  %v10279 = vor.u32 1.1754944e-38, %v10278
  %v10280 = vsel %vm10277, %v10279, %v10275
  %v10281 = vmul.f32 1.0, %v10280
  %v10282 = vrcp.pop %v9532
  %v10283 = vmul.f32 %v9532, %v10282
  %v10284 = vsub.f32 1.0, %v10283
  %v10285 = vmul.f32 %v10282, %v10284
  %v10286 = vadd.f32 %v10282, %v10285
  %vm10287 = vweird.f32 %v9532
  %vm10288 = vweird.f32 %v10282
  %vm10289 = vmor %vm10287, %vm10288
  %v10290 = vsel %vm10289, %v10282, %v10286
  %v10291 = vand.u32 2147483647, %v9532
  %vm10292 = vcmp.eq.f32.partialorder %v10291, 8.507059e+37
  %v10293 = vand.u32 %v9532, 2147483648
  %v10294 = vor.u32 1.1754944e-38, %v10293
  %v10295 = vsel %vm10292, %v10294, %v10290
  %v10296 = vmul.f32 1.0, %v10295
  %v10297 = vrcp.pop %v9533
  %v10298 = vmul.f32 %v9533, %v10297
  %v10299 = vsub.f32 1.0, %v10298
  %v10300 = vmul.f32 %v10297, %v10299
  %v10301 = vadd.f32 %v10297, %v10300
  %vm10302 = vweird.f32 %v9533
  %vm10303 = vweird.f32 %v10297
  %vm10304 = vmor %vm10302, %vm10303
  %v10305 = vsel %vm10304, %v10297, %v10301
  %v10306 = vand.u32 2147483647, %v9533
  %vm10307 = vcmp.eq.f32.partialorder %v10306, 8.507059e+37
  %v10308 = vand.u32 %v9533, 2147483648
  %v10309 = vor.u32 1.1754944e-38, %v10308
  %v10310 = vsel %vm10307, %v10309, %v10305
  %v10311 = vmul.f32 1.0, %v10310
  %v10312 = vrcp.pop %v9534
  %v10313 = vmul.f32 %v9534, %v10312
  %v10314 = vsub.f32 1.0, %v10313
  %v10315 = vmul.f32 %v10312, %v10314
  %v10316 = vadd.f32 %v10312, %v10315
  %vm10317 = vweird.f32 %v9534
  %vm10318 = vweird.f32 %v10312
  %vm10319 = vmor %vm10317, %vm10318
  %v10320 = vsel %vm10319, %v10312, %v10316
  %v10321 = vand.u32 2147483647, %v9534
  %vm10322 = vcmp.eq.f32.partialorder %v10321, 8.507059e+37
  %v10323 = vand.u32 %v9534, 2147483648
  %v10324 = vor.u32 1.1754944e-38, %v10323
  %v10325 = vsel %vm10322, %v10324, %v10320
  %v10326 = vmul.f32 1.0, %v10325
  %v10327 = vrcp.pop %v9535
  %v10328 = vmul.f32 %v9535, %v10327
  %v10329 = vsub.f32 1.0, %v10328
  %v10330 = vmul.f32 %v10327, %v10329
  %v10331 = vadd.f32 %v10327, %v10330
  %vm10332 = vweird.f32 %v9535
  %vm10333 = vweird.f32 %v10327
  %vm10334 = vmor %vm10332, %vm10333
  %v10335 = vsel %vm10334, %v10327, %v10331
  %v10336 = vand.u32 2147483647, %v9535
  %vm10337 = vcmp.eq.f32.partialorder %v10336, 8.507059e+37
  %v10338 = vand.u32 %v9535, 2147483648
  %v10339 = vor.u32 1.1754944e-38, %v10338
  %v10340 = vsel %vm10337, %v10339, %v10335
  %v10341 = vmul.f32 1.0, %v10340
  %v10342 = vrcp.pop %v9536
  %v10343 = vmul.f32 %v9536, %v10342
  %v10344 = vsub.f32 1.0, %v10343
  %v10345 = vmul.f32 %v10342, %v10344
  %v10346 = vadd.f32 %v10342, %v10345
  %vm10347 = vweird.f32 %v9536
  %vm10348 = vweird.f32 %v10342
  %vm10349 = vmor %vm10347, %vm10348
  %v10350 = vsel %vm10349, %v10342, %v10346
  %v10351 = vand.u32 2147483647, %v9536
  %vm10352 = vcmp.eq.f32.partialorder %v10351, 8.507059e+37
  %v10353 = vand.u32 %v9536, 2147483648
  %v10354 = vor.u32 1.1754944e-38, %v10353
  %v10355 = vsel %vm10352, %v10354, %v10350
  %v10356 = vmul.f32 1.0, %v10355
  %v10357 = vrcp.pop %v9537
  %v10358 = vmul.f32 %v9537, %v10357
  %v10359 = vsub.f32 1.0, %v10358
  %v10360 = vmul.f32 %v10357, %v10359
  %v10361 = vadd.f32 %v10357, %v10360
  %vm10362 = vweird.f32 %v9537
  %vm10363 = vweird.f32 %v10357
  %vm10364 = vmor %vm10362, %vm10363
  %v10365 = vsel %vm10364, %v10357, %v10361
  %v10366 = vand.u32 2147483647, %v9537
  %vm10367 = vcmp.eq.f32.partialorder %v10366, 8.507059e+37
  %v10368 = vand.u32 %v9537, 2147483648
  %v10369 = vor.u32 1.1754944e-38, %v10368
  %v10370 = vsel %vm10367, %v10369, %v10365
  %v10371 = vmul.f32 1.0, %v10370
  %v10372 = vrcp.pop %v9538
  %v10373 = vmul.f32 %v9538, %v10372
  %v10374 = vsub.f32 1.0, %v10373
  %v10375 = vmul.f32 %v10372, %v10374
  %v10376 = vadd.f32 %v10372, %v10375
  %vm10377 = vweird.f32 %v9538
  %vm10378 = vweird.f32 %v10372
  %vm10379 = vmor %vm10377, %vm10378
  %v10380 = vsel %vm10379, %v10372, %v10376
  %v10381 = vand.u32 2147483647, %v9538
  %vm10382 = vcmp.eq.f32.partialorder %v10381, 8.507059e+37
  %v10383 = vand.u32 %v9538, 2147483648
  %v10384 = vor.u32 1.1754944e-38, %v10383
  %v10385 = vsel %vm10382, %v10384, %v10380
  %v10386 = vmul.f32 1.0, %v10385
  %v10387 = vrcp.pop %v9539
  %v10388 = vmul.f32 %v9539, %v10387
  %v10389 = vsub.f32 1.0, %v10388
  %v10390 = vmul.f32 %v10387, %v10389
  %v10391 = vadd.f32 %v10387, %v10390
  %vm10392 = vweird.f32 %v9539
  %vm10393 = vweird.f32 %v10387
  %vm10394 = vmor %vm10392, %vm10393
  %v10395 = vsel %vm10394, %v10387, %v10391
  %v10396 = vand.u32 2147483647, %v9539
  %vm10397 = vcmp.eq.f32.partialorder %v10396, 8.507059e+37
  %v10398 = vand.u32 %v9539, 2147483648
  %v10399 = vor.u32 1.1754944e-38, %v10398
  %v10400 = vsel %vm10397, %v10399, %v10395
  %v10401 = vmul.f32 1.0, %v10400
  %v10402 = vrcp.pop %v9540
  %v10403 = vmul.f32 %v9540, %v10402
  %v10404 = vsub.f32 1.0, %v10403
  %v10405 = vmul.f32 %v10402, %v10404
  %v10406 = vadd.f32 %v10402, %v10405
  %vm10407 = vweird.f32 %v9540
  %vm10408 = vweird.f32 %v10402
  %vm10409 = vmor %vm10407, %vm10408
  %v10410 = vsel %vm10409, %v10402, %v10406
  %v10411 = vand.u32 2147483647, %v9540
  %vm10412 = vcmp.eq.f32.partialorder %v10411, 8.507059e+37
  %v10413 = vand.u32 %v9540, 2147483648
  %v10414 = vor.u32 1.1754944e-38, %v10413
  %v10415 = vsel %vm10412, %v10414, %v10410
  %v10416 = vmul.f32 1.0, %v10415
  %v10417 = vrcp.pop %v9541
  %v10418 = vmul.f32 %v9541, %v10417
  %v10419 = vsub.f32 1.0, %v10418
  %v10420 = vmul.f32 %v10417, %v10419
  %v10421 = vadd.f32 %v10417, %v10420
  %vm10422 = vweird.f32 %v9541
  %vm10423 = vweird.f32 %v10417
  %vm10424 = vmor %vm10422, %vm10423
  %v10425 = vsel %vm10424, %v10417, %v10421
  %v10426 = vand.u32 2147483647, %v9541
  %vm10427 = vcmp.eq.f32.partialorder %v10426, 8.507059e+37
  %v10428 = vand.u32 %v9541, 2147483648
  %v10429 = vor.u32 1.1754944e-38, %v10428
  %v10430 = vsel %vm10427, %v10429, %v10425
  %v10431 = vmul.f32 1.0, %v10430
  %v10432 = vrcp.pop %v9542
  %v10433 = vmul.f32 %v9542, %v10432
  %v10434 = vsub.f32 1.0, %v10433
  %v10435 = vmul.f32 %v10432, %v10434
  %v10436 = vadd.f32 %v10432, %v10435
  %vm10437 = vweird.f32 %v9542
  %vm10438 = vweird.f32 %v10432
  %vm10439 = vmor %vm10437, %vm10438
  %v10440 = vsel %vm10439, %v10432, %v10436
  %v10441 = vand.u32 2147483647, %v9542
  %vm10442 = vcmp.eq.f32.partialorder %v10441, 8.507059e+37
  %v10443 = vand.u32 %v9542, 2147483648
  %v10444 = vor.u32 1.1754944e-38, %v10443
  %v10445 = vsel %vm10442, %v10444, %v10440
  %v10446 = vmul.f32 1.0, %v10445
  %v10447 = vrcp.pop %v9543
  %v10448 = vmul.f32 %v9543, %v10447
  %v10449 = vsub.f32 1.0, %v10448
  %v10450 = vmul.f32 %v10447, %v10449
  %v10451 = vadd.f32 %v10447, %v10450
  %vm10452 = vweird.f32 %v9543
  %vm10453 = vweird.f32 %v10447
  %vm10454 = vmor %vm10452, %vm10453
  %v10455 = vsel %vm10454, %v10447, %v10451
  %v10456 = vand.u32 2147483647, %v9543
  %vm10457 = vcmp.eq.f32.partialorder %v10456, 8.507059e+37
  %v10458 = vand.u32 %v9543, 2147483648
  %v10459 = vor.u32 1.1754944e-38, %v10458
  %v10460 = vsel %vm10457, %v10459, %v10455
  %v10461 = vmul.f32 1.0, %v10460
  %v10462 = vrcp.pop %v9544
  %v10463 = vmul.f32 %v9544, %v10462
  %v10464 = vsub.f32 1.0, %v10463
  %v10465 = vmul.f32 %v10462, %v10464
  %v10466 = vadd.f32 %v10462, %v10465
  %vm10467 = vweird.f32 %v9544
  %vm10468 = vweird.f32 %v10462
  %vm10469 = vmor %vm10467, %vm10468
  %v10470 = vsel %vm10469, %v10462, %v10466
  %v10471 = vand.u32 2147483647, %v9544
  %vm10472 = vcmp.eq.f32.partialorder %v10471, 8.507059e+37
  %v10473 = vand.u32 %v9544, 2147483648
  %v10474 = vor.u32 1.1754944e-38, %v10473
  %v10475 = vsel %vm10472, %v10474, %v10470
  %v10476 = vmul.f32 1.0, %v10475
  %v10477 = vrcp.pop %v9545
  %v10478 = vmul.f32 %v9545, %v10477
  %v10479 = vsub.f32 1.0, %v10478
  %v10480 = vmul.f32 %v10477, %v10479
  %v10481 = vadd.f32 %v10477, %v10480
  %vm10482 = vweird.f32 %v9545
  %vm10483 = vweird.f32 %v10477
  %vm10484 = vmor %vm10482, %vm10483
  %v10485 = vsel %vm10484, %v10477, %v10481
  %v10486 = vand.u32 2147483647, %v9545
  %vm10487 = vcmp.eq.f32.partialorder %v10486, 8.507059e+37
  %v10488 = vand.u32 %v9545, 2147483648
  %v10489 = vor.u32 1.1754944e-38, %v10488
  %v10490 = vsel %vm10487, %v10489, %v10485
  %v10491 = vmul.f32 1.0, %v10490
  %v10492 = vrcp.pop %v9546
  %v10493 = vmul.f32 %v9546, %v10492
  %v10494 = vsub.f32 1.0, %v10493
  %v10495 = vmul.f32 %v10492, %v10494
  %v10496 = vadd.f32 %v10492, %v10495
  %vm10497 = vweird.f32 %v9546
  %vm10498 = vweird.f32 %v10492
  %vm10499 = vmor %vm10497, %vm10498
  %v10500 = vsel %vm10499, %v10492, %v10496
  %v10501 = vand.u32 2147483647, %v9546
  %vm10502 = vcmp.eq.f32.partialorder %v10501, 8.507059e+37
  %v10503 = vand.u32 %v9546, 2147483648
  %v10504 = vor.u32 1.1754944e-38, %v10503
  %v10505 = vsel %vm10502, %v10504, %v10500
  %v10506 = vmul.f32 1.0, %v10505
  %v10507 = vld [vmem:[%s20] sm:$0xff]
  %v10508 = vld [vmem:[%s20 + $0x8] sm:$0xff]
  %v10511 = vperm.slane %v10507, 0
  %v10512 = vlaneseq
  %v10513 = vshrl.u32 %v10512, 7
  %10515 = vset.pattern.permute.xlu0 %v10513
  %10516 = vperm.xlu0 %10515, %v10511
  %v10517 = vpop.permute.xlu0 %10516
  %v10518 = vlaneseq
  %v10519 = vshrl.u32 %v10518, 7
  %v10520 = vadd.s32 %v10519, 8
  %10521 = vset.pattern.permute.xlu0 %v10520
  %10522 = vperm.xlu0 %10521, %v10511
  %v10523 = vpop.permute.xlu0 %10522
  %v10524 = vperm.slane %v10507, 1
  %v10525 = vlaneseq
  %v10526 = vshrl.u32 %v10525, 7
  %10528 = vset.pattern.permute.xlu0 %v10526
  %10529 = vperm.xlu0 %10528, %v10524
  %v10530 = vpop.permute.xlu0 %10529
  %v10531 = vlaneseq
  %v10532 = vshrl.u32 %v10531, 7
  %v10533 = vadd.s32 %v10532, 8
  %10534 = vset.pattern.permute.xlu0 %v10533
  %10535 = vperm.xlu0 %10534, %v10524
  %v10536 = vpop.permute.xlu0 %10535
  %v10537 = vperm.slane %v10507, 2
  %v10538 = vlaneseq
  %v10539 = vshrl.u32 %v10538, 7
  %10541 = vset.pattern.permute.xlu0 %v10539
  %10542 = vperm.xlu0 %10541, %v10537
  %v10543 = vpop.permute.xlu0 %10542
  %v10544 = vlaneseq
  %v10545 = vshrl.u32 %v10544, 7
  %v10546 = vadd.s32 %v10545, 8
  %10547 = vset.pattern.permute.xlu0 %v10546
  %10548 = vperm.xlu0 %10547, %v10537
  %v10549 = vpop.permute.xlu0 %10548
  %v10550 = vperm.slane %v10507, 3
  %v10551 = vlaneseq
  %v10552 = vshrl.u32 %v10551, 7
  %10554 = vset.pattern.permute.xlu0 %v10552
  %10555 = vperm.xlu0 %10554, %v10550
  %v10556 = vpop.permute.xlu0 %10555
  %v10557 = vlaneseq
  %v10558 = vshrl.u32 %v10557, 7
  %v10559 = vadd.s32 %v10558, 8
  %10560 = vset.pattern.permute.xlu0 %v10559
  %10561 = vperm.xlu0 %10560, %v10550
  %v10562 = vpop.permute.xlu0 %10561
  %v10563 = vperm.slane %v10507, 4
  %v10564 = vlaneseq
  %v10565 = vshrl.u32 %v10564, 7
  %10567 = vset.pattern.permute.xlu0 %v10565
  %10568 = vperm.xlu0 %10567, %v10563
  %v10569 = vpop.permute.xlu0 %10568
  %v10570 = vlaneseq
  %v10571 = vshrl.u32 %v10570, 7
  %v10572 = vadd.s32 %v10571, 8
  %10573 = vset.pattern.permute.xlu0 %v10572
  %10574 = vperm.xlu0 %10573, %v10563
  %v10575 = vpop.permute.xlu0 %10574
  %v10576 = vperm.slane %v10507, 5
  %v10577 = vlaneseq
  %v10578 = vshrl.u32 %v10577, 7
  %10580 = vset.pattern.permute.xlu0 %v10578
  %10581 = vperm.xlu0 %10580, %v10576
  %v10582 = vpop.permute.xlu0 %10581
  %v10583 = vlaneseq
  %v10584 = vshrl.u32 %v10583, 7
  %v10585 = vadd.s32 %v10584, 8
  %10586 = vset.pattern.permute.xlu0 %v10585
  %10587 = vperm.xlu0 %10586, %v10576
  %v10588 = vpop.permute.xlu0 %10587
  %v10589 = vperm.slane %v10507, 6
  %v10590 = vlaneseq
  %v10591 = vshrl.u32 %v10590, 7
  %10593 = vset.pattern.permute.xlu0 %v10591
  %10594 = vperm.xlu0 %10593, %v10589
  %v10595 = vpop.permute.xlu0 %10594
  %v10596 = vlaneseq
  %v10597 = vshrl.u32 %v10596, 7
  %v10598 = vadd.s32 %v10597, 8
  %10599 = vset.pattern.permute.xlu0 %v10598
  %10600 = vperm.xlu0 %10599, %v10589
  %v10601 = vpop.permute.xlu0 %10600
  %v10602 = vperm.slane %v10507, 7
  %v10603 = vlaneseq
  %v10604 = vshrl.u32 %v10603, 7
  %10606 = vset.pattern.permute.xlu0 %v10604
  %10607 = vperm.xlu0 %10606, %v10602
  %v10608 = vpop.permute.xlu0 %10607
  %v10609 = vlaneseq
  %v10610 = vshrl.u32 %v10609, 7
  %v10611 = vadd.s32 %v10610, 8
  %10612 = vset.pattern.permute.xlu0 %v10611
  %10613 = vperm.xlu0 %10612, %v10602
  %v10614 = vpop.permute.xlu0 %10613
  %v10615 = vperm.slane %v10508, 0
  %v10616 = vlaneseq
  %v10617 = vshrl.u32 %v10616, 7
  %10619 = vset.pattern.permute.xlu0 %v10617
  %10620 = vperm.xlu0 %10619, %v10615
  %v10621 = vpop.permute.xlu0 %10620
  %v10622 = vlaneseq
  %v10623 = vshrl.u32 %v10622, 7
  %v10624 = vadd.s32 %v10623, 8
  %10625 = vset.pattern.permute.xlu0 %v10624
  %10626 = vperm.xlu0 %10625, %v10615
  %v10627 = vpop.permute.xlu0 %10626
  %v10628 = vperm.slane %v10508, 1
  %v10629 = vlaneseq
  %v10630 = vshrl.u32 %v10629, 7
  %10632 = vset.pattern.permute.xlu0 %v10630
  %10633 = vperm.xlu0 %10632, %v10628
  %v10634 = vpop.permute.xlu0 %10633
  %v10635 = vlaneseq
  %v10636 = vshrl.u32 %v10635, 7
  %v10637 = vadd.s32 %v10636, 8
  %10638 = vset.pattern.permute.xlu0 %v10637
  %10639 = vperm.xlu0 %10638, %v10628
  %v10640 = vpop.permute.xlu0 %10639
  %v10641 = vperm.slane %v10508, 2
  %v10642 = vlaneseq
  %v10643 = vshrl.u32 %v10642, 7
  %10645 = vset.pattern.permute.xlu0 %v10643
  %10646 = vperm.xlu0 %10645, %v10641
  %v10647 = vpop.permute.xlu0 %10646
  %v10648 = vlaneseq
  %v10649 = vshrl.u32 %v10648, 7
  %v10650 = vadd.s32 %v10649, 8
  %10651 = vset.pattern.permute.xlu0 %v10650
  %10652 = vperm.xlu0 %10651, %v10641
  %v10653 = vpop.permute.xlu0 %10652
  %v10654 = vperm.slane %v10508, 3
  %v10655 = vlaneseq
  %v10656 = vshrl.u32 %v10655, 7
  %10658 = vset.pattern.permute.xlu0 %v10656
  %10659 = vperm.xlu0 %10658, %v10654
  %v10660 = vpop.permute.xlu0 %10659
  %v10661 = vlaneseq
  %v10662 = vshrl.u32 %v10661, 7
  %v10663 = vadd.s32 %v10662, 8
  %10664 = vset.pattern.permute.xlu0 %v10663
  %10665 = vperm.xlu0 %10664, %v10654
  %v10666 = vpop.permute.xlu0 %10665
  %v10667 = vperm.slane %v10508, 4
  %v10668 = vlaneseq
  %v10669 = vshrl.u32 %v10668, 7
  %10671 = vset.pattern.permute.xlu0 %v10669
  %10672 = vperm.xlu0 %10671, %v10667
  %v10673 = vpop.permute.xlu0 %10672
  %v10674 = vlaneseq
  %v10675 = vshrl.u32 %v10674, 7
  %v10676 = vadd.s32 %v10675, 8
  %10677 = vset.pattern.permute.xlu0 %v10676
  %10678 = vperm.xlu0 %10677, %v10667
  %v10679 = vpop.permute.xlu0 %10678
  %v10680 = vperm.slane %v10508, 5
  %v10681 = vlaneseq
  %v10682 = vshrl.u32 %v10681, 7
  %10684 = vset.pattern.permute.xlu0 %v10682
  %10685 = vperm.xlu0 %10684, %v10680
  %v10686 = vpop.permute.xlu0 %10685
  %v10687 = vlaneseq
  %v10688 = vshrl.u32 %v10687, 7
  %v10689 = vadd.s32 %v10688, 8
  %10690 = vset.pattern.permute.xlu0 %v10689
  %10691 = vperm.xlu0 %10690, %v10680
  %v10692 = vpop.permute.xlu0 %10691
  %v10693 = vperm.slane %v10508, 6
  %v10694 = vlaneseq
  %v10695 = vshrl.u32 %v10694, 7
  %10697 = vset.pattern.permute.xlu0 %v10695
  %10698 = vperm.xlu0 %10697, %v10693
  %v10699 = vpop.permute.xlu0 %10698
  %v10700 = vlaneseq
  %v10701 = vshrl.u32 %v10700, 7
  %v10702 = vadd.s32 %v10701, 8
  %10703 = vset.pattern.permute.xlu0 %v10702
  %10704 = vperm.xlu0 %10703, %v10693
  %v10705 = vpop.permute.xlu0 %10704
  %v10706 = vperm.slane %v10508, 7
  %v10707 = vlaneseq
  %v10708 = vshrl.u32 %v10707, 7
  %10710 = vset.pattern.permute.xlu0 %v10708
  %10711 = vperm.xlu0 %10710, %v10706
  %v10712 = vpop.permute.xlu0 %10711
  %v10713 = vlaneseq
  %v10714 = vshrl.u32 %v10713, 7
  %v10715 = vadd.s32 %v10714, 8
  %10716 = vset.pattern.permute.xlu0 %v10715
  %10717 = vperm.xlu0 %10716, %v10706
  %v10718 = vpop.permute.xlu0 %10717
  %v10751 = vmul.f32 %v9561, %v10517
  %v10752 = vmul.f32 %v9576, %v10523
  %v10753 = vmul.f32 %v9591, %v10530
  %v10754 = vmul.f32 %v9606, %v10536
  %v10755 = vmul.f32 %v9621, %v10543
  %v10756 = vmul.f32 %v9636, %v10549
  %v10757 = vmul.f32 %v9651, %v10556
  %v10758 = vmul.f32 %v9666, %v10562
  %v10759 = vmul.f32 %v9681, %v10569
  %v10760 = vmul.f32 %v9696, %v10575
  %v10761 = vmul.f32 %v9711, %v10582
  %v10762 = vmul.f32 %v9726, %v10588
  %v10763 = vmul.f32 %v9741, %v10595
  %v10764 = vmul.f32 %v9756, %v10601
  %v10765 = vmul.f32 %v9771, %v10608
  %v10766 = vmul.f32 %v9786, %v10614
  %v10767 = vmul.f32 %v9801, %v10621
  %v10768 = vmul.f32 %v9816, %v10627
  %v10769 = vmul.f32 %v9831, %v10634
  %v10770 = vmul.f32 %v9846, %v10640
  %v10771 = vmul.f32 %v9861, %v10647
  %v10772 = vmul.f32 %v9876, %v10653
  %v10773 = vmul.f32 %v9891, %v10660
  %v10774 = vmul.f32 %v9906, %v10666
  %v10775 = vmul.f32 %v9921, %v10673
  %v10776 = vmul.f32 %v9936, %v10679
  %v10777 = vmul.f32 %v9951, %v10686
  %v10778 = vmul.f32 %v9966, %v10692
  %v10779 = vmul.f32 %v9981, %v10699
  %v10780 = vmul.f32 %v9996, %v10705
  %v10781 = vmul.f32 %v10011, %v10712
  %v10782 = vmul.f32 %v10026, %v10718
  %v10783 = vmul.f32 %v10041, %v10517
  %v10784 = vmul.f32 %v10056, %v10523
  %v10785 = vmul.f32 %v10071, %v10530
  %v10786 = vmul.f32 %v10086, %v10536
  %v10787 = vmul.f32 %v10101, %v10543
  %v10788 = vmul.f32 %v10116, %v10549
  %v10789 = vmul.f32 %v10131, %v10556
  %v10790 = vmul.f32 %v10146, %v10562
  %v10791 = vmul.f32 %v10161, %v10569
  %v10792 = vmul.f32 %v10176, %v10575
  %v10793 = vmul.f32 %v10191, %v10582
  %v10794 = vmul.f32 %v10206, %v10588
  %v10795 = vmul.f32 %v10221, %v10595
  %v10796 = vmul.f32 %v10236, %v10601
  %v10797 = vmul.f32 %v10251, %v10608
  %v10798 = vmul.f32 %v10266, %v10614
  %v10799 = vmul.f32 %v10281, %v10621
  %v10800 = vmul.f32 %v10296, %v10627
  %v10801 = vmul.f32 %v10311, %v10634
  %v10802 = vmul.f32 %v10326, %v10640
  %v10803 = vmul.f32 %v10341, %v10647
  %v10804 = vmul.f32 %v10356, %v10653
  %v10805 = vmul.f32 %v10371, %v10660
  %v10806 = vmul.f32 %v10386, %v10666
  %v10807 = vmul.f32 %v10401, %v10673
  %v10808 = vmul.f32 %v10416, %v10679
  %v10809 = vmul.f32 %v10431, %v10686
  %v10810 = vmul.f32 %v10446, %v10692
  %v10811 = vmul.f32 %v10461, %v10699
  %v10812 = vmul.f32 %v10476, %v10705
  %v10813 = vmul.f32 %v10491, %v10712
  %v10814 = vmul.f32 %v10506, %v10718
  %10819 = vset.pattern.permute.xlu0 0
  %10820 = vperm.xlu0 %10819, %v10751
  %v10821 = vpop.permute.xlu0 %10820
  %10822 = vset.pattern.permute.xlu0 0
  %10823 = vperm.xlu0 %10822, %v10752
  %v10824 = vpop.permute.xlu0 %10823
  %10825 = vset.pattern.permute.xlu0 0
  %10826 = vperm.xlu0 %10825, %v10783
  %v10827 = vpop.permute.xlu0 %10826
  %10828 = vset.pattern.permute.xlu0 0
  %10829 = vperm.xlu0 %10828, %v10784
  %v10830 = vpop.permute.xlu0 %10829
  %v10831 = vlaneseq
  %v10832 = vand.u32 %v10831, 127
  %v10833 = vperm.slane %v10821, %v10832
  %v10834 = vadd.s32 %v10832, 4294967288
  %v10835 = vperm.slane %v10824, %v10834
  %vm10836 = vcmask 130112
  %v10837 = vsel %vm10836, %v10835, %v10833
  %v10838 = vperm.slane %v10827, %v10832
  %v10839 = vperm.slane %v10830, %v10834
  %v10840 = vsel %vm10836, %v10839, %v10838
  %10847 = vset.pattern.permute.xlu0 0
  %10848 = vperm.xlu0 %10847, %v10753
  %v10849 = vpop.permute.xlu0 %10848
  %10850 = vset.pattern.permute.xlu0 0
  %10851 = vperm.xlu0 %10850, %v10754
  %v10852 = vpop.permute.xlu0 %10851
  %10853 = vset.pattern.permute.xlu0 0
  %10854 = vperm.xlu0 %10853, %v10785
  %v10855 = vpop.permute.xlu0 %10854
  %10856 = vset.pattern.permute.xlu0 0
  %10857 = vperm.xlu0 %10856, %v10786
  %v10858 = vpop.permute.xlu0 %10857
  %v10859 = vadd.s32 %v10832, 4294967280
  %v10860 = vperm.slane %v10849, %v10859
  %v10861 = vadd.s32 %v10832, 4294967272
  %v10862 = vperm.slane %v10852, %v10861
  %vm10863 = vcmask 261312
  %v10864 = vsel %vm10863, %v10862, %v10860
  %v10865 = vperm.slane %v10855, %v10859
  %v10866 = vperm.slane %v10858, %v10861
  %v10867 = vsel %vm10863, %v10866, %v10865
  %10874 = vset.pattern.permute.xlu0 0
  %10875 = vperm.xlu0 %10874, %v10755
  %v10876 = vpop.permute.xlu0 %10875
  %10877 = vset.pattern.permute.xlu0 0
  %10878 = vperm.xlu0 %10877, %v10756
  %v10879 = vpop.permute.xlu0 %10878
  %10880 = vset.pattern.permute.xlu0 0
  %10881 = vperm.xlu0 %10880, %v10787
  %v10882 = vpop.permute.xlu0 %10881
  %10883 = vset.pattern.permute.xlu0 0
  %10884 = vperm.xlu0 %10883, %v10788
  %v10885 = vpop.permute.xlu0 %10884
  %v10886 = vadd.s32 %v10832, 4294967264
  %v10887 = vperm.slane %v10876, %v10886
  %v10888 = vadd.s32 %v10832, 4294967256
  %v10889 = vperm.slane %v10879, %v10888
  %vm10890 = vcmask 392512
  %v10891 = vsel %vm10890, %v10889, %v10887
  %v10892 = vperm.slane %v10882, %v10886
  %v10893 = vperm.slane %v10885, %v10888
  %v10894 = vsel %vm10890, %v10893, %v10892
  %10901 = vset.pattern.permute.xlu0 0
  %10902 = vperm.xlu0 %10901, %v10757
  %v10903 = vpop.permute.xlu0 %10902
  %10904 = vset.pattern.permute.xlu0 0
  %10905 = vperm.xlu0 %10904, %v10758
  %v10906 = vpop.permute.xlu0 %10905
  %10907 = vset.pattern.permute.xlu0 0
  %10908 = vperm.xlu0 %10907, %v10789
  %v10909 = vpop.permute.xlu0 %10908
  %10910 = vset.pattern.permute.xlu0 0
  %10911 = vperm.xlu0 %10910, %v10790
  %v10912 = vpop.permute.xlu0 %10911
  %v10913 = vadd.s32 %v10832, 4294967248
  %v10914 = vperm.slane %v10903, %v10913
  %v10915 = vadd.s32 %v10832, 4294967240
  %v10916 = vperm.slane %v10906, %v10915
  %vm10917 = vcmask 523712
  %v10918 = vsel %vm10917, %v10916, %v10914
  %v10919 = vperm.slane %v10909, %v10913
  %v10920 = vperm.slane %v10912, %v10915
  %v10921 = vsel %vm10917, %v10920, %v10919
  %10928 = vset.pattern.permute.xlu0 0
  %10929 = vperm.xlu0 %10928, %v10759
  %v10930 = vpop.permute.xlu0 %10929
  %10931 = vset.pattern.permute.xlu0 0
  %10932 = vperm.xlu0 %10931, %v10760
  %v10933 = vpop.permute.xlu0 %10932
  %10934 = vset.pattern.permute.xlu0 0
  %10935 = vperm.xlu0 %10934, %v10791
  %v10936 = vpop.permute.xlu0 %10935
  %10937 = vset.pattern.permute.xlu0 0
  %10938 = vperm.xlu0 %10937, %v10792
  %v10939 = vpop.permute.xlu0 %10938
  %v10940 = vadd.s32 %v10832, 4294967232
  %v10941 = vperm.slane %v10930, %v10940
  %v10942 = vadd.s32 %v10832, 4294967224
  %v10943 = vperm.slane %v10933, %v10942
  %vm10944 = vcmask 654912
  %v10945 = vsel %vm10944, %v10943, %v10941
  %v10946 = vperm.slane %v10936, %v10940
  %v10947 = vperm.slane %v10939, %v10942
  %v10948 = vsel %vm10944, %v10947, %v10946
  %10955 = vset.pattern.permute.xlu0 0
  %10956 = vperm.xlu0 %10955, %v10761
  %v10957 = vpop.permute.xlu0 %10956
  %10958 = vset.pattern.permute.xlu0 0
  %10959 = vperm.xlu0 %10958, %v10762
  %v10960 = vpop.permute.xlu0 %10959
  %10961 = vset.pattern.permute.xlu0 0
  %10962 = vperm.xlu0 %10961, %v10793
  %v10963 = vpop.permute.xlu0 %10962
  %10964 = vset.pattern.permute.xlu0 0
  %10965 = vperm.xlu0 %10964, %v10794
  %v10966 = vpop.permute.xlu0 %10965
  %v10967 = vadd.s32 %v10832, 4294967216
  %v10968 = vperm.slane %v10957, %v10967
  %v10969 = vadd.s32 %v10832, 4294967208
  %v10970 = vperm.slane %v10960, %v10969
  %vm10971 = vcmask 786112
  %v10972 = vsel %vm10971, %v10970, %v10968
  %v10973 = vperm.slane %v10963, %v10967
  %v10974 = vperm.slane %v10966, %v10969
  %v10975 = vsel %vm10971, %v10974, %v10973
  %10982 = vset.pattern.permute.xlu0 0
  %10983 = vperm.xlu0 %10982, %v10763
  %v10984 = vpop.permute.xlu0 %10983
  %10985 = vset.pattern.permute.xlu0 0
  %10986 = vperm.xlu0 %10985, %v10764
  %v10987 = vpop.permute.xlu0 %10986
  %10988 = vset.pattern.permute.xlu0 0
  %10989 = vperm.xlu0 %10988, %v10795
  %v10990 = vpop.permute.xlu0 %10989
  %10991 = vset.pattern.permute.xlu0 0
  %10992 = vperm.xlu0 %10991, %v10796
  %v10993 = vpop.permute.xlu0 %10992
  %v10994 = vadd.s32 %v10832, 4294967200
  %v10995 = vperm.slane %v10984, %v10994
  %v10996 = vadd.s32 %v10832, 4294967192
  %v10997 = vperm.slane %v10987, %v10996
  %vm10998 = vcmask 917312
  %v10999 = vsel %vm10998, %v10997, %v10995
  %v11000 = vperm.slane %v10990, %v10994
  %v11001 = vperm.slane %v10993, %v10996
  %v11002 = vsel %vm10998, %v11001, %v11000
  %11009 = vset.pattern.permute.xlu0 0
  %11010 = vperm.xlu0 %11009, %v10765
  %v11011 = vpop.permute.xlu0 %11010
  %11012 = vset.pattern.permute.xlu0 0
  %11013 = vperm.xlu0 %11012, %v10766
  %v11014 = vpop.permute.xlu0 %11013
  %11015 = vset.pattern.permute.xlu0 0
  %11016 = vperm.xlu0 %11015, %v10797
  %v11017 = vpop.permute.xlu0 %11016
  %11018 = vset.pattern.permute.xlu0 0
  %11019 = vperm.xlu0 %11018, %v10798
  %v11020 = vpop.permute.xlu0 %11019
  %v11021 = vadd.s32 %v10832, 4294967184
  %v11022 = vperm.slane %v11011, %v11021
  %v11023 = vadd.s32 %v10832, 4294967176
  %v11024 = vperm.slane %v11014, %v11023
  %vm11025 = vcmask 1048512
  %v11026 = vsel %vm11025, %v11024, %v11022
  %v11027 = vperm.slane %v11017, %v11021
  %v11028 = vperm.slane %v11020, %v11023
  %v11029 = vsel %vm11025, %v11028, %v11027
  %11036 = vset.pattern.permute.xlu0 0
  %11037 = vperm.xlu0 %11036, %v10767
  %v11038 = vpop.permute.xlu0 %11037
  %11039 = vset.pattern.permute.xlu0 0
  %11040 = vperm.xlu0 %11039, %v10768
  %v11041 = vpop.permute.xlu0 %11040
  %11042 = vset.pattern.permute.xlu0 0
  %11043 = vperm.xlu0 %11042, %v10799
  %v11044 = vpop.permute.xlu0 %11043
  %11045 = vset.pattern.permute.xlu0 0
  %11046 = vperm.xlu0 %11045, %v10800
  %v11047 = vpop.permute.xlu0 %11046
  %v11048 = vperm.slane %v11038, %v10832
  %v11049 = vperm.slane %v11041, %v10834
  %v11050 = vsel %vm10836, %v11049, %v11048
  %v11051 = vperm.slane %v11044, %v10832
  %v11052 = vperm.slane %v11047, %v10834
  %v11053 = vsel %vm10836, %v11052, %v11051
  %11060 = vset.pattern.permute.xlu0 0
  %11061 = vperm.xlu0 %11060, %v10769
  %v11062 = vpop.permute.xlu0 %11061
  %11063 = vset.pattern.permute.xlu0 0
  %11064 = vperm.xlu0 %11063, %v10770
  %v11065 = vpop.permute.xlu0 %11064
  %11066 = vset.pattern.permute.xlu0 0
  %11067 = vperm.xlu0 %11066, %v10801
  %v11068 = vpop.permute.xlu0 %11067
  %11069 = vset.pattern.permute.xlu0 0
  %11070 = vperm.xlu0 %11069, %v10802
  %v11071 = vpop.permute.xlu0 %11070
  %v11072 = vperm.slane %v11062, %v10859
  %v11073 = vperm.slane %v11065, %v10861
  %v11074 = vsel %vm10863, %v11073, %v11072
  %v11075 = vperm.slane %v11068, %v10859
  %v11076 = vperm.slane %v11071, %v10861
  %v11077 = vsel %vm10863, %v11076, %v11075
  %11084 = vset.pattern.permute.xlu0 0
  %11085 = vperm.xlu0 %11084, %v10771
  %v11086 = vpop.permute.xlu0 %11085
  %11087 = vset.pattern.permute.xlu0 0
  %11088 = vperm.xlu0 %11087, %v10772
  %v11089 = vpop.permute.xlu0 %11088
  %11090 = vset.pattern.permute.xlu0 0
  %11091 = vperm.xlu0 %11090, %v10803
  %v11092 = vpop.permute.xlu0 %11091
  %11093 = vset.pattern.permute.xlu0 0
  %11094 = vperm.xlu0 %11093, %v10804
  %v11095 = vpop.permute.xlu0 %11094
  %v11096 = vperm.slane %v11086, %v10886
  %v11097 = vperm.slane %v11089, %v10888
  %v11098 = vsel %vm10890, %v11097, %v11096
  %v11099 = vperm.slane %v11092, %v10886
  %v11100 = vperm.slane %v11095, %v10888
  %v11101 = vsel %vm10890, %v11100, %v11099
  %11108 = vset.pattern.permute.xlu0 0
  %11109 = vperm.xlu0 %11108, %v10773
  %v11110 = vpop.permute.xlu0 %11109
  %11111 = vset.pattern.permute.xlu0 0
  %11112 = vperm.xlu0 %11111, %v10774
  %v11113 = vpop.permute.xlu0 %11112
  %11114 = vset.pattern.permute.xlu0 0
  %11115 = vperm.xlu0 %11114, %v10805
  %v11116 = vpop.permute.xlu0 %11115
  %11117 = vset.pattern.permute.xlu0 0
  %11118 = vperm.xlu0 %11117, %v10806
  %v11119 = vpop.permute.xlu0 %11118
  %v11120 = vperm.slane %v11110, %v10913
  %v11121 = vperm.slane %v11113, %v10915
  %v11122 = vsel %vm10917, %v11121, %v11120
  %v11123 = vperm.slane %v11116, %v10913
  %v11124 = vperm.slane %v11119, %v10915
  %v11125 = vsel %vm10917, %v11124, %v11123
  %11132 = vset.pattern.permute.xlu0 0
  %11133 = vperm.xlu0 %11132, %v10775
  %v11134 = vpop.permute.xlu0 %11133
  %11135 = vset.pattern.permute.xlu0 0
  %11136 = vperm.xlu0 %11135, %v10776
  %v11137 = vpop.permute.xlu0 %11136
  %11138 = vset.pattern.permute.xlu0 0
  %11139 = vperm.xlu0 %11138, %v10807
  %v11140 = vpop.permute.xlu0 %11139
  %11141 = vset.pattern.permute.xlu0 0
  %11142 = vperm.xlu0 %11141, %v10808
  %v11143 = vpop.permute.xlu0 %11142
  %v11144 = vperm.slane %v11134, %v10940
  %v11145 = vperm.slane %v11137, %v10942
  %v11146 = vsel %vm10944, %v11145, %v11144
  %v11147 = vperm.slane %v11140, %v10940
  %v11148 = vperm.slane %v11143, %v10942
  %v11149 = vsel %vm10944, %v11148, %v11147
  %11156 = vset.pattern.permute.xlu0 0
  %11157 = vperm.xlu0 %11156, %v10777
  %v11158 = vpop.permute.xlu0 %11157
  %11159 = vset.pattern.permute.xlu0 0
  %11160 = vperm.xlu0 %11159, %v10778
  %v11161 = vpop.permute.xlu0 %11160
  %11162 = vset.pattern.permute.xlu0 0
  %11163 = vperm.xlu0 %11162, %v10809
  %v11164 = vpop.permute.xlu0 %11163
  %11165 = vset.pattern.permute.xlu0 0
  %11166 = vperm.xlu0 %11165, %v10810
  %v11167 = vpop.permute.xlu0 %11166
  %v11168 = vperm.slane %v11158, %v10967
  %v11169 = vperm.slane %v11161, %v10969
  %v11170 = vsel %vm10971, %v11169, %v11168
  %v11171 = vperm.slane %v11164, %v10967
  %v11172 = vperm.slane %v11167, %v10969
  %v11173 = vsel %vm10971, %v11172, %v11171
  %11180 = vset.pattern.permute.xlu0 0
  %11181 = vperm.xlu0 %11180, %v10779
  %v11182 = vpop.permute.xlu0 %11181
  %11183 = vset.pattern.permute.xlu0 0
  %11184 = vperm.xlu0 %11183, %v10780
  %v11185 = vpop.permute.xlu0 %11184
  %11186 = vset.pattern.permute.xlu0 0
  %11187 = vperm.xlu0 %11186, %v10811
  %v11188 = vpop.permute.xlu0 %11187
  %11189 = vset.pattern.permute.xlu0 0
  %11190 = vperm.xlu0 %11189, %v10812
  %v11191 = vpop.permute.xlu0 %11190
  %v11192 = vperm.slane %v11182, %v10994
  %v11193 = vperm.slane %v11185, %v10996
  %v11194 = vsel %vm10998, %v11193, %v11192
  %v11195 = vperm.slane %v11188, %v10994
  %v11196 = vperm.slane %v11191, %v10996
  %v11197 = vsel %vm10998, %v11196, %v11195
  %11204 = vset.pattern.permute.xlu0 0
  %11205 = vperm.xlu0 %11204, %v10781
  %v11206 = vpop.permute.xlu0 %11205
  %11207 = vset.pattern.permute.xlu0 0
  %11208 = vperm.xlu0 %11207, %v10782
  %v11209 = vpop.permute.xlu0 %11208
  %11210 = vset.pattern.permute.xlu0 0
  %11211 = vperm.xlu0 %11210, %v10813
  %v11212 = vpop.permute.xlu0 %11211
  %11213 = vset.pattern.permute.xlu0 0
  %11214 = vperm.xlu0 %11213, %v10814
  %v11215 = vpop.permute.xlu0 %11214
  %v11216 = vperm.slane %v11206, %v11021
  %v11217 = vperm.slane %v11209, %v11023
  %v11218 = vsel %vm11025, %v11217, %v11216
  %v11219 = vperm.slane %v11212, %v11021
  %v11220 = vperm.slane %v11215, %v11023
  %v11221 = vsel %vm11025, %v11220, %v11219
  %v11224 = vsel %vm481, %v10837, %v10864
  %v11225 = vsel %vm481, %v10840, %v10867
  %v11226 = vsel %vm517, %v11224, %v10891
  %v11227 = vsel %vm517, %v11225, %v10894
  %vm11228 = vcmask 392192
  %v11229 = vsel %vm11228, %v11226, %v10918
  %v11230 = vsel %vm11228, %v11227, %v10921
  %v11231 = vsel %vm86, %v11229, %v10945
  %v11232 = vsel %vm86, %v11230, %v10948
  %vm11233 = vcmask 654336
  %v11234 = vsel %vm11233, %v11231, %v10972
  %v11235 = vsel %vm11233, %v11232, %v10975
  %v11236 = vsel %vm4424, %v11234, %v10999
  %v11237 = vsel %vm4424, %v11235, %v11002
  %vm11238 = vcmask 916480
  %v11239 = vsel %vm11238, %v11236, %v11026
  %v11240 = vsel %vm11238, %v11237, %v11029
  %v11241 = vsel %vm481, %v11050, %v11074
  %v11242 = vsel %vm481, %v11053, %v11077
  %v11243 = vsel %vm517, %v11241, %v11098
  %v11244 = vsel %vm517, %v11242, %v11101
  %v11245 = vsel %vm11228, %v11243, %v11122
  %v11246 = vsel %vm11228, %v11244, %v11125
  %v11247 = vsel %vm86, %v11245, %v11146
  %v11248 = vsel %vm86, %v11246, %v11149
  %v11249 = vsel %vm11233, %v11247, %v11170
  %v11250 = vsel %vm11233, %v11248, %v11173
  %v11251 = vsel %vm4424, %v11249, %v11194
  %v11252 = vsel %vm4424, %v11250, %v11197
  %v11253 = vsel %vm11238, %v11251, %v11218
  %v11254 = vsel %vm11238, %v11252, %v11221
  %v11259 = vrot.slane %v11253, 6
  %v11260 = vrot.slane %v11254, 6
  %vm11261 = vcmask 1041408
  %v11262 = vsel %vm11261, %v11239, %v11259
  %v11263 = vsel %vm11261, %v11240, %v11260
  %vm11264 = vcmask 1044484
  %v11265 = vsel %vm11264, %v11262, %v11262
  %vm11266 = vcmask 1046534
  %v11267 = vsel %vm11266, %v11262, %v11265
  %v11268 = vrot.slane %v11263, 7
  %vm11269 = vcmask 1041409
  %v11270 = vsel %vm11269, %v11268, %v11267
  %vm11271 = vcmask 1043459
  %v11272 = vsel %vm11271, %v11268, %v11270
  %vm11273 = vcmask 1045509
  %v11274 = vsel %vm11273, %v11268, %v11272
  %vm11275 = vcmask 1047559
  %v11276 = vsel %vm11275, %v11268, %v11274
  %11278 = vst [vmem:[%s21] sm:$0xf] %v11276
  // Predicated region
  $region86: #{tan_forward.1} parent=0 // pred_check
    _
  $region87: #{tan_forward.1} parent=0 // pred_check_branch
    %11280 = sbr.rel (0) target = $region89
  $region88: #{tan_forward.1} parent=0 // pred_region
    _
  $region89: #{tan_forward.1} parent=0 // pred_fallthru
    _
  // Predicated region
  $region90: #{tan_forward.1} parent=0 // pred_check
    _
  $region91: #{tan_forward.1} parent=0 // pred_check_branch
    %11282 = sbr.rel (0) target = $region93
  $region92: #{tan_forward.1} parent=0 // pred_region
    _
  $region93: #{tan_forward.1} parent=0 // pred_fallthru
    _

</llo_original>
